<compile_context>
chip_gen: v6e
topology: v6e:2x2x1
jax: 0.10.0
libtpu: 0.0.40
codegen_flags: <defaults>
</compile_context>

<pallas_src>
import math

import jax
import jax.numpy as jnp
import numpy as np
from jax.experimental import pallas as pl
from jax.experimental.pallas import tpu as pltpu

# --- model hyper-parameters (match TransAm.__init__ defaults) ---------------
D = 250            # feature_size (d_model)
H = 10             # nhead
HD = D // H        # per-head dim = 25
FF = 2048          # dim_feedforward (nn.TransformerEncoderLayer default)
EPS = 1e-5         # LayerNorm eps (PyTorch default)


def _layernorm(x, g, b):
    mu = jnp.mean(x, axis=-1, keepdims=True)
    var = jnp.mean((x - mu) ** 2, axis=-1, keepdims=True)
    return (x - mu) * jax.lax.rsqrt(var + EPS) * g + b


def transam_kernel(x_ref, pe_ref, mask_ref,
                   wqT_ref, bq_ref, wkT_ref, bk_ref, wvT_ref, bv_ref,
                   woT_ref, bo_ref, g1_ref, be1_ref,
                   w1T_ref, b1_ref, w2T_ref, b2_ref, g2_ref, be2_ref,
                   wd_ref, bd_ref, o_ref):
    BT, S, _ = x_ref.shape
    M = BT * S
    scale = 1.0 / math.sqrt(HD)

    # ---- positional encoding (residual path stays f32) ----
    x = x_ref[...].astype(jnp.float32) + pe_ref[...][None, :, :]     # (BT,S,D)
    x2 = x.reshape(M, D)
    xb = x2.astype(jnp.bfloat16)

    # ---- fused full-width Q/K/V projections (bf16 MXU, f32 accumulate) ----
    q = jnp.dot(xb, wqT_ref[...], preferred_element_type=jnp.float32) + bq_ref[...]
    k = jnp.dot(xb, wkT_ref[...], preferred_element_type=jnp.float32) + bk_ref[...]
    v = jnp.dot(xb, wvT_ref[...], preferred_element_type=jnp.float32) + bv_ref[...]
    q3 = q.reshape(BT, S, D)
    k3 = k.reshape(BT, S, D)
    v3 = v.reshape(BT, S, D)
    mask = mask_ref[...][None, :, :]                                  # (1,S,S)

    # ---- per-head causal attention (tiny; heads statically unrolled) ----
    ctx_heads = []
    for h in range(H):
        sl = slice(h * HD, (h + 1) * HD)
        qh = q3[:, :, sl].astype(jnp.bfloat16)
        kh = k3[:, :, sl].astype(jnp.bfloat16)
        vh = v3[:, :, sl].astype(jnp.bfloat16)
        s = jnp.einsum('bqd,bkd->bqk', qh, kh,
                       preferred_element_type=jnp.float32) * scale + mask
        s = s - jnp.max(s, axis=-1, keepdims=True)
        p = jnp.exp(s)
        p = p * pl.reciprocal(jnp.sum(p, axis=-1, keepdims=True), approx=True)
        ctx_heads.append(
            jnp.einsum('bqk,bkd->bqd', p.astype(jnp.bfloat16), vh,
                       preferred_element_type=jnp.float32))
    ctx = jnp.concatenate(ctx_heads, axis=-1).reshape(M, D)

    # ---- single full-width output projection ----
    attn = jnp.dot(ctx.astype(jnp.bfloat16), woT_ref[...],
                   preferred_element_type=jnp.float32) + bo_ref[...]

    # ---- residual + LayerNorm 1 ----
    y = _layernorm(x2 + attn, g1_ref[...], be1_ref[...])

    # ---- feed-forward (ReLU) ----
    hid = jnp.dot(y.astype(jnp.bfloat16), w1T_ref[...],
                  preferred_element_type=jnp.float32) + b1_ref[...]   # (M, FF)
    hid = jnp.maximum(hid, 0.0)
    f = jnp.dot(hid.astype(jnp.bfloat16), w2T_ref[...],
                preferred_element_type=jnp.float32) + b2_ref[...]     # (M, D)

    # ---- residual + LayerNorm 2 ----
    z = _layernorm(y + f, g2_ref[...], be2_ref[...])

    # ---- decoder Linear(D -> 1) as VPU/XLU lane reduction ----
    z3 = z.reshape(BT, S, D)
    out = jnp.sum(z3 * wd_ref[...][None, :, :], axis=-1) + bd_ref[...]  # (BT,S)
    o_ref[0] = out.astype(o_ref.dtype)


def positional_encoding(seq_len):
    position = jnp.arange(seq_len, dtype=jnp.float32)[:, None]
    div_term = jnp.exp(jnp.arange(0, D, 2, dtype=jnp.float32)
                       * (-math.log(10000.0) / D))
    pe = jnp.zeros((seq_len, D), jnp.float32)
    pe = pe.at[:, 0::2].set(jnp.sin(position * div_term))
    pe = pe.at[:, 1::2].set(jnp.cos(position * div_term))
    return pe


def causal_mask(seq_len):
    allowed = jnp.tril(jnp.ones((seq_len, seq_len), jnp.float32)) == 1.0
    return jnp.where(allowed, 0.0, -jnp.inf).astype(jnp.float32)


def init_params(key):
    ks = jax.random.split(key, 8)

    def nrm(k, shape, scale=0.05):
        return (scale * jax.random.normal(k, shape)).astype(jnp.float32)

    wq = nrm(ks[0], (D, D))
    wk = nrm(ks[1], (D, D))
    wv = nrm(ks[2], (D, D))
    kb = jax.random.split(ks[3], 3)
    bq = nrm(kb[0], (D,), 0.02)
    bk = nrm(kb[1], (D,), 0.02)
    bv = nrm(kb[2], (D,), 0.02)

    wo = nrm(ks[4], (D, D))
    bo = jnp.zeros((D,), jnp.float32)

    g1 = jnp.ones((D,), jnp.float32)
    be1 = jnp.zeros((D,), jnp.float32)
    g2 = jnp.ones((D,), jnp.float32)
    be2 = jnp.zeros((D,), jnp.float32)

    w1 = nrm(ks[5], (FF, D), 0.03)
    b1 = jnp.zeros((FF,), jnp.float32)
    w2 = nrm(ks[6], (D, FF), 0.03)
    b2 = jnp.zeros((D,), jnp.float32)

    # decoder Linear(D, 1): init_weights -> uniform(-0.1, 0.1), bias zero
    wd = jax.random.uniform(ks[7], (1, D), jnp.float32, -0.1, 0.1)
    bd = jnp.zeros((1,), jnp.float32)

    return dict(wq=wq, bq=bq, wk=wk, bk=bk, wv=wv, bv=bv, wo=wo, bo=bo,
                g1=g1, be1=be1, w1=w1, b1=b1, w2=w2, b2=b2, g2=g2, be2=be2,
                wd=wd, bd=bd)


def _pick_batch_tile(B, S, target_rows):
    """Largest divisor BT of B with BT*S <= target_rows (at least 1)."""
    cap = max(1, target_rows // S)
    bt = 1
    for d in range(1, B + 1):
        if B % d == 0 and d <= cap:
            bt = d
    return bt


def transam_forward(src, params, target_rows=256):
    """src: (S, B, D) float32  ->  (S, B, 1) float32 (PyTorch convention)."""
    S, B, _ = src.shape
    BT = _pick_batch_tile(B, S, target_rows)
    NB = B // BT

    x = jnp.transpose(src, (1, 0, 2))          # (B, S, D)
    pe = positional_encoding(S)
    mask = causal_mask(S)

    bf = lambda a: a.astype(jnp.bfloat16)
    r2 = lambda a: a.reshape(1, -1).astype(jnp.float32)

    args = (x, pe, mask,
            bf(params["wq"].T), r2(params["bq"]),
            bf(params["wk"].T), r2(params["bk"]),
            bf(params["wv"].T), r2(params["bv"]),
            bf(params["wo"].T), r2(params["bo"]),
            r2(params["g1"]), r2(params["be1"]),
            bf(params["w1"].T), r2(params["b1"]),
            bf(params["w2"].T), r2(params["b2"]),
            r2(params["g2"]), r2(params["be2"]),
            params["wd"].reshape(1, D), params["bd"].reshape(1, 1))

    def _const_spec(a):
        zeros = (0,) * a.ndim
        return pl.BlockSpec(a.shape, lambda b, z=zeros: z)

    in_specs = [pl.BlockSpec((BT, S, D), lambda b: (b, 0, 0))]
    in_specs += [_const_spec(a) for a in args[1:]]

    out = pl.pallas_call(
        transam_kernel,
        out_shape=jax.ShapeDtypeStruct((NB, BT, S), jnp.float32),
        grid=(NB,),
        in_specs=in_specs,
        out_specs=pl.BlockSpec((1, BT, S), lambda b: (b, 0, 0)),
        compiler_params=pltpu.CompilerParams(
            dimension_semantics=("parallel",),
            vmem_limit_bytes=32 << 20),
    )(*args)

    out = out.reshape(B, S)                    # (B, S)
    return jnp.transpose(out, (1, 0))[..., None]   # (S, B, 1)


def transam_reference(src, params):
    """Pure-JAX reference (f32 math). Weights are rounded through bf16 so the
    check isolates kernel correctness rather than bf16 weight quantization."""
    S, B, _ = src.shape
    pe = positional_encoding(S)
    mask = causal_mask(S)

    def q_(w):  # match the kernel's bf16 weight precision
        return w.astype(jnp.bfloat16).astype(jnp.float32)

    wq, wk, wv = q_(params["wq"]), q_(params["wk"]), q_(params["wv"])
    wo, w1, w2 = q_(params["wo"]), q_(params["w1"]), q_(params["w2"])

    def ln(t, g, bb):
        mu = jnp.mean(t, -1, keepdims=True)
        var = jnp.mean((t - mu) ** 2, -1, keepdims=True)
        return (t - mu) / jnp.sqrt(var + EPS) * g + bb

    outs = []
    for b in range(B):
        x = src[:, b, :] + pe
        q = x @ wq.T + params["bq"]
        k = x @ wk.T + params["bk"]
        v = x @ wv.T + params["bv"]
        heads = []
        for h in range(H):
            sl = slice(h * HD, (h + 1) * HD)
            s = (q[:, sl] @ k[:, sl].T) / math.sqrt(HD) + mask
            p = jax.nn.softmax(s, axis=-1)
            heads.append(p @ v[:, sl])
        ctx = jnp.concatenate(heads, axis=-1)
        attn = ctx @ wo.T + params["bo"]

        y = ln(x + attn, params["g1"], params["be1"])
        f = jnp.maximum(y @ w1.T + params["b1"], 0.0) @ w2.T + params["b2"]
        z = ln(y + f, params["g2"], params["be2"])
        outs.append(z @ params["wd"].T + params["bd"])        # (S, 1)
    return jnp.stack(outs, axis=1)                            # (S, B, 1)


if __name__ == "__main__":
    S, B = 8, 4                                  # small seq / batch
    key = jax.random.PRNGKey(0)
    k_src, k_par = jax.random.split(key)
    src = jax.random.normal(k_src, (S, B, D), jnp.float32)
    params = init_params(k_par)

    # target_rows=16 -> BT=2, grid of 2 steps (exercises batch tiling and both
    # TensorCores on v7x).  Real workloads use the default target_rows=256.
    out = transam_forward(src, params, target_rows=16)
    out = jax.block_until_ready(out)

    ref = jax.block_until_ready(transam_reference(src, params))
    assert out.shape == (S, B, 1)
    np.testing.assert_allclose(np.asarray(out), np.asarray(ref),
                               rtol=2e-2, atol=2e-2)
    print("KERNEL_OK")
</pallas_src>

<mosaic_0001>
module attributes {stable_mosaic.version = 11 : i64} {
  func.func @transam_kernel(%arg0: i32, %arg1: memref<2x8x250xf32, #tpu.memory_space<vmem>>, %arg2: memref<8x250xf32, #tpu.memory_space<vmem>>, %arg3: memref<8x8xf32, #tpu.memory_space<vmem>>, %arg4: memref<250x250xbf16, #tpu.memory_space<vmem>>, %arg5: memref<1x250xf32, #tpu.memory_space<vmem>>, %arg6: memref<250x250xbf16, #tpu.memory_space<vmem>>, %arg7: memref<1x250xf32, #tpu.memory_space<vmem>>, %arg8: memref<250x250xbf16, #tpu.memory_space<vmem>>, %arg9: memref<1x250xf32, #tpu.memory_space<vmem>>, %arg10: memref<250x250xbf16, #tpu.memory_space<vmem>>, %arg11: memref<1x250xf32, #tpu.memory_space<vmem>>, %arg12: memref<1x250xf32, #tpu.memory_space<vmem>>, %arg13: memref<1x250xf32, #tpu.memory_space<vmem>>, %arg14: memref<250x2048xbf16, #tpu.memory_space<vmem>>, %arg15: memref<1x2048xf32, #tpu.memory_space<vmem>>, %arg16: memref<2048x250xbf16, #tpu.memory_space<vmem>>, %arg17: memref<1x250xf32, #tpu.memory_space<vmem>>, %arg18: memref<1x250xf32, #tpu.memory_space<vmem>>, %arg19: memref<1x250xf32, #tpu.memory_space<vmem>>, %arg20: memref<1x250xf32, #tpu.memory_space<vmem>>, %arg21: memref<1x1xf32, #tpu.memory_space<vmem>>, %arg22: memref<1x2x8xf32, #tpu.memory_space<vmem>>) attributes {dimension_semantics = [#tpu.dimension_semantics<parallel>], iteration_bounds = array<i64: 2>, scalar_prefetch = 0 : i64, scratch_operands = 0 : i64, tpu.core_type = #tpu.core_type<tc>, window_params = [{transform_indices = @transform_0, window_bounds = array<i64: 2, 8, 250>}, {pipeline_mode = #tpu.pipeline_mode<synchronous>, transform_indices = @transform_1, window_bounds = array<i64: 8, 250>}, {pipeline_mode = #tpu.pipeline_mode<synchronous>, transform_indices = @transform_2, window_bounds = array<i64: 8, 8>}, {pipeline_mode = #tpu.pipeline_mode<synchronous>, transform_indices = @transform_3, window_bounds = array<i64: 250, 250>}, {pipeline_mode = #tpu.pipeline_mode<synchronous>, transform_indices = @transform_4, window_bounds = array<i64: 1, 250>}, {pipeline_mode = #tpu.pipeline_mode<synchronous>, transform_indices = @transform_5, window_bounds = array<i64: 250, 250>}, {pipeline_mode = #tpu.pipeline_mode<synchronous>, transform_indices = @transform_6, window_bounds = array<i64: 1, 250>}, {pipeline_mode = #tpu.pipeline_mode<synchronous>, transform_indices = @transform_7, window_bounds = array<i64: 250, 250>}, {pipeline_mode = #tpu.pipeline_mode<synchronous>, transform_indices = @transform_8, window_bounds = array<i64: 1, 250>}, {pipeline_mode = #tpu.pipeline_mode<synchronous>, transform_indices = @transform_9, window_bounds = array<i64: 250, 250>}, {pipeline_mode = #tpu.pipeline_mode<synchronous>, transform_indices = @transform_10, window_bounds = array<i64: 1, 250>}, {pipeline_mode = #tpu.pipeline_mode<synchronous>, transform_indices = @transform_11, window_bounds = array<i64: 1, 250>}, {pipeline_mode = #tpu.pipeline_mode<synchronous>, transform_indices = @transform_12, window_bounds = array<i64: 1, 250>}, {pipeline_mode = #tpu.pipeline_mode<synchronous>, transform_indices = @transform_13, window_bounds = array<i64: 250, 2048>}, {pipeline_mode = #tpu.pipeline_mode<synchronous>, transform_indices = @transform_14, window_bounds = array<i64: 1, 2048>}, {pipeline_mode = #tpu.pipeline_mode<synchronous>, transform_indices = @transform_15, window_bounds = array<i64: 2048, 250>}, {pipeline_mode = #tpu.pipeline_mode<synchronous>, transform_indices = @transform_16, window_bounds = array<i64: 1, 250>}, {pipeline_mode = #tpu.pipeline_mode<synchronous>, transform_indices = @transform_17, window_bounds = array<i64: 1, 250>}, {pipeline_mode = #tpu.pipeline_mode<synchronous>, transform_indices = @transform_18, window_bounds = array<i64: 1, 250>}, {pipeline_mode = #tpu.pipeline_mode<synchronous>, transform_indices = @transform_19, window_bounds = array<i64: 1, 250>}, {pipeline_mode = #tpu.pipeline_mode<synchronous>, transform_indices = @transform_20, window_bounds = array<i64: 1, 1>}, {transform_indices = @transform_21, window_bounds = array<i64: 1, 2, 8>}]} {
    %c0 = arith.constant 0 : index
    %c0_0 = arith.constant 0 : index
    %c0_1 = arith.constant 0 : index
    %0 = vector.load %arg1[%c0, %c0_0, %c0_1] : memref<2x8x250xf32, #tpu.memory_space<vmem>>, vector<2x8x250xf32>
    %c0_2 = arith.constant 0 : index
    %c0_3 = arith.constant 0 : index
    %1 = vector.load %arg2[%c0_2, %c0_3] : memref<8x250xf32, #tpu.memory_space<vmem>>, vector<8x250xf32>
    %2 = vector.shape_cast %1 : vector<8x250xf32> to vector<1x8x250xf32>
    %3 = vector.broadcast %2 : vector<1x8x250xf32> to vector<2x8x250xf32>
    %4 = arith.addf %0, %3 : vector<2x8x250xf32>
    %5 = vector.shape_cast %4 : vector<2x8x250xf32> to vector<16x250xf32>
    %6 = arith.truncf %5 : vector<16x250xf32> to vector<16x250xbf16>
    %c0_4 = arith.constant 0 : index
    %c0_5 = arith.constant 0 : index
    %7 = vector.load %arg4[%c0_4, %c0_5] : memref<250x250xbf16, #tpu.memory_space<vmem>>, vector<250x250xbf16>
    %cst = arith.constant dense<0.000000e+00> : vector<16x250xf32>
    %8 = tpu.matmul %6, %7, %cst {dimension_numbers = #tpu.dot_dimension_numbers<[1], [0], [0], [1], [0, 0, 1, 1], [], []>} : vector<16x250xbf16>, vector<250x250xbf16>, vector<16x250xf32> -> vector<16x250xf32>
    %c0_6 = arith.constant 0 : index
    %c0_7 = arith.constant 0 : index
    %9 = vector.load %arg5[%c0_6, %c0_7] : memref<1x250xf32, #tpu.memory_space<vmem>>, vector<1x250xf32>
    %10 = vector.broadcast %9 : vector<1x250xf32> to vector<16x250xf32>
    %11 = arith.addf %8, %10 : vector<16x250xf32>
    %c0_8 = arith.constant 0 : index
    %c0_9 = arith.constant 0 : index
    %12 = vector.load %arg6[%c0_8, %c0_9] : memref<250x250xbf16, #tpu.memory_space<vmem>>, vector<250x250xbf16>
    %cst_10 = arith.constant dense<0.000000e+00> : vector<16x250xf32>
    %13 = tpu.matmul %6, %12, %cst_10 {dimension_numbers = #tpu.dot_dimension_numbers<[1], [0], [0], [1], [0, 0, 1, 1], [], []>} : vector<16x250xbf16>, vector<250x250xbf16>, vector<16x250xf32> -> vector<16x250xf32>
    %c0_11 = arith.constant 0 : index
    %c0_12 = arith.constant 0 : index
    %14 = vector.load %arg7[%c0_11, %c0_12] : memref<1x250xf32, #tpu.memory_space<vmem>>, vector<1x250xf32>
    %15 = vector.broadcast %14 : vector<1x250xf32> to vector<16x250xf32>
    %16 = arith.addf %13, %15 : vector<16x250xf32>
    %c0_13 = arith.constant 0 : index
    %c0_14 = arith.constant 0 : index
    %17 = vector.load %arg8[%c0_13, %c0_14] : memref<250x250xbf16, #tpu.memory_space<vmem>>, vector<250x250xbf16>
    %cst_15 = arith.constant dense<0.000000e+00> : vector<16x250xf32>
    %18 = tpu.matmul %6, %17, %cst_15 {dimension_numbers = #tpu.dot_dimension_numbers<[1], [0], [0], [1], [0, 0, 1, 1], [], []>} : vector<16x250xbf16>, vector<250x250xbf16>, vector<16x250xf32> -> vector<16x250xf32>
    %c0_16 = arith.constant 0 : index
    %c0_17 = arith.constant 0 : index
    %19 = vector.load %arg9[%c0_16, %c0_17] : memref<1x250xf32, #tpu.memory_space<vmem>>, vector<1x250xf32>
    %20 = vector.broadcast %19 : vector<1x250xf32> to vector<16x250xf32>
    %21 = arith.addf %18, %20 : vector<16x250xf32>
    %22 = vector.shape_cast %11 : vector<16x250xf32> to vector<2x8x250xf32>
    %23 = vector.shape_cast %16 : vector<16x250xf32> to vector<2x8x250xf32>
    %24 = vector.shape_cast %21 : vector<16x250xf32> to vector<2x8x250xf32>
    %c0_18 = arith.constant 0 : index
    %c0_19 = arith.constant 0 : index
    %25 = vector.load %arg3[%c0_18, %c0_19] : memref<8x8xf32, #tpu.memory_space<vmem>>, vector<8x8xf32>
    %26 = vector.shape_cast %25 : vector<8x8xf32> to vector<1x8x8xf32>
    %27 = vector.extract_strided_slice %22 {offsets = [0, 0, 0], sizes = [2, 8, 25], strides = [1, 1, 1]} : vector<2x8x250xf32> to vector<2x8x25xf32>
    %28 = arith.truncf %27 : vector<2x8x25xf32> to vector<2x8x25xbf16>
    %29 = vector.extract_strided_slice %23 {offsets = [0, 0, 0], sizes = [2, 8, 25], strides = [1, 1, 1]} : vector<2x8x250xf32> to vector<2x8x25xf32>
    %30 = arith.truncf %29 : vector<2x8x25xf32> to vector<2x8x25xbf16>
    %31 = vector.extract_strided_slice %24 {offsets = [0, 0, 0], sizes = [2, 8, 25], strides = [1, 1, 1]} : vector<2x8x250xf32> to vector<2x8x25xf32>
    %32 = arith.truncf %31 : vector<2x8x25xf32> to vector<2x8x25xbf16>
    "tpu.trace_start"() <{level = 10 : i32, message = "bqd,bkd->bqk"}> : () -> ()
    %cst_20 = arith.constant dense<0.000000e+00> : vector<2x8x8xf32>
    %33 = tpu.matmul %28, %30, %cst_20 {dimension_numbers = #tpu.dot_dimension_numbers<[2], [2], [1], [1], [0, 0, 0, 1, 1, 1], [0], [0]>} : vector<2x8x25xbf16>, vector<2x8x25xbf16>, vector<2x8x8xf32> -> vector<2x8x8xf32>
    "tpu.trace_stop"() : () -> ()
    %cst_21 = arith.constant 2.000000e-01 : f32
    %34 = vector.broadcast %cst_21 : f32 to vector<2x8x8xf32>
    %35 = arith.mulf %33, %34 : vector<2x8x8xf32>
    %36 = vector.broadcast %26 : vector<1x8x8xf32> to vector<2x8x8xf32>
    %37 = arith.addf %35, %36 : vector<2x8x8xf32>
    %cst_22 = arith.constant dense<0xFF800000> : vector<2x8xf32>
    %38 = vector.multi_reduction <maximumf>, %37, %cst_22 [2] : vector<2x8x8xf32> to vector<2x8xf32>
    %39 = vector.shape_cast %38 : vector<2x8xf32> to vector<2x8x1xf32>
    %40 = vector.broadcast %39 : vector<2x8x1xf32> to vector<2x8x8xf32>
    %41 = arith.subf %37, %40 : vector<2x8x8xf32>
    %42 = math.exp %41 : vector<2x8x8xf32>
    %cst_23 = arith.constant dense<0.000000e+00> : vector<2x8xf32>
    %43 = vector.multi_reduction <add>, %42, %cst_23 [2] : vector<2x8x8xf32> to vector<2x8xf32>
    %44 = vector.shape_cast %43 : vector<2x8xf32> to vector<2x8x1xf32>
    %45 = tpu.reciprocal %44 {approx = true} : vector<2x8x1xf32> -> vector<2x8x1xf32>
    %46 = vector.broadcast %45 : vector<2x8x1xf32> to vector<2x8x8xf32>
    %47 = arith.mulf %42, %46 : vector<2x8x8xf32>
    %48 = arith.truncf %47 : vector<2x8x8xf32> to vector<2x8x8xbf16>
    "tpu.trace_start"() <{level = 10 : i32, message = "bqk,bkd->bqd"}> : () -> ()
    %cst_24 = arith.constant dense<0.000000e+00> : vector<2x8x25xf32>
    %49 = tpu.matmul %48, %32, %cst_24 {dimension_numbers = #tpu.dot_dimension_numbers<[2], [1], [1], [2], [0, 0, 0, 1, 1, 2], [0], [0]>} : vector<2x8x8xbf16>, vector<2x8x25xbf16>, vector<2x8x25xf32> -> vector<2x8x25xf32>
    "tpu.trace_stop"() : () -> ()
    %50 = vector.extract_strided_slice %22 {offsets = [0, 0, 25], sizes = [2, 8, 25], strides = [1, 1, 1]} : vector<2x8x250xf32> to vector<2x8x25xf32>
    %51 = arith.truncf %50 : vector<2x8x25xf32> to vector<2x8x25xbf16>
    %52 = vector.extract_strided_slice %23 {offsets = [0, 0, 25], sizes = [2, 8, 25], strides = [1, 1, 1]} : vector<2x8x250xf32> to vector<2x8x25xf32>
    %53 = arith.truncf %52 : vector<2x8x25xf32> to vector<2x8x25xbf16>
    %54 = vector.extract_strided_slice %24 {offsets = [0, 0, 25], sizes = [2, 8, 25], strides = [1, 1, 1]} : vector<2x8x250xf32> to vector<2x8x25xf32>
    %55 = arith.truncf %54 : vector<2x8x25xf32> to vector<2x8x25xbf16>
    "tpu.trace_start"() <{level = 10 : i32, message = "bqd,bkd->bqk"}> : () -> ()
    %cst_25 = arith.constant dense<0.000000e+00> : vector<2x8x8xf32>
    %56 = tpu.matmul %51, %53, %cst_25 {dimension_numbers = #tpu.dot_dimension_numbers<[2], [2], [1], [1], [0, 0, 0, 1, 1, 1], [0], [0]>} : vector<2x8x25xbf16>, vector<2x8x25xbf16>, vector<2x8x8xf32> -> vector<2x8x8xf32>
    "tpu.trace_stop"() : () -> ()
    %cst_26 = arith.constant 2.000000e-01 : f32
    %57 = vector.broadcast %cst_26 : f32 to vector<2x8x8xf32>
    %58 = arith.mulf %56, %57 : vector<2x8x8xf32>
    %59 = vector.broadcast %26 : vector<1x8x8xf32> to vector<2x8x8xf32>
    %60 = arith.addf %58, %59 : vector<2x8x8xf32>
    %cst_27 = arith.constant dense<0xFF800000> : vector<2x8xf32>
    %61 = vector.multi_reduction <maximumf>, %60, %cst_27 [2] : vector<2x8x8xf32> to vector<2x8xf32>
    %62 = vector.shape_cast %61 : vector<2x8xf32> to vector<2x8x1xf32>
    %63 = vector.broadcast %62 : vector<2x8x1xf32> to vector<2x8x8xf32>
    %64 = arith.subf %60, %63 : vector<2x8x8xf32>
    %65 = math.exp %64 : vector<2x8x8xf32>
    %cst_28 = arith.constant dense<0.000000e+00> : vector<2x8xf32>
    %66 = vector.multi_reduction <add>, %65, %cst_28 [2] : vector<2x8x8xf32> to vector<2x8xf32>
    %67 = vector.shape_cast %66 : vector<2x8xf32> to vector<2x8x1xf32>
    %68 = tpu.reciprocal %67 {approx = true} : vector<2x8x1xf32> -> vector<2x8x1xf32>
    %69 = vector.broadcast %68 : vector<2x8x1xf32> to vector<2x8x8xf32>
    %70 = arith.mulf %65, %69 : vector<2x8x8xf32>
    %71 = arith.truncf %70 : vector<2x8x8xf32> to vector<2x8x8xbf16>
    "tpu.trace_start"() <{level = 10 : i32, message = "bqk,bkd->bqd"}> : () -> ()
    %cst_29 = arith.constant dense<0.000000e+00> : vector<2x8x25xf32>
    %72 = tpu.matmul %71, %55, %cst_29 {dimension_numbers = #tpu.dot_dimension_numbers<[2], [1], [1], [2], [0, 0, 0, 1, 1, 2], [0], [0]>} : vector<2x8x8xbf16>, vector<2x8x25xbf16>, vector<2x8x25xf32> -> vector<2x8x25xf32>
    "tpu.trace_stop"() : () -> ()
    %73 = vector.extract_strided_slice %22 {offsets = [0, 0, 50], sizes = [2, 8, 25], strides = [1, 1, 1]} : vector<2x8x250xf32> to vector<2x8x25xf32>
    %74 = arith.truncf %73 : vector<2x8x25xf32> to vector<2x8x25xbf16>
    %75 = vector.extract_strided_slice %23 {offsets = [0, 0, 50], sizes = [2, 8, 25], strides = [1, 1, 1]} : vector<2x8x250xf32> to vector<2x8x25xf32>
    %76 = arith.truncf %75 : vector<2x8x25xf32> to vector<2x8x25xbf16>
    %77 = vector.extract_strided_slice %24 {offsets = [0, 0, 50], sizes = [2, 8, 25], strides = [1, 1, 1]} : vector<2x8x250xf32> to vector<2x8x25xf32>
    %78 = arith.truncf %77 : vector<2x8x25xf32> to vector<2x8x25xbf16>
    "tpu.trace_start"() <{level = 10 : i32, message = "bqd,bkd->bqk"}> : () -> ()
    %cst_30 = arith.constant dense<0.000000e+00> : vector<2x8x8xf32>
    %79 = tpu.matmul %74, %76, %cst_30 {dimension_numbers = #tpu.dot_dimension_numbers<[2], [2], [1], [1], [0, 0, 0, 1, 1, 1], [0], [0]>} : vector<2x8x25xbf16>, vector<2x8x25xbf16>, vector<2x8x8xf32> -> vector<2x8x8xf32>
    "tpu.trace_stop"() : () -> ()
    %cst_31 = arith.constant 2.000000e-01 : f32
    %80 = vector.broadcast %cst_31 : f32 to vector<2x8x8xf32>
    %81 = arith.mulf %79, %80 : vector<2x8x8xf32>
    %82 = vector.broadcast %26 : vector<1x8x8xf32> to vector<2x8x8xf32>
    %83 = arith.addf %81, %82 : vector<2x8x8xf32>
    %cst_32 = arith.constant dense<0xFF800000> : vector<2x8xf32>
    %84 = vector.multi_reduction <maximumf>, %83, %cst_32 [2] : vector<2x8x8xf32> to vector<2x8xf32>
    %85 = vector.shape_cast %84 : vector<2x8xf32> to vector<2x8x1xf32>
    %86 = vector.broadcast %85 : vector<2x8x1xf32> to vector<2x8x8xf32>
    %87 = arith.subf %83, %86 : vector<2x8x8xf32>
    %88 = math.exp %87 : vector<2x8x8xf32>
    %cst_33 = arith.constant dense<0.000000e+00> : vector<2x8xf32>
    %89 = vector.multi_reduction <add>, %88, %cst_33 [2] : vector<2x8x8xf32> to vector<2x8xf32>
    %90 = vector.shape_cast %89 : vector<2x8xf32> to vector<2x8x1xf32>
    %91 = tpu.reciprocal %90 {approx = true} : vector<2x8x1xf32> -> vector<2x8x1xf32>
    %92 = vector.broadcast %91 : vector<2x8x1xf32> to vector<2x8x8xf32>
    %93 = arith.mulf %88, %92 : vector<2x8x8xf32>
    %94 = arith.truncf %93 : vector<2x8x8xf32> to vector<2x8x8xbf16>
    "tpu.trace_start"() <{level = 10 : i32, message = "bqk,bkd->bqd"}> : () -> ()
    %cst_34 = arith.constant dense<0.000000e+00> : vector<2x8x25xf32>
    %95 = tpu.matmul %94, %78, %cst_34 {dimension_numbers = #tpu.dot_dimension_numbers<[2], [1], [1], [2], [0, 0, 0, 1, 1, 2], [0], [0]>} : vector<2x8x8xbf16>, vector<2x8x25xbf16>, vector<2x8x25xf32> -> vector<2x8x25xf32>
    "tpu.trace_stop"() : () -> ()
    %96 = vector.extract_strided_slice %22 {offsets = [0, 0, 75], sizes = [2, 8, 25], strides = [1, 1, 1]} : vector<2x8x250xf32> to vector<2x8x25xf32>
    %97 = arith.truncf %96 : vector<2x8x25xf32> to vector<2x8x25xbf16>
    %98 = vector.extract_strided_slice %23 {offsets = [0, 0, 75], sizes = [2, 8, 25], strides = [1, 1, 1]} : vector<2x8x250xf32> to vector<2x8x25xf32>
    %99 = arith.truncf %98 : vector<2x8x25xf32> to vector<2x8x25xbf16>
    %100 = vector.extract_strided_slice %24 {offsets = [0, 0, 75], sizes = [2, 8, 25], strides = [1, 1, 1]} : vector<2x8x250xf32> to vector<2x8x25xf32>
    %101 = arith.truncf %100 : vector<2x8x25xf32> to vector<2x8x25xbf16>
    "tpu.trace_start"() <{level = 10 : i32, message = "bqd,bkd->bqk"}> : () -> ()
    %cst_35 = arith.constant dense<0.000000e+00> : vector<2x8x8xf32>
    %102 = tpu.matmul %97, %99, %cst_35 {dimension_numbers = #tpu.dot_dimension_numbers<[2], [2], [1], [1], [0, 0, 0, 1, 1, 1], [0], [0]>} : vector<2x8x25xbf16>, vector<2x8x25xbf16>, vector<2x8x8xf32> -> vector<2x8x8xf32>
    "tpu.trace_stop"() : () -> ()
    %cst_36 = arith.constant 2.000000e-01 : f32
    %103 = vector.broadcast %cst_36 : f32 to vector<2x8x8xf32>
    %104 = arith.mulf %102, %103 : vector<2x8x8xf32>
    %105 = vector.broadcast %26 : vector<1x8x8xf32> to vector<2x8x8xf32>
    %106 = arith.addf %104, %105 : vector<2x8x8xf32>
    %cst_37 = arith.constant dense<0xFF800000> : vector<2x8xf32>
    %107 = vector.multi_reduction <maximumf>, %106, %cst_37 [2] : vector<2x8x8xf32> to vector<2x8xf32>
    %108 = vector.shape_cast %107 : vector<2x8xf32> to vector<2x8x1xf32>
    %109 = vector.broadcast %108 : vector<2x8x1xf32> to vector<2x8x8xf32>
    %110 = arith.subf %106, %109 : vector<2x8x8xf32>
    %111 = math.exp %110 : vector<2x8x8xf32>
    %cst_38 = arith.constant dense<0.000000e+00> : vector<2x8xf32>
    %112 = vector.multi_reduction <add>, %111, %cst_38 [2] : vector<2x8x8xf32> to vector<2x8xf32>
    %113 = vector.shape_cast %112 : vector<2x8xf32> to vector<2x8x1xf32>
    %114 = tpu.reciprocal %113 {approx = true} : vector<2x8x1xf32> -> vector<2x8x1xf32>
    %115 = vector.broadcast %114 : vector<2x8x1xf32> to vector<2x8x8xf32>
    %116 = arith.mulf %111, %115 : vector<2x8x8xf32>
    %117 = arith.truncf %116 : vector<2x8x8xf32> to vector<2x8x8xbf16>
    "tpu.trace_start"() <{level = 10 : i32, message = "bqk,bkd->bqd"}> : () -> ()
    %cst_39 = arith.constant dense<0.000000e+00> : vector<2x8x25xf32>
    %118 = tpu.matmul %117, %101, %cst_39 {dimension_numbers = #tpu.dot_dimension_numbers<[2], [1], [1], [2], [0, 0, 0, 1, 1, 2], [0], [0]>} : vector<2x8x8xbf16>, vector<2x8x25xbf16>, vector<2x8x25xf32> -> vector<2x8x25xf32>
    "tpu.trace_stop"() : () -> ()
    %119 = vector.extract_strided_slice %22 {offsets = [0, 0, 100], sizes = [2, 8, 25], strides = [1, 1, 1]} : vector<2x8x250xf32> to vector<2x8x25xf32>
    %120 = arith.truncf %119 : vector<2x8x25xf32> to vector<2x8x25xbf16>
    %121 = vector.extract_strided_slice %23 {offsets = [0, 0, 100], sizes = [2, 8, 25], strides = [1, 1, 1]} : vector<2x8x250xf32> to vector<2x8x25xf32>
    %122 = arith.truncf %121 : vector<2x8x25xf32> to vector<2x8x25xbf16>
    %123 = vector.extract_strided_slice %24 {offsets = [0, 0, 100], sizes = [2, 8, 25], strides = [1, 1, 1]} : vector<2x8x250xf32> to vector<2x8x25xf32>
    %124 = arith.truncf %123 : vector<2x8x25xf32> to vector<2x8x25xbf16>
    "tpu.trace_start"() <{level = 10 : i32, message = "bqd,bkd->bqk"}> : () -> ()
    %cst_40 = arith.constant dense<0.000000e+00> : vector<2x8x8xf32>
    %125 = tpu.matmul %120, %122, %cst_40 {dimension_numbers = #tpu.dot_dimension_numbers<[2], [2], [1], [1], [0, 0, 0, 1, 1, 1], [0], [0]>} : vector<2x8x25xbf16>, vector<2x8x25xbf16>, vector<2x8x8xf32> -> vector<2x8x8xf32>
    "tpu.trace_stop"() : () -> ()
    %cst_41 = arith.constant 2.000000e-01 : f32
    %126 = vector.broadcast %cst_41 : f32 to vector<2x8x8xf32>
    %127 = arith.mulf %125, %126 : vector<2x8x8xf32>
    %128 = vector.broadcast %26 : vector<1x8x8xf32> to vector<2x8x8xf32>
    %129 = arith.addf %127, %128 : vector<2x8x8xf32>
    %cst_42 = arith.constant dense<0xFF800000> : vector<2x8xf32>
    %130 = vector.multi_reduction <maximumf>, %129, %cst_42 [2] : vector<2x8x8xf32> to vector<2x8xf32>
    %131 = vector.shape_cast %130 : vector<2x8xf32> to vector<2x8x1xf32>
    %132 = vector.broadcast %131 : vector<2x8x1xf32> to vector<2x8x8xf32>
    %133 = arith.subf %129, %132 : vector<2x8x8xf32>
    %134 = math.exp %133 : vector<2x8x8xf32>
    %cst_43 = arith.constant dense<0.000000e+00> : vector<2x8xf32>
    %135 = vector.multi_reduction <add>, %134, %cst_43 [2] : vector<2x8x8xf32> to vector<2x8xf32>
    %136 = vector.shape_cast %135 : vector<2x8xf32> to vector<2x8x1xf32>
    %137 = tpu.reciprocal %136 {approx = true} : vector<2x8x1xf32> -> vector<2x8x1xf32>
    %138 = vector.broadcast %137 : vector<2x8x1xf32> to vector<2x8x8xf32>
    %139 = arith.mulf %134, %138 : vector<2x8x8xf32>
    %140 = arith.truncf %139 : vector<2x8x8xf32> to vector<2x8x8xbf16>
    "tpu.trace_start"() <{level = 10 : i32, message = "bqk,bkd->bqd"}> : () -> ()
    %cst_44 = arith.constant dense<0.000000e+00> : vector<2x8x25xf32>
    %141 = tpu.matmul %140, %124, %cst_44 {dimension_numbers = #tpu.dot_dimension_numbers<[2], [1], [1], [2], [0, 0, 0, 1, 1, 2], [0], [0]>} : vector<2x8x8xbf16>, vector<2x8x25xbf16>, vector<2x8x25xf32> -> vector<2x8x25xf32>
    "tpu.trace_stop"() : () -> ()
    %142 = vector.extract_strided_slice %22 {offsets = [0, 0, 125], sizes = [2, 8, 25], strides = [1, 1, 1]} : vector<2x8x250xf32> to vector<2x8x25xf32>
    %143 = arith.truncf %142 : vector<2x8x25xf32> to vector<2x8x25xbf16>
    %144 = vector.extract_strided_slice %23 {offsets = [0, 0, 125], sizes = [2, 8, 25], strides = [1, 1, 1]} : vector<2x8x250xf32> to vector<2x8x25xf32>
    %145 = arith.truncf %144 : vector<2x8x25xf32> to vector<2x8x25xbf16>
    %146 = vector.extract_strided_slice %24 {offsets = [0, 0, 125], sizes = [2, 8, 25], strides = [1, 1, 1]} : vector<2x8x250xf32> to vector<2x8x25xf32>
    %147 = arith.truncf %146 : vector<2x8x25xf32> to vector<2x8x25xbf16>
    "tpu.trace_start"() <{level = 10 : i32, message = "bqd,bkd->bqk"}> : () -> ()
    %cst_45 = arith.constant dense<0.000000e+00> : vector<2x8x8xf32>
    %148 = tpu.matmul %143, %145, %cst_45 {dimension_numbers = #tpu.dot_dimension_numbers<[2], [2], [1], [1], [0, 0, 0, 1, 1, 1], [0], [0]>} : vector<2x8x25xbf16>, vector<2x8x25xbf16>, vector<2x8x8xf32> -> vector<2x8x8xf32>
    "tpu.trace_stop"() : () -> ()
    %cst_46 = arith.constant 2.000000e-01 : f32
    %149 = vector.broadcast %cst_46 : f32 to vector<2x8x8xf32>
    %150 = arith.mulf %148, %149 : vector<2x8x8xf32>
    %151 = vector.broadcast %26 : vector<1x8x8xf32> to vector<2x8x8xf32>
    %152 = arith.addf %150, %151 : vector<2x8x8xf32>
    %cst_47 = arith.constant dense<0xFF800000> : vector<2x8xf32>
    %153 = vector.multi_reduction <maximumf>, %152, %cst_47 [2] : vector<2x8x8xf32> to vector<2x8xf32>
    %154 = vector.shape_cast %153 : vector<2x8xf32> to vector<2x8x1xf32>
    %155 = vector.broadcast %154 : vector<2x8x1xf32> to vector<2x8x8xf32>
    %156 = arith.subf %152, %155 : vector<2x8x8xf32>
    %157 = math.exp %156 : vector<2x8x8xf32>
    %cst_48 = arith.constant dense<0.000000e+00> : vector<2x8xf32>
    %158 = vector.multi_reduction <add>, %157, %cst_48 [2] : vector<2x8x8xf32> to vector<2x8xf32>
    %159 = vector.shape_cast %158 : vector<2x8xf32> to vector<2x8x1xf32>
    %160 = tpu.reciprocal %159 {approx = true} : vector<2x8x1xf32> -> vector<2x8x1xf32>
    %161 = vector.broadcast %160 : vector<2x8x1xf32> to vector<2x8x8xf32>
    %162 = arith.mulf %157, %161 : vector<2x8x8xf32>
    %163 = arith.truncf %162 : vector<2x8x8xf32> to vector<2x8x8xbf16>
    "tpu.trace_start"() <{level = 10 : i32, message = "bqk,bkd->bqd"}> : () -> ()
    %cst_49 = arith.constant dense<0.000000e+00> : vector<2x8x25xf32>
    %164 = tpu.matmul %163, %147, %cst_49 {dimension_numbers = #tpu.dot_dimension_numbers<[2], [1], [1], [2], [0, 0, 0, 1, 1, 2], [0], [0]>} : vector<2x8x8xbf16>, vector<2x8x25xbf16>, vector<2x8x25xf32> -> vector<2x8x25xf32>
    "tpu.trace_stop"() : () -> ()
    %165 = vector.extract_strided_slice %22 {offsets = [0, 0, 150], sizes = [2, 8, 25], strides = [1, 1, 1]} : vector<2x8x250xf32> to vector<2x8x25xf32>
    %166 = arith.truncf %165 : vector<2x8x25xf32> to vector<2x8x25xbf16>
    %167 = vector.extract_strided_slice %23 {offsets = [0, 0, 150], sizes = [2, 8, 25], strides = [1, 1, 1]} : vector<2x8x250xf32> to vector<2x8x25xf32>
    %168 = arith.truncf %167 : vector<2x8x25xf32> to vector<2x8x25xbf16>
    %169 = vector.extract_strided_slice %24 {offsets = [0, 0, 150], sizes = [2, 8, 25], strides = [1, 1, 1]} : vector<2x8x250xf32> to vector<2x8x25xf32>
    %170 = arith.truncf %169 : vector<2x8x25xf32> to vector<2x8x25xbf16>
    "tpu.trace_start"() <{level = 10 : i32, message = "bqd,bkd->bqk"}> : () -> ()
    %cst_50 = arith.constant dense<0.000000e+00> : vector<2x8x8xf32>
    %171 = tpu.matmul %166, %168, %cst_50 {dimension_numbers = #tpu.dot_dimension_numbers<[2], [2], [1], [1], [0, 0, 0, 1, 1, 1], [0], [0]>} : vector<2x8x25xbf16>, vector<2x8x25xbf16>, vector<2x8x8xf32> -> vector<2x8x8xf32>
    "tpu.trace_stop"() : () -> ()
    %cst_51 = arith.constant 2.000000e-01 : f32
    %172 = vector.broadcast %cst_51 : f32 to vector<2x8x8xf32>
    %173 = arith.mulf %171, %172 : vector<2x8x8xf32>
    %174 = vector.broadcast %26 : vector<1x8x8xf32> to vector<2x8x8xf32>
    %175 = arith.addf %173, %174 : vector<2x8x8xf32>
    %cst_52 = arith.constant dense<0xFF800000> : vector<2x8xf32>
    %176 = vector.multi_reduction <maximumf>, %175, %cst_52 [2] : vector<2x8x8xf32> to vector<2x8xf32>
    %177 = vector.shape_cast %176 : vector<2x8xf32> to vector<2x8x1xf32>
    %178 = vector.broadcast %177 : vector<2x8x1xf32> to vector<2x8x8xf32>
    %179 = arith.subf %175, %178 : vector<2x8x8xf32>
    %180 = math.exp %179 : vector<2x8x8xf32>
    %cst_53 = arith.constant dense<0.000000e+00> : vector<2x8xf32>
    %181 = vector.multi_reduction <add>, %180, %cst_53 [2] : vector<2x8x8xf32> to vector<2x8xf32>
    %182 = vector.shape_cast %181 : vector<2x8xf32> to vector<2x8x1xf32>
    %183 = tpu.reciprocal %182 {approx = true} : vector<2x8x1xf32> -> vector<2x8x1xf32>
    %184 = vector.broadcast %183 : vector<2x8x1xf32> to vector<2x8x8xf32>
    %185 = arith.mulf %180, %184 : vector<2x8x8xf32>
    %186 = arith.truncf %185 : vector<2x8x8xf32> to vector<2x8x8xbf16>
    "tpu.trace_start"() <{level = 10 : i32, message = "bqk,bkd->bqd"}> : () -> ()
    %cst_54 = arith.constant dense<0.000000e+00> : vector<2x8x25xf32>
    %187 = tpu.matmul %186, %170, %cst_54 {dimension_numbers = #tpu.dot_dimension_numbers<[2], [1], [1], [2], [0, 0, 0, 1, 1, 2], [0], [0]>} : vector<2x8x8xbf16>, vector<2x8x25xbf16>, vector<2x8x25xf32> -> vector<2x8x25xf32>
    "tpu.trace_stop"() : () -> ()
    %188 = vector.extract_strided_slice %22 {offsets = [0, 0, 175], sizes = [2, 8, 25], strides = [1, 1, 1]} : vector<2x8x250xf32> to vector<2x8x25xf32>
    %189 = arith.truncf %188 : vector<2x8x25xf32> to vector<2x8x25xbf16>
    %190 = vector.extract_strided_slice %23 {offsets = [0, 0, 175], sizes = [2, 8, 25], strides = [1, 1, 1]} : vector<2x8x250xf32> to vector<2x8x25xf32>
    %191 = arith.truncf %190 : vector<2x8x25xf32> to vector<2x8x25xbf16>
    %192 = vector.extract_strided_slice %24 {offsets = [0, 0, 175], sizes = [2, 8, 25], strides = [1, 1, 1]} : vector<2x8x250xf32> to vector<2x8x25xf32>
    %193 = arith.truncf %192 : vector<2x8x25xf32> to vector<2x8x25xbf16>
    "tpu.trace_start"() <{level = 10 : i32, message = "bqd,bkd->bqk"}> : () -> ()
    %cst_55 = arith.constant dense<0.000000e+00> : vector<2x8x8xf32>
    %194 = tpu.matmul %189, %191, %cst_55 {dimension_numbers = #tpu.dot_dimension_numbers<[2], [2], [1], [1], [0, 0, 0, 1, 1, 1], [0], [0]>} : vector<2x8x25xbf16>, vector<2x8x25xbf16>, vector<2x8x8xf32> -> vector<2x8x8xf32>
    "tpu.trace_stop"() : () -> ()
    %cst_56 = arith.constant 2.000000e-01 : f32
    %195 = vector.broadcast %cst_56 : f32 to vector<2x8x8xf32>
    %196 = arith.mulf %194, %195 : vector<2x8x8xf32>
    %197 = vector.broadcast %26 : vector<1x8x8xf32> to vector<2x8x8xf32>
    %198 = arith.addf %196, %197 : vector<2x8x8xf32>
    %cst_57 = arith.constant dense<0xFF800000> : vector<2x8xf32>
    %199 = vector.multi_reduction <maximumf>, %198, %cst_57 [2] : vector<2x8x8xf32> to vector<2x8xf32>
    %200 = vector.shape_cast %199 : vector<2x8xf32> to vector<2x8x1xf32>
    %201 = vector.broadcast %200 : vector<2x8x1xf32> to vector<2x8x8xf32>
    %202 = arith.subf %198, %201 : vector<2x8x8xf32>
    %203 = math.exp %202 : vector<2x8x8xf32>
    %cst_58 = arith.constant dense<0.000000e+00> : vector<2x8xf32>
    %204 = vector.multi_reduction <add>, %203, %cst_58 [2] : vector<2x8x8xf32> to vector<2x8xf32>
    %205 = vector.shape_cast %204 : vector<2x8xf32> to vector<2x8x1xf32>
    %206 = tpu.reciprocal %205 {approx = true} : vector<2x8x1xf32> -> vector<2x8x1xf32>
    %207 = vector.broadcast %206 : vector<2x8x1xf32> to vector<2x8x8xf32>
    %208 = arith.mulf %203, %207 : vector<2x8x8xf32>
    %209 = arith.truncf %208 : vector<2x8x8xf32> to vector<2x8x8xbf16>
    "tpu.trace_start"() <{level = 10 : i32, message = "bqk,bkd->bqd"}> : () -> ()
    %cst_59 = arith.constant dense<0.000000e+00> : vector<2x8x25xf32>
    %210 = tpu.matmul %209, %193, %cst_59 {dimension_numbers = #tpu.dot_dimension_numbers<[2], [1], [1], [2], [0, 0, 0, 1, 1, 2], [0], [0]>} : vector<2x8x8xbf16>, vector<2x8x25xbf16>, vector<2x8x25xf32> -> vector<2x8x25xf32>
    "tpu.trace_stop"() : () -> ()
    %211 = vector.extract_strided_slice %22 {offsets = [0, 0, 200], sizes = [2, 8, 25], strides = [1, 1, 1]} : vector<2x8x250xf32> to vector<2x8x25xf32>
    %212 = arith.truncf %211 : vector<2x8x25xf32> to vector<2x8x25xbf16>
    %213 = vector.extract_strided_slice %23 {offsets = [0, 0, 200], sizes = [2, 8, 25], strides = [1, 1, 1]} : vector<2x8x250xf32> to vector<2x8x25xf32>
    %214 = arith.truncf %213 : vector<2x8x25xf32> to vector<2x8x25xbf16>
    %215 = vector.extract_strided_slice %24 {offsets = [0, 0, 200], sizes = [2, 8, 25], strides = [1, 1, 1]} : vector<2x8x250xf32> to vector<2x8x25xf32>
    %216 = arith.truncf %215 : vector<2x8x25xf32> to vector<2x8x25xbf16>
    "tpu.trace_start"() <{level = 10 : i32, message = "bqd,bkd->bqk"}> : () -> ()
    %cst_60 = arith.constant dense<0.000000e+00> : vector<2x8x8xf32>
    %217 = tpu.matmul %212, %214, %cst_60 {dimension_numbers = #tpu.dot_dimension_numbers<[2], [2], [1], [1], [0, 0, 0, 1, 1, 1], [0], [0]>} : vector<2x8x25xbf16>, vector<2x8x25xbf16>, vector<2x8x8xf32> -> vector<2x8x8xf32>
    "tpu.trace_stop"() : () -> ()
    %cst_61 = arith.constant 2.000000e-01 : f32
    %218 = vector.broadcast %cst_61 : f32 to vector<2x8x8xf32>
    %219 = arith.mulf %217, %218 : vector<2x8x8xf32>
    %220 = vector.broadcast %26 : vector<1x8x8xf32> to vector<2x8x8xf32>
    %221 = arith.addf %219, %220 : vector<2x8x8xf32>
    %cst_62 = arith.constant dense<0xFF800000> : vector<2x8xf32>
    %222 = vector.multi_reduction <maximumf>, %221, %cst_62 [2] : vector<2x8x8xf32> to vector<2x8xf32>
    %223 = vector.shape_cast %222 : vector<2x8xf32> to vector<2x8x1xf32>
    %224 = vector.broadcast %223 : vector<2x8x1xf32> to vector<2x8x8xf32>
    %225 = arith.subf %221, %224 : vector<2x8x8xf32>
    %226 = math.exp %225 : vector<2x8x8xf32>
    %cst_63 = arith.constant dense<0.000000e+00> : vector<2x8xf32>
    %227 = vector.multi_reduction <add>, %226, %cst_63 [2] : vector<2x8x8xf32> to vector<2x8xf32>
    %228 = vector.shape_cast %227 : vector<2x8xf32> to vector<2x8x1xf32>
    %229 = tpu.reciprocal %228 {approx = true} : vector<2x8x1xf32> -> vector<2x8x1xf32>
    %230 = vector.broadcast %229 : vector<2x8x1xf32> to vector<2x8x8xf32>
    %231 = arith.mulf %226, %230 : vector<2x8x8xf32>
    %232 = arith.truncf %231 : vector<2x8x8xf32> to vector<2x8x8xbf16>
    "tpu.trace_start"() <{level = 10 : i32, message = "bqk,bkd->bqd"}> : () -> ()
    %cst_64 = arith.constant dense<0.000000e+00> : vector<2x8x25xf32>
    %233 = tpu.matmul %232, %216, %cst_64 {dimension_numbers = #tpu.dot_dimension_numbers<[2], [1], [1], [2], [0, 0, 0, 1, 1, 2], [0], [0]>} : vector<2x8x8xbf16>, vector<2x8x25xbf16>, vector<2x8x25xf32> -> vector<2x8x25xf32>
    "tpu.trace_stop"() : () -> ()
    %234 = vector.extract_strided_slice %22 {offsets = [0, 0, 225], sizes = [2, 8, 25], strides = [1, 1, 1]} : vector<2x8x250xf32> to vector<2x8x25xf32>
    %235 = arith.truncf %234 : vector<2x8x25xf32> to vector<2x8x25xbf16>
    %236 = vector.extract_strided_slice %23 {offsets = [0, 0, 225], sizes = [2, 8, 25], strides = [1, 1, 1]} : vector<2x8x250xf32> to vector<2x8x25xf32>
    %237 = arith.truncf %236 : vector<2x8x25xf32> to vector<2x8x25xbf16>
    %238 = vector.extract_strided_slice %24 {offsets = [0, 0, 225], sizes = [2, 8, 25], strides = [1, 1, 1]} : vector<2x8x250xf32> to vector<2x8x25xf32>
    %239 = arith.truncf %238 : vector<2x8x25xf32> to vector<2x8x25xbf16>
    "tpu.trace_start"() <{level = 10 : i32, message = "bqd,bkd->bqk"}> : () -> ()
    %cst_65 = arith.constant dense<0.000000e+00> : vector<2x8x8xf32>
    %240 = tpu.matmul %235, %237, %cst_65 {dimension_numbers = #tpu.dot_dimension_numbers<[2], [2], [1], [1], [0, 0, 0, 1, 1, 1], [0], [0]>} : vector<2x8x25xbf16>, vector<2x8x25xbf16>, vector<2x8x8xf32> -> vector<2x8x8xf32>
    "tpu.trace_stop"() : () -> ()
    %cst_66 = arith.constant 2.000000e-01 : f32
    %241 = vector.broadcast %cst_66 : f32 to vector<2x8x8xf32>
    %242 = arith.mulf %240, %241 : vector<2x8x8xf32>
    %243 = vector.broadcast %26 : vector<1x8x8xf32> to vector<2x8x8xf32>
    %244 = arith.addf %242, %243 : vector<2x8x8xf32>
    %cst_67 = arith.constant dense<0xFF800000> : vector<2x8xf32>
    %245 = vector.multi_reduction <maximumf>, %244, %cst_67 [2] : vector<2x8x8xf32> to vector<2x8xf32>
    %246 = vector.shape_cast %245 : vector<2x8xf32> to vector<2x8x1xf32>
    %247 = vector.broadcast %246 : vector<2x8x1xf32> to vector<2x8x8xf32>
    %248 = arith.subf %244, %247 : vector<2x8x8xf32>
    %249 = math.exp %248 : vector<2x8x8xf32>
    %cst_68 = arith.constant dense<0.000000e+00> : vector<2x8xf32>
    %250 = vector.multi_reduction <add>, %249, %cst_68 [2] : vector<2x8x8xf32> to vector<2x8xf32>
    %251 = vector.shape_cast %250 : vector<2x8xf32> to vector<2x8x1xf32>
    %252 = tpu.reciprocal %251 {approx = true} : vector<2x8x1xf32> -> vector<2x8x1xf32>
    %253 = vector.broadcast %252 : vector<2x8x1xf32> to vector<2x8x8xf32>
    %254 = arith.mulf %249, %253 : vector<2x8x8xf32>
    %255 = arith.truncf %254 : vector<2x8x8xf32> to vector<2x8x8xbf16>
    "tpu.trace_start"() <{level = 10 : i32, message = "bqk,bkd->bqd"}> : () -> ()
    %cst_69 = arith.constant dense<0.000000e+00> : vector<2x8x25xf32>
    %256 = tpu.matmul %255, %239, %cst_69 {dimension_numbers = #tpu.dot_dimension_numbers<[2], [1], [1], [2], [0, 0, 0, 1, 1, 2], [0], [0]>} : vector<2x8x8xbf16>, vector<2x8x25xbf16>, vector<2x8x25xf32> -> vector<2x8x25xf32>
    "tpu.trace_stop"() : () -> ()
    %257 = tpu.concatenate %49, %72, %95, %118, %141, %164, %187, %210, %233, %256 in 2 : vector<2x8x25xf32>, vector<2x8x25xf32>, vector<2x8x25xf32>, vector<2x8x25xf32>, vector<2x8x25xf32>, vector<2x8x25xf32>, vector<2x8x25xf32>, vector<2x8x25xf32>, vector<2x8x25xf32>, vector<2x8x25xf32> -> vector<2x8x250xf32>
    %258 = vector.shape_cast %257 : vector<2x8x250xf32> to vector<16x250xf32>
    %259 = arith.truncf %258 : vector<16x250xf32> to vector<16x250xbf16>
    %c0_70 = arith.constant 0 : index
    %c0_71 = arith.constant 0 : index
    %260 = vector.load %arg10[%c0_70, %c0_71] : memref<250x250xbf16, #tpu.memory_space<vmem>>, vector<250x250xbf16>
    %cst_72 = arith.constant dense<0.000000e+00> : vector<16x250xf32>
    %261 = tpu.matmul %259, %260, %cst_72 {dimension_numbers = #tpu.dot_dimension_numbers<[1], [0], [0], [1], [0, 0, 1, 1], [], []>} : vector<16x250xbf16>, vector<250x250xbf16>, vector<16x250xf32> -> vector<16x250xf32>
    %c0_73 = arith.constant 0 : index
    %c0_74 = arith.constant 0 : index
    %262 = vector.load %arg11[%c0_73, %c0_74] : memref<1x250xf32, #tpu.memory_space<vmem>>, vector<1x250xf32>
    %263 = vector.broadcast %262 : vector<1x250xf32> to vector<16x250xf32>
    %264 = arith.addf %261, %263 : vector<16x250xf32>
    %265 = arith.addf %5, %264 : vector<16x250xf32>
    %c0_75 = arith.constant 0 : index
    %c0_76 = arith.constant 0 : index
    %266 = vector.load %arg12[%c0_75, %c0_76] : memref<1x250xf32, #tpu.memory_space<vmem>>, vector<1x250xf32>
    %c0_77 = arith.constant 0 : index
    %c0_78 = arith.constant 0 : index
    %267 = vector.load %arg13[%c0_77, %c0_78] : memref<1x250xf32, #tpu.memory_space<vmem>>, vector<1x250xf32>
    %cst_79 = arith.constant dense<0.000000e+00> : vector<16xf32>
    %268 = vector.multi_reduction <add>, %265, %cst_79 [1] : vector<16x250xf32> to vector<16xf32>
    %269 = vector.shape_cast %268 : vector<16xf32> to vector<16x1xf32>
    %cst_80 = arith.constant 2.500000e+02 : f32
    %270 = vector.broadcast %cst_80 : f32 to vector<16x1xf32>
    %271 = arith.divf %269, %270 : vector<16x1xf32>
    %272 = vector.broadcast %271 : vector<16x1xf32> to vector<16x250xf32>
    %273 = arith.subf %265, %272 : vector<16x250xf32>
    %274 = arith.mulf %273, %273 : vector<16x250xf32>
    %cst_81 = arith.constant dense<0.000000e+00> : vector<16xf32>
    %275 = vector.multi_reduction <add>, %274, %cst_81 [1] : vector<16x250xf32> to vector<16xf32>
    %276 = vector.shape_cast %275 : vector<16xf32> to vector<16x1xf32>
    %cst_82 = arith.constant 2.500000e+02 : f32
    %277 = vector.broadcast %cst_82 : f32 to vector<16x1xf32>
    %278 = arith.divf %276, %277 : vector<16x1xf32>
    %279 = vector.broadcast %271 : vector<16x1xf32> to vector<16x250xf32>
    %280 = arith.subf %265, %279 : vector<16x250xf32>
    %cst_83 = arith.constant 9.99999974E-6 : f32
    %281 = vector.broadcast %cst_83 : f32 to vector<16x1xf32>
    %282 = arith.addf %278, %281 : vector<16x1xf32>
    %283 = math.rsqrt %282 : vector<16x1xf32>
    %284 = vector.broadcast %283 : vector<16x1xf32> to vector<16x250xf32>
    %285 = arith.mulf %280, %284 : vector<16x250xf32>
    %286 = vector.broadcast %266 : vector<1x250xf32> to vector<16x250xf32>
    %287 = arith.mulf %285, %286 : vector<16x250xf32>
    %288 = vector.broadcast %267 : vector<1x250xf32> to vector<16x250xf32>
    %289 = arith.addf %287, %288 : vector<16x250xf32>
    %290 = arith.truncf %289 : vector<16x250xf32> to vector<16x250xbf16>
    %c0_84 = arith.constant 0 : index
    %c0_85 = arith.constant 0 : index
    %291 = vector.load %arg14[%c0_84, %c0_85] : memref<250x2048xbf16, #tpu.memory_space<vmem>>, vector<250x2048xbf16>
    %cst_86 = arith.constant dense<0.000000e+00> : vector<16x2048xf32>
    %292 = tpu.matmul %290, %291, %cst_86 {dimension_numbers = #tpu.dot_dimension_numbers<[1], [0], [0], [1], [0, 0, 1, 1], [], []>} : vector<16x250xbf16>, vector<250x2048xbf16>, vector<16x2048xf32> -> vector<16x2048xf32>
    %c0_87 = arith.constant 0 : index
    %c0_88 = arith.constant 0 : index
    %293 = vector.load %arg15[%c0_87, %c0_88] : memref<1x2048xf32, #tpu.memory_space<vmem>>, vector<1x2048xf32>
    %294 = vector.broadcast %293 : vector<1x2048xf32> to vector<16x2048xf32>
    %295 = arith.addf %292, %294 : vector<16x2048xf32>
    %cst_89 = arith.constant 0.000000e+00 : f32
    %296 = vector.broadcast %cst_89 : f32 to vector<16x2048xf32>
    %297 = arith.maximumf %295, %296 : vector<16x2048xf32>
    %298 = arith.truncf %297 : vector<16x2048xf32> to vector<16x2048xbf16>
    %c0_90 = arith.constant 0 : index
    %c0_91 = arith.constant 0 : index
    %299 = vector.load %arg16[%c0_90, %c0_91] : memref<2048x250xbf16, #tpu.memory_space<vmem>>, vector<2048x250xbf16>
    %cst_92 = arith.constant dense<0.000000e+00> : vector<16x250xf32>
    %300 = tpu.matmul %298, %299, %cst_92 {dimension_numbers = #tpu.dot_dimension_numbers<[1], [0], [0], [1], [0, 0, 1, 1], [], []>} : vector<16x2048xbf16>, vector<2048x250xbf16>, vector<16x250xf32> -> vector<16x250xf32>
    %c0_93 = arith.constant 0 : index
    %c0_94 = arith.constant 0 : index
    %301 = vector.load %arg17[%c0_93, %c0_94] : memref<1x250xf32, #tpu.memory_space<vmem>>, vector<1x250xf32>
    %302 = vector.broadcast %301 : vector<1x250xf32> to vector<16x250xf32>
    %303 = arith.addf %300, %302 : vector<16x250xf32>
    %304 = arith.addf %289, %303 : vector<16x250xf32>
    %c0_95 = arith.constant 0 : index
    %c0_96 = arith.constant 0 : index
    %305 = vector.load %arg18[%c0_95, %c0_96] : memref<1x250xf32, #tpu.memory_space<vmem>>, vector<1x250xf32>
    %c0_97 = arith.constant 0 : index
    %c0_98 = arith.constant 0 : index
    %306 = vector.load %arg19[%c0_97, %c0_98] : memref<1x250xf32, #tpu.memory_space<vmem>>, vector<1x250xf32>
    %cst_99 = arith.constant dense<0.000000e+00> : vector<16xf32>
    %307 = vector.multi_reduction <add>, %304, %cst_99 [1] : vector<16x250xf32> to vector<16xf32>
    %308 = vector.shape_cast %307 : vector<16xf32> to vector<16x1xf32>
    %cst_100 = arith.constant 2.500000e+02 : f32
    %309 = vector.broadcast %cst_100 : f32 to vector<16x1xf32>
    %310 = arith.divf %308, %309 : vector<16x1xf32>
    %311 = vector.broadcast %310 : vector<16x1xf32> to vector<16x250xf32>
    %312 = arith.subf %304, %311 : vector<16x250xf32>
    %313 = arith.mulf %312, %312 : vector<16x250xf32>
    %cst_101 = arith.constant dense<0.000000e+00> : vector<16xf32>
    %314 = vector.multi_reduction <add>, %313, %cst_101 [1] : vector<16x250xf32> to vector<16xf32>
    %315 = vector.shape_cast %314 : vector<16xf32> to vector<16x1xf32>
    %cst_102 = arith.constant 2.500000e+02 : f32
    %316 = vector.broadcast %cst_102 : f32 to vector<16x1xf32>
    %317 = arith.divf %315, %316 : vector<16x1xf32>
    %318 = vector.broadcast %310 : vector<16x1xf32> to vector<16x250xf32>
    %319 = arith.subf %304, %318 : vector<16x250xf32>
    %cst_103 = arith.constant 9.99999974E-6 : f32
    %320 = vector.broadcast %cst_103 : f32 to vector<16x1xf32>
    %321 = arith.addf %317, %320 : vector<16x1xf32>
    %322 = math.rsqrt %321 : vector<16x1xf32>
    %323 = vector.broadcast %322 : vector<16x1xf32> to vector<16x250xf32>
    %324 = arith.mulf %319, %323 : vector<16x250xf32>
    %325 = vector.broadcast %305 : vector<1x250xf32> to vector<16x250xf32>
    %326 = arith.mulf %324, %325 : vector<16x250xf32>
    %327 = vector.broadcast %306 : vector<1x250xf32> to vector<16x250xf32>
    %328 = arith.addf %326, %327 : vector<16x250xf32>
    %329 = vector.shape_cast %328 : vector<16x250xf32> to vector<2x8x250xf32>
    %c0_104 = arith.constant 0 : index
    %c0_105 = arith.constant 0 : index
    %330 = vector.load %arg20[%c0_104, %c0_105] : memref<1x250xf32, #tpu.memory_space<vmem>>, vector<1x250xf32>
    %331 = vector.shape_cast %330 : vector<1x250xf32> to vector<1x1x250xf32>
    %332 = vector.broadcast %331 : vector<1x1x250xf32> to vector<2x8x250xf32>
    %333 = arith.mulf %329, %332 : vector<2x8x250xf32>
    %cst_106 = arith.constant dense<0.000000e+00> : vector<2x8xf32>
    %334 = vector.multi_reduction <add>, %333, %cst_106 [2] : vector<2x8x250xf32> to vector<2x8xf32>
    %c0_107 = arith.constant 0 : index
    %c0_108 = arith.constant 0 : index
    %335 = vector.load %arg21[%c0_107, %c0_108] : memref<1x1xf32, #tpu.memory_space<vmem>>, vector<1x1xf32>
    %336 = vector.broadcast %335 : vector<1x1xf32> to vector<2x8xf32>
    %337 = arith.addf %334, %336 : vector<2x8xf32>
    %c0_109 = arith.constant 0 : index
    %c0_110 = arith.constant 0 : index
    %c0_111 = arith.constant 0 : index
    %338 = vector.load %arg22[%c0_109, %c0_110, %c0_111] : memref<1x2x8xf32, #tpu.memory_space<vmem>>, vector<1x2x8xf32>
    %339 = vector.shape_cast %338 : vector<1x2x8xf32> to vector<2x8xf32>
    %340 = vector.shape_cast %337 : vector<2x8xf32> to vector<1x2x8xf32>
    tpu.vector_store %arg22[%c0_109, %c0_110, %c0_111], %340 {strides = array<i32>} : memref<1x2x8xf32, #tpu.memory_space<vmem>>, vector<1x2x8xf32>,
    return
  }
  func.func @transform_0(%arg0: i32) -> (i32, i32, i32) {
    %c0_i32 = arith.constant 0 : i32
    %c0_i32_0 = arith.constant 0 : i32
    %c0_i32_1 = arith.constant 0 : i32
    return %arg0, %c0_i32, %c0_i32_0 : i32, i32, i32
  }
  func.func @transform_1(%arg0: i32) -> (i32, i32) {
    %c0_i32 = arith.constant 0 : i32
    %c0_i32_0 = arith.constant 0 : i32
    %c0_i32_1 = arith.constant 0 : i32
    return %c0_i32, %c0_i32_0 : i32, i32
  }
  func.func @transform_2(%arg0: i32) -> (i32, i32) {
    %c0_i32 = arith.constant 0 : i32
    %c0_i32_0 = arith.constant 0 : i32
    %c0_i32_1 = arith.constant 0 : i32
    return %c0_i32, %c0_i32_0 : i32, i32
  }
  func.func @transform_3(%arg0: i32) -> (i32, i32) {
    %c0_i32 = arith.constant 0 : i32
    %c0_i32_0 = arith.constant 0 : i32
    %c0_i32_1 = arith.constant 0 : i32
    return %c0_i32, %c0_i32_0 : i32, i32
  }
  func.func @transform_4(%arg0: i32) -> (i32, i32) {
    %c0_i32 = arith.constant 0 : i32
    %c0_i32_0 = arith.constant 0 : i32
    %c0_i32_1 = arith.constant 0 : i32
    return %c0_i32, %c0_i32_0 : i32, i32
  }
  func.func @transform_5(%arg0: i32) -> (i32, i32) {
    %c0_i32 = arith.constant 0 : i32
    %c0_i32_0 = arith.constant 0 : i32
    %c0_i32_1 = arith.constant 0 : i32
    return %c0_i32, %c0_i32_0 : i32, i32
  }
  func.func @transform_6(%arg0: i32) -> (i32, i32) {
    %c0_i32 = arith.constant 0 : i32
    %c0_i32_0 = arith.constant 0 : i32
    %c0_i32_1 = arith.constant 0 : i32
    return %c0_i32, %c0_i32_0 : i32, i32
  }
  func.func @transform_7(%arg0: i32) -> (i32, i32) {
    %c0_i32 = arith.constant 0 : i32
    %c0_i32_0 = arith.constant 0 : i32
    %c0_i32_1 = arith.constant 0 : i32
    return %c0_i32, %c0_i32_0 : i32, i32
  }
  func.func @transform_8(%arg0: i32) -> (i32, i32) {
    %c0_i32 = arith.constant 0 : i32
    %c0_i32_0 = arith.constant 0 : i32
    %c0_i32_1 = arith.constant 0 : i32
    return %c0_i32, %c0_i32_0 : i32, i32
  }
  func.func @transform_9(%arg0: i32) -> (i32, i32) {
    %c0_i32 = arith.constant 0 : i32
    %c0_i32_0 = arith.constant 0 : i32
    %c0_i32_1 = arith.constant 0 : i32
    return %c0_i32, %c0_i32_0 : i32, i32
  }
  func.func @transform_10(%arg0: i32) -> (i32, i32) {
    %c0_i32 = arith.constant 0 : i32
    %c0_i32_0 = arith.constant 0 : i32
    %c0_i32_1 = arith.constant 0 : i32
    return %c0_i32, %c0_i32_0 : i32, i32
  }
  func.func @transform_11(%arg0: i32) -> (i32, i32) {
    %c0_i32 = arith.constant 0 : i32
    %c0_i32_0 = arith.constant 0 : i32
    %c0_i32_1 = arith.constant 0 : i32
    return %c0_i32, %c0_i32_0 : i32, i32
  }
  func.func @transform_12(%arg0: i32) -> (i32, i32) {
    %c0_i32 = arith.constant 0 : i32
    %c0_i32_0 = arith.constant 0 : i32
    %c0_i32_1 = arith.constant 0 : i32
    return %c0_i32, %c0_i32_0 : i32, i32
  }
  func.func @transform_13(%arg0: i32) -> (i32, i32) {
    %c0_i32 = arith.constant 0 : i32
    %c0_i32_0 = arith.constant 0 : i32
    %c0_i32_1 = arith.constant 0 : i32
    return %c0_i32, %c0_i32_0 : i32, i32
  }
  func.func @transform_14(%arg0: i32) -> (i32, i32) {
    %c0_i32 = arith.constant 0 : i32
    %c0_i32_0 = arith.constant 0 : i32
    %c0_i32_1 = arith.constant 0 : i32
    return %c0_i32, %c0_i32_0 : i32, i32
  }
  func.func @transform_15(%arg0: i32) -> (i32, i32) {
    %c0_i32 = arith.constant 0 : i32
    %c0_i32_0 = arith.constant 0 : i32
    %c0_i32_1 = arith.constant 0 : i32
    return %c0_i32, %c0_i32_0 : i32, i32
  }
  func.func @transform_16(%arg0: i32) -> (i32, i32) {
    %c0_i32 = arith.constant 0 : i32
    %c0_i32_0 = arith.constant 0 : i32
    %c0_i32_1 = arith.constant 0 : i32
    return %c0_i32, %c0_i32_0 : i32, i32
  }
  func.func @transform_17(%arg0: i32) -> (i32, i32) {
    %c0_i32 = arith.constant 0 : i32
    %c0_i32_0 = arith.constant 0 : i32
    %c0_i32_1 = arith.constant 0 : i32
    return %c0_i32, %c0_i32_0 : i32, i32
  }
  func.func @transform_18(%arg0: i32) -> (i32, i32) {
    %c0_i32 = arith.constant 0 : i32
    %c0_i32_0 = arith.constant 0 : i32
    %c0_i32_1 = arith.constant 0 : i32
    return %c0_i32, %c0_i32_0 : i32, i32
  }
  func.func @transform_19(%arg0: i32) -> (i32, i32) {
    %c0_i32 = arith.constant 0 : i32
    %c0_i32_0 = arith.constant 0 : i32
    %c0_i32_1 = arith.constant 0 : i32
    return %c0_i32, %c0_i32_0 : i32, i32
  }
  func.func @transform_20(%arg0: i32) -> (i32, i32) {
    %c0_i32 = arith.constant 0 : i32
    %c0_i32_0 = arith.constant 0 : i32
    %c0_i32_1 = arith.constant 0 : i32
    return %c0_i32, %c0_i32_0 : i32, i32
  }
  func.func @transform_21(%arg0: i32) -> (i32, i32, i32) {
    %c0_i32 = arith.constant 0 : i32
    %c0_i32_0 = arith.constant 0 : i32
    %c0_i32_1 = arith.constant 0 : i32
    return %arg0, %c0_i32, %c0_i32_0 : i32, i32, i32
  }
}

</mosaic_0001>

<llo_original>
// kernel: tpu_custom_call.1
$region0: #{tpu_custom_call.1}
  #allocation0 [shape = 'u32[]', space=smem, size = 0x4, offset = 0x4, fixed_abs, tag = 'smem constant byte address 0x4 - core index']
  #allocation1 [shape = 'u32[144,128]{1,0:T(1,128)}', space=vmem, size = 0x12000, scoped, tag = 'internal scratch']
  #allocation2 [shape = 'f32[1,1]{1,0:T(1,128)S(1)}', space=vmem, size = 0x200, scoped, tag = 'scoped memory for tpu_custom_call.1']
  %s0 = inlined_call_operand.hbm [shape: f32[4,8,250], index: 0, kind: input, shape index: {}]
  %s1 = inlined_call_operand.hbm [shape: f32[8,250], index: 1, kind: input, shape index: {}]
  %s2 = inlined_call_operand.hbm [shape: f32[8,8], index: 2, kind: input, shape index: {}]
  %s3 = inlined_call_operand.hbm [shape: bf16[250,250], index: 3, kind: input, shape index: {}]
  %s4 = inlined_call_operand.vmem [shape: f32[1,250], index: 4, kind: input, shape index: {}]
  %s5 = inlined_call_operand.hbm [shape: bf16[250,250], index: 5, kind: input, shape index: {}]
  %s6 = inlined_call_operand.vmem [shape: f32[1,250], index: 6, kind: input, shape index: {}]
  %s7 = inlined_call_operand.hbm [shape: bf16[250,250], index: 7, kind: input, shape index: {}]
  %s8 = inlined_call_operand.vmem [shape: f32[1,250], index: 8, kind: input, shape index: {}]
  %s9 = inlined_call_operand.hbm [shape: bf16[250,250], index: 9, kind: input, shape index: {}]
  %s10 = inlined_call_operand.vmem [shape: f32[1,250], index: 10, kind: input, shape index: {}]
  %s11 = inlined_call_operand.vmem [shape: f32[1,250], index: 11, kind: input, shape index: {}]
  %s12 = inlined_call_operand.hbm [shape: f32[1,250], index: 12, kind: input, shape index: {}]
  %s13 = inlined_call_operand.hbm [shape: bf16[250,2048], index: 13, kind: input, shape index: {}]
  %s14 = inlined_call_operand.vmem [shape: f32[1,2048], index: 14, kind: input, shape index: {}]
  %s15 = inlined_call_operand.hbm [shape: bf16[2048,250], index: 15, kind: input, shape index: {}]
  %s16 = inlined_call_operand.vmem [shape: f32[1,250], index: 16, kind: input, shape index: {}]
  %s17 = inlined_call_operand.vmem [shape: f32[1,250], index: 17, kind: input, shape index: {}]
  %s18 = inlined_call_operand.vmem [shape: f32[1,250], index: 18, kind: input, shape index: {}]
  %s19 = inlined_call_operand.vmem [shape: f32[1,250], index: 19, kind: input, shape index: {}]
  %s20 = inlined_call_operand.<no memory space> [shape: f32[1,1], index: 20, kind: input, shape index: {}]
  %s21 = inlined_call_operand.hbm [shape: f32[2,2,8], index: 21, kind: output, shape index: {}]
  %s22 = sld [smem:[#allocation0]]
  $region157: #{tpu_custom_call.1} parent=0
    _
  %s24 = ssub.s32 1, %s22
  %s25 = scalar_select 0, %s24, %s22
  %v26 = vstv %s20
  %27 = vst [vmem:[#allocation2] sm:$0x1] %v26
  $region1: #{tpu_custom_call.1} parent=0
    #allocation3 [shape = 'u8[32768]{0}', space=vmem, size = 0x8000, scoped, tag = 'input window, operand 0']
    #allocation4 [shape = 's32[2]{0}', space=sflag, size = 0x8, scoped, tag = 'scoped memory for tpu_custom_call.1']
    #allocation5 [shape = 's32[2]{0}', space=sflag, size = 0x8, scoped, tag = 'scoped memory for tpu_custom_call.1']
    #allocation6 [shape = 'u8[8192]{0}', space=vmem, size = 0x2000, scoped, tag = 'input window, operand 1, single buffered']
    #allocation7 [shape = 's32[1]{0}', space=sflag, size = 0x4, scoped, tag = 'scoped memory for tpu_custom_call.1']
    #allocation8 [shape = 'u8[4096]{0}', space=vmem, size = 0x1000, scoped, tag = 'input window, operand 2, single buffered']
    #allocation9 [shape = 'u8[131072]{0}', space=vmem, size = 0x20000, scoped, tag = 'input window, operand 3, single buffered']
    #allocation10 [shape = 's32[1]{0}', space=sflag, size = 0x4, scoped, tag = 'scoped memory for tpu_custom_call.1']
    #allocation11 [shape = 'u8[131072]{0}', space=vmem, size = 0x20000, scoped, tag = 'input window, operand 5, single buffered']
    #allocation12 [shape = 'u8[131072]{0}', space=vmem, size = 0x20000, scoped, tag = 'input window, operand 7, single buffered']
    #allocation13 [shape = 's32[1]{0}', space=sflag, size = 0x4, scoped, tag = 'scoped memory for tpu_custom_call.1']
    #allocation14 [shape = 'u8[131072]{0}', space=vmem, size = 0x20000, scoped, tag = 'input window, operand 9, single buffered']
    #allocation15 [shape = 'u8[1024]{0}', space=vmem, size = 0x400, scoped, tag = 'input window, operand 12, single buffered']
    #allocation16 [shape = 's32[1]{0}', space=sflag, size = 0x4, scoped, tag = 'scoped memory for tpu_custom_call.1']
    #allocation17 [shape = 'u8[1048576]{0}', space=vmem, size = 0x100000, scoped, tag = 'input window, operand 13, single buffered']
    #allocation18 [shape = 'u8[1048576]{0}', space=vmem, size = 0x100000, scoped, tag = 'input window, operand 15, single buffered']
    #allocation19 [shape = 's32[1]{0}', space=sflag, size = 0x4, scoped, tag = 'scoped memory for tpu_custom_call.1']
    #allocation20 [shape = 'u8[2048]{0}', space=vmem, size = 0x800, scoped, tag = 'output window, operand 0']
    %28 = vsyncpa [#allocation4], 0
    %s29 = scalar_lea.sflag [#allocation4], 1
    %30 = vsyncpa %s29, 0
    %31 = vsyncpa [#allocation7], 0
    %32 = vsyncpa [#allocation10], 0
    %33 = vsyncpa [#allocation13], 0
    %34 = vsyncpa [#allocation16], 0
    %35 = vsyncpa [#allocation19], 0
    %36 = vsyncpa [#allocation5], 0
    %s37 = scalar_lea.sflag [#allocation5], 1
    %38 = vsyncpa %s37, 0
    loop: start=0, step=1, limit=4
    $region2: #{tpu_custom_call.1} parent=1 // loop_pre_header
      _
    $region3: #{tpu_custom_call.1} parent=1 // loop_header
      %s40 = sphi 0, %s44
      %p41 = scmp.ge.s32.totalorder %s40, 4
      %s50 = sphi 0, %s52
      %s53 = sphi 0, %s50
      %s54 = sphi 0, %s53
      %s70 = sphi 0, %s54
      %s74 = sphi 0, %s74
      %s76 = sphi 0, %s74
      %s77 = sphi 0, %s76
      %s91 = sphi 0, %s77
      %s95 = sphi 0, %s95
      %s97 = sphi 0, %s95
      %s98 = sphi 0, %s97
      %s112 = sphi 0, %s98
      %s116 = sphi 0, %s116
      %s118 = sphi 0, %s116
      %s119 = sphi 0, %s118
      %s133 = sphi 0, %s119
      %s137 = sphi 0, %s137
      %s139 = sphi 0, %s137
      %s140 = sphi 0, %s139
      %s154 = sphi 0, %s140
      %s158 = sphi 0, %s158
      %s160 = sphi 0, %s158
      %s161 = sphi 0, %s160
      %s175 = sphi 0, %s161
      %s179 = sphi 0, %s179
      %s181 = sphi 0, %s179
      %s182 = sphi 0, %s181
      %s196 = sphi 0, %s182
      %s200 = sphi 0, %s200
      %s202 = sphi 0, %s200
      %s203 = sphi 0, %s202
      %s217 = sphi 0, %s203
      %s221 = sphi 0, %s221
      %s223 = sphi 0, %s221
      %s224 = sphi 0, %s223
      %s238 = sphi 0, %s224
      %s242 = sphi 0, %s242
      %s244 = sphi 0, %s242
      %s245 = sphi 0, %s244
      %s259 = sphi 0, %s245
      %s263 = sphi 0, %s263
      %s265 = sphi 0, %s263
      %s266 = sphi 0, %s265
      %s280 = sphi 0, %s266
      %s284 = sphi 0, %s284
      %s286 = sphi 0, %s284
      %s287 = sphi 0, %s286
      %s301 = sphi 0, %s287
      %s305 = sphi 0, %s305
      %s307 = sphi 0, %s305
      %s308 = sphi 0, %s307
      %s322 = sphi 0, %s308
      %s326 = sphi 0, %s326
      %s328 = sphi 0, %s326
      %s329 = sphi 0, %s328
      %s343 = sphi 0, %s329
      %s347 = sphi 0, %s347
      %s349 = sphi 0, %s347
      %s350 = sphi 0, %s349
      %s364 = sphi 0, %s350
      %s368 = sphi 0, %s368
      %s370 = sphi 0, %s368
      %s371 = sphi 0, %s370
      %s385 = sphi 0, %s371
      %s389 = sphi 0, %s389
      %s391 = sphi 0, %s389
      %s392 = sphi 0, %s391
      %s406 = sphi 0, %s392
      %s410 = sphi 0, %s410
      %s412 = sphi 0, %s410
      %s413 = sphi 0, %s412
      %s427 = sphi 0, %s413
      %s431 = sphi 0, %s431
      %s433 = sphi 0, %s431
      %s434 = sphi 0, %s433
      %s448 = sphi 0, %s434
      %s452 = sphi 0, %s452
      %s454 = sphi 0, %s452
      %s455 = sphi 0, %s454
      %s469 = sphi 0, %s455
      %s473 = sphi 0, %s473
      %s475 = sphi 0, %s473
      %s476 = sphi 0, %s475
      %s490 = sphi 0, %s476
      %s496 = sphi 0, %s498
      %s499 = sphi 0, %s496
      %s500 = sphi 0, %s499
      %s516 = sphi 0, %s500
    $region4: #{tpu_custom_call.1} parent=1 // loop_header_branch
      %43 = sbr.rel (%p41) target = $region8
    $region5: #{tpu_custom_call.1} parent=1 // loop_body
      %s45 = ssub.s32 %s40, 1
      %s46 = ssub.s32 %s40, 2
      %s47 = sadd.s32 %s40, 1
      %s48 = ssub.s32 %s40, %s47
      %p49 = scmp.eq.s32.totalorder %s48, 0
      %s51 = sadd.s32 %s50, 1
      %s52 = scalar_select %p49, %s50, %s51
      %p55 = pneg %p49
      %p56 = scmp.eq.s32.totalorder %s40, 1
      %p57 = por %p55, %p56
      %p58 = scmp.ne.s32.totalorder %s50, %s53
      %p59 = scmp.eq.s32.totalorder %s40, 0
      %p60 = por %p58, %p59
      %p61 = scmp.ne.s32.totalorder %s50, %s53
      %p62 = scmp.eq.s32.totalorder %s45, 1
      %p63 = por %p61, %p62
      %p64 = scmp.ne.s32.totalorder %s53, %s54
      %p65 = scmp.eq.s32.totalorder %s45, 0
      %p66 = por %p64, %p65
      %p67 = scmp.ne.s32.totalorder %s53, %s54
      %p68 = scmp.eq.s32.totalorder %s46, 1
      %p69 = por %p67, %p68
      %p71 = scmp.ne.s32.totalorder %s54, %s70
      %p72 = scmp.eq.s32.totalorder %s46, 0
      %p73 = por %p71, %p72
      %s75 = sadd.s32 %s74, 1
      %p78 = scmp.eq.s32.totalorder %s40, 1
      %p79 = scmp.ne.s32.totalorder %s74, %s76
      %p80 = scmp.eq.s32.totalorder %s40, 0
      %p81 = por %p79, %p80
      %p82 = scmp.ne.s32.totalorder %s74, %s76
      %p83 = scmp.eq.s32.totalorder %s45, 1
      %p84 = por %p82, %p83
      %p85 = scmp.ne.s32.totalorder %s76, %s77
      %p86 = scmp.eq.s32.totalorder %s45, 0
      %p87 = por %p85, %p86
      %p88 = scmp.ne.s32.totalorder %s76, %s77
      %p89 = scmp.eq.s32.totalorder %s46, 1
      %p90 = por %p88, %p89
      %p92 = scmp.ne.s32.totalorder %s77, %s91
      %p93 = scmp.eq.s32.totalorder %s46, 0
      %p94 = por %p92, %p93
      %s96 = sadd.s32 %s95, 1
      %p99 = scmp.eq.s32.totalorder %s40, 1
      %p100 = scmp.ne.s32.totalorder %s95, %s97
      %p101 = scmp.eq.s32.totalorder %s40, 0
      %p102 = por %p100, %p101
      %p103 = scmp.ne.s32.totalorder %s95, %s97
      %p104 = scmp.eq.s32.totalorder %s45, 1
      %p105 = por %p103, %p104
      %p106 = scmp.ne.s32.totalorder %s97, %s98
      %p107 = scmp.eq.s32.totalorder %s45, 0
      %p108 = por %p106, %p107
      %p109 = scmp.ne.s32.totalorder %s97, %s98
      %p110 = scmp.eq.s32.totalorder %s46, 1
      %p111 = por %p109, %p110
      %p113 = scmp.ne.s32.totalorder %s98, %s112
      %p114 = scmp.eq.s32.totalorder %s46, 0
      %p115 = por %p113, %p114
      %s117 = sadd.s32 %s116, 1
      %p120 = scmp.eq.s32.totalorder %s40, 1
      %p121 = scmp.ne.s32.totalorder %s116, %s118
      %p122 = scmp.eq.s32.totalorder %s40, 0
      %p123 = por %p121, %p122
      %p124 = scmp.ne.s32.totalorder %s116, %s118
      %p125 = scmp.eq.s32.totalorder %s45, 1
      %p126 = por %p124, %p125
      %p127 = scmp.ne.s32.totalorder %s118, %s119
      %p128 = scmp.eq.s32.totalorder %s45, 0
      %p129 = por %p127, %p128
      %p130 = scmp.ne.s32.totalorder %s118, %s119
      %p131 = scmp.eq.s32.totalorder %s46, 1
      %p132 = por %p130, %p131
      %p134 = scmp.ne.s32.totalorder %s119, %s133
      %p135 = scmp.eq.s32.totalorder %s46, 0
      %p136 = por %p134, %p135
      %s138 = sadd.s32 %s137, 1
      %p141 = scmp.eq.s32.totalorder %s40, 1
      %p142 = scmp.ne.s32.totalorder %s137, %s139
      %p143 = scmp.eq.s32.totalorder %s40, 0
      %p144 = por %p142, %p143
      %p145 = scmp.ne.s32.totalorder %s137, %s139
      %p146 = scmp.eq.s32.totalorder %s45, 1
      %p147 = por %p145, %p146
      %p148 = scmp.ne.s32.totalorder %s139, %s140
      %p149 = scmp.eq.s32.totalorder %s45, 0
      %p150 = por %p148, %p149
      %p151 = scmp.ne.s32.totalorder %s139, %s140
      %p152 = scmp.eq.s32.totalorder %s46, 1
      %p153 = por %p151, %p152
      %p155 = scmp.ne.s32.totalorder %s140, %s154
      %p156 = scmp.eq.s32.totalorder %s46, 0
      %p157 = por %p155, %p156
      %s159 = sadd.s32 %s158, 1
      %p162 = scmp.eq.s32.totalorder %s40, 1
      %p163 = scmp.ne.s32.totalorder %s158, %s160
      %p164 = scmp.eq.s32.totalorder %s40, 0
      %p165 = por %p163, %p164
      %p166 = scmp.ne.s32.totalorder %s158, %s160
      %p167 = scmp.eq.s32.totalorder %s45, 1
      %p168 = por %p166, %p167
      %p169 = scmp.ne.s32.totalorder %s160, %s161
      %p170 = scmp.eq.s32.totalorder %s45, 0
      %p171 = por %p169, %p170
      %p172 = scmp.ne.s32.totalorder %s160, %s161
      %p173 = scmp.eq.s32.totalorder %s46, 1
      %p174 = por %p172, %p173
      %p176 = scmp.ne.s32.totalorder %s161, %s175
      %p177 = scmp.eq.s32.totalorder %s46, 0
      %p178 = por %p176, %p177
      %s180 = sadd.s32 %s179, 1
      %p183 = scmp.eq.s32.totalorder %s40, 1
      %p184 = scmp.ne.s32.totalorder %s179, %s181
      %p185 = scmp.eq.s32.totalorder %s40, 0
      %p186 = por %p184, %p185
      %p187 = scmp.ne.s32.totalorder %s179, %s181
      %p188 = scmp.eq.s32.totalorder %s45, 1
      %p189 = por %p187, %p188
      %p190 = scmp.ne.s32.totalorder %s181, %s182
      %p191 = scmp.eq.s32.totalorder %s45, 0
      %p192 = por %p190, %p191
      %p193 = scmp.ne.s32.totalorder %s181, %s182
      %p194 = scmp.eq.s32.totalorder %s46, 1
      %p195 = por %p193, %p194
      %p197 = scmp.ne.s32.totalorder %s182, %s196
      %p198 = scmp.eq.s32.totalorder %s46, 0
      %p199 = por %p197, %p198
      %s201 = sadd.s32 %s200, 1
      %p204 = scmp.eq.s32.totalorder %s40, 1
      %p205 = scmp.ne.s32.totalorder %s200, %s202
      %p206 = scmp.eq.s32.totalorder %s40, 0
      %p207 = por %p205, %p206
      %p208 = scmp.ne.s32.totalorder %s200, %s202
      %p209 = scmp.eq.s32.totalorder %s45, 1
      %p210 = por %p208, %p209
      %p211 = scmp.ne.s32.totalorder %s202, %s203
      %p212 = scmp.eq.s32.totalorder %s45, 0
      %p213 = por %p211, %p212
      %p214 = scmp.ne.s32.totalorder %s202, %s203
      %p215 = scmp.eq.s32.totalorder %s46, 1
      %p216 = por %p214, %p215
      %p218 = scmp.ne.s32.totalorder %s203, %s217
      %p219 = scmp.eq.s32.totalorder %s46, 0
      %p220 = por %p218, %p219
      %s222 = sadd.s32 %s221, 1
      %p225 = scmp.eq.s32.totalorder %s40, 1
      %p226 = scmp.ne.s32.totalorder %s221, %s223
      %p227 = scmp.eq.s32.totalorder %s40, 0
      %p228 = por %p226, %p227
      %p229 = scmp.ne.s32.totalorder %s221, %s223
      %p230 = scmp.eq.s32.totalorder %s45, 1
      %p231 = por %p229, %p230
      %p232 = scmp.ne.s32.totalorder %s223, %s224
      %p233 = scmp.eq.s32.totalorder %s45, 0
      %p234 = por %p232, %p233
      %p235 = scmp.ne.s32.totalorder %s223, %s224
      %p236 = scmp.eq.s32.totalorder %s46, 1
      %p237 = por %p235, %p236
      %p239 = scmp.ne.s32.totalorder %s224, %s238
      %p240 = scmp.eq.s32.totalorder %s46, 0
      %p241 = por %p239, %p240
      %s243 = sadd.s32 %s242, 1
      %p246 = scmp.eq.s32.totalorder %s40, 1
      %p247 = scmp.ne.s32.totalorder %s242, %s244
      %p248 = scmp.eq.s32.totalorder %s40, 0
      %p249 = por %p247, %p248
      %p250 = scmp.ne.s32.totalorder %s242, %s244
      %p251 = scmp.eq.s32.totalorder %s45, 1
      %p252 = por %p250, %p251
      %p253 = scmp.ne.s32.totalorder %s244, %s245
      %p254 = scmp.eq.s32.totalorder %s45, 0
      %p255 = por %p253, %p254
      %p256 = scmp.ne.s32.totalorder %s244, %s245
      %p257 = scmp.eq.s32.totalorder %s46, 1
      %p258 = por %p256, %p257
      %p260 = scmp.ne.s32.totalorder %s245, %s259
      %p261 = scmp.eq.s32.totalorder %s46, 0
      %p262 = por %p260, %p261
      %s264 = sadd.s32 %s263, 1
      %p267 = scmp.eq.s32.totalorder %s40, 1
      %p268 = scmp.ne.s32.totalorder %s263, %s265
      %p269 = scmp.eq.s32.totalorder %s40, 0
      %p270 = por %p268, %p269
      %p271 = scmp.ne.s32.totalorder %s263, %s265
      %p272 = scmp.eq.s32.totalorder %s45, 1
      %p273 = por %p271, %p272
      %p274 = scmp.ne.s32.totalorder %s265, %s266
      %p275 = scmp.eq.s32.totalorder %s45, 0
      %p276 = por %p274, %p275
      %p277 = scmp.ne.s32.totalorder %s265, %s266
      %p278 = scmp.eq.s32.totalorder %s46, 1
      %p279 = por %p277, %p278
      %p281 = scmp.ne.s32.totalorder %s266, %s280
      %p282 = scmp.eq.s32.totalorder %s46, 0
      %p283 = por %p281, %p282
      %s285 = sadd.s32 %s284, 1
      %p288 = scmp.eq.s32.totalorder %s40, 1
      %p289 = scmp.ne.s32.totalorder %s284, %s286
      %p290 = scmp.eq.s32.totalorder %s40, 0
      %p291 = por %p289, %p290
      %p292 = scmp.ne.s32.totalorder %s284, %s286
      %p293 = scmp.eq.s32.totalorder %s45, 1
      %p294 = por %p292, %p293
      %p295 = scmp.ne.s32.totalorder %s286, %s287
      %p296 = scmp.eq.s32.totalorder %s45, 0
      %p297 = por %p295, %p296
      %p298 = scmp.ne.s32.totalorder %s286, %s287
      %p299 = scmp.eq.s32.totalorder %s46, 1
      %p300 = por %p298, %p299
      %p302 = scmp.ne.s32.totalorder %s287, %s301
      %p303 = scmp.eq.s32.totalorder %s46, 0
      %p304 = por %p302, %p303
      %s306 = sadd.s32 %s305, 1
      %p309 = scmp.eq.s32.totalorder %s40, 1
      %p310 = scmp.ne.s32.totalorder %s305, %s307
      %p311 = scmp.eq.s32.totalorder %s40, 0
      %p312 = por %p310, %p311
      %p313 = scmp.ne.s32.totalorder %s305, %s307
      %p314 = scmp.eq.s32.totalorder %s45, 1
      %p315 = por %p313, %p314
      %p316 = scmp.ne.s32.totalorder %s307, %s308
      %p317 = scmp.eq.s32.totalorder %s45, 0
      %p318 = por %p316, %p317
      %p319 = scmp.ne.s32.totalorder %s307, %s308
      %p320 = scmp.eq.s32.totalorder %s46, 1
      %p321 = por %p319, %p320
      %p323 = scmp.ne.s32.totalorder %s308, %s322
      %p324 = scmp.eq.s32.totalorder %s46, 0
      %p325 = por %p323, %p324
      %s327 = sadd.s32 %s326, 1
      %p330 = scmp.eq.s32.totalorder %s40, 1
      %p331 = scmp.ne.s32.totalorder %s326, %s328
      %p332 = scmp.eq.s32.totalorder %s40, 0
      %p333 = por %p331, %p332
      %p334 = scmp.ne.s32.totalorder %s326, %s328
      %p335 = scmp.eq.s32.totalorder %s45, 1
      %p336 = por %p334, %p335
      %p337 = scmp.ne.s32.totalorder %s328, %s329
      %p338 = scmp.eq.s32.totalorder %s45, 0
      %p339 = por %p337, %p338
      %p340 = scmp.ne.s32.totalorder %s328, %s329
      %p341 = scmp.eq.s32.totalorder %s46, 1
      %p342 = por %p340, %p341
      %p344 = scmp.ne.s32.totalorder %s329, %s343
      %p345 = scmp.eq.s32.totalorder %s46, 0
      %p346 = por %p344, %p345
      %s348 = sadd.s32 %s347, 1
      %p351 = scmp.eq.s32.totalorder %s40, 1
      %p352 = scmp.ne.s32.totalorder %s347, %s349
      %p353 = scmp.eq.s32.totalorder %s40, 0
      %p354 = por %p352, %p353
      %p355 = scmp.ne.s32.totalorder %s347, %s349
      %p356 = scmp.eq.s32.totalorder %s45, 1
      %p357 = por %p355, %p356
      %p358 = scmp.ne.s32.totalorder %s349, %s350
      %p359 = scmp.eq.s32.totalorder %s45, 0
      %p360 = por %p358, %p359
      %p361 = scmp.ne.s32.totalorder %s349, %s350
      %p362 = scmp.eq.s32.totalorder %s46, 1
      %p363 = por %p361, %p362
      %p365 = scmp.ne.s32.totalorder %s350, %s364
      %p366 = scmp.eq.s32.totalorder %s46, 0
      %p367 = por %p365, %p366
      %s369 = sadd.s32 %s368, 1
      %p372 = scmp.eq.s32.totalorder %s40, 1
      %p373 = scmp.ne.s32.totalorder %s368, %s370
      %p374 = scmp.eq.s32.totalorder %s40, 0
      %p375 = por %p373, %p374
      %p376 = scmp.ne.s32.totalorder %s368, %s370
      %p377 = scmp.eq.s32.totalorder %s45, 1
      %p378 = por %p376, %p377
      %p379 = scmp.ne.s32.totalorder %s370, %s371
      %p380 = scmp.eq.s32.totalorder %s45, 0
      %p381 = por %p379, %p380
      %p382 = scmp.ne.s32.totalorder %s370, %s371
      %p383 = scmp.eq.s32.totalorder %s46, 1
      %p384 = por %p382, %p383
      %p386 = scmp.ne.s32.totalorder %s371, %s385
      %p387 = scmp.eq.s32.totalorder %s46, 0
      %p388 = por %p386, %p387
      %s390 = sadd.s32 %s389, 1
      %p393 = scmp.eq.s32.totalorder %s40, 1
      %p394 = scmp.ne.s32.totalorder %s389, %s391
      %p395 = scmp.eq.s32.totalorder %s40, 0
      %p396 = por %p394, %p395
      %p397 = scmp.ne.s32.totalorder %s389, %s391
      %p398 = scmp.eq.s32.totalorder %s45, 1
      %p399 = por %p397, %p398
      %p400 = scmp.ne.s32.totalorder %s391, %s392
      %p401 = scmp.eq.s32.totalorder %s45, 0
      %p402 = por %p400, %p401
      %p403 = scmp.ne.s32.totalorder %s391, %s392
      %p404 = scmp.eq.s32.totalorder %s46, 1
      %p405 = por %p403, %p404
      %p407 = scmp.ne.s32.totalorder %s392, %s406
      %p408 = scmp.eq.s32.totalorder %s46, 0
      %p409 = por %p407, %p408
      %s411 = sadd.s32 %s410, 1
      %p414 = scmp.eq.s32.totalorder %s40, 1
      %p415 = scmp.ne.s32.totalorder %s410, %s412
      %p416 = scmp.eq.s32.totalorder %s40, 0
      %p417 = por %p415, %p416
      %p418 = scmp.ne.s32.totalorder %s410, %s412
      %p419 = scmp.eq.s32.totalorder %s45, 1
      %p420 = por %p418, %p419
      %p421 = scmp.ne.s32.totalorder %s412, %s413
      %p422 = scmp.eq.s32.totalorder %s45, 0
      %p423 = por %p421, %p422
      %p424 = scmp.ne.s32.totalorder %s412, %s413
      %p425 = scmp.eq.s32.totalorder %s46, 1
      %p426 = por %p424, %p425
      %p428 = scmp.ne.s32.totalorder %s413, %s427
      %p429 = scmp.eq.s32.totalorder %s46, 0
      %p430 = por %p428, %p429
      %s432 = sadd.s32 %s431, 1
      %p435 = scmp.eq.s32.totalorder %s40, 1
      %p436 = scmp.ne.s32.totalorder %s431, %s433
      %p437 = scmp.eq.s32.totalorder %s40, 0
      %p438 = por %p436, %p437
      %p439 = scmp.ne.s32.totalorder %s431, %s433
      %p440 = scmp.eq.s32.totalorder %s45, 1
      %p441 = por %p439, %p440
      %p442 = scmp.ne.s32.totalorder %s433, %s434
      %p443 = scmp.eq.s32.totalorder %s45, 0
      %p444 = por %p442, %p443
      %p445 = scmp.ne.s32.totalorder %s433, %s434
      %p446 = scmp.eq.s32.totalorder %s46, 1
      %p447 = por %p445, %p446
      %p449 = scmp.ne.s32.totalorder %s434, %s448
      %p450 = scmp.eq.s32.totalorder %s46, 0
      %p451 = por %p449, %p450
      %s453 = sadd.s32 %s452, 1
      %p456 = scmp.eq.s32.totalorder %s40, 1
      %p457 = scmp.ne.s32.totalorder %s452, %s454
      %p458 = scmp.eq.s32.totalorder %s40, 0
      %p459 = por %p457, %p458
      %p460 = scmp.ne.s32.totalorder %s452, %s454
      %p461 = scmp.eq.s32.totalorder %s45, 1
      %p462 = por %p460, %p461
      %p463 = scmp.ne.s32.totalorder %s454, %s455
      %p464 = scmp.eq.s32.totalorder %s45, 0
      %p465 = por %p463, %p464
      %p466 = scmp.ne.s32.totalorder %s454, %s455
      %p467 = scmp.eq.s32.totalorder %s46, 1
      %p468 = por %p466, %p467
      %p470 = scmp.ne.s32.totalorder %s455, %s469
      %p471 = scmp.eq.s32.totalorder %s46, 0
      %p472 = por %p470, %p471
      %s474 = sadd.s32 %s473, 1
      %p477 = scmp.eq.s32.totalorder %s40, 1
      %p478 = scmp.ne.s32.totalorder %s473, %s475
      %p479 = scmp.eq.s32.totalorder %s40, 0
      %p480 = por %p478, %p479
      %p481 = scmp.ne.s32.totalorder %s473, %s475
      %p482 = scmp.eq.s32.totalorder %s45, 1
      %p483 = por %p481, %p482
      %p484 = scmp.ne.s32.totalorder %s475, %s476
      %p485 = scmp.eq.s32.totalorder %s45, 0
      %p486 = por %p484, %p485
      %p487 = scmp.ne.s32.totalorder %s475, %s476
      %p488 = scmp.eq.s32.totalorder %s46, 1
      %p489 = por %p487, %p488
      %p491 = scmp.ne.s32.totalorder %s476, %s490
      %p492 = scmp.eq.s32.totalorder %s46, 0
      %p493 = por %p491, %p492
      %s494 = ssub.s32 %s40, %s47
      %p495 = scmp.eq.s32.totalorder %s494, 0
      %s497 = sadd.s32 %s496, 1
      %s498 = scalar_select %p495, %s496, %s497
      %p501 = pneg %p495
      %p502 = scmp.eq.s32.totalorder %s40, 1
      %p503 = por %p501, %p502
      %p504 = scmp.ne.s32.totalorder %s496, %s499
      %p505 = scmp.eq.s32.totalorder %s40, 0
      %p506 = por %p504, %p505
      %p507 = scmp.ne.s32.totalorder %s496, %s499
      %p508 = scmp.eq.s32.totalorder %s45, 1
      %p509 = por %p507, %p508
      %p510 = scmp.ne.s32.totalorder %s499, %s500
      %p511 = scmp.eq.s32.totalorder %s45, 0
      %p512 = por %p510, %p511
      %p513 = scmp.ne.s32.totalorder %s499, %s500
      %p514 = scmp.eq.s32.totalorder %s46, 1
      %p515 = por %p513, %p514
      %p517 = scmp.ne.s32.totalorder %s500, %s516
      %p518 = scmp.eq.s32.totalorder %s46, 0
      %p519 = por %p517, %p518
      %p520 = scmp.le.s32.totalorder 1, %s40
      %p521 = scmp.lt.s32.totalorder %s40, 3
      %p522 = pnand %p520, %p521
      %p523 = pneg %p522
      // Predicated region
      $region9: #{tpu_custom_call.1} parent=5 // pred_check
        _
      $region10: #{tpu_custom_call.1} parent=5 // pred_check_branch
        %525 = sbr.rel (%p522) target = $region12
      $region11: #{tpu_custom_call.1} parent=5 // pred_region
        %s526 = ssub.s32 %s40, 1
        // Predicated region
        $region13: #{tpu_custom_call.1} parent=11 // pred_check
          %p527 = pneg %p87
        $region14: #{tpu_custom_call.1} parent=11 // pred_check_branch
          %529 = sbr.rel (%p527) target = $region16
        $region15: #{tpu_custom_call.1} parent=11 // pred_region
          %s531 = ssub.s32 256, 256
          %532 = vsyncadd [#allocation7], %s531
          %s534 = sshll.u32 [#allocation6], 4
          %s535 = int_to_ptr.vmem [resolvable:$true] %s534
          %537 = dma.hbm_to_vmem [thread:$0]  %s1, 256, %s535, [#allocation7]
        $region16: #{tpu_custom_call.1} parent=11 // pred_fallthru
          _
        // Predicated region
        $region17: #{tpu_custom_call.1} parent=11 // pred_check
          %p538 = pneg %p108
        $region18: #{tpu_custom_call.1} parent=11 // pred_check_branch
          %540 = sbr.rel (%p538) target = $region20
        $region19: #{tpu_custom_call.1} parent=11 // pred_region
          %s542 = ssub.s32 128, 128
          %543 = vsyncadd [#allocation7], %s542
          %s545 = sshll.u32 [#allocation8], 4
          %s546 = int_to_ptr.vmem [resolvable:$true] %s545
          %548 = dma.hbm_to_vmem [thread:$0]  %s2, 128, %s546, [#allocation7]
        $region20: #{tpu_custom_call.1} parent=11 // pred_fallthru
          _
        // Predicated region
        $region21: #{tpu_custom_call.1} parent=11 // pred_check
          %p549 = pneg %p129
        $region22: #{tpu_custom_call.1} parent=11 // pred_check_branch
          %551 = sbr.rel (%p549) target = $region24
        $region23: #{tpu_custom_call.1} parent=11 // pred_region
          %s553 = ssub.s32 4096, 4096
          %554 = vsyncadd [#allocation10], %s553
          %s555 = sshll.u32 [#allocation9], 4
          %s556 = int_to_ptr.vmem [resolvable:$true] %s555
          %561 = dma.hbm_to_vmem [thread:$0]  %s3, 4096, %s556, [#allocation10], 128, 128, 8
        $region24: #{tpu_custom_call.1} parent=11 // pred_fallthru
          _
        // Predicated region
        $region25: #{tpu_custom_call.1} parent=11 // pred_check
          %p562 = pneg %p150
        $region26: #{tpu_custom_call.1} parent=11 // pred_check_branch
          %564 = sbr.rel (%p562) target = $region28
        $region27: #{tpu_custom_call.1} parent=11 // pred_region
          _
        $region28: #{tpu_custom_call.1} parent=11 // pred_fallthru
          _
        // Predicated region
        $region29: #{tpu_custom_call.1} parent=11 // pred_check
          %p565 = pneg %p171
        $region30: #{tpu_custom_call.1} parent=11 // pred_check_branch
          %567 = sbr.rel (%p565) target = $region32
        $region31: #{tpu_custom_call.1} parent=11 // pred_region
          %s569 = ssub.s32 4096, 4096
          %570 = vsyncadd [#allocation10], %s569
          %s571 = sshll.u32 [#allocation11], 4
          %s572 = int_to_ptr.vmem [resolvable:$true] %s571
          %577 = dma.hbm_to_vmem [thread:$0]  %s5, 4096, %s572, [#allocation10], 128, 128, 8
        $region32: #{tpu_custom_call.1} parent=11 // pred_fallthru
          _
        // Predicated region
        $region33: #{tpu_custom_call.1} parent=11 // pred_check
          %p578 = pneg %p192
        $region34: #{tpu_custom_call.1} parent=11 // pred_check_branch
          %580 = sbr.rel (%p578) target = $region36
        $region35: #{tpu_custom_call.1} parent=11 // pred_region
          _
        $region36: #{tpu_custom_call.1} parent=11 // pred_fallthru
          _
        // Predicated region
        $region37: #{tpu_custom_call.1} parent=11 // pred_check
          %p581 = pneg %p213
        $region38: #{tpu_custom_call.1} parent=11 // pred_check_branch
          %583 = sbr.rel (%p581) target = $region40
        $region39: #{tpu_custom_call.1} parent=11 // pred_region
          %s585 = ssub.s32 4096, 4096
          %586 = vsyncadd [#allocation13], %s585
          %s587 = sshll.u32 [#allocation12], 4
          %s588 = int_to_ptr.vmem [resolvable:$true] %s587
          %593 = dma.hbm_to_vmem [thread:$0]  %s7, 4096, %s588, [#allocation13], 128, 128, 8
        $region40: #{tpu_custom_call.1} parent=11 // pred_fallthru
          _
        // Predicated region
        $region41: #{tpu_custom_call.1} parent=11 // pred_check
          %p594 = pneg %p234
        $region42: #{tpu_custom_call.1} parent=11 // pred_check_branch
          %596 = sbr.rel (%p594) target = $region44
        $region43: #{tpu_custom_call.1} parent=11 // pred_region
          _
        $region44: #{tpu_custom_call.1} parent=11 // pred_fallthru
          _
        // Predicated region
        $region45: #{tpu_custom_call.1} parent=11 // pred_check
          %p597 = pneg %p255
        $region46: #{tpu_custom_call.1} parent=11 // pred_check_branch
          %599 = sbr.rel (%p597) target = $region48
        $region47: #{tpu_custom_call.1} parent=11 // pred_region
          %s601 = ssub.s32 4096, 4096
          %602 = vsyncadd [#allocation13], %s601
          %s603 = sshll.u32 [#allocation14], 4
          %s604 = int_to_ptr.vmem [resolvable:$true] %s603
          %609 = dma.hbm_to_vmem [thread:$0]  %s9, 4096, %s604, [#allocation13], 128, 128, 8
        $region48: #{tpu_custom_call.1} parent=11 // pred_fallthru
          _
        // Predicated region
        $region49: #{tpu_custom_call.1} parent=11 // pred_check
          %p610 = pneg %p276
        $region50: #{tpu_custom_call.1} parent=11 // pred_check_branch
          %612 = sbr.rel (%p610) target = $region52
        $region51: #{tpu_custom_call.1} parent=11 // pred_region
          _
        $region52: #{tpu_custom_call.1} parent=11 // pred_fallthru
          _
        // Predicated region
        $region53: #{tpu_custom_call.1} parent=11 // pred_check
          %p613 = pneg %p297
        $region54: #{tpu_custom_call.1} parent=11 // pred_check_branch
          %615 = sbr.rel (%p613) target = $region56
        $region55: #{tpu_custom_call.1} parent=11 // pred_region
          _
        $region56: #{tpu_custom_call.1} parent=11 // pred_fallthru
          _
        // Predicated region
        $region57: #{tpu_custom_call.1} parent=11 // pred_check
          %p616 = pneg %p318
        $region58: #{tpu_custom_call.1} parent=11 // pred_check_branch
          %618 = sbr.rel (%p616) target = $region60
        $region59: #{tpu_custom_call.1} parent=11 // pred_region
          %s620 = ssub.s32 32, 32
          %621 = vsyncadd [#allocation16], %s620
          %s623 = sshll.u32 [#allocation15], 4
          %s624 = int_to_ptr.vmem [resolvable:$true] %s623
          %626 = dma.hbm_to_vmem [thread:$0]  %s12, 32, %s624, [#allocation16]
        $region60: #{tpu_custom_call.1} parent=11 // pred_fallthru
          _
        // Predicated region
        $region61: #{tpu_custom_call.1} parent=11 // pred_check
          %p627 = pneg %p339
        $region62: #{tpu_custom_call.1} parent=11 // pred_check_branch
          %629 = sbr.rel (%p627) target = $region64
        $region63: #{tpu_custom_call.1} parent=11 // pred_region
          %s631 = ssub.s32 32768, 32768
          %632 = vsyncadd [#allocation16], %s631
          %s633 = sshll.u32 [#allocation17], 4
          %s634 = int_to_ptr.vmem [resolvable:$true] %s633
          %639 = dma.hbm_to_vmem [thread:$0]  %s13, 32768, %s634, [#allocation16], 1024, 1024, 64
        $region64: #{tpu_custom_call.1} parent=11 // pred_fallthru
          _
        // Predicated region
        $region65: #{tpu_custom_call.1} parent=11 // pred_check
          %p640 = pneg %p360
        $region66: #{tpu_custom_call.1} parent=11 // pred_check_branch
          %642 = sbr.rel (%p640) target = $region68
        $region67: #{tpu_custom_call.1} parent=11 // pred_region
          _
        $region68: #{tpu_custom_call.1} parent=11 // pred_fallthru
          _
        // Predicated region
        $region69: #{tpu_custom_call.1} parent=11 // pred_check
          %p643 = pneg %p381
        $region70: #{tpu_custom_call.1} parent=11 // pred_check_branch
          %645 = sbr.rel (%p643) target = $region72
        $region71: #{tpu_custom_call.1} parent=11 // pred_region
          %s647 = ssub.s32 32768, 32768
          %648 = vsyncadd [#allocation19], %s647
          %s649 = sshll.u32 [#allocation18], 4
          %s650 = int_to_ptr.vmem [resolvable:$true] %s649
          %655 = dma.hbm_to_vmem [thread:$0]  %s15, 32768, %s650, [#allocation19], 128, 128, 8
        $region72: #{tpu_custom_call.1} parent=11 // pred_fallthru
          _
        // Predicated region
        $region73: #{tpu_custom_call.1} parent=11 // pred_check
          %p656 = pneg %p402
        $region74: #{tpu_custom_call.1} parent=11 // pred_check_branch
          %658 = sbr.rel (%p656) target = $region76
        $region75: #{tpu_custom_call.1} parent=11 // pred_region
          _
        $region76: #{tpu_custom_call.1} parent=11 // pred_fallthru
          _
        // Predicated region
        $region77: #{tpu_custom_call.1} parent=11 // pred_check
          %p659 = pneg %p423
        $region78: #{tpu_custom_call.1} parent=11 // pred_check_branch
          %661 = sbr.rel (%p659) target = $region80
        $region79: #{tpu_custom_call.1} parent=11 // pred_region
          _
        $region80: #{tpu_custom_call.1} parent=11 // pred_fallthru
          _
        // Predicated region
        $region81: #{tpu_custom_call.1} parent=11 // pred_check
          %p662 = pneg %p444
        $region82: #{tpu_custom_call.1} parent=11 // pred_check_branch
          %664 = sbr.rel (%p662) target = $region84
        $region83: #{tpu_custom_call.1} parent=11 // pred_region
          _
        $region84: #{tpu_custom_call.1} parent=11 // pred_fallthru
          _
        // Predicated region
        $region85: #{tpu_custom_call.1} parent=11 // pred_check
          %p665 = pneg %p465
        $region86: #{tpu_custom_call.1} parent=11 // pred_check_branch
          %667 = sbr.rel (%p665) target = $region88
        $region87: #{tpu_custom_call.1} parent=11 // pred_region
          _
        $region88: #{tpu_custom_call.1} parent=11 // pred_fallthru
          _
        // Predicated region
        $region89: #{tpu_custom_call.1} parent=11 // pred_check
          %p668 = pneg %p486
        $region90: #{tpu_custom_call.1} parent=11 // pred_check_branch
          %670 = sbr.rel (%p668) target = $region92
        $region91: #{tpu_custom_call.1} parent=11 // pred_region
          _
        $region92: #{tpu_custom_call.1} parent=11 // pred_fallthru
          _
      $region12: #{tpu_custom_call.1} parent=5 // pred_fallthru
        _
      %p671 = scmp.lt.s32.totalorder %s40, 2
      // Predicated region
      $region93: #{tpu_custom_call.1} parent=5 // pred_check
        %p672 = pneg %p671
      $region94: #{tpu_custom_call.1} parent=5 // pred_check_branch
        %674 = sbr.rel (%p672) target = $region96
      $region95: #{tpu_custom_call.1} parent=5 // pred_region
        // Predicated region
        $region97: #{tpu_custom_call.1} parent=95 // pred_check
          %p675 = pneg %p60
        $region98: #{tpu_custom_call.1} parent=95 // pred_check_branch
          %677 = sbr.rel (%p675) target = $region100
        $region99: #{tpu_custom_call.1} parent=95 // pred_region
          %s678 = sand.u32 %s50, 1
          %s679 = scalar_lea.sflag [#allocation4], %s678
          %s680 = sand.u32 %s50, 1
          %s681 = smul.addr %s680, 32
          %s682 = scalar_lea.vmem [#allocation3], %s681
          %s683 = smul.u32 2, %s40
          %s685 = ssub.s32 512, 512
          %686 = vsyncadd %s679, %s685
          %s687 = smul.addr %s683, 2
          %s688 = smul.addr %s687, 128
          %s689 = scalar_lea.hbm %s0, %s688
          %s690 = sshll.u32 %s682, 4
          %s691 = int_to_ptr.vmem [resolvable:$true] %s690
          %696 = dma.hbm_to_vmem [thread:$0]  %s689, 512, %s691, %s679, 256, 256, 16
        $region100: #{tpu_custom_call.1} parent=95 // pred_fallthru
          _
      $region96: #{tpu_custom_call.1} parent=5 // pred_fallthru
        _
      %p697 = scmp.le.s32.totalorder 1, %s40
      %p698 = scmp.lt.s32.totalorder %s40, 3
      %p699 = pnand %p697, %p698
      %p700 = pneg %p699
      // Predicated region
      $region101: #{tpu_custom_call.1} parent=5 // pred_check
        _
      $region102: #{tpu_custom_call.1} parent=5 // pred_check_branch
        %702 = sbr.rel (%p699) target = $region104
      $region103: #{tpu_custom_call.1} parent=5 // pred_region
        %s703 = ssub.s32 %s40, 1
        %s704 = sand.u32 %s53, 1
        %s705 = scalar_lea.sflag [#allocation4], %s704
        %s706 = sand.u32 %s53, 1
        %s707 = smul.addr %s706, 32
        %s708 = scalar_lea.vmem [#allocation3], %s707
        // Predicated region
        $region105: #{tpu_custom_call.1} parent=103 // pred_check
          %p709 = pneg %p66
        $region106: #{tpu_custom_call.1} parent=103 // pred_check_branch
          %711 = sbr.rel (%p709) target = $region108
        $region107: #{tpu_custom_call.1} parent=103 // pred_region
          %712 = dma.done %s705, 512
        $region108: #{tpu_custom_call.1} parent=103 // pred_fallthru
          _
        // Predicated region
        $region109: #{tpu_custom_call.1} parent=103 // pred_check
          %p713 = pneg %p87
        $region110: #{tpu_custom_call.1} parent=103 // pred_check_branch
          %715 = sbr.rel (%p713) target = $region112
        $region111: #{tpu_custom_call.1} parent=103 // pred_region
          %716 = dma.done [#allocation7], 256
        $region112: #{tpu_custom_call.1} parent=103 // pred_fallthru
          _
        // Predicated region
        $region113: #{tpu_custom_call.1} parent=103 // pred_check
          %p717 = pneg %p108
        $region114: #{tpu_custom_call.1} parent=103 // pred_check_branch
          %719 = sbr.rel (%p717) target = $region116
        $region115: #{tpu_custom_call.1} parent=103 // pred_region
          %720 = dma.done [#allocation7], 128
        $region116: #{tpu_custom_call.1} parent=103 // pred_fallthru
          _
        // Predicated region
        $region117: #{tpu_custom_call.1} parent=103 // pred_check
          %p721 = pneg %p129
        $region118: #{tpu_custom_call.1} parent=103 // pred_check_branch
          %723 = sbr.rel (%p721) target = $region120
        $region119: #{tpu_custom_call.1} parent=103 // pred_region
          %724 = dma.done [#allocation10], 4096
        $region120: #{tpu_custom_call.1} parent=103 // pred_fallthru
          _
        // Predicated region
        $region121: #{tpu_custom_call.1} parent=103 // pred_check
          %p725 = pneg %p171
        $region122: #{tpu_custom_call.1} parent=103 // pred_check_branch
          %727 = sbr.rel (%p725) target = $region124
        $region123: #{tpu_custom_call.1} parent=103 // pred_region
          %728 = dma.done [#allocation10], 4096
        $region124: #{tpu_custom_call.1} parent=103 // pred_fallthru
          _
        // Predicated region
        $region125: #{tpu_custom_call.1} parent=103 // pred_check
          %p729 = pneg %p213
        $region126: #{tpu_custom_call.1} parent=103 // pred_check_branch
          %731 = sbr.rel (%p729) target = $region128
        $region127: #{tpu_custom_call.1} parent=103 // pred_region
          %732 = dma.done [#allocation13], 4096
        $region128: #{tpu_custom_call.1} parent=103 // pred_fallthru
          _
        // Predicated region
        $region129: #{tpu_custom_call.1} parent=103 // pred_check
          %p733 = pneg %p255
        $region130: #{tpu_custom_call.1} parent=103 // pred_check_branch
          %735 = sbr.rel (%p733) target = $region132
        $region131: #{tpu_custom_call.1} parent=103 // pred_region
          %736 = dma.done [#allocation13], 4096
        $region132: #{tpu_custom_call.1} parent=103 // pred_fallthru
          _
        // Predicated region
        $region133: #{tpu_custom_call.1} parent=103 // pred_check
          %p737 = pneg %p318
        $region134: #{tpu_custom_call.1} parent=103 // pred_check_branch
          %739 = sbr.rel (%p737) target = $region136
        $region135: #{tpu_custom_call.1} parent=103 // pred_region
          %740 = dma.done [#allocation16], 32
        $region136: #{tpu_custom_call.1} parent=103 // pred_fallthru
          _
        // Predicated region
        $region137: #{tpu_custom_call.1} parent=103 // pred_check
          %p741 = pneg %p339
        $region138: #{tpu_custom_call.1} parent=103 // pred_check_branch
          %743 = sbr.rel (%p741) target = $region140
        $region139: #{tpu_custom_call.1} parent=103 // pred_region
          %744 = dma.done [#allocation16], 32768
        $region140: #{tpu_custom_call.1} parent=103 // pred_fallthru
          _
        // Predicated region
        $region141: #{tpu_custom_call.1} parent=103 // pred_check
          %p745 = pneg %p381
        $region142: #{tpu_custom_call.1} parent=103 // pred_check_branch
          %747 = sbr.rel (%p745) target = $region144
        $region143: #{tpu_custom_call.1} parent=103 // pred_region
          %748 = dma.done [#allocation19], 32768
        $region144: #{tpu_custom_call.1} parent=103 // pred_fallthru
          _
        %s749 = sand.u32 %s53, 1
        %s750 = scalar_lea.sflag [#allocation4], %s749
        %s751 = sand.u32 %s53, 1
        %s752 = smul.addr %s751, 32
        %s753 = scalar_lea.vmem [#allocation3], %s752
        %p754 = pneg %p66
        %p755 = pneg %p63
        %p756 = pneg %p87
        %p757 = pneg %p84
        %p758 = pneg %p108
        %p759 = pneg %p105
        %p760 = pneg %p129
        %p761 = pneg %p126
        %p762 = pneg %p150
        %p763 = pneg %p147
        %p764 = pneg %p171
        %p765 = pneg %p168
        %p766 = pneg %p192
        %p767 = pneg %p189
        %p768 = pneg %p213
        %p769 = pneg %p210
        %p770 = pneg %p234
        %p771 = pneg %p231
        %p772 = pneg %p255
        %p773 = pneg %p252
        %p774 = pneg %p276
        %p775 = pneg %p273
        %p776 = pneg %p297
        %p777 = pneg %p294
        %p778 = pneg %p318
        %p779 = pneg %p315
        %p780 = pneg %p339
        %p781 = pneg %p336
        %p782 = pneg %p360
        %p783 = pneg %p357
        %p784 = pneg %p381
        %p785 = pneg %p378
        %p786 = pneg %p402
        %p787 = pneg %p399
        %p788 = pneg %p423
        %p789 = pneg %p420
        %p790 = pneg %p444
        %p791 = pneg %p441
        %p792 = pneg %p465
        %p793 = pneg %p462
        %p794 = pneg %p486
        %p795 = pneg %p483
        %p796 = pneg %p512
        %p797 = pneg %p509
        %s798 = sand.u32 %s499, 1
        %s799 = scalar_lea.sflag [#allocation5], %s798
        %s800 = sand.u32 %s499, 1
        %s801 = smul.addr %s800, 2
        %s802 = scalar_lea.vmem [#allocation20], %s801
        %s803 = smul.u32 2, %s45
        %v805 = vld [vmem:[%s708] sm:$0xff]
        %v806 = vld [vmem:[%s708 + $0x8] sm:$0xff]
        %v807 = vld [vmem:[%s708 + $0x10] sm:$0xff]
        %v808 = vld [vmem:[%s708 + $0x18] sm:$0xff]
        %v809 = vld [vmem:[#allocation6] sm:$0xff]
        %v810 = vld [vmem:[#allocation6 + $0x8] sm:$0xff]
        %v811 = vadd.f32 %v805, %v809
        %v812 = vadd.f32 %v806, %v810
        %v813 = vadd.f32 %v807, %v809
        %v814 = vadd.f32 %v808, %v810
        %v815 = vpack.c.bf16 %v813, %v811
        %v816 = vpack.c.bf16 %v814, %v812
        %v817 = vld [vmem:[#allocation9] sm:$0xff]
        %v818 = vld [vmem:[#allocation9 + $0x8] sm:$0xff]
        %v819 = vld [vmem:[#allocation9 + $0x10] sm:$0xff]
        %v820 = vld [vmem:[#allocation9 + $0x18] sm:$0xff]
        %v821 = vld [vmem:[#allocation9 + $0x20] sm:$0xff]
        %v822 = vld [vmem:[#allocation9 + $0x28] sm:$0xff]
        %v823 = vld [vmem:[#allocation9 + $0x30] sm:$0xff]
        %v824 = vld [vmem:[#allocation9 + $0x38] sm:$0xff]
        %v825 = vld [vmem:[#allocation9 + $0x40] sm:$0xff]
        %v826 = vld [vmem:[#allocation9 + $0x48] sm:$0xff]
        %v827 = vld [vmem:[#allocation9 + $0x50] sm:$0xff]
        %v828 = vld [vmem:[#allocation9 + $0x58] sm:$0xff]
        %v829 = vld [vmem:[#allocation9 + $0x60] sm:$0xff]
        %v830 = vld [vmem:[#allocation9 + $0x68] sm:$0xff]
        %v831 = vld [vmem:[#allocation9 + $0x70] sm:$0xff]
        %v832 = vld [vmem:[#allocation9 + $0x78] sm:$0xff]
        %v833 = vld [vmem:[#allocation9 + $0x80] sm:$0xff]
        %v834 = vld [vmem:[#allocation9 + $0x88] sm:$0xff]
        %v835 = vld [vmem:[#allocation9 + $0x90] sm:$0xff]
        %v836 = vld [vmem:[#allocation9 + $0x98] sm:$0xff]
        %v837 = vld [vmem:[#allocation9 + $0xa0] sm:$0xff]
        %v838 = vld [vmem:[#allocation9 + $0xa8] sm:$0xff]
        %v839 = vld [vmem:[#allocation9 + $0xb0] sm:$0xff]
        %v840 = vld [vmem:[#allocation9 + $0xb8] sm:$0xff]
        %v841 = vld [vmem:[#allocation9 + $0xc0] sm:$0xff]
        %v842 = vld [vmem:[#allocation9 + $0xc8] sm:$0xff]
        %v843 = vld [vmem:[#allocation9 + $0xd0] sm:$0xff]
        %v844 = vld [vmem:[#allocation9 + $0xd8] sm:$0xff]
        %v845 = vld [vmem:[#allocation9 + $0xe0] sm:$0xff]
        %v846 = vld [vmem:[#allocation9 + $0xe8] sm:$0xff]
        %v847 = vld [vmem:[#allocation9 + $0xf0] sm:$0xff]
        %v848 = vld [vmem:[#allocation9 + $0xf8] sm:$0x11]
        %v849 = vld [vmem:[%s4] sm:$0x3]
        %v851 = vlaneseq
        %v852 = vshrl.u32 %v851, 7
        %v853 = vsub.s32 0, %v852
        %v854 = vrot.slane %v849, %v853
        %v855 = vlaneseq
        %v856 = vshrl.u32 %v855, 7
        %v857 = vsub.s32 1, %v856
        %v858 = vrot.slane %v849, %v857
        %v893 = vunpack.c.l.b16 %v817
        %v894 = vunpack.c.h.b16 %v817
        %v895 = vunpack.c.l.b16 %v818
        %v896 = vunpack.c.h.b16 %v818
        %v897 = vunpack.c.l.b16 %v819
        %v898 = vunpack.c.h.b16 %v819
        %v899 = vunpack.c.l.b16 %v820
        %v900 = vunpack.c.h.b16 %v820
        %v901 = vunpack.c.l.b16 %v821
        %v902 = vunpack.c.h.b16 %v821
        %v903 = vunpack.c.l.b16 %v822
        %v904 = vunpack.c.h.b16 %v822
        %v905 = vunpack.c.l.b16 %v823
        %v906 = vunpack.c.h.b16 %v823
        %v907 = vunpack.c.l.b16 %v824
        %v908 = vunpack.c.h.b16 %v824
        %v909 = vunpack.c.l.b16 %v825
        %v910 = vunpack.c.h.b16 %v825
        %v911 = vunpack.c.l.b16 %v826
        %v912 = vunpack.c.h.b16 %v826
        %v913 = vunpack.c.l.b16 %v827
        %v914 = vunpack.c.h.b16 %v827
        %v915 = vunpack.c.l.b16 %v828
        %v916 = vunpack.c.h.b16 %v828
        %v917 = vunpack.c.l.b16 %v829
        %v918 = vunpack.c.h.b16 %v829
        %v919 = vunpack.c.l.b16 %v830
        %v920 = vunpack.c.h.b16 %v830
        %v921 = vunpack.c.l.b16 %v831
        %v922 = vunpack.c.h.b16 %v831
        %v923 = vunpack.c.l.b16 %v832
        %v924 = vunpack.c.h.b16 %v832
        %v925 = vunpack.c.l.b16 %v833
        %v926 = vunpack.c.h.b16 %v833
        %v927 = vunpack.c.l.b16 %v834
        %v928 = vunpack.c.h.b16 %v834
        %v929 = vunpack.c.l.b16 %v835
        %v930 = vunpack.c.h.b16 %v835
        %v931 = vunpack.c.l.b16 %v836
        %v932 = vunpack.c.h.b16 %v836
        %v933 = vunpack.c.l.b16 %v837
        %v934 = vunpack.c.h.b16 %v837
        %v935 = vunpack.c.l.b16 %v838
        %v936 = vunpack.c.h.b16 %v838
        %v937 = vunpack.c.l.b16 %v839
        %v938 = vunpack.c.h.b16 %v839
        %v939 = vunpack.c.l.b16 %v840
        %v940 = vunpack.c.h.b16 %v840
        %v941 = vunpack.c.l.b16 %v841
        %v942 = vunpack.c.h.b16 %v841
        %v943 = vunpack.c.l.b16 %v842
        %v944 = vunpack.c.h.b16 %v842
        %v945 = vunpack.c.l.b16 %v843
        %v946 = vunpack.c.h.b16 %v843
        %v947 = vunpack.c.l.b16 %v844
        %v948 = vunpack.c.h.b16 %v844
        %v949 = vunpack.c.l.b16 %v845
        %v950 = vunpack.c.h.b16 %v845
        %v951 = vunpack.c.l.b16 %v846
        %v952 = vunpack.c.h.b16 %v846
        %v953 = vunpack.c.l.b16 %v847
        %v954 = vunpack.c.h.b16 %v847
        %v955 = vunpack.c.l.b16 %v848
        %v956 = vunpack.c.h.b16 %v848
        %v957 = vpack.c.b16 %v895, %v893
        %v958 = vpack.c.b16 %v896, %v894
        %v959 = vpack.c.b16 %v899, %v897
        %v960 = vpack.c.b16 %v900, %v898
        %v961 = vpack.c.b16 %v903, %v901
        %v962 = vpack.c.b16 %v904, %v902
        %v963 = vpack.c.b16 %v907, %v905
        %v964 = vpack.c.b16 %v908, %v906
        %v965 = vpack.c.b16 %v911, %v909
        %v966 = vpack.c.b16 %v912, %v910
        %v967 = vpack.c.b16 %v915, %v913
        %v968 = vpack.c.b16 %v916, %v914
        %v969 = vpack.c.b16 %v919, %v917
        %v970 = vpack.c.b16 %v920, %v918
        %v971 = vpack.c.b16 %v923, %v921
        %v972 = vpack.c.b16 %v924, %v922
        %v973 = vpack.c.b16 %v927, %v925
        %v974 = vpack.c.b16 %v928, %v926
        %v975 = vpack.c.b16 %v931, %v929
        %v976 = vpack.c.b16 %v932, %v930
        %v977 = vpack.c.b16 %v935, %v933
        %v978 = vpack.c.b16 %v936, %v934
        %v979 = vpack.c.b16 %v939, %v937
        %v980 = vpack.c.b16 %v940, %v938
        %v981 = vpack.c.b16 %v943, %v941
        %v982 = vpack.c.b16 %v944, %v942
        %v983 = vpack.c.b16 %v947, %v945
        %v984 = vpack.c.b16 %v948, %v946
        %v985 = vpack.c.b16 %v951, %v949
        %v986 = vpack.c.b16 %v952, %v950
        %v987 = vpack.c.b16 %v955, %v953
        %v988 = vpack.c.b16 %v956, %v954
        %vm1019 = vcmask 998400
        %v1021 = vsel %vm1019, %v816, 0
        %vm1023 = vcmask 1044480
        %v1025 = vsel %vm1023, %v987, 0
        %v1028 = vsel %vm1023, %v988, 0
        %1030 = vmatprep.subr.bf16.mxu0 %v972
        %1031 = vmatpush1.bf16.msra.mxu0 %v971
        %1032 = vmatprep.subr.bf16.mxu0 %v970
        %1033 = vmatpush1.bf16.msra.mxu0 %v969
        %1034 = vmatprep.subr.bf16.mxu0 %v968
        %1035 = vmatpush1.bf16.msra.mxu0 %v967
        %1036 = vmatprep.subr.bf16.mxu0 %v966
        %1037 = vmatpush1.bf16.msra.mxu0 %v965
        %1038 = vmatprep.subr.bf16.mxu0 %v964
        %1039 = vmatpush1.bf16.msra.mxu0 %v963
        %1040 = vmatprep.subr.bf16.mxu0 %v962
        %1041 = vmatpush1.bf16.msra.mxu0 %v961
        %1042 = vmatprep.subr.bf16.mxu0 %v960
        %1043 = vmatpush1.bf16.msra.mxu0 %v959
        %1044 = vmatprep.subr.bf16.mxu0 %v958
        %1045 = vmatpush1.bf16.msra.mxu0 %v957
        %1046 = vmatprep.subr.bf16.mxu0 %v1028
        %1047 = vmatpush2.bf16.msra.mxu0 %v1025
        %1048 = vmatprep.subr.bf16.mxu0 %v986
        %1049 = vmatpush2.bf16.msra.mxu0 %v985
        %1050 = vmatprep.subr.bf16.mxu0 %v984
        %1051 = vmatpush2.bf16.msra.mxu0 %v983
        %1052 = vmatprep.subr.bf16.mxu0 %v982
        %1053 = vmatpush2.bf16.msra.mxu0 %v981
        %1054 = vmatprep.subr.bf16.mxu0 %v980
        %1055 = vmatpush2.bf16.msra.mxu0 %v979
        %1056 = vmatprep.subr.bf16.mxu0 %v978
        %1057 = vmatpush2.bf16.msra.mxu0 %v977
        %1058 = vmatprep.subr.bf16.mxu0 %v976
        %1059 = vmatpush2.bf16.msra.mxu0 %v975
        %1060 = vmatprep.subr.bf16.mxu0 %v974
        %1061 = vmatpush2.bf16.msra.mxu0 %v973
        %1062 = vmatprep.mubr.bf16.mxu0 %v1021
        %1063 = vmatmul.mubr.bf16.gmra.mxu0 %v815
        %v1064 = vpop.f32.mrf.mxu0
        %v1065 = vadd.f32 %v854, %v1064
        %v1066 = vpop.f32.mrf.mxu0
        %v1067 = vadd.f32 %v858, %v1066
        %v1068 = vpop.f32.mrf.mxu0
        %v1069 = vadd.f32 %v854, %v1068
        %v1070 = vpop.f32.mrf.mxu0
        %v1071 = vadd.f32 %v858, %v1070
        %1072 = vdwg.mxu0
        %v1073 = vld [vmem:[#allocation11] sm:$0xff]
        %v1074 = vld [vmem:[#allocation11 + $0x8] sm:$0xff]
        %v1075 = vld [vmem:[#allocation11 + $0x10] sm:$0xff]
        %v1076 = vld [vmem:[#allocation11 + $0x18] sm:$0xff]
        %v1077 = vld [vmem:[#allocation11 + $0x20] sm:$0xff]
        %v1078 = vld [vmem:[#allocation11 + $0x28] sm:$0xff]
        %v1079 = vld [vmem:[#allocation11 + $0x30] sm:$0xff]
        %v1080 = vld [vmem:[#allocation11 + $0x38] sm:$0xff]
        %v1081 = vld [vmem:[#allocation11 + $0x40] sm:$0xff]
        %v1082 = vld [vmem:[#allocation11 + $0x48] sm:$0xff]
        %v1083 = vld [vmem:[#allocation11 + $0x50] sm:$0xff]
        %v1084 = vld [vmem:[#allocation11 + $0x58] sm:$0xff]
        %v1085 = vld [vmem:[#allocation11 + $0x60] sm:$0xff]
        %v1086 = vld [vmem:[#allocation11 + $0x68] sm:$0xff]
        %v1087 = vld [vmem:[#allocation11 + $0x70] sm:$0xff]
        %v1088 = vld [vmem:[#allocation11 + $0x78] sm:$0xff]
        %v1089 = vld [vmem:[#allocation11 + $0x80] sm:$0xff]
        %v1090 = vld [vmem:[#allocation11 + $0x88] sm:$0xff]
        %v1091 = vld [vmem:[#allocation11 + $0x90] sm:$0xff]
        %v1092 = vld [vmem:[#allocation11 + $0x98] sm:$0xff]
        %v1093 = vld [vmem:[#allocation11 + $0xa0] sm:$0xff]
        %v1094 = vld [vmem:[#allocation11 + $0xa8] sm:$0xff]
        %v1095 = vld [vmem:[#allocation11 + $0xb0] sm:$0xff]
        %v1096 = vld [vmem:[#allocation11 + $0xb8] sm:$0xff]
        %v1097 = vld [vmem:[#allocation11 + $0xc0] sm:$0xff]
        %v1098 = vld [vmem:[#allocation11 + $0xc8] sm:$0xff]
        %v1099 = vld [vmem:[#allocation11 + $0xd0] sm:$0xff]
        %v1100 = vld [vmem:[#allocation11 + $0xd8] sm:$0xff]
        %v1101 = vld [vmem:[#allocation11 + $0xe0] sm:$0xff]
        %v1102 = vld [vmem:[#allocation11 + $0xe8] sm:$0xff]
        %v1103 = vld [vmem:[#allocation11 + $0xf0] sm:$0xff]
        %v1104 = vld [vmem:[#allocation11 + $0xf8] sm:$0x11]
        %v1105 = vld [vmem:[%s6] sm:$0x3]
        %v1107 = vlaneseq
        %v1108 = vshrl.u32 %v1107, 7
        %v1109 = vsub.s32 0, %v1108
        %v1110 = vrot.slane %v1105, %v1109
        %v1111 = vlaneseq
        %v1112 = vshrl.u32 %v1111, 7
        %v1113 = vsub.s32 1, %v1112
        %v1114 = vrot.slane %v1105, %v1113
        %v1149 = vunpack.c.l.b16 %v1073
        %v1150 = vunpack.c.h.b16 %v1073
        %v1151 = vunpack.c.l.b16 %v1074
        %v1152 = vunpack.c.h.b16 %v1074
        %v1153 = vunpack.c.l.b16 %v1075
        %v1154 = vunpack.c.h.b16 %v1075
        %v1155 = vunpack.c.l.b16 %v1076
        %v1156 = vunpack.c.h.b16 %v1076
        %v1157 = vunpack.c.l.b16 %v1077
        %v1158 = vunpack.c.h.b16 %v1077
        %v1159 = vunpack.c.l.b16 %v1078
        %v1160 = vunpack.c.h.b16 %v1078
        %v1161 = vunpack.c.l.b16 %v1079
        %v1162 = vunpack.c.h.b16 %v1079
        %v1163 = vunpack.c.l.b16 %v1080
        %v1164 = vunpack.c.h.b16 %v1080
        %v1165 = vunpack.c.l.b16 %v1081
        %v1166 = vunpack.c.h.b16 %v1081
        %v1167 = vunpack.c.l.b16 %v1082
        %v1168 = vunpack.c.h.b16 %v1082
        %v1169 = vunpack.c.l.b16 %v1083
        %v1170 = vunpack.c.h.b16 %v1083
        %v1171 = vunpack.c.l.b16 %v1084
        %v1172 = vunpack.c.h.b16 %v1084
        %v1173 = vunpack.c.l.b16 %v1085
        %v1174 = vunpack.c.h.b16 %v1085
        %v1175 = vunpack.c.l.b16 %v1086
        %v1176 = vunpack.c.h.b16 %v1086
        %v1177 = vunpack.c.l.b16 %v1087
        %v1178 = vunpack.c.h.b16 %v1087
        %v1179 = vunpack.c.l.b16 %v1088
        %v1180 = vunpack.c.h.b16 %v1088
        %v1181 = vunpack.c.l.b16 %v1089
        %v1182 = vunpack.c.h.b16 %v1089
        %v1183 = vunpack.c.l.b16 %v1090
        %v1184 = vunpack.c.h.b16 %v1090
        %v1185 = vunpack.c.l.b16 %v1091
        %v1186 = vunpack.c.h.b16 %v1091
        %v1187 = vunpack.c.l.b16 %v1092
        %v1188 = vunpack.c.h.b16 %v1092
        %v1189 = vunpack.c.l.b16 %v1093
        %v1190 = vunpack.c.h.b16 %v1093
        %v1191 = vunpack.c.l.b16 %v1094
        %v1192 = vunpack.c.h.b16 %v1094
        %v1193 = vunpack.c.l.b16 %v1095
        %v1194 = vunpack.c.h.b16 %v1095
        %v1195 = vunpack.c.l.b16 %v1096
        %v1196 = vunpack.c.h.b16 %v1096
        %v1197 = vunpack.c.l.b16 %v1097
        %v1198 = vunpack.c.h.b16 %v1097
        %v1199 = vunpack.c.l.b16 %v1098
        %v1200 = vunpack.c.h.b16 %v1098
        %v1201 = vunpack.c.l.b16 %v1099
        %v1202 = vunpack.c.h.b16 %v1099
        %v1203 = vunpack.c.l.b16 %v1100
        %v1204 = vunpack.c.h.b16 %v1100
        %v1205 = vunpack.c.l.b16 %v1101
        %v1206 = vunpack.c.h.b16 %v1101
        %v1207 = vunpack.c.l.b16 %v1102
        %v1208 = vunpack.c.h.b16 %v1102
        %v1209 = vunpack.c.l.b16 %v1103
        %v1210 = vunpack.c.h.b16 %v1103
        %v1211 = vunpack.c.l.b16 %v1104
        %v1212 = vunpack.c.h.b16 %v1104
        %v1213 = vpack.c.b16 %v1151, %v1149
        %v1214 = vpack.c.b16 %v1152, %v1150
        %v1215 = vpack.c.b16 %v1155, %v1153
        %v1216 = vpack.c.b16 %v1156, %v1154
        %v1217 = vpack.c.b16 %v1159, %v1157
        %v1218 = vpack.c.b16 %v1160, %v1158
        %v1219 = vpack.c.b16 %v1163, %v1161
        %v1220 = vpack.c.b16 %v1164, %v1162
        %v1221 = vpack.c.b16 %v1167, %v1165
        %v1222 = vpack.c.b16 %v1168, %v1166
        %v1223 = vpack.c.b16 %v1171, %v1169
        %v1224 = vpack.c.b16 %v1172, %v1170
        %v1225 = vpack.c.b16 %v1175, %v1173
        %v1226 = vpack.c.b16 %v1176, %v1174
        %v1227 = vpack.c.b16 %v1179, %v1177
        %v1228 = vpack.c.b16 %v1180, %v1178
        %v1229 = vpack.c.b16 %v1183, %v1181
        %v1230 = vpack.c.b16 %v1184, %v1182
        %v1231 = vpack.c.b16 %v1187, %v1185
        %v1232 = vpack.c.b16 %v1188, %v1186
        %v1233 = vpack.c.b16 %v1191, %v1189
        %v1234 = vpack.c.b16 %v1192, %v1190
        %v1235 = vpack.c.b16 %v1195, %v1193
        %v1236 = vpack.c.b16 %v1196, %v1194
        %v1237 = vpack.c.b16 %v1199, %v1197
        %v1238 = vpack.c.b16 %v1200, %v1198
        %v1239 = vpack.c.b16 %v1203, %v1201
        %v1240 = vpack.c.b16 %v1204, %v1202
        %v1241 = vpack.c.b16 %v1207, %v1205
        %v1242 = vpack.c.b16 %v1208, %v1206
        %v1243 = vpack.c.b16 %v1211, %v1209
        %v1244 = vpack.c.b16 %v1212, %v1210
        %v1276 = vsel %vm1023, %v1243, 0
        %v1279 = vsel %vm1023, %v1244, 0
        %1281 = vmatprep.subr.bf16.mxu0 %v1228
        %1282 = vmatpush1.bf16.msra.mxu0 %v1227
        %1283 = vmatprep.subr.bf16.mxu0 %v1226
        %1284 = vmatpush1.bf16.msra.mxu0 %v1225
        %1285 = vmatprep.subr.bf16.mxu0 %v1224
        %1286 = vmatpush1.bf16.msra.mxu0 %v1223
        %1287 = vmatprep.subr.bf16.mxu0 %v1222
        %1288 = vmatpush1.bf16.msra.mxu0 %v1221
        %1289 = vmatprep.subr.bf16.mxu0 %v1220
        %1290 = vmatpush1.bf16.msra.mxu0 %v1219
        %1291 = vmatprep.subr.bf16.mxu0 %v1218
        %1292 = vmatpush1.bf16.msra.mxu0 %v1217
        %1293 = vmatprep.subr.bf16.mxu0 %v1216
        %1294 = vmatpush1.bf16.msra.mxu0 %v1215
        %1295 = vmatprep.subr.bf16.mxu0 %v1214
        %1296 = vmatpush1.bf16.msra.mxu0 %v1213
        %1297 = vmatprep.subr.bf16.mxu0 %v1279
        %1298 = vmatpush2.bf16.msra.mxu0 %v1276
        %1299 = vmatprep.subr.bf16.mxu0 %v1242
        %1300 = vmatpush2.bf16.msra.mxu0 %v1241
        %1301 = vmatprep.subr.bf16.mxu0 %v1240
        %1302 = vmatpush2.bf16.msra.mxu0 %v1239
        %1303 = vmatprep.subr.bf16.mxu0 %v1238
        %1304 = vmatpush2.bf16.msra.mxu0 %v1237
        %1305 = vmatprep.subr.bf16.mxu0 %v1236
        %1306 = vmatpush2.bf16.msra.mxu0 %v1235
        %1307 = vmatprep.subr.bf16.mxu0 %v1234
        %1308 = vmatpush2.bf16.msra.mxu0 %v1233
        %1309 = vmatprep.subr.bf16.mxu0 %v1232
        %1310 = vmatpush2.bf16.msra.mxu0 %v1231
        %1311 = vmatprep.subr.bf16.mxu0 %v1230
        %1312 = vmatpush2.bf16.msra.mxu0 %v1229
        %1313 = vmatprep.mubr.bf16.mxu0 %v1021
        %1314 = vmatmul.mubr.bf16.gmra.mxu0 %v815
        %v1315 = vpop.f32.mrf.mxu0
        %v1316 = vadd.f32 %v1110, %v1315
        %v1317 = vpop.f32.mrf.mxu0
        %v1318 = vadd.f32 %v1114, %v1317
        %v1319 = vpop.f32.mrf.mxu0
        %v1320 = vadd.f32 %v1110, %v1319
        %v1321 = vpop.f32.mrf.mxu0
        %v1322 = vadd.f32 %v1114, %v1321
        %1323 = vdwg.mxu0
        %v1324 = vld [vmem:[#allocation12] sm:$0xff]
        %v1325 = vld [vmem:[#allocation12 + $0x8] sm:$0xff]
        %v1326 = vld [vmem:[#allocation12 + $0x10] sm:$0xff]
        %v1327 = vld [vmem:[#allocation12 + $0x18] sm:$0xff]
        %v1328 = vld [vmem:[#allocation12 + $0x20] sm:$0xff]
        %v1329 = vld [vmem:[#allocation12 + $0x28] sm:$0xff]
        %v1330 = vld [vmem:[#allocation12 + $0x30] sm:$0xff]
        %v1331 = vld [vmem:[#allocation12 + $0x38] sm:$0xff]
        %v1332 = vld [vmem:[#allocation12 + $0x40] sm:$0xff]
        %v1333 = vld [vmem:[#allocation12 + $0x48] sm:$0xff]
        %v1334 = vld [vmem:[#allocation12 + $0x50] sm:$0xff]
        %v1335 = vld [vmem:[#allocation12 + $0x58] sm:$0xff]
        %v1336 = vld [vmem:[#allocation12 + $0x60] sm:$0xff]
        %v1337 = vld [vmem:[#allocation12 + $0x68] sm:$0xff]
        %v1338 = vld [vmem:[#allocation12 + $0x70] sm:$0xff]
        %v1339 = vld [vmem:[#allocation12 + $0x78] sm:$0xff]
        %v1340 = vld [vmem:[#allocation12 + $0x80] sm:$0xff]
        %v1341 = vld [vmem:[#allocation12 + $0x88] sm:$0xff]
        %v1342 = vld [vmem:[#allocation12 + $0x90] sm:$0xff]
        %v1343 = vld [vmem:[#allocation12 + $0x98] sm:$0xff]
        %v1344 = vld [vmem:[#allocation12 + $0xa0] sm:$0xff]
        %v1345 = vld [vmem:[#allocation12 + $0xa8] sm:$0xff]
        %v1346 = vld [vmem:[#allocation12 + $0xb0] sm:$0xff]
        %v1347 = vld [vmem:[#allocation12 + $0xb8] sm:$0xff]
        %v1348 = vld [vmem:[#allocation12 + $0xc0] sm:$0xff]
        %v1349 = vld [vmem:[#allocation12 + $0xc8] sm:$0xff]
        %v1350 = vld [vmem:[#allocation12 + $0xd0] sm:$0xff]
        %v1351 = vld [vmem:[#allocation12 + $0xd8] sm:$0xff]
        %v1352 = vld [vmem:[#allocation12 + $0xe0] sm:$0xff]
        %v1353 = vld [vmem:[#allocation12 + $0xe8] sm:$0xff]
        %v1354 = vld [vmem:[#allocation12 + $0xf0] sm:$0xff]
        %v1355 = vld [vmem:[#allocation12 + $0xf8] sm:$0x11]
        %v1356 = vld [vmem:[%s8] sm:$0x3]
        %v1358 = vlaneseq
        %v1359 = vshrl.u32 %v1358, 7
        %v1360 = vsub.s32 0, %v1359
        %v1361 = vrot.slane %v1356, %v1360
        %v1362 = vlaneseq
        %v1363 = vshrl.u32 %v1362, 7
        %v1364 = vsub.s32 1, %v1363
        %v1365 = vrot.slane %v1356, %v1364
        %v1400 = vunpack.c.l.b16 %v1324
        %v1401 = vunpack.c.h.b16 %v1324
        %v1402 = vunpack.c.l.b16 %v1325
        %v1403 = vunpack.c.h.b16 %v1325
        %v1404 = vunpack.c.l.b16 %v1326
        %v1405 = vunpack.c.h.b16 %v1326
        %v1406 = vunpack.c.l.b16 %v1327
        %v1407 = vunpack.c.h.b16 %v1327
        %v1408 = vunpack.c.l.b16 %v1328
        %v1409 = vunpack.c.h.b16 %v1328
        %v1410 = vunpack.c.l.b16 %v1329
        %v1411 = vunpack.c.h.b16 %v1329
        %v1412 = vunpack.c.l.b16 %v1330
        %v1413 = vunpack.c.h.b16 %v1330
        %v1414 = vunpack.c.l.b16 %v1331
        %v1415 = vunpack.c.h.b16 %v1331
        %v1416 = vunpack.c.l.b16 %v1332
        %v1417 = vunpack.c.h.b16 %v1332
        %v1418 = vunpack.c.l.b16 %v1333
        %v1419 = vunpack.c.h.b16 %v1333
        %v1420 = vunpack.c.l.b16 %v1334
        %v1421 = vunpack.c.h.b16 %v1334
        %v1422 = vunpack.c.l.b16 %v1335
        %v1423 = vunpack.c.h.b16 %v1335
        %v1424 = vunpack.c.l.b16 %v1336
        %v1425 = vunpack.c.h.b16 %v1336
        %v1426 = vunpack.c.l.b16 %v1337
        %v1427 = vunpack.c.h.b16 %v1337
        %v1428 = vunpack.c.l.b16 %v1338
        %v1429 = vunpack.c.h.b16 %v1338
        %v1430 = vunpack.c.l.b16 %v1339
        %v1431 = vunpack.c.h.b16 %v1339
        %v1432 = vunpack.c.l.b16 %v1340
        %v1433 = vunpack.c.h.b16 %v1340
        %v1434 = vunpack.c.l.b16 %v1341
        %v1435 = vunpack.c.h.b16 %v1341
        %v1436 = vunpack.c.l.b16 %v1342
        %v1437 = vunpack.c.h.b16 %v1342
        %v1438 = vunpack.c.l.b16 %v1343
        %v1439 = vunpack.c.h.b16 %v1343
        %v1440 = vunpack.c.l.b16 %v1344
        %v1441 = vunpack.c.h.b16 %v1344
        %v1442 = vunpack.c.l.b16 %v1345
        %v1443 = vunpack.c.h.b16 %v1345
        %v1444 = vunpack.c.l.b16 %v1346
        %v1445 = vunpack.c.h.b16 %v1346
        %v1446 = vunpack.c.l.b16 %v1347
        %v1447 = vunpack.c.h.b16 %v1347
        %v1448 = vunpack.c.l.b16 %v1348
        %v1449 = vunpack.c.h.b16 %v1348
        %v1450 = vunpack.c.l.b16 %v1349
        %v1451 = vunpack.c.h.b16 %v1349
        %v1452 = vunpack.c.l.b16 %v1350
        %v1453 = vunpack.c.h.b16 %v1350
        %v1454 = vunpack.c.l.b16 %v1351
        %v1455 = vunpack.c.h.b16 %v1351
        %v1456 = vunpack.c.l.b16 %v1352
        %v1457 = vunpack.c.h.b16 %v1352
        %v1458 = vunpack.c.l.b16 %v1353
        %v1459 = vunpack.c.h.b16 %v1353
        %v1460 = vunpack.c.l.b16 %v1354
        %v1461 = vunpack.c.h.b16 %v1354
        %v1462 = vunpack.c.l.b16 %v1355
        %v1463 = vunpack.c.h.b16 %v1355
        %v1464 = vpack.c.b16 %v1402, %v1400
        %v1465 = vpack.c.b16 %v1403, %v1401
        %v1466 = vpack.c.b16 %v1406, %v1404
        %v1467 = vpack.c.b16 %v1407, %v1405
        %v1468 = vpack.c.b16 %v1410, %v1408
        %v1469 = vpack.c.b16 %v1411, %v1409
        %v1470 = vpack.c.b16 %v1414, %v1412
        %v1471 = vpack.c.b16 %v1415, %v1413
        %v1472 = vpack.c.b16 %v1418, %v1416
        %v1473 = vpack.c.b16 %v1419, %v1417
        %v1474 = vpack.c.b16 %v1422, %v1420
        %v1475 = vpack.c.b16 %v1423, %v1421
        %v1476 = vpack.c.b16 %v1426, %v1424
        %v1477 = vpack.c.b16 %v1427, %v1425
        %v1478 = vpack.c.b16 %v1430, %v1428
        %v1479 = vpack.c.b16 %v1431, %v1429
        %v1480 = vpack.c.b16 %v1434, %v1432
        %v1481 = vpack.c.b16 %v1435, %v1433
        %v1482 = vpack.c.b16 %v1438, %v1436
        %v1483 = vpack.c.b16 %v1439, %v1437
        %v1484 = vpack.c.b16 %v1442, %v1440
        %v1485 = vpack.c.b16 %v1443, %v1441
        %v1486 = vpack.c.b16 %v1446, %v1444
        %v1487 = vpack.c.b16 %v1447, %v1445
        %v1488 = vpack.c.b16 %v1450, %v1448
        %v1489 = vpack.c.b16 %v1451, %v1449
        %v1490 = vpack.c.b16 %v1454, %v1452
        %v1491 = vpack.c.b16 %v1455, %v1453
        %v1492 = vpack.c.b16 %v1458, %v1456
        %v1493 = vpack.c.b16 %v1459, %v1457
        %v1494 = vpack.c.b16 %v1462, %v1460
        %v1495 = vpack.c.b16 %v1463, %v1461
        %v1527 = vsel %vm1023, %v1494, 0
        %v1530 = vsel %vm1023, %v1495, 0
        %1532 = vmatprep.subr.bf16.mxu0 %v1479
        %1533 = vmatpush1.bf16.msra.mxu0 %v1478
        %1534 = vmatprep.subr.bf16.mxu0 %v1477
        %1535 = vmatpush1.bf16.msra.mxu0 %v1476
        %1536 = vmatprep.subr.bf16.mxu0 %v1475
        %1537 = vmatpush1.bf16.msra.mxu0 %v1474
        %1538 = vmatprep.subr.bf16.mxu0 %v1473
        %1539 = vmatpush1.bf16.msra.mxu0 %v1472
        %1540 = vmatprep.subr.bf16.mxu0 %v1471
        %1541 = vmatpush1.bf16.msra.mxu0 %v1470
        %1542 = vmatprep.subr.bf16.mxu0 %v1469
        %1543 = vmatpush1.bf16.msra.mxu0 %v1468
        %1544 = vmatprep.subr.bf16.mxu0 %v1467
        %1545 = vmatpush1.bf16.msra.mxu0 %v1466
        %1546 = vmatprep.subr.bf16.mxu0 %v1465
        %1547 = vmatpush1.bf16.msra.mxu0 %v1464
        %1548 = vmatprep.subr.bf16.mxu0 %v1530
        %1549 = vmatpush2.bf16.msra.mxu0 %v1527
        %1550 = vmatprep.subr.bf16.mxu0 %v1493
        %1551 = vmatpush2.bf16.msra.mxu0 %v1492
        %1552 = vmatprep.subr.bf16.mxu0 %v1491
        %1553 = vmatpush2.bf16.msra.mxu0 %v1490
        %1554 = vmatprep.subr.bf16.mxu0 %v1489
        %1555 = vmatpush2.bf16.msra.mxu0 %v1488
        %1556 = vmatprep.subr.bf16.mxu0 %v1487
        %1557 = vmatpush2.bf16.msra.mxu0 %v1486
        %1558 = vmatprep.subr.bf16.mxu0 %v1485
        %1559 = vmatpush2.bf16.msra.mxu0 %v1484
        %1560 = vmatprep.subr.bf16.mxu0 %v1483
        %1561 = vmatpush2.bf16.msra.mxu0 %v1482
        %1562 = vmatprep.subr.bf16.mxu0 %v1481
        %1563 = vmatpush2.bf16.msra.mxu0 %v1480
        %1564 = vmatprep.mubr.bf16.mxu0 %v1021
        %1565 = vmatmul.mubr.bf16.gmra.mxu0 %v815
        %v1566 = vpop.f32.mrf.mxu0
        %v1567 = vadd.f32 %v1361, %v1566
        %v1568 = vpop.f32.mrf.mxu0
        %v1569 = vadd.f32 %v1365, %v1568
        %v1570 = vpop.f32.mrf.mxu0
        %v1571 = vadd.f32 %v1361, %v1570
        %v1572 = vpop.f32.mrf.mxu0
        %v1573 = vadd.f32 %v1365, %v1572
        %1574 = vdwg.mxu0
        %v1575 = vld [vmem:[#allocation8] sm:$0xff]
        %v1576 = vpack.c.bf16 %v1065, %v1065
        %v1577 = vpack.c.bf16 %v1069, %v1069
        %v1578 = vpack.c.bf16 %v1316, %v1316
        %v1579 = vpack.c.bf16 %v1320, %v1320
        %v1580 = vpack.c.bf16 %v1567, %v1567
        %v1581 = vpack.c.bf16 %v1571, %v1571
        %vm1582 = vcmask 203776
        %v1584 = vsel %vm1582, %v1576, 0
        %v1587 = vsel %vm1582, %v1578, 0
        %1589 = vmatprep.subr.bf16.mxu0 0
        %1590 = vmatpush1.bf16.xpose.msra.mxu0 0
        %1591 = vmatprep.subr.bf16.mxu0 0
        %1592 = vmatpush1.bf16.xpose.msra.mxu0 0
        %1593 = vmatprep.subr.bf16.mxu0 0
        %1594 = vmatpush1.bf16.xpose.msra.mxu0 0
        %1595 = vmatprep.subr.bf16.mxu0 0
        %1596 = vmatpush1.bf16.xpose.msra.mxu0 0
        %1597 = vmatprep.subr.bf16.mxu0 0
        %1598 = vmatpush1.bf16.xpose.msra.mxu0 0
        %1599 = vmatprep.subr.bf16.mxu0 0
        %1600 = vmatpush1.bf16.xpose.msra.mxu0 0
        %1601 = vmatprep.subr.bf16.mxu0 0
        %1602 = vmatpush1.bf16.xpose.msra.mxu0 0
        %1603 = vmatprep.subr.bf16.mxu0 0
        %1604 = vmatpush1.bf16.xpose.msra.mxu0 %v1587
        %1605 = vmatprep.subr.bf16.mxu0 0
        %1606 = vmatpush2.bf16.xpose.msra.mxu0 0
        %1607 = vmatprep.subr.bf16.mxu0 0
        %1608 = vmatpush2.bf16.xpose.msra.mxu0 0
        %1609 = vmatprep.subr.bf16.mxu0 0
        %1610 = vmatpush2.bf16.xpose.msra.mxu0 0
        %1611 = vmatprep.subr.bf16.mxu0 0
        %1612 = vmatpush2.bf16.xpose.msra.mxu0 0
        %1613 = vmatprep.subr.bf16.mxu0 0
        %1614 = vmatpush2.bf16.xpose.msra.mxu0 0
        %1615 = vmatprep.subr.bf16.mxu0 0
        %1616 = vmatpush2.bf16.xpose.msra.mxu0 0
        %1617 = vmatprep.subr.bf16.mxu0 0
        %1618 = vmatpush2.bf16.xpose.msra.mxu0 0
        %1619 = vmatprep.subr.bf16.mxu0 0
        %1620 = vmatpush2.bf16.xpose.msra.mxu0 0
        %1621 = vmatprep.mubr.bf16.mxu0 0
        %1622 = vmatmul.mubr.bf16.gmra.mxu0 %v1584
        %v1623 = vpop.f32.mrf.mxu0
        %v1624 = vadd.f32 0.0, %v1623
        %v1625 = vpop.f32.mrf.mxu0
        %v1626 = vpop.f32.mrf.mxu0
        %v1627 = vpop.f32.mrf.mxu0
        %1628 = vdwg.mxu0
        %v1630 = vsel %vm1582, %v1577, 0
        %v1633 = vsel %vm1582, %v1579, 0
        %1635 = vmatprep.subr.bf16.mxu0 0
        %1636 = vmatpush1.bf16.xpose.msra.mxu0 0
        %1637 = vmatprep.subr.bf16.mxu0 0
        %1638 = vmatpush1.bf16.xpose.msra.mxu0 0
        %1639 = vmatprep.subr.bf16.mxu0 0
        %1640 = vmatpush1.bf16.xpose.msra.mxu0 0
        %1641 = vmatprep.subr.bf16.mxu0 0
        %1642 = vmatpush1.bf16.xpose.msra.mxu0 0
        %1643 = vmatprep.subr.bf16.mxu0 0
        %1644 = vmatpush1.bf16.xpose.msra.mxu0 0
        %1645 = vmatprep.subr.bf16.mxu0 0
        %1646 = vmatpush1.bf16.xpose.msra.mxu0 0
        %1647 = vmatprep.subr.bf16.mxu0 0
        %1648 = vmatpush1.bf16.xpose.msra.mxu0 0
        %1649 = vmatprep.subr.bf16.mxu0 0
        %1650 = vmatpush1.bf16.xpose.msra.mxu0 %v1633
        %1651 = vmatprep.subr.bf16.mxu0 0
        %1652 = vmatpush2.bf16.xpose.msra.mxu0 0
        %1653 = vmatprep.subr.bf16.mxu0 0
        %1654 = vmatpush2.bf16.xpose.msra.mxu0 0
        %1655 = vmatprep.subr.bf16.mxu0 0
        %1656 = vmatpush2.bf16.xpose.msra.mxu0 0
        %1657 = vmatprep.subr.bf16.mxu0 0
        %1658 = vmatpush2.bf16.xpose.msra.mxu0 0
        %1659 = vmatprep.subr.bf16.mxu0 0
        %1660 = vmatpush2.bf16.xpose.msra.mxu0 0
        %1661 = vmatprep.subr.bf16.mxu0 0
        %1662 = vmatpush2.bf16.xpose.msra.mxu0 0
        %1663 = vmatprep.subr.bf16.mxu0 0
        %1664 = vmatpush2.bf16.xpose.msra.mxu0 0
        %1665 = vmatprep.subr.bf16.mxu0 0
        %1666 = vmatpush2.bf16.xpose.msra.mxu0 0
        %1667 = vmatprep.mubr.bf16.mxu0 0
        %1668 = vmatmul.mubr.bf16.gmra.mxu0 %v1630
        %v1669 = vpop.f32.mrf.mxu0
        %v1670 = vadd.f32 0.0, %v1669
        %v1671 = vpop.f32.mrf.mxu0
        %v1672 = vpop.f32.mrf.mxu0
        %v1673 = vpop.f32.mrf.mxu0
        %1674 = vdwg.mxu0
        %v1675 = vmul.f32 %v1624, 0.2
        %v1676 = vmul.f32 %v1670, 0.2
        %v1677 = vadd.f32 %v1675, %v1575
        %v1678 = vadd.f32 %v1676, %v1575
        %vm1679 = vcmask 64512
        %v1680 = vsel %vm1679, %v1677, -inf
        %1681 = vmax.xlane.f32.xlu0 %v1680
        %v1682 = vpop.xlane.xlu0 %1681
        %v1683 = vsel %vm1679, %v1678, -inf
        %1684 = vmax.xlane.f32.xlu0 %v1683
        %v1685 = vpop.xlane.xlu0 %1684
        %v1686 = vsub.f32 %v1677, %v1682
        %v1687 = vsub.f32 %v1678, %v1685
        %v1688 = vmul.f32 %v1686, 1.442695
        %v1689 = vpow.pop %v1688
        %v1690 = vmul.f32 %v1687, 1.442695
        %v1691 = vpow.pop %v1690
        %v1692 = vsel %vm1679, %v1689, 0.0
        %1693 = vadd.xlane.f32.xlu0 %v1692
        %v1694 = vpop.xlane.xlu0 %1693
        %v1695 = vsel %vm1679, %v1691, 0.0
        %1696 = vadd.xlane.f32.xlu0 %v1695
        %v1697 = vpop.xlane.xlu0 %1696
        %v1698 = vrcp.pop %v1694
        %v1699 = vrcp.pop %v1697
        %v1700 = vmul.f32 %v1689, %v1698
        %v1701 = vmul.f32 %v1691, %v1699
        %v1702 = vpack.c.bf16 %v1700, %v1700
        %v1703 = vpack.c.bf16 %v1701, %v1701
        %v1705 = vsel %vm1679, %v1702, 0
        %vm1707 = vcmask 1043456
        %v1709 = vsel %vm1707, %v1580, 0
        %1711 = vmatprep.subr.bf16.mxu0 0
        %1712 = vmatpush1.bf16.msra.mxu0 0
        %1713 = vmatprep.subr.bf16.mxu0 0
        %1714 = vmatpush1.bf16.msra.mxu0 0
        %1715 = vmatprep.subr.bf16.mxu0 0
        %1716 = vmatpush1.bf16.msra.mxu0 0
        %1717 = vmatprep.subr.bf16.mxu0 0
        %1718 = vmatpush1.bf16.msra.mxu0 0
        %1719 = vmatprep.subr.bf16.mxu0 0
        %1720 = vmatpush1.bf16.msra.mxu0 0
        %1721 = vmatprep.subr.bf16.mxu0 0
        %1722 = vmatpush1.bf16.msra.mxu0 0
        %1723 = vmatprep.subr.bf16.mxu0 0
        %1724 = vmatpush1.bf16.msra.mxu0 0
        %1725 = vmatprep.subr.bf16.mxu0 0
        %1726 = vmatpush1.bf16.msra.mxu0 %v1709
        %1727 = vmatprep.subr.bf16.mxu0 0
        %1728 = vmatpush2.bf16.msra.mxu0 0
        %1729 = vmatprep.subr.bf16.mxu0 0
        %1730 = vmatpush2.bf16.msra.mxu0 0
        %1731 = vmatprep.subr.bf16.mxu0 0
        %1732 = vmatpush2.bf16.msra.mxu0 0
        %1733 = vmatprep.subr.bf16.mxu0 0
        %1734 = vmatpush2.bf16.msra.mxu0 0
        %1735 = vmatprep.subr.bf16.mxu0 0
        %1736 = vmatpush2.bf16.msra.mxu0 0
        %1737 = vmatprep.subr.bf16.mxu0 0
        %1738 = vmatpush2.bf16.msra.mxu0 0
        %1739 = vmatprep.subr.bf16.mxu0 0
        %1740 = vmatpush2.bf16.msra.mxu0 0
        %1741 = vmatprep.subr.bf16.mxu0 0
        %1742 = vmatpush2.bf16.msra.mxu0 0
        %1743 = vmatprep.mubr.bf16.mxu0 0
        %1744 = vmatmul.mubr.bf16.gmra.mxu0 %v1705
        %v1745 = vpop.f32.mrf.mxu0
        %v1746 = vadd.f32 0.0, %v1745
        %v1747 = vpop.f32.mrf.mxu0
        %v1748 = vpop.f32.mrf.mxu0
        %v1749 = vpop.f32.mrf.mxu0
        %1750 = vdwg.mxu0
        %v1752 = vsel %vm1679, %v1703, 0
        %v1755 = vsel %vm1707, %v1581, 0
        %1757 = vmatprep.subr.bf16.mxu0 0
        %1758 = vmatpush1.bf16.msra.mxu0 0
        %1759 = vmatprep.subr.bf16.mxu0 0
        %1760 = vmatpush1.bf16.msra.mxu0 0
        %1761 = vmatprep.subr.bf16.mxu0 0
        %1762 = vmatpush1.bf16.msra.mxu0 0
        %1763 = vmatprep.subr.bf16.mxu0 0
        %1764 = vmatpush1.bf16.msra.mxu0 0
        %1765 = vmatprep.subr.bf16.mxu0 0
        %1766 = vmatpush1.bf16.msra.mxu0 0
        %1767 = vmatprep.subr.bf16.mxu0 0
        %1768 = vmatpush1.bf16.msra.mxu0 0
        %1769 = vmatprep.subr.bf16.mxu0 0
        %1770 = vmatpush1.bf16.msra.mxu0 0
        %1771 = vmatprep.subr.bf16.mxu0 0
        %1772 = vmatpush1.bf16.msra.mxu0 %v1755
        %1773 = vmatprep.subr.bf16.mxu0 0
        %1774 = vmatpush2.bf16.msra.mxu0 0
        %1775 = vmatprep.subr.bf16.mxu0 0
        %1776 = vmatpush2.bf16.msra.mxu0 0
        %1777 = vmatprep.subr.bf16.mxu0 0
        %1778 = vmatpush2.bf16.msra.mxu0 0
        %1779 = vmatprep.subr.bf16.mxu0 0
        %1780 = vmatpush2.bf16.msra.mxu0 0
        %1781 = vmatprep.subr.bf16.mxu0 0
        %1782 = vmatpush2.bf16.msra.mxu0 0
        %1783 = vmatprep.subr.bf16.mxu0 0
        %1784 = vmatpush2.bf16.msra.mxu0 0
        %1785 = vmatprep.subr.bf16.mxu0 0
        %1786 = vmatpush2.bf16.msra.mxu0 0
        %1787 = vmatprep.subr.bf16.mxu0 0
        %1788 = vmatpush2.bf16.msra.mxu0 0
        %1789 = vmatprep.mubr.bf16.mxu0 0
        %1790 = vmatmul.mubr.bf16.gmra.mxu0 %v1752
        %v1791 = vpop.f32.mrf.mxu0
        %v1792 = vadd.f32 0.0, %v1791
        %v1793 = vpop.f32.mrf.mxu0
        %v1794 = vpop.f32.mrf.mxu0
        %v1795 = vpop.f32.mrf.mxu0
        %1796 = vdwg.mxu0
        %1798 = vrot.lane.b32.xlu0 %v1576, 103
        %v1799 = vpop.permute.xlu0 %1798
        %1801 = vrot.lane.b32.xlu0 %v1578, 103
        %v1802 = vpop.permute.xlu0 %1801
        %v1804 = vsel %vm1582, %v1799, 0
        %v1807 = vsel %vm1582, %v1802, 0
        %1809 = vmatprep.subr.bf16.mxu0 0
        %1810 = vmatpush1.bf16.xpose.msra.mxu0 0
        %1811 = vmatprep.subr.bf16.mxu0 0
        %1812 = vmatpush1.bf16.xpose.msra.mxu0 0
        %1813 = vmatprep.subr.bf16.mxu0 0
        %1814 = vmatpush1.bf16.xpose.msra.mxu0 0
        %1815 = vmatprep.subr.bf16.mxu0 0
        %1816 = vmatpush1.bf16.xpose.msra.mxu0 0
        %1817 = vmatprep.subr.bf16.mxu0 0
        %1818 = vmatpush1.bf16.xpose.msra.mxu0 0
        %1819 = vmatprep.subr.bf16.mxu0 0
        %1820 = vmatpush1.bf16.xpose.msra.mxu0 0
        %1821 = vmatprep.subr.bf16.mxu0 0
        %1822 = vmatpush1.bf16.xpose.msra.mxu0 0
        %1823 = vmatprep.subr.bf16.mxu0 0
        %1824 = vmatpush1.bf16.xpose.msra.mxu0 %v1807
        %1825 = vmatprep.subr.bf16.mxu0 0
        %1826 = vmatpush2.bf16.xpose.msra.mxu0 0
        %1827 = vmatprep.subr.bf16.mxu0 0
        %1828 = vmatpush2.bf16.xpose.msra.mxu0 0
        %1829 = vmatprep.subr.bf16.mxu0 0
        %1830 = vmatpush2.bf16.xpose.msra.mxu0 0
        %1831 = vmatprep.subr.bf16.mxu0 0
        %1832 = vmatpush2.bf16.xpose.msra.mxu0 0
        %1833 = vmatprep.subr.bf16.mxu0 0
        %1834 = vmatpush2.bf16.xpose.msra.mxu0 0
        %1835 = vmatprep.subr.bf16.mxu0 0
        %1836 = vmatpush2.bf16.xpose.msra.mxu0 0
        %1837 = vmatprep.subr.bf16.mxu0 0
        %1838 = vmatpush2.bf16.xpose.msra.mxu0 0
        %1839 = vmatprep.subr.bf16.mxu0 0
        %1840 = vmatpush2.bf16.xpose.msra.mxu0 0
        %1841 = vmatprep.mubr.bf16.mxu0 0
        %1842 = vmatmul.mubr.bf16.gmra.mxu0 %v1804
        %v1843 = vpop.f32.mrf.mxu0
        %v1844 = vadd.f32 0.0, %v1843
        %v1845 = vpop.f32.mrf.mxu0
        %v1846 = vpop.f32.mrf.mxu0
        %v1847 = vpop.f32.mrf.mxu0
        %1848 = vdwg.mxu0
        %1850 = vrot.lane.b32.xlu0 %v1577, 103
        %v1851 = vpop.permute.xlu0 %1850
        %1853 = vrot.lane.b32.xlu0 %v1579, 103
        %v1854 = vpop.permute.xlu0 %1853
        %v1856 = vsel %vm1582, %v1851, 0
        %v1859 = vsel %vm1582, %v1854, 0
        %1861 = vmatprep.subr.bf16.mxu0 0
        %1862 = vmatpush1.bf16.xpose.msra.mxu0 0
        %1863 = vmatprep.subr.bf16.mxu0 0
        %1864 = vmatpush1.bf16.xpose.msra.mxu0 0
        %1865 = vmatprep.subr.bf16.mxu0 0
        %1866 = vmatpush1.bf16.xpose.msra.mxu0 0
        %1867 = vmatprep.subr.bf16.mxu0 0
        %1868 = vmatpush1.bf16.xpose.msra.mxu0 0
        %1869 = vmatprep.subr.bf16.mxu0 0
        %1870 = vmatpush1.bf16.xpose.msra.mxu0 0
        %1871 = vmatprep.subr.bf16.mxu0 0
        %1872 = vmatpush1.bf16.xpose.msra.mxu0 0
        %1873 = vmatprep.subr.bf16.mxu0 0
        %1874 = vmatpush1.bf16.xpose.msra.mxu0 0
        %1875 = vmatprep.subr.bf16.mxu0 0
        %1876 = vmatpush1.bf16.xpose.msra.mxu0 %v1859
        %1877 = vmatprep.subr.bf16.mxu0 0
        %1878 = vmatpush2.bf16.xpose.msra.mxu0 0
        %1879 = vmatprep.subr.bf16.mxu0 0
        %1880 = vmatpush2.bf16.xpose.msra.mxu0 0
        %1881 = vmatprep.subr.bf16.mxu0 0
        %1882 = vmatpush2.bf16.xpose.msra.mxu0 0
        %1883 = vmatprep.subr.bf16.mxu0 0
        %1884 = vmatpush2.bf16.xpose.msra.mxu0 0
        %1885 = vmatprep.subr.bf16.mxu0 0
        %1886 = vmatpush2.bf16.xpose.msra.mxu0 0
        %1887 = vmatprep.subr.bf16.mxu0 0
        %1888 = vmatpush2.bf16.xpose.msra.mxu0 0
        %1889 = vmatprep.subr.bf16.mxu0 0
        %1890 = vmatpush2.bf16.xpose.msra.mxu0 0
        %1891 = vmatprep.subr.bf16.mxu0 0
        %1892 = vmatpush2.bf16.xpose.msra.mxu0 0
        %1893 = vmatprep.mubr.bf16.mxu0 0
        %1894 = vmatmul.mubr.bf16.gmra.mxu0 %v1856
        %v1895 = vpop.f32.mrf.mxu0
        %v1896 = vadd.f32 0.0, %v1895
        %v1897 = vpop.f32.mrf.mxu0
        %v1898 = vpop.f32.mrf.mxu0
        %v1899 = vpop.f32.mrf.mxu0
        %1900 = vdwg.mxu0
        %v1901 = vmul.f32 %v1844, 0.2
        %v1902 = vmul.f32 %v1896, 0.2
        %v1903 = vadd.f32 %v1901, %v1575
        %v1904 = vadd.f32 %v1902, %v1575
        %v1905 = vsel %vm1679, %v1903, -inf
        %1906 = vmax.xlane.f32.xlu0 %v1905
        %v1907 = vpop.xlane.xlu0 %1906
        %v1908 = vsel %vm1679, %v1904, -inf
        %1909 = vmax.xlane.f32.xlu0 %v1908
        %v1910 = vpop.xlane.xlu0 %1909
        %v1911 = vsub.f32 %v1903, %v1907
        %v1912 = vsub.f32 %v1904, %v1910
        %v1913 = vmul.f32 %v1911, 1.442695
        %v1914 = vpow.pop %v1913
        %v1915 = vmul.f32 %v1912, 1.442695
        %v1916 = vpow.pop %v1915
        %v1917 = vsel %vm1679, %v1914, 0.0
        %1918 = vadd.xlane.f32.xlu0 %v1917
        %v1919 = vpop.xlane.xlu0 %1918
        %v1920 = vsel %vm1679, %v1916, 0.0
        %1921 = vadd.xlane.f32.xlu0 %v1920
        %v1922 = vpop.xlane.xlu0 %1921
        %v1923 = vrcp.pop %v1919
        %v1924 = vrcp.pop %v1922
        %v1925 = vmul.f32 %v1914, %v1923
        %v1926 = vmul.f32 %v1916, %v1924
        %v1927 = vpack.c.bf16 %v1925, %v1925
        %v1928 = vpack.c.bf16 %v1926, %v1926
        %1930 = vrot.lane.b32.xlu0 %v1580, 103
        %v1931 = vpop.permute.xlu0 %1930
        %v1933 = vsel %vm1679, %v1927, 0
        %v1936 = vsel %vm1707, %v1931, 0
        %1938 = vmatprep.subr.bf16.mxu0 0
        %1939 = vmatpush1.bf16.msra.mxu0 0
        %1940 = vmatprep.subr.bf16.mxu0 0
        %1941 = vmatpush1.bf16.msra.mxu0 0
        %1942 = vmatprep.subr.bf16.mxu0 0
        %1943 = vmatpush1.bf16.msra.mxu0 0
        %1944 = vmatprep.subr.bf16.mxu0 0
        %1945 = vmatpush1.bf16.msra.mxu0 0
        %1946 = vmatprep.subr.bf16.mxu0 0
        %1947 = vmatpush1.bf16.msra.mxu0 0
        %1948 = vmatprep.subr.bf16.mxu0 0
        %1949 = vmatpush1.bf16.msra.mxu0 0
        %1950 = vmatprep.subr.bf16.mxu0 0
        %1951 = vmatpush1.bf16.msra.mxu0 0
        %1952 = vmatprep.subr.bf16.mxu0 0
        %1953 = vmatpush1.bf16.msra.mxu0 %v1936
        %1954 = vmatprep.subr.bf16.mxu0 0
        %1955 = vmatpush2.bf16.msra.mxu0 0
        %1956 = vmatprep.subr.bf16.mxu0 0
        %1957 = vmatpush2.bf16.msra.mxu0 0
        %1958 = vmatprep.subr.bf16.mxu0 0
        %1959 = vmatpush2.bf16.msra.mxu0 0
        %1960 = vmatprep.subr.bf16.mxu0 0
        %1961 = vmatpush2.bf16.msra.mxu0 0
        %1962 = vmatprep.subr.bf16.mxu0 0
        %1963 = vmatpush2.bf16.msra.mxu0 0
        %1964 = vmatprep.subr.bf16.mxu0 0
        %1965 = vmatpush2.bf16.msra.mxu0 0
        %1966 = vmatprep.subr.bf16.mxu0 0
        %1967 = vmatpush2.bf16.msra.mxu0 0
        %1968 = vmatprep.subr.bf16.mxu0 0
        %1969 = vmatpush2.bf16.msra.mxu0 0
        %1970 = vmatprep.mubr.bf16.mxu0 0
        %1971 = vmatmul.mubr.bf16.gmra.mxu0 %v1933
        %v1972 = vpop.f32.mrf.mxu0
        %v1973 = vadd.f32 0.0, %v1972
        %v1974 = vpop.f32.mrf.mxu0
        %v1975 = vpop.f32.mrf.mxu0
        %v1976 = vpop.f32.mrf.mxu0
        %1977 = vdwg.mxu0
        %1979 = vrot.lane.b32.xlu0 %v1581, 103
        %v1980 = vpop.permute.xlu0 %1979
        %v1982 = vsel %vm1679, %v1928, 0
        %v1985 = vsel %vm1707, %v1980, 0
        %1987 = vmatprep.subr.bf16.mxu0 0
        %1988 = vmatpush1.bf16.msra.mxu0 0
        %1989 = vmatprep.subr.bf16.mxu0 0
        %1990 = vmatpush1.bf16.msra.mxu0 0
        %1991 = vmatprep.subr.bf16.mxu0 0
        %1992 = vmatpush1.bf16.msra.mxu0 0
        %1993 = vmatprep.subr.bf16.mxu0 0
        %1994 = vmatpush1.bf16.msra.mxu0 0
        %1995 = vmatprep.subr.bf16.mxu0 0
        %1996 = vmatpush1.bf16.msra.mxu0 0
        %1997 = vmatprep.subr.bf16.mxu0 0
        %1998 = vmatpush1.bf16.msra.mxu0 0
        %1999 = vmatprep.subr.bf16.mxu0 0
        %2000 = vmatpush1.bf16.msra.mxu0 0
        %2001 = vmatprep.subr.bf16.mxu0 0
        %2002 = vmatpush1.bf16.msra.mxu0 %v1985
        %2003 = vmatprep.subr.bf16.mxu0 0
        %2004 = vmatpush2.bf16.msra.mxu0 0
        %2005 = vmatprep.subr.bf16.mxu0 0
        %2006 = vmatpush2.bf16.msra.mxu0 0
        %2007 = vmatprep.subr.bf16.mxu0 0
        %2008 = vmatpush2.bf16.msra.mxu0 0
        %2009 = vmatprep.subr.bf16.mxu0 0
        %2010 = vmatpush2.bf16.msra.mxu0 0
        %2011 = vmatprep.subr.bf16.mxu0 0
        %2012 = vmatpush2.bf16.msra.mxu0 0
        %2013 = vmatprep.subr.bf16.mxu0 0
        %2014 = vmatpush2.bf16.msra.mxu0 0
        %2015 = vmatprep.subr.bf16.mxu0 0
        %2016 = vmatpush2.bf16.msra.mxu0 0
        %2017 = vmatprep.subr.bf16.mxu0 0
        %2018 = vmatpush2.bf16.msra.mxu0 0
        %2019 = vmatprep.mubr.bf16.mxu0 0
        %2020 = vmatmul.mubr.bf16.gmra.mxu0 %v1982
        %v2021 = vpop.f32.mrf.mxu0
        %v2022 = vadd.f32 0.0, %v2021
        %v2023 = vpop.f32.mrf.mxu0
        %v2024 = vpop.f32.mrf.mxu0
        %v2025 = vpop.f32.mrf.mxu0
        %2026 = vdwg.mxu0
        %2027 = vrot.lane.b32.xlu0 %v1576, 78
        %v2028 = vpop.permute.xlu0 %2027
        %2029 = vrot.lane.b32.xlu0 %v1578, 78
        %v2030 = vpop.permute.xlu0 %2029
        %v2032 = vsel %vm1582, %v2028, 0
        %v2035 = vsel %vm1582, %v2030, 0
        %2037 = vmatprep.subr.bf16.mxu0 0
        %2038 = vmatpush1.bf16.xpose.msra.mxu0 0
        %2039 = vmatprep.subr.bf16.mxu0 0
        %2040 = vmatpush1.bf16.xpose.msra.mxu0 0
        %2041 = vmatprep.subr.bf16.mxu0 0
        %2042 = vmatpush1.bf16.xpose.msra.mxu0 0
        %2043 = vmatprep.subr.bf16.mxu0 0
        %2044 = vmatpush1.bf16.xpose.msra.mxu0 0
        %2045 = vmatprep.subr.bf16.mxu0 0
        %2046 = vmatpush1.bf16.xpose.msra.mxu0 0
        %2047 = vmatprep.subr.bf16.mxu0 0
        %2048 = vmatpush1.bf16.xpose.msra.mxu0 0
        %2049 = vmatprep.subr.bf16.mxu0 0
        %2050 = vmatpush1.bf16.xpose.msra.mxu0 0
        %2051 = vmatprep.subr.bf16.mxu0 0
        %2052 = vmatpush1.bf16.xpose.msra.mxu0 %v2035
        %2053 = vmatprep.subr.bf16.mxu0 0
        %2054 = vmatpush2.bf16.xpose.msra.mxu0 0
        %2055 = vmatprep.subr.bf16.mxu0 0
        %2056 = vmatpush2.bf16.xpose.msra.mxu0 0
        %2057 = vmatprep.subr.bf16.mxu0 0
        %2058 = vmatpush2.bf16.xpose.msra.mxu0 0
        %2059 = vmatprep.subr.bf16.mxu0 0
        %2060 = vmatpush2.bf16.xpose.msra.mxu0 0
        %2061 = vmatprep.subr.bf16.mxu0 0
        %2062 = vmatpush2.bf16.xpose.msra.mxu0 0
        %2063 = vmatprep.subr.bf16.mxu0 0
        %2064 = vmatpush2.bf16.xpose.msra.mxu0 0
        %2065 = vmatprep.subr.bf16.mxu0 0
        %2066 = vmatpush2.bf16.xpose.msra.mxu0 0
        %2067 = vmatprep.subr.bf16.mxu0 0
        %2068 = vmatpush2.bf16.xpose.msra.mxu0 0
        %2069 = vmatprep.mubr.bf16.mxu0 0
        %2070 = vmatmul.mubr.bf16.gmra.mxu0 %v2032
        %v2071 = vpop.f32.mrf.mxu0
        %v2072 = vadd.f32 0.0, %v2071
        %v2073 = vpop.f32.mrf.mxu0
        %v2074 = vpop.f32.mrf.mxu0
        %v2075 = vpop.f32.mrf.mxu0
        %2076 = vdwg.mxu0
        %2077 = vrot.lane.b32.xlu0 %v1577, 78
        %v2078 = vpop.permute.xlu0 %2077
        %2079 = vrot.lane.b32.xlu0 %v1579, 78
        %v2080 = vpop.permute.xlu0 %2079
        %v2082 = vsel %vm1582, %v2078, 0
        %v2085 = vsel %vm1582, %v2080, 0
        %2087 = vmatprep.subr.bf16.mxu0 0
        %2088 = vmatpush1.bf16.xpose.msra.mxu0 0
        %2089 = vmatprep.subr.bf16.mxu0 0
        %2090 = vmatpush1.bf16.xpose.msra.mxu0 0
        %2091 = vmatprep.subr.bf16.mxu0 0
        %2092 = vmatpush1.bf16.xpose.msra.mxu0 0
        %2093 = vmatprep.subr.bf16.mxu0 0
        %2094 = vmatpush1.bf16.xpose.msra.mxu0 0
        %2095 = vmatprep.subr.bf16.mxu0 0
        %2096 = vmatpush1.bf16.xpose.msra.mxu0 0
        %2097 = vmatprep.subr.bf16.mxu0 0
        %2098 = vmatpush1.bf16.xpose.msra.mxu0 0
        %2099 = vmatprep.subr.bf16.mxu0 0
        %2100 = vmatpush1.bf16.xpose.msra.mxu0 0
        %2101 = vmatprep.subr.bf16.mxu0 0
        %2102 = vmatpush1.bf16.xpose.msra.mxu0 %v2085
        %2103 = vmatprep.subr.bf16.mxu0 0
        %2104 = vmatpush2.bf16.xpose.msra.mxu0 0
        %2105 = vmatprep.subr.bf16.mxu0 0
        %2106 = vmatpush2.bf16.xpose.msra.mxu0 0
        %2107 = vmatprep.subr.bf16.mxu0 0
        %2108 = vmatpush2.bf16.xpose.msra.mxu0 0
        %2109 = vmatprep.subr.bf16.mxu0 0
        %2110 = vmatpush2.bf16.xpose.msra.mxu0 0
        %2111 = vmatprep.subr.bf16.mxu0 0
        %2112 = vmatpush2.bf16.xpose.msra.mxu0 0
        %2113 = vmatprep.subr.bf16.mxu0 0
        %2114 = vmatpush2.bf16.xpose.msra.mxu0 0
        %2115 = vmatprep.subr.bf16.mxu0 0
        %2116 = vmatpush2.bf16.xpose.msra.mxu0 0
        %2117 = vmatprep.subr.bf16.mxu0 0
        %2118 = vmatpush2.bf16.xpose.msra.mxu0 0
        %2119 = vmatprep.mubr.bf16.mxu0 0
        %2120 = vmatmul.mubr.bf16.gmra.mxu0 %v2082
        %v2121 = vpop.f32.mrf.mxu0
        %v2122 = vadd.f32 0.0, %v2121
        %v2123 = vpop.f32.mrf.mxu0
        %v2124 = vpop.f32.mrf.mxu0
        %v2125 = vpop.f32.mrf.mxu0
        %2126 = vdwg.mxu0
        %v2127 = vmul.f32 %v2072, 0.2
        %v2128 = vmul.f32 %v2122, 0.2
        %v2129 = vadd.f32 %v2127, %v1575
        %v2130 = vadd.f32 %v2128, %v1575
        %v2131 = vsel %vm1679, %v2129, -inf
        %2132 = vmax.xlane.f32.xlu0 %v2131
        %v2133 = vpop.xlane.xlu0 %2132
        %v2134 = vsel %vm1679, %v2130, -inf
        %2135 = vmax.xlane.f32.xlu0 %v2134
        %v2136 = vpop.xlane.xlu0 %2135
        %v2137 = vsub.f32 %v2129, %v2133
        %v2138 = vsub.f32 %v2130, %v2136
        %v2139 = vmul.f32 %v2137, 1.442695
        %v2140 = vpow.pop %v2139
        %v2141 = vmul.f32 %v2138, 1.442695
        %v2142 = vpow.pop %v2141
        %v2143 = vsel %vm1679, %v2140, 0.0
        %2144 = vadd.xlane.f32.xlu0 %v2143
        %v2145 = vpop.xlane.xlu0 %2144
        %v2146 = vsel %vm1679, %v2142, 0.0
        %2147 = vadd.xlane.f32.xlu0 %v2146
        %v2148 = vpop.xlane.xlu0 %2147
        %v2149 = vrcp.pop %v2145
        %v2150 = vrcp.pop %v2148
        %v2151 = vmul.f32 %v2140, %v2149
        %v2152 = vmul.f32 %v2142, %v2150
        %v2153 = vpack.c.bf16 %v2151, %v2151
        %v2154 = vpack.c.bf16 %v2152, %v2152
        %2155 = vrot.lane.b32.xlu0 %v1580, 78
        %v2156 = vpop.permute.xlu0 %2155
        %v2158 = vsel %vm1679, %v2153, 0
        %v2161 = vsel %vm1707, %v2156, 0
        %2163 = vmatprep.subr.bf16.mxu0 0
        %2164 = vmatpush1.bf16.msra.mxu0 0
        %2165 = vmatprep.subr.bf16.mxu0 0
        %2166 = vmatpush1.bf16.msra.mxu0 0
        %2167 = vmatprep.subr.bf16.mxu0 0
        %2168 = vmatpush1.bf16.msra.mxu0 0
        %2169 = vmatprep.subr.bf16.mxu0 0
        %2170 = vmatpush1.bf16.msra.mxu0 0
        %2171 = vmatprep.subr.bf16.mxu0 0
        %2172 = vmatpush1.bf16.msra.mxu0 0
        %2173 = vmatprep.subr.bf16.mxu0 0
        %2174 = vmatpush1.bf16.msra.mxu0 0
        %2175 = vmatprep.subr.bf16.mxu0 0
        %2176 = vmatpush1.bf16.msra.mxu0 0
        %2177 = vmatprep.subr.bf16.mxu0 0
        %2178 = vmatpush1.bf16.msra.mxu0 %v2161
        %2179 = vmatprep.subr.bf16.mxu0 0
        %2180 = vmatpush2.bf16.msra.mxu0 0
        %2181 = vmatprep.subr.bf16.mxu0 0
        %2182 = vmatpush2.bf16.msra.mxu0 0
        %2183 = vmatprep.subr.bf16.mxu0 0
        %2184 = vmatpush2.bf16.msra.mxu0 0
        %2185 = vmatprep.subr.bf16.mxu0 0
        %2186 = vmatpush2.bf16.msra.mxu0 0
        %2187 = vmatprep.subr.bf16.mxu0 0
        %2188 = vmatpush2.bf16.msra.mxu0 0
        %2189 = vmatprep.subr.bf16.mxu0 0
        %2190 = vmatpush2.bf16.msra.mxu0 0
        %2191 = vmatprep.subr.bf16.mxu0 0
        %2192 = vmatpush2.bf16.msra.mxu0 0
        %2193 = vmatprep.subr.bf16.mxu0 0
        %2194 = vmatpush2.bf16.msra.mxu0 0
        %2195 = vmatprep.mubr.bf16.mxu0 0
        %2196 = vmatmul.mubr.bf16.gmra.mxu0 %v2158
        %v2197 = vpop.f32.mrf.mxu0
        %v2198 = vadd.f32 0.0, %v2197
        %v2199 = vpop.f32.mrf.mxu0
        %v2200 = vpop.f32.mrf.mxu0
        %v2201 = vpop.f32.mrf.mxu0
        %2202 = vdwg.mxu0
        %2203 = vrot.lane.b32.xlu0 %v1581, 78
        %v2204 = vpop.permute.xlu0 %2203
        %v2206 = vsel %vm1679, %v2154, 0
        %v2209 = vsel %vm1707, %v2204, 0
        %2211 = vmatprep.subr.bf16.mxu0 0
        %2212 = vmatpush1.bf16.msra.mxu0 0
        %2213 = vmatprep.subr.bf16.mxu0 0
        %2214 = vmatpush1.bf16.msra.mxu0 0
        %2215 = vmatprep.subr.bf16.mxu0 0
        %2216 = vmatpush1.bf16.msra.mxu0 0
        %2217 = vmatprep.subr.bf16.mxu0 0
        %2218 = vmatpush1.bf16.msra.mxu0 0
        %2219 = vmatprep.subr.bf16.mxu0 0
        %2220 = vmatpush1.bf16.msra.mxu0 0
        %2221 = vmatprep.subr.bf16.mxu0 0
        %2222 = vmatpush1.bf16.msra.mxu0 0
        %2223 = vmatprep.subr.bf16.mxu0 0
        %2224 = vmatpush1.bf16.msra.mxu0 0
        %2225 = vmatprep.subr.bf16.mxu0 0
        %2226 = vmatpush1.bf16.msra.mxu0 %v2209
        %2227 = vmatprep.subr.bf16.mxu0 0
        %2228 = vmatpush2.bf16.msra.mxu0 0
        %2229 = vmatprep.subr.bf16.mxu0 0
        %2230 = vmatpush2.bf16.msra.mxu0 0
        %2231 = vmatprep.subr.bf16.mxu0 0
        %2232 = vmatpush2.bf16.msra.mxu0 0
        %2233 = vmatprep.subr.bf16.mxu0 0
        %2234 = vmatpush2.bf16.msra.mxu0 0
        %2235 = vmatprep.subr.bf16.mxu0 0
        %2236 = vmatpush2.bf16.msra.mxu0 0
        %2237 = vmatprep.subr.bf16.mxu0 0
        %2238 = vmatpush2.bf16.msra.mxu0 0
        %2239 = vmatprep.subr.bf16.mxu0 0
        %2240 = vmatpush2.bf16.msra.mxu0 0
        %2241 = vmatprep.subr.bf16.mxu0 0
        %2242 = vmatpush2.bf16.msra.mxu0 0
        %2243 = vmatprep.mubr.bf16.mxu0 0
        %2244 = vmatmul.mubr.bf16.gmra.mxu0 %v2206
        %v2245 = vpop.f32.mrf.mxu0
        %v2246 = vadd.f32 0.0, %v2245
        %v2247 = vpop.f32.mrf.mxu0
        %v2248 = vpop.f32.mrf.mxu0
        %v2249 = vpop.f32.mrf.mxu0
        %2250 = vdwg.mxu0
        %2251 = vrot.lane.b32.xlu0 %v1576, 53
        %v2252 = vpop.permute.xlu0 %2251
        %2253 = vrot.lane.b32.xlu0 %v1578, 53
        %v2254 = vpop.permute.xlu0 %2253
        %v2256 = vsel %vm1582, %v2252, 0
        %v2259 = vsel %vm1582, %v2254, 0
        %2261 = vmatprep.subr.bf16.mxu0 0
        %2262 = vmatpush1.bf16.xpose.msra.mxu0 0
        %2263 = vmatprep.subr.bf16.mxu0 0
        %2264 = vmatpush1.bf16.xpose.msra.mxu0 0
        %2265 = vmatprep.subr.bf16.mxu0 0
        %2266 = vmatpush1.bf16.xpose.msra.mxu0 0
        %2267 = vmatprep.subr.bf16.mxu0 0
        %2268 = vmatpush1.bf16.xpose.msra.mxu0 0
        %2269 = vmatprep.subr.bf16.mxu0 0
        %2270 = vmatpush1.bf16.xpose.msra.mxu0 0
        %2271 = vmatprep.subr.bf16.mxu0 0
        %2272 = vmatpush1.bf16.xpose.msra.mxu0 0
        %2273 = vmatprep.subr.bf16.mxu0 0
        %2274 = vmatpush1.bf16.xpose.msra.mxu0 0
        %2275 = vmatprep.subr.bf16.mxu0 0
        %2276 = vmatpush1.bf16.xpose.msra.mxu0 %v2259
        %2277 = vmatprep.subr.bf16.mxu0 0
        %2278 = vmatpush2.bf16.xpose.msra.mxu0 0
        %2279 = vmatprep.subr.bf16.mxu0 0
        %2280 = vmatpush2.bf16.xpose.msra.mxu0 0
        %2281 = vmatprep.subr.bf16.mxu0 0
        %2282 = vmatpush2.bf16.xpose.msra.mxu0 0
        %2283 = vmatprep.subr.bf16.mxu0 0
        %2284 = vmatpush2.bf16.xpose.msra.mxu0 0
        %2285 = vmatprep.subr.bf16.mxu0 0
        %2286 = vmatpush2.bf16.xpose.msra.mxu0 0
        %2287 = vmatprep.subr.bf16.mxu0 0
        %2288 = vmatpush2.bf16.xpose.msra.mxu0 0
        %2289 = vmatprep.subr.bf16.mxu0 0
        %2290 = vmatpush2.bf16.xpose.msra.mxu0 0
        %2291 = vmatprep.subr.bf16.mxu0 0
        %2292 = vmatpush2.bf16.xpose.msra.mxu0 0
        %2293 = vmatprep.mubr.bf16.mxu0 0
        %2294 = vmatmul.mubr.bf16.gmra.mxu0 %v2256
        %v2295 = vpop.f32.mrf.mxu0
        %v2296 = vadd.f32 0.0, %v2295
        %v2297 = vpop.f32.mrf.mxu0
        %v2298 = vpop.f32.mrf.mxu0
        %v2299 = vpop.f32.mrf.mxu0
        %2300 = vdwg.mxu0
        %2301 = vrot.lane.b32.xlu0 %v1577, 53
        %v2302 = vpop.permute.xlu0 %2301
        %2303 = vrot.lane.b32.xlu0 %v1579, 53
        %v2304 = vpop.permute.xlu0 %2303
        %v2306 = vsel %vm1582, %v2302, 0
        %v2309 = vsel %vm1582, %v2304, 0
        %2311 = vmatprep.subr.bf16.mxu0 0
        %2312 = vmatpush1.bf16.xpose.msra.mxu0 0
        %2313 = vmatprep.subr.bf16.mxu0 0
        %2314 = vmatpush1.bf16.xpose.msra.mxu0 0
        %2315 = vmatprep.subr.bf16.mxu0 0
        %2316 = vmatpush1.bf16.xpose.msra.mxu0 0
        %2317 = vmatprep.subr.bf16.mxu0 0
        %2318 = vmatpush1.bf16.xpose.msra.mxu0 0
        %2319 = vmatprep.subr.bf16.mxu0 0
        %2320 = vmatpush1.bf16.xpose.msra.mxu0 0
        %2321 = vmatprep.subr.bf16.mxu0 0
        %2322 = vmatpush1.bf16.xpose.msra.mxu0 0
        %2323 = vmatprep.subr.bf16.mxu0 0
        %2324 = vmatpush1.bf16.xpose.msra.mxu0 0
        %2325 = vmatprep.subr.bf16.mxu0 0
        %2326 = vmatpush1.bf16.xpose.msra.mxu0 %v2309
        %2327 = vmatprep.subr.bf16.mxu0 0
        %2328 = vmatpush2.bf16.xpose.msra.mxu0 0
        %2329 = vmatprep.subr.bf16.mxu0 0
        %2330 = vmatpush2.bf16.xpose.msra.mxu0 0
        %2331 = vmatprep.subr.bf16.mxu0 0
        %2332 = vmatpush2.bf16.xpose.msra.mxu0 0
        %2333 = vmatprep.subr.bf16.mxu0 0
        %2334 = vmatpush2.bf16.xpose.msra.mxu0 0
        %2335 = vmatprep.subr.bf16.mxu0 0
        %2336 = vmatpush2.bf16.xpose.msra.mxu0 0
        %2337 = vmatprep.subr.bf16.mxu0 0
        %2338 = vmatpush2.bf16.xpose.msra.mxu0 0
        %2339 = vmatprep.subr.bf16.mxu0 0
        %2340 = vmatpush2.bf16.xpose.msra.mxu0 0
        %2341 = vmatprep.subr.bf16.mxu0 0
        %2342 = vmatpush2.bf16.xpose.msra.mxu0 0
        %2343 = vmatprep.mubr.bf16.mxu0 0
        %2344 = vmatmul.mubr.bf16.gmra.mxu0 %v2306
        %v2345 = vpop.f32.mrf.mxu0
        %v2346 = vadd.f32 0.0, %v2345
        %v2347 = vpop.f32.mrf.mxu0
        %v2348 = vpop.f32.mrf.mxu0
        %v2349 = vpop.f32.mrf.mxu0
        %2350 = vdwg.mxu0
        %v2351 = vmul.f32 %v2296, 0.2
        %v2352 = vmul.f32 %v2346, 0.2
        %v2353 = vadd.f32 %v2351, %v1575
        %v2354 = vadd.f32 %v2352, %v1575
        %v2355 = vsel %vm1679, %v2353, -inf
        %2356 = vmax.xlane.f32.xlu0 %v2355
        %v2357 = vpop.xlane.xlu0 %2356
        %v2358 = vsel %vm1679, %v2354, -inf
        %2359 = vmax.xlane.f32.xlu0 %v2358
        %v2360 = vpop.xlane.xlu0 %2359
        %v2361 = vsub.f32 %v2353, %v2357
        %v2362 = vsub.f32 %v2354, %v2360
        %v2363 = vmul.f32 %v2361, 1.442695
        %v2364 = vpow.pop %v2363
        %v2365 = vmul.f32 %v2362, 1.442695
        %v2366 = vpow.pop %v2365
        %v2367 = vsel %vm1679, %v2364, 0.0
        %2368 = vadd.xlane.f32.xlu0 %v2367
        %v2369 = vpop.xlane.xlu0 %2368
        %v2370 = vsel %vm1679, %v2366, 0.0
        %2371 = vadd.xlane.f32.xlu0 %v2370
        %v2372 = vpop.xlane.xlu0 %2371
        %v2373 = vrcp.pop %v2369
        %v2374 = vrcp.pop %v2372
        %v2375 = vmul.f32 %v2364, %v2373
        %v2376 = vmul.f32 %v2366, %v2374
        %v2377 = vpack.c.bf16 %v2375, %v2375
        %v2378 = vpack.c.bf16 %v2376, %v2376
        %2379 = vrot.lane.b32.xlu0 %v1580, 53
        %v2380 = vpop.permute.xlu0 %2379
        %v2382 = vsel %vm1679, %v2377, 0
        %v2385 = vsel %vm1707, %v2380, 0
        %2387 = vmatprep.subr.bf16.mxu0 0
        %2388 = vmatpush1.bf16.msra.mxu0 0
        %2389 = vmatprep.subr.bf16.mxu0 0
        %2390 = vmatpush1.bf16.msra.mxu0 0
        %2391 = vmatprep.subr.bf16.mxu0 0
        %2392 = vmatpush1.bf16.msra.mxu0 0
        %2393 = vmatprep.subr.bf16.mxu0 0
        %2394 = vmatpush1.bf16.msra.mxu0 0
        %2395 = vmatprep.subr.bf16.mxu0 0
        %2396 = vmatpush1.bf16.msra.mxu0 0
        %2397 = vmatprep.subr.bf16.mxu0 0
        %2398 = vmatpush1.bf16.msra.mxu0 0
        %2399 = vmatprep.subr.bf16.mxu0 0
        %2400 = vmatpush1.bf16.msra.mxu0 0
        %2401 = vmatprep.subr.bf16.mxu0 0
        %2402 = vmatpush1.bf16.msra.mxu0 %v2385
        %2403 = vmatprep.subr.bf16.mxu0 0
        %2404 = vmatpush2.bf16.msra.mxu0 0
        %2405 = vmatprep.subr.bf16.mxu0 0
        %2406 = vmatpush2.bf16.msra.mxu0 0
        %2407 = vmatprep.subr.bf16.mxu0 0
        %2408 = vmatpush2.bf16.msra.mxu0 0
        %2409 = vmatprep.subr.bf16.mxu0 0
        %2410 = vmatpush2.bf16.msra.mxu0 0
        %2411 = vmatprep.subr.bf16.mxu0 0
        %2412 = vmatpush2.bf16.msra.mxu0 0
        %2413 = vmatprep.subr.bf16.mxu0 0
        %2414 = vmatpush2.bf16.msra.mxu0 0
        %2415 = vmatprep.subr.bf16.mxu0 0
        %2416 = vmatpush2.bf16.msra.mxu0 0
        %2417 = vmatprep.subr.bf16.mxu0 0
        %2418 = vmatpush2.bf16.msra.mxu0 0
        %2419 = vmatprep.mubr.bf16.mxu0 0
        %2420 = vmatmul.mubr.bf16.gmra.mxu0 %v2382
        %v2421 = vpop.f32.mrf.mxu0
        %v2422 = vadd.f32 0.0, %v2421
        %v2423 = vpop.f32.mrf.mxu0
        %v2424 = vpop.f32.mrf.mxu0
        %v2425 = vpop.f32.mrf.mxu0
        %2426 = vdwg.mxu0
        %2427 = vrot.lane.b32.xlu0 %v1581, 53
        %v2428 = vpop.permute.xlu0 %2427
        %v2430 = vsel %vm1679, %v2378, 0
        %v2433 = vsel %vm1707, %v2428, 0
        %2435 = vmatprep.subr.bf16.mxu0 0
        %2436 = vmatpush1.bf16.msra.mxu0 0
        %2437 = vmatprep.subr.bf16.mxu0 0
        %2438 = vmatpush1.bf16.msra.mxu0 0
        %2439 = vmatprep.subr.bf16.mxu0 0
        %2440 = vmatpush1.bf16.msra.mxu0 0
        %2441 = vmatprep.subr.bf16.mxu0 0
        %2442 = vmatpush1.bf16.msra.mxu0 0
        %2443 = vmatprep.subr.bf16.mxu0 0
        %2444 = vmatpush1.bf16.msra.mxu0 0
        %2445 = vmatprep.subr.bf16.mxu0 0
        %2446 = vmatpush1.bf16.msra.mxu0 0
        %2447 = vmatprep.subr.bf16.mxu0 0
        %2448 = vmatpush1.bf16.msra.mxu0 0
        %2449 = vmatprep.subr.bf16.mxu0 0
        %2450 = vmatpush1.bf16.msra.mxu0 %v2433
        %2451 = vmatprep.subr.bf16.mxu0 0
        %2452 = vmatpush2.bf16.msra.mxu0 0
        %2453 = vmatprep.subr.bf16.mxu0 0
        %2454 = vmatpush2.bf16.msra.mxu0 0
        %2455 = vmatprep.subr.bf16.mxu0 0
        %2456 = vmatpush2.bf16.msra.mxu0 0
        %2457 = vmatprep.subr.bf16.mxu0 0
        %2458 = vmatpush2.bf16.msra.mxu0 0
        %2459 = vmatprep.subr.bf16.mxu0 0
        %2460 = vmatpush2.bf16.msra.mxu0 0
        %2461 = vmatprep.subr.bf16.mxu0 0
        %2462 = vmatpush2.bf16.msra.mxu0 0
        %2463 = vmatprep.subr.bf16.mxu0 0
        %2464 = vmatpush2.bf16.msra.mxu0 0
        %2465 = vmatprep.subr.bf16.mxu0 0
        %2466 = vmatpush2.bf16.msra.mxu0 0
        %2467 = vmatprep.mubr.bf16.mxu0 0
        %2468 = vmatmul.mubr.bf16.gmra.mxu0 %v2430
        %v2469 = vpop.f32.mrf.mxu0
        %v2470 = vadd.f32 0.0, %v2469
        %v2471 = vpop.f32.mrf.mxu0
        %v2472 = vpop.f32.mrf.mxu0
        %v2473 = vpop.f32.mrf.mxu0
        %2474 = vdwg.mxu0
        %2475 = vrot.lane.b32.xlu0 %v1576, 28
        %v2476 = vpop.permute.xlu0 %2475
        %2477 = vrot.lane.b32.xlu0 %v1578, 28
        %v2478 = vpop.permute.xlu0 %2477
        %v2480 = vsel %vm1582, %v2476, 0
        %v2483 = vsel %vm1582, %v2478, 0
        %2485 = vmatprep.subr.bf16.mxu0 0
        %2486 = vmatpush1.bf16.xpose.msra.mxu0 0
        %2487 = vmatprep.subr.bf16.mxu0 0
        %2488 = vmatpush1.bf16.xpose.msra.mxu0 0
        %2489 = vmatprep.subr.bf16.mxu0 0
        %2490 = vmatpush1.bf16.xpose.msra.mxu0 0
        %2491 = vmatprep.subr.bf16.mxu0 0
        %2492 = vmatpush1.bf16.xpose.msra.mxu0 0
        %2493 = vmatprep.subr.bf16.mxu0 0
        %2494 = vmatpush1.bf16.xpose.msra.mxu0 0
        %2495 = vmatprep.subr.bf16.mxu0 0
        %2496 = vmatpush1.bf16.xpose.msra.mxu0 0
        %2497 = vmatprep.subr.bf16.mxu0 0
        %2498 = vmatpush1.bf16.xpose.msra.mxu0 0
        %2499 = vmatprep.subr.bf16.mxu0 0
        %2500 = vmatpush1.bf16.xpose.msra.mxu0 %v2483
        %2501 = vmatprep.subr.bf16.mxu0 0
        %2502 = vmatpush2.bf16.xpose.msra.mxu0 0
        %2503 = vmatprep.subr.bf16.mxu0 0
        %2504 = vmatpush2.bf16.xpose.msra.mxu0 0
        %2505 = vmatprep.subr.bf16.mxu0 0
        %2506 = vmatpush2.bf16.xpose.msra.mxu0 0
        %2507 = vmatprep.subr.bf16.mxu0 0
        %2508 = vmatpush2.bf16.xpose.msra.mxu0 0
        %2509 = vmatprep.subr.bf16.mxu0 0
        %2510 = vmatpush2.bf16.xpose.msra.mxu0 0
        %2511 = vmatprep.subr.bf16.mxu0 0
        %2512 = vmatpush2.bf16.xpose.msra.mxu0 0
        %2513 = vmatprep.subr.bf16.mxu0 0
        %2514 = vmatpush2.bf16.xpose.msra.mxu0 0
        %2515 = vmatprep.subr.bf16.mxu0 0
        %2516 = vmatpush2.bf16.xpose.msra.mxu0 0
        %2517 = vmatprep.mubr.bf16.mxu0 0
        %2518 = vmatmul.mubr.bf16.gmra.mxu0 %v2480
        %v2519 = vpop.f32.mrf.mxu0
        %v2520 = vadd.f32 0.0, %v2519
        %v2521 = vpop.f32.mrf.mxu0
        %v2522 = vpop.f32.mrf.mxu0
        %v2523 = vpop.f32.mrf.mxu0
        %2524 = vdwg.mxu0
        %2525 = vrot.lane.b32.xlu0 %v1577, 28
        %v2526 = vpop.permute.xlu0 %2525
        %2527 = vrot.lane.b32.xlu0 %v1579, 28
        %v2528 = vpop.permute.xlu0 %2527
        %v2530 = vsel %vm1582, %v2526, 0
        %v2533 = vsel %vm1582, %v2528, 0
        %2535 = vmatprep.subr.bf16.mxu0 0
        %2536 = vmatpush1.bf16.xpose.msra.mxu0 0
        %2537 = vmatprep.subr.bf16.mxu0 0
        %2538 = vmatpush1.bf16.xpose.msra.mxu0 0
        %2539 = vmatprep.subr.bf16.mxu0 0
        %2540 = vmatpush1.bf16.xpose.msra.mxu0 0
        %2541 = vmatprep.subr.bf16.mxu0 0
        %2542 = vmatpush1.bf16.xpose.msra.mxu0 0
        %2543 = vmatprep.subr.bf16.mxu0 0
        %2544 = vmatpush1.bf16.xpose.msra.mxu0 0
        %2545 = vmatprep.subr.bf16.mxu0 0
        %2546 = vmatpush1.bf16.xpose.msra.mxu0 0
        %2547 = vmatprep.subr.bf16.mxu0 0
        %2548 = vmatpush1.bf16.xpose.msra.mxu0 0
        %2549 = vmatprep.subr.bf16.mxu0 0
        %2550 = vmatpush1.bf16.xpose.msra.mxu0 %v2533
        %2551 = vmatprep.subr.bf16.mxu0 0
        %2552 = vmatpush2.bf16.xpose.msra.mxu0 0
        %2553 = vmatprep.subr.bf16.mxu0 0
        %2554 = vmatpush2.bf16.xpose.msra.mxu0 0
        %2555 = vmatprep.subr.bf16.mxu0 0
        %2556 = vmatpush2.bf16.xpose.msra.mxu0 0
        %2557 = vmatprep.subr.bf16.mxu0 0
        %2558 = vmatpush2.bf16.xpose.msra.mxu0 0
        %2559 = vmatprep.subr.bf16.mxu0 0
        %2560 = vmatpush2.bf16.xpose.msra.mxu0 0
        %2561 = vmatprep.subr.bf16.mxu0 0
        %2562 = vmatpush2.bf16.xpose.msra.mxu0 0
        %2563 = vmatprep.subr.bf16.mxu0 0
        %2564 = vmatpush2.bf16.xpose.msra.mxu0 0
        %2565 = vmatprep.subr.bf16.mxu0 0
        %2566 = vmatpush2.bf16.xpose.msra.mxu0 0
        %2567 = vmatprep.mubr.bf16.mxu0 0
        %2568 = vmatmul.mubr.bf16.gmra.mxu0 %v2530
        %v2569 = vpop.f32.mrf.mxu0
        %v2570 = vadd.f32 0.0, %v2569
        %v2571 = vpop.f32.mrf.mxu0
        %v2572 = vpop.f32.mrf.mxu0
        %v2573 = vpop.f32.mrf.mxu0
        %2574 = vdwg.mxu0
        %v2575 = vmul.f32 %v2520, 0.2
        %v2576 = vmul.f32 %v2570, 0.2
        %v2577 = vadd.f32 %v2575, %v1575
        %v2578 = vadd.f32 %v2576, %v1575
        %v2579 = vsel %vm1679, %v2577, -inf
        %2580 = vmax.xlane.f32.xlu0 %v2579
        %v2581 = vpop.xlane.xlu0 %2580
        %v2582 = vsel %vm1679, %v2578, -inf
        %2583 = vmax.xlane.f32.xlu0 %v2582
        %v2584 = vpop.xlane.xlu0 %2583
        %v2585 = vsub.f32 %v2577, %v2581
        %v2586 = vsub.f32 %v2578, %v2584
        %v2587 = vmul.f32 %v2585, 1.442695
        %v2588 = vpow.pop %v2587
        %v2589 = vmul.f32 %v2586, 1.442695
        %v2590 = vpow.pop %v2589
        %v2591 = vsel %vm1679, %v2588, 0.0
        %2592 = vadd.xlane.f32.xlu0 %v2591
        %v2593 = vpop.xlane.xlu0 %2592
        %v2594 = vsel %vm1679, %v2590, 0.0
        %2595 = vadd.xlane.f32.xlu0 %v2594
        %v2596 = vpop.xlane.xlu0 %2595
        %v2597 = vrcp.pop %v2593
        %v2598 = vrcp.pop %v2596
        %v2599 = vmul.f32 %v2588, %v2597
        %v2600 = vmul.f32 %v2590, %v2598
        %v2601 = vpack.c.bf16 %v2599, %v2599
        %v2602 = vpack.c.bf16 %v2600, %v2600
        %2603 = vrot.lane.b32.xlu0 %v1580, 28
        %v2604 = vpop.permute.xlu0 %2603
        %v2606 = vsel %vm1679, %v2601, 0
        %v2609 = vsel %vm1707, %v2604, 0
        %2611 = vmatprep.subr.bf16.mxu0 0
        %2612 = vmatpush1.bf16.msra.mxu0 0
        %2613 = vmatprep.subr.bf16.mxu0 0
        %2614 = vmatpush1.bf16.msra.mxu0 0
        %2615 = vmatprep.subr.bf16.mxu0 0
        %2616 = vmatpush1.bf16.msra.mxu0 0
        %2617 = vmatprep.subr.bf16.mxu0 0
        %2618 = vmatpush1.bf16.msra.mxu0 0
        %2619 = vmatprep.subr.bf16.mxu0 0
        %2620 = vmatpush1.bf16.msra.mxu0 0
        %2621 = vmatprep.subr.bf16.mxu0 0
        %2622 = vmatpush1.bf16.msra.mxu0 0
        %2623 = vmatprep.subr.bf16.mxu0 0
        %2624 = vmatpush1.bf16.msra.mxu0 0
        %2625 = vmatprep.subr.bf16.mxu0 0
        %2626 = vmatpush1.bf16.msra.mxu0 %v2609
        %2627 = vmatprep.subr.bf16.mxu0 0
        %2628 = vmatpush2.bf16.msra.mxu0 0
        %2629 = vmatprep.subr.bf16.mxu0 0
        %2630 = vmatpush2.bf16.msra.mxu0 0
        %2631 = vmatprep.subr.bf16.mxu0 0
        %2632 = vmatpush2.bf16.msra.mxu0 0
        %2633 = vmatprep.subr.bf16.mxu0 0
        %2634 = vmatpush2.bf16.msra.mxu0 0
        %2635 = vmatprep.subr.bf16.mxu0 0
        %2636 = vmatpush2.bf16.msra.mxu0 0
        %2637 = vmatprep.subr.bf16.mxu0 0
        %2638 = vmatpush2.bf16.msra.mxu0 0
        %2639 = vmatprep.subr.bf16.mxu0 0
        %2640 = vmatpush2.bf16.msra.mxu0 0
        %2641 = vmatprep.subr.bf16.mxu0 0
        %2642 = vmatpush2.bf16.msra.mxu0 0
        %2643 = vmatprep.mubr.bf16.mxu0 0
        %2644 = vmatmul.mubr.bf16.gmra.mxu0 %v2606
        %v2645 = vpop.f32.mrf.mxu0
        %v2646 = vadd.f32 0.0, %v2645
        %v2647 = vpop.f32.mrf.mxu0
        %v2648 = vpop.f32.mrf.mxu0
        %v2649 = vpop.f32.mrf.mxu0
        %2650 = vdwg.mxu0
        %2651 = vrot.lane.b32.xlu0 %v1581, 28
        %v2652 = vpop.permute.xlu0 %2651
        %v2654 = vsel %vm1679, %v2602, 0
        %v2657 = vsel %vm1707, %v2652, 0
        %2659 = vmatprep.subr.bf16.mxu0 0
        %2660 = vmatpush1.bf16.msra.mxu0 0
        %2661 = vmatprep.subr.bf16.mxu0 0
        %2662 = vmatpush1.bf16.msra.mxu0 0
        %2663 = vmatprep.subr.bf16.mxu0 0
        %2664 = vmatpush1.bf16.msra.mxu0 0
        %2665 = vmatprep.subr.bf16.mxu0 0
        %2666 = vmatpush1.bf16.msra.mxu0 0
        %2667 = vmatprep.subr.bf16.mxu0 0
        %2668 = vmatpush1.bf16.msra.mxu0 0
        %2669 = vmatprep.subr.bf16.mxu0 0
        %2670 = vmatpush1.bf16.msra.mxu0 0
        %2671 = vmatprep.subr.bf16.mxu0 0
        %2672 = vmatpush1.bf16.msra.mxu0 0
        %2673 = vmatprep.subr.bf16.mxu0 0
        %2674 = vmatpush1.bf16.msra.mxu0 %v2657
        %2675 = vmatprep.subr.bf16.mxu0 0
        %2676 = vmatpush2.bf16.msra.mxu0 0
        %2677 = vmatprep.subr.bf16.mxu0 0
        %2678 = vmatpush2.bf16.msra.mxu0 0
        %2679 = vmatprep.subr.bf16.mxu0 0
        %2680 = vmatpush2.bf16.msra.mxu0 0
        %2681 = vmatprep.subr.bf16.mxu0 0
        %2682 = vmatpush2.bf16.msra.mxu0 0
        %2683 = vmatprep.subr.bf16.mxu0 0
        %2684 = vmatpush2.bf16.msra.mxu0 0
        %2685 = vmatprep.subr.bf16.mxu0 0
        %2686 = vmatpush2.bf16.msra.mxu0 0
        %2687 = vmatprep.subr.bf16.mxu0 0
        %2688 = vmatpush2.bf16.msra.mxu0 0
        %2689 = vmatprep.subr.bf16.mxu0 0
        %2690 = vmatpush2.bf16.msra.mxu0 0
        %2691 = vmatprep.mubr.bf16.mxu0 0
        %2692 = vmatmul.mubr.bf16.gmra.mxu0 %v2654
        %v2693 = vpop.f32.mrf.mxu0
        %v2694 = vadd.f32 0.0, %v2693
        %v2695 = vpop.f32.mrf.mxu0
        %v2696 = vpop.f32.mrf.mxu0
        %v2697 = vpop.f32.mrf.mxu0
        %2698 = vdwg.mxu0
        %v2699 = vpack.c.bf16 %v1067, %v1067
        %v2700 = vpack.c.bf16 %v1071, %v1071
        %v2701 = vpack.c.bf16 %v1318, %v1318
        %v2702 = vpack.c.bf16 %v1322, %v1322
        %v2703 = vpack.c.bf16 %v1569, %v1569
        %v2704 = vpack.c.bf16 %v1573, %v1573
        %2706 = vrot.lane.b32.xlu0 %v1576, 3
        %v2707 = vpop.permute.xlu0 %2706
        %2708 = vrot.lane.b32.xlu0 %v2699, 3
        %v2709 = vpop.permute.xlu0 %2708
        %vm2710 = vcmask 23552
        %v2711 = vsel %vm2710, %v2707, %v2709
        %2713 = vrot.lane.b32.xlu0 %v1578, 3
        %v2714 = vpop.permute.xlu0 %2713
        %2715 = vrot.lane.b32.xlu0 %v2701, 3
        %v2716 = vpop.permute.xlu0 %2715
        %v2717 = vsel %vm2710, %v2714, %v2716
        %v2719 = vsel %vm1582, %v2711, 0
        %v2722 = vsel %vm1582, %v2717, 0
        %2724 = vmatprep.subr.bf16.mxu0 0
        %2725 = vmatpush1.bf16.xpose.msra.mxu0 0
        %2726 = vmatprep.subr.bf16.mxu0 0
        %2727 = vmatpush1.bf16.xpose.msra.mxu0 0
        %2728 = vmatprep.subr.bf16.mxu0 0
        %2729 = vmatpush1.bf16.xpose.msra.mxu0 0
        %2730 = vmatprep.subr.bf16.mxu0 0
        %2731 = vmatpush1.bf16.xpose.msra.mxu0 0
        %2732 = vmatprep.subr.bf16.mxu0 0
        %2733 = vmatpush1.bf16.xpose.msra.mxu0 0
        %2734 = vmatprep.subr.bf16.mxu0 0
        %2735 = vmatpush1.bf16.xpose.msra.mxu0 0
        %2736 = vmatprep.subr.bf16.mxu0 0
        %2737 = vmatpush1.bf16.xpose.msra.mxu0 0
        %2738 = vmatprep.subr.bf16.mxu0 0
        %2739 = vmatpush1.bf16.xpose.msra.mxu0 %v2722
        %2740 = vmatprep.subr.bf16.mxu0 0
        %2741 = vmatpush2.bf16.xpose.msra.mxu0 0
        %2742 = vmatprep.subr.bf16.mxu0 0
        %2743 = vmatpush2.bf16.xpose.msra.mxu0 0
        %2744 = vmatprep.subr.bf16.mxu0 0
        %2745 = vmatpush2.bf16.xpose.msra.mxu0 0
        %2746 = vmatprep.subr.bf16.mxu0 0
        %2747 = vmatpush2.bf16.xpose.msra.mxu0 0
        %2748 = vmatprep.subr.bf16.mxu0 0
        %2749 = vmatpush2.bf16.xpose.msra.mxu0 0
        %2750 = vmatprep.subr.bf16.mxu0 0
        %2751 = vmatpush2.bf16.xpose.msra.mxu0 0
        %2752 = vmatprep.subr.bf16.mxu0 0
        %2753 = vmatpush2.bf16.xpose.msra.mxu0 0
        %2754 = vmatprep.subr.bf16.mxu0 0
        %2755 = vmatpush2.bf16.xpose.msra.mxu0 0
        %2756 = vmatprep.mubr.bf16.mxu0 0
        %2757 = vmatmul.mubr.bf16.gmra.mxu0 %v2719
        %v2758 = vpop.f32.mrf.mxu0
        %v2759 = vadd.f32 0.0, %v2758
        %v2760 = vpop.f32.mrf.mxu0
        %v2761 = vpop.f32.mrf.mxu0
        %v2762 = vpop.f32.mrf.mxu0
        %2763 = vdwg.mxu0
        %2765 = vrot.lane.b32.xlu0 %v1577, 3
        %v2766 = vpop.permute.xlu0 %2765
        %2767 = vrot.lane.b32.xlu0 %v2700, 3
        %v2768 = vpop.permute.xlu0 %2767
        %v2769 = vsel %vm2710, %v2766, %v2768
        %2771 = vrot.lane.b32.xlu0 %v1579, 3
        %v2772 = vpop.permute.xlu0 %2771
        %2773 = vrot.lane.b32.xlu0 %v2702, 3
        %v2774 = vpop.permute.xlu0 %2773
        %v2775 = vsel %vm2710, %v2772, %v2774
        %v2777 = vsel %vm1582, %v2769, 0
        %v2780 = vsel %vm1582, %v2775, 0
        %2782 = vmatprep.subr.bf16.mxu0 0
        %2783 = vmatpush1.bf16.xpose.msra.mxu0 0
        %2784 = vmatprep.subr.bf16.mxu0 0
        %2785 = vmatpush1.bf16.xpose.msra.mxu0 0
        %2786 = vmatprep.subr.bf16.mxu0 0
        %2787 = vmatpush1.bf16.xpose.msra.mxu0 0
        %2788 = vmatprep.subr.bf16.mxu0 0
        %2789 = vmatpush1.bf16.xpose.msra.mxu0 0
        %2790 = vmatprep.subr.bf16.mxu0 0
        %2791 = vmatpush1.bf16.xpose.msra.mxu0 0
        %2792 = vmatprep.subr.bf16.mxu0 0
        %2793 = vmatpush1.bf16.xpose.msra.mxu0 0
        %2794 = vmatprep.subr.bf16.mxu0 0
        %2795 = vmatpush1.bf16.xpose.msra.mxu0 0
        %2796 = vmatprep.subr.bf16.mxu0 0
        %2797 = vmatpush1.bf16.xpose.msra.mxu0 %v2780
        %2798 = vmatprep.subr.bf16.mxu0 0
        %2799 = vmatpush2.bf16.xpose.msra.mxu0 0
        %2800 = vmatprep.subr.bf16.mxu0 0
        %2801 = vmatpush2.bf16.xpose.msra.mxu0 0
        %2802 = vmatprep.subr.bf16.mxu0 0
        %2803 = vmatpush2.bf16.xpose.msra.mxu0 0
        %2804 = vmatprep.subr.bf16.mxu0 0
        %2805 = vmatpush2.bf16.xpose.msra.mxu0 0
        %2806 = vmatprep.subr.bf16.mxu0 0
        %2807 = vmatpush2.bf16.xpose.msra.mxu0 0
        %2808 = vmatprep.subr.bf16.mxu0 0
        %2809 = vmatpush2.bf16.xpose.msra.mxu0 0
        %2810 = vmatprep.subr.bf16.mxu0 0
        %2811 = vmatpush2.bf16.xpose.msra.mxu0 0
        %2812 = vmatprep.subr.bf16.mxu0 0
        %2813 = vmatpush2.bf16.xpose.msra.mxu0 0
        %2814 = vmatprep.mubr.bf16.mxu0 0
        %2815 = vmatmul.mubr.bf16.gmra.mxu0 %v2777
        %v2816 = vpop.f32.mrf.mxu0
        %v2817 = vadd.f32 0.0, %v2816
        %v2818 = vpop.f32.mrf.mxu0
        %v2819 = vpop.f32.mrf.mxu0
        %v2820 = vpop.f32.mrf.mxu0
        %2821 = vdwg.mxu0
        %v2822 = vmul.f32 %v2759, 0.2
        %v2823 = vmul.f32 %v2817, 0.2
        %v2824 = vadd.f32 %v2822, %v1575
        %v2825 = vadd.f32 %v2823, %v1575
        %v2826 = vsel %vm1679, %v2824, -inf
        %2827 = vmax.xlane.f32.xlu0 %v2826
        %v2828 = vpop.xlane.xlu0 %2827
        %v2829 = vsel %vm1679, %v2825, -inf
        %2830 = vmax.xlane.f32.xlu0 %v2829
        %v2831 = vpop.xlane.xlu0 %2830
        %v2832 = vsub.f32 %v2824, %v2828
        %v2833 = vsub.f32 %v2825, %v2831
        %v2834 = vmul.f32 %v2832, 1.442695
        %v2835 = vpow.pop %v2834
        %v2836 = vmul.f32 %v2833, 1.442695
        %v2837 = vpow.pop %v2836
        %v2838 = vsel %vm1679, %v2835, 0.0
        %2839 = vadd.xlane.f32.xlu0 %v2838
        %v2840 = vpop.xlane.xlu0 %2839
        %v2841 = vsel %vm1679, %v2837, 0.0
        %2842 = vadd.xlane.f32.xlu0 %v2841
        %v2843 = vpop.xlane.xlu0 %2842
        %v2844 = vrcp.pop %v2840
        %v2845 = vrcp.pop %v2843
        %v2846 = vmul.f32 %v2835, %v2844
        %v2847 = vmul.f32 %v2837, %v2845
        %v2848 = vpack.c.bf16 %v2846, %v2846
        %v2849 = vpack.c.bf16 %v2847, %v2847
        %2851 = vrot.lane.b32.xlu0 %v1580, 3
        %v2852 = vpop.permute.xlu0 %2851
        %2853 = vrot.lane.b32.xlu0 %v2703, 3
        %v2854 = vpop.permute.xlu0 %2853
        %v2855 = vsel %vm2710, %v2852, %v2854
        %v2857 = vsel %vm1679, %v2848, 0
        %v2860 = vsel %vm1707, %v2855, 0
        %2862 = vmatprep.subr.bf16.mxu0 0
        %2863 = vmatpush1.bf16.msra.mxu0 0
        %2864 = vmatprep.subr.bf16.mxu0 0
        %2865 = vmatpush1.bf16.msra.mxu0 0
        %2866 = vmatprep.subr.bf16.mxu0 0
        %2867 = vmatpush1.bf16.msra.mxu0 0
        %2868 = vmatprep.subr.bf16.mxu0 0
        %2869 = vmatpush1.bf16.msra.mxu0 0
        %2870 = vmatprep.subr.bf16.mxu0 0
        %2871 = vmatpush1.bf16.msra.mxu0 0
        %2872 = vmatprep.subr.bf16.mxu0 0
        %2873 = vmatpush1.bf16.msra.mxu0 0
        %2874 = vmatprep.subr.bf16.mxu0 0
        %2875 = vmatpush1.bf16.msra.mxu0 0
        %2876 = vmatprep.subr.bf16.mxu0 0
        %2877 = vmatpush1.bf16.msra.mxu0 %v2860
        %2878 = vmatprep.subr.bf16.mxu0 0
        %2879 = vmatpush2.bf16.msra.mxu0 0
        %2880 = vmatprep.subr.bf16.mxu0 0
        %2881 = vmatpush2.bf16.msra.mxu0 0
        %2882 = vmatprep.subr.bf16.mxu0 0
        %2883 = vmatpush2.bf16.msra.mxu0 0
        %2884 = vmatprep.subr.bf16.mxu0 0
        %2885 = vmatpush2.bf16.msra.mxu0 0
        %2886 = vmatprep.subr.bf16.mxu0 0
        %2887 = vmatpush2.bf16.msra.mxu0 0
        %2888 = vmatprep.subr.bf16.mxu0 0
        %2889 = vmatpush2.bf16.msra.mxu0 0
        %2890 = vmatprep.subr.bf16.mxu0 0
        %2891 = vmatpush2.bf16.msra.mxu0 0
        %2892 = vmatprep.subr.bf16.mxu0 0
        %2893 = vmatpush2.bf16.msra.mxu0 0
        %2894 = vmatprep.mubr.bf16.mxu0 0
        %2895 = vmatmul.mubr.bf16.gmra.mxu0 %v2857
        %v2896 = vpop.f32.mrf.mxu0
        %v2897 = vadd.f32 0.0, %v2896
        %v2898 = vpop.f32.mrf.mxu0
        %v2899 = vpop.f32.mrf.mxu0
        %v2900 = vpop.f32.mrf.mxu0
        %2901 = vdwg.mxu0
        %2903 = vrot.lane.b32.xlu0 %v1581, 3
        %v2904 = vpop.permute.xlu0 %2903
        %2905 = vrot.lane.b32.xlu0 %v2704, 3
        %v2906 = vpop.permute.xlu0 %2905
        %v2907 = vsel %vm2710, %v2904, %v2906
        %v2909 = vsel %vm1679, %v2849, 0
        %v2912 = vsel %vm1707, %v2907, 0
        %2914 = vmatprep.subr.bf16.mxu0 0
        %2915 = vmatpush1.bf16.msra.mxu0 0
        %2916 = vmatprep.subr.bf16.mxu0 0
        %2917 = vmatpush1.bf16.msra.mxu0 0
        %2918 = vmatprep.subr.bf16.mxu0 0
        %2919 = vmatpush1.bf16.msra.mxu0 0
        %2920 = vmatprep.subr.bf16.mxu0 0
        %2921 = vmatpush1.bf16.msra.mxu0 0
        %2922 = vmatprep.subr.bf16.mxu0 0
        %2923 = vmatpush1.bf16.msra.mxu0 0
        %2924 = vmatprep.subr.bf16.mxu0 0
        %2925 = vmatpush1.bf16.msra.mxu0 0
        %2926 = vmatprep.subr.bf16.mxu0 0
        %2927 = vmatpush1.bf16.msra.mxu0 0
        %2928 = vmatprep.subr.bf16.mxu0 0
        %2929 = vmatpush1.bf16.msra.mxu0 %v2912
        %2930 = vmatprep.subr.bf16.mxu0 0
        %2931 = vmatpush2.bf16.msra.mxu0 0
        %2932 = vmatprep.subr.bf16.mxu0 0
        %2933 = vmatpush2.bf16.msra.mxu0 0
        %2934 = vmatprep.subr.bf16.mxu0 0
        %2935 = vmatpush2.bf16.msra.mxu0 0
        %2936 = vmatprep.subr.bf16.mxu0 0
        %2937 = vmatpush2.bf16.msra.mxu0 0
        %2938 = vmatprep.subr.bf16.mxu0 0
        %2939 = vmatpush2.bf16.msra.mxu0 0
        %2940 = vmatprep.subr.bf16.mxu0 0
        %2941 = vmatpush2.bf16.msra.mxu0 0
        %2942 = vmatprep.subr.bf16.mxu0 0
        %2943 = vmatpush2.bf16.msra.mxu0 0
        %2944 = vmatprep.subr.bf16.mxu0 0
        %2945 = vmatpush2.bf16.msra.mxu0 0
        %2946 = vmatprep.mubr.bf16.mxu0 0
        %2947 = vmatmul.mubr.bf16.gmra.mxu0 %v2909
        %v2948 = vpop.f32.mrf.mxu0
        %v2949 = vadd.f32 0.0, %v2948
        %v2950 = vpop.f32.mrf.mxu0
        %v2951 = vpop.f32.mrf.mxu0
        %v2952 = vpop.f32.mrf.mxu0
        %2953 = vdwg.mxu0
        %2954 = vrot.lane.b32.xlu0 %v2699, 106
        %v2955 = vpop.permute.xlu0 %2954
        %2956 = vrot.lane.b32.xlu0 %v2701, 106
        %v2957 = vpop.permute.xlu0 %2956
        %v2959 = vsel %vm1582, %v2955, 0
        %v2962 = vsel %vm1582, %v2957, 0
        %2964 = vmatprep.subr.bf16.mxu0 0
        %2965 = vmatpush1.bf16.xpose.msra.mxu0 0
        %2966 = vmatprep.subr.bf16.mxu0 0
        %2967 = vmatpush1.bf16.xpose.msra.mxu0 0
        %2968 = vmatprep.subr.bf16.mxu0 0
        %2969 = vmatpush1.bf16.xpose.msra.mxu0 0
        %2970 = vmatprep.subr.bf16.mxu0 0
        %2971 = vmatpush1.bf16.xpose.msra.mxu0 0
        %2972 = vmatprep.subr.bf16.mxu0 0
        %2973 = vmatpush1.bf16.xpose.msra.mxu0 0
        %2974 = vmatprep.subr.bf16.mxu0 0
        %2975 = vmatpush1.bf16.xpose.msra.mxu0 0
        %2976 = vmatprep.subr.bf16.mxu0 0
        %2977 = vmatpush1.bf16.xpose.msra.mxu0 0
        %2978 = vmatprep.subr.bf16.mxu0 0
        %2979 = vmatpush1.bf16.xpose.msra.mxu0 %v2962
        %2980 = vmatprep.subr.bf16.mxu0 0
        %2981 = vmatpush2.bf16.xpose.msra.mxu0 0
        %2982 = vmatprep.subr.bf16.mxu0 0
        %2983 = vmatpush2.bf16.xpose.msra.mxu0 0
        %2984 = vmatprep.subr.bf16.mxu0 0
        %2985 = vmatpush2.bf16.xpose.msra.mxu0 0
        %2986 = vmatprep.subr.bf16.mxu0 0
        %2987 = vmatpush2.bf16.xpose.msra.mxu0 0
        %2988 = vmatprep.subr.bf16.mxu0 0
        %2989 = vmatpush2.bf16.xpose.msra.mxu0 0
        %2990 = vmatprep.subr.bf16.mxu0 0
        %2991 = vmatpush2.bf16.xpose.msra.mxu0 0
        %2992 = vmatprep.subr.bf16.mxu0 0
        %2993 = vmatpush2.bf16.xpose.msra.mxu0 0
        %2994 = vmatprep.subr.bf16.mxu0 0
        %2995 = vmatpush2.bf16.xpose.msra.mxu0 0
        %2996 = vmatprep.mubr.bf16.mxu0 0
        %2997 = vmatmul.mubr.bf16.gmra.mxu0 %v2959
        %v2998 = vpop.f32.mrf.mxu0
        %v2999 = vadd.f32 0.0, %v2998
        %v3000 = vpop.f32.mrf.mxu0
        %v3001 = vpop.f32.mrf.mxu0
        %v3002 = vpop.f32.mrf.mxu0
        %3003 = vdwg.mxu0
        %3004 = vrot.lane.b32.xlu0 %v2700, 106
        %v3005 = vpop.permute.xlu0 %3004
        %3006 = vrot.lane.b32.xlu0 %v2702, 106
        %v3007 = vpop.permute.xlu0 %3006
        %v3009 = vsel %vm1582, %v3005, 0
        %v3012 = vsel %vm1582, %v3007, 0
        %3014 = vmatprep.subr.bf16.mxu0 0
        %3015 = vmatpush1.bf16.xpose.msra.mxu0 0
        %3016 = vmatprep.subr.bf16.mxu0 0
        %3017 = vmatpush1.bf16.xpose.msra.mxu0 0
        %3018 = vmatprep.subr.bf16.mxu0 0
        %3019 = vmatpush1.bf16.xpose.msra.mxu0 0
        %3020 = vmatprep.subr.bf16.mxu0 0
        %3021 = vmatpush1.bf16.xpose.msra.mxu0 0
        %3022 = vmatprep.subr.bf16.mxu0 0
        %3023 = vmatpush1.bf16.xpose.msra.mxu0 0
        %3024 = vmatprep.subr.bf16.mxu0 0
        %3025 = vmatpush1.bf16.xpose.msra.mxu0 0
        %3026 = vmatprep.subr.bf16.mxu0 0
        %3027 = vmatpush1.bf16.xpose.msra.mxu0 0
        %3028 = vmatprep.subr.bf16.mxu0 0
        %3029 = vmatpush1.bf16.xpose.msra.mxu0 %v3012
        %3030 = vmatprep.subr.bf16.mxu0 0
        %3031 = vmatpush2.bf16.xpose.msra.mxu0 0
        %3032 = vmatprep.subr.bf16.mxu0 0
        %3033 = vmatpush2.bf16.xpose.msra.mxu0 0
        %3034 = vmatprep.subr.bf16.mxu0 0
        %3035 = vmatpush2.bf16.xpose.msra.mxu0 0
        %3036 = vmatprep.subr.bf16.mxu0 0
        %3037 = vmatpush2.bf16.xpose.msra.mxu0 0
        %3038 = vmatprep.subr.bf16.mxu0 0
        %3039 = vmatpush2.bf16.xpose.msra.mxu0 0
        %3040 = vmatprep.subr.bf16.mxu0 0
        %3041 = vmatpush2.bf16.xpose.msra.mxu0 0
        %3042 = vmatprep.subr.bf16.mxu0 0
        %3043 = vmatpush2.bf16.xpose.msra.mxu0 0
        %3044 = vmatprep.subr.bf16.mxu0 0
        %3045 = vmatpush2.bf16.xpose.msra.mxu0 0
        %3046 = vmatprep.mubr.bf16.mxu0 0
        %3047 = vmatmul.mubr.bf16.gmra.mxu0 %v3009
        %v3048 = vpop.f32.mrf.mxu0
        %v3049 = vadd.f32 0.0, %v3048
        %v3050 = vpop.f32.mrf.mxu0
        %v3051 = vpop.f32.mrf.mxu0
        %v3052 = vpop.f32.mrf.mxu0
        %3053 = vdwg.mxu0
        %v3054 = vmul.f32 %v2999, 0.2
        %v3055 = vmul.f32 %v3049, 0.2
        %v3056 = vadd.f32 %v3054, %v1575
        %v3057 = vadd.f32 %v3055, %v1575
        %v3058 = vsel %vm1679, %v3056, -inf
        %3059 = vmax.xlane.f32.xlu0 %v3058
        %v3060 = vpop.xlane.xlu0 %3059
        %v3061 = vsel %vm1679, %v3057, -inf
        %3062 = vmax.xlane.f32.xlu0 %v3061
        %v3063 = vpop.xlane.xlu0 %3062
        %v3064 = vsub.f32 %v3056, %v3060
        %v3065 = vsub.f32 %v3057, %v3063
        %v3066 = vmul.f32 %v3064, 1.442695
        %v3067 = vpow.pop %v3066
        %v3068 = vmul.f32 %v3065, 1.442695
        %v3069 = vpow.pop %v3068
        %v3070 = vsel %vm1679, %v3067, 0.0
        %3071 = vadd.xlane.f32.xlu0 %v3070
        %v3072 = vpop.xlane.xlu0 %3071
        %v3073 = vsel %vm1679, %v3069, 0.0
        %3074 = vadd.xlane.f32.xlu0 %v3073
        %v3075 = vpop.xlane.xlu0 %3074
        %v3076 = vrcp.pop %v3072
        %v3077 = vrcp.pop %v3075
        %v3078 = vmul.f32 %v3067, %v3076
        %v3079 = vmul.f32 %v3069, %v3077
        %v3080 = vpack.c.bf16 %v3078, %v3078
        %v3081 = vpack.c.bf16 %v3079, %v3079
        %3082 = vrot.lane.b32.xlu0 %v2703, 106
        %v3083 = vpop.permute.xlu0 %3082
        %v3085 = vsel %vm1679, %v3080, 0
        %v3088 = vsel %vm1707, %v3083, 0
        %3090 = vmatprep.subr.bf16.mxu0 0
        %3091 = vmatpush1.bf16.msra.mxu0 0
        %3092 = vmatprep.subr.bf16.mxu0 0
        %3093 = vmatpush1.bf16.msra.mxu0 0
        %3094 = vmatprep.subr.bf16.mxu0 0
        %3095 = vmatpush1.bf16.msra.mxu0 0
        %3096 = vmatprep.subr.bf16.mxu0 0
        %3097 = vmatpush1.bf16.msra.mxu0 0
        %3098 = vmatprep.subr.bf16.mxu0 0
        %3099 = vmatpush1.bf16.msra.mxu0 0
        %3100 = vmatprep.subr.bf16.mxu0 0
        %3101 = vmatpush1.bf16.msra.mxu0 0
        %3102 = vmatprep.subr.bf16.mxu0 0
        %3103 = vmatpush1.bf16.msra.mxu0 0
        %3104 = vmatprep.subr.bf16.mxu0 0
        %3105 = vmatpush1.bf16.msra.mxu0 %v3088
        %3106 = vmatprep.subr.bf16.mxu0 0
        %3107 = vmatpush2.bf16.msra.mxu0 0
        %3108 = vmatprep.subr.bf16.mxu0 0
        %3109 = vmatpush2.bf16.msra.mxu0 0
        %3110 = vmatprep.subr.bf16.mxu0 0
        %3111 = vmatpush2.bf16.msra.mxu0 0
        %3112 = vmatprep.subr.bf16.mxu0 0
        %3113 = vmatpush2.bf16.msra.mxu0 0
        %3114 = vmatprep.subr.bf16.mxu0 0
        %3115 = vmatpush2.bf16.msra.mxu0 0
        %3116 = vmatprep.subr.bf16.mxu0 0
        %3117 = vmatpush2.bf16.msra.mxu0 0
        %3118 = vmatprep.subr.bf16.mxu0 0
        %3119 = vmatpush2.bf16.msra.mxu0 0
        %3120 = vmatprep.subr.bf16.mxu0 0
        %3121 = vmatpush2.bf16.msra.mxu0 0
        %3122 = vmatprep.mubr.bf16.mxu0 0
        %3123 = vmatmul.mubr.bf16.gmra.mxu0 %v3085
        %v3124 = vpop.f32.mrf.mxu0
        %v3125 = vadd.f32 0.0, %v3124
        %v3126 = vpop.f32.mrf.mxu0
        %v3127 = vpop.f32.mrf.mxu0
        %v3128 = vpop.f32.mrf.mxu0
        %3129 = vdwg.mxu0
        %3130 = vrot.lane.b32.xlu0 %v2704, 106
        %v3131 = vpop.permute.xlu0 %3130
        %v3133 = vsel %vm1679, %v3081, 0
        %v3136 = vsel %vm1707, %v3131, 0
        %3138 = vmatprep.subr.bf16.mxu0 0
        %3139 = vmatpush1.bf16.msra.mxu0 0
        %3140 = vmatprep.subr.bf16.mxu0 0
        %3141 = vmatpush1.bf16.msra.mxu0 0
        %3142 = vmatprep.subr.bf16.mxu0 0
        %3143 = vmatpush1.bf16.msra.mxu0 0
        %3144 = vmatprep.subr.bf16.mxu0 0
        %3145 = vmatpush1.bf16.msra.mxu0 0
        %3146 = vmatprep.subr.bf16.mxu0 0
        %3147 = vmatpush1.bf16.msra.mxu0 0
        %3148 = vmatprep.subr.bf16.mxu0 0
        %3149 = vmatpush1.bf16.msra.mxu0 0
        %3150 = vmatprep.subr.bf16.mxu0 0
        %3151 = vmatpush1.bf16.msra.mxu0 0
        %3152 = vmatprep.subr.bf16.mxu0 0
        %3153 = vmatpush1.bf16.msra.mxu0 %v3136
        %3154 = vmatprep.subr.bf16.mxu0 0
        %3155 = vmatpush2.bf16.msra.mxu0 0
        %3156 = vmatprep.subr.bf16.mxu0 0
        %3157 = vmatpush2.bf16.msra.mxu0 0
        %3158 = vmatprep.subr.bf16.mxu0 0
        %3159 = vmatpush2.bf16.msra.mxu0 0
        %3160 = vmatprep.subr.bf16.mxu0 0
        %3161 = vmatpush2.bf16.msra.mxu0 0
        %3162 = vmatprep.subr.bf16.mxu0 0
        %3163 = vmatpush2.bf16.msra.mxu0 0
        %3164 = vmatprep.subr.bf16.mxu0 0
        %3165 = vmatpush2.bf16.msra.mxu0 0
        %3166 = vmatprep.subr.bf16.mxu0 0
        %3167 = vmatpush2.bf16.msra.mxu0 0
        %3168 = vmatprep.subr.bf16.mxu0 0
        %3169 = vmatpush2.bf16.msra.mxu0 0
        %3170 = vmatprep.mubr.bf16.mxu0 0
        %3171 = vmatmul.mubr.bf16.gmra.mxu0 %v3133
        %v3172 = vpop.f32.mrf.mxu0
        %v3173 = vadd.f32 0.0, %v3172
        %v3174 = vpop.f32.mrf.mxu0
        %v3175 = vpop.f32.mrf.mxu0
        %v3176 = vpop.f32.mrf.mxu0
        %3177 = vdwg.mxu0
        %3178 = vrot.lane.b32.xlu0 %v2699, 81
        %v3179 = vpop.permute.xlu0 %3178
        %3180 = vrot.lane.b32.xlu0 %v2701, 81
        %v3181 = vpop.permute.xlu0 %3180
        %v3183 = vsel %vm1582, %v3179, 0
        %v3186 = vsel %vm1582, %v3181, 0
        %3188 = vmatprep.subr.bf16.mxu0 0
        %3189 = vmatpush1.bf16.xpose.msra.mxu0 0
        %3190 = vmatprep.subr.bf16.mxu0 0
        %3191 = vmatpush1.bf16.xpose.msra.mxu0 0
        %3192 = vmatprep.subr.bf16.mxu0 0
        %3193 = vmatpush1.bf16.xpose.msra.mxu0 0
        %3194 = vmatprep.subr.bf16.mxu0 0
        %3195 = vmatpush1.bf16.xpose.msra.mxu0 0
        %3196 = vmatprep.subr.bf16.mxu0 0
        %3197 = vmatpush1.bf16.xpose.msra.mxu0 0
        %3198 = vmatprep.subr.bf16.mxu0 0
        %3199 = vmatpush1.bf16.xpose.msra.mxu0 0
        %3200 = vmatprep.subr.bf16.mxu0 0
        %3201 = vmatpush1.bf16.xpose.msra.mxu0 0
        %3202 = vmatprep.subr.bf16.mxu0 0
        %3203 = vmatpush1.bf16.xpose.msra.mxu0 %v3186
        %3204 = vmatprep.subr.bf16.mxu0 0
        %3205 = vmatpush2.bf16.xpose.msra.mxu0 0
        %3206 = vmatprep.subr.bf16.mxu0 0
        %3207 = vmatpush2.bf16.xpose.msra.mxu0 0
        %3208 = vmatprep.subr.bf16.mxu0 0
        %3209 = vmatpush2.bf16.xpose.msra.mxu0 0
        %3210 = vmatprep.subr.bf16.mxu0 0
        %3211 = vmatpush2.bf16.xpose.msra.mxu0 0
        %3212 = vmatprep.subr.bf16.mxu0 0
        %3213 = vmatpush2.bf16.xpose.msra.mxu0 0
        %3214 = vmatprep.subr.bf16.mxu0 0
        %3215 = vmatpush2.bf16.xpose.msra.mxu0 0
        %3216 = vmatprep.subr.bf16.mxu0 0
        %3217 = vmatpush2.bf16.xpose.msra.mxu0 0
        %3218 = vmatprep.subr.bf16.mxu0 0
        %3219 = vmatpush2.bf16.xpose.msra.mxu0 0
        %3220 = vmatprep.mubr.bf16.mxu0 0
        %3221 = vmatmul.mubr.bf16.gmra.mxu0 %v3183
        %v3222 = vpop.f32.mrf.mxu0
        %v3223 = vadd.f32 0.0, %v3222
        %v3224 = vpop.f32.mrf.mxu0
        %v3225 = vpop.f32.mrf.mxu0
        %v3226 = vpop.f32.mrf.mxu0
        %3227 = vdwg.mxu0
        %3228 = vrot.lane.b32.xlu0 %v2700, 81
        %v3229 = vpop.permute.xlu0 %3228
        %3230 = vrot.lane.b32.xlu0 %v2702, 81
        %v3231 = vpop.permute.xlu0 %3230
        %v3233 = vsel %vm1582, %v3229, 0
        %v3236 = vsel %vm1582, %v3231, 0
        %3238 = vmatprep.subr.bf16.mxu0 0
        %3239 = vmatpush1.bf16.xpose.msra.mxu0 0
        %3240 = vmatprep.subr.bf16.mxu0 0
        %3241 = vmatpush1.bf16.xpose.msra.mxu0 0
        %3242 = vmatprep.subr.bf16.mxu0 0
        %3243 = vmatpush1.bf16.xpose.msra.mxu0 0
        %3244 = vmatprep.subr.bf16.mxu0 0
        %3245 = vmatpush1.bf16.xpose.msra.mxu0 0
        %3246 = vmatprep.subr.bf16.mxu0 0
        %3247 = vmatpush1.bf16.xpose.msra.mxu0 0
        %3248 = vmatprep.subr.bf16.mxu0 0
        %3249 = vmatpush1.bf16.xpose.msra.mxu0 0
        %3250 = vmatprep.subr.bf16.mxu0 0
        %3251 = vmatpush1.bf16.xpose.msra.mxu0 0
        %3252 = vmatprep.subr.bf16.mxu0 0
        %3253 = vmatpush1.bf16.xpose.msra.mxu0 %v3236
        %3254 = vmatprep.subr.bf16.mxu0 0
        %3255 = vmatpush2.bf16.xpose.msra.mxu0 0
        %3256 = vmatprep.subr.bf16.mxu0 0
        %3257 = vmatpush2.bf16.xpose.msra.mxu0 0
        %3258 = vmatprep.subr.bf16.mxu0 0
        %3259 = vmatpush2.bf16.xpose.msra.mxu0 0
        %3260 = vmatprep.subr.bf16.mxu0 0
        %3261 = vmatpush2.bf16.xpose.msra.mxu0 0
        %3262 = vmatprep.subr.bf16.mxu0 0
        %3263 = vmatpush2.bf16.xpose.msra.mxu0 0
        %3264 = vmatprep.subr.bf16.mxu0 0
        %3265 = vmatpush2.bf16.xpose.msra.mxu0 0
        %3266 = vmatprep.subr.bf16.mxu0 0
        %3267 = vmatpush2.bf16.xpose.msra.mxu0 0
        %3268 = vmatprep.subr.bf16.mxu0 0
        %3269 = vmatpush2.bf16.xpose.msra.mxu0 0
        %3270 = vmatprep.mubr.bf16.mxu0 0
        %3271 = vmatmul.mubr.bf16.gmra.mxu0 %v3233
        %v3272 = vpop.f32.mrf.mxu0
        %v3273 = vadd.f32 0.0, %v3272
        %v3274 = vpop.f32.mrf.mxu0
        %v3275 = vpop.f32.mrf.mxu0
        %v3276 = vpop.f32.mrf.mxu0
        %3277 = vdwg.mxu0
        %v3278 = vmul.f32 %v3223, 0.2
        %v3279 = vmul.f32 %v3273, 0.2
        %v3280 = vadd.f32 %v3278, %v1575
        %v3281 = vadd.f32 %v3279, %v1575
        %v3282 = vsel %vm1679, %v3280, -inf
        %3283 = vmax.xlane.f32.xlu0 %v3282
        %v3284 = vpop.xlane.xlu0 %3283
        %v3285 = vsel %vm1679, %v3281, -inf
        %3286 = vmax.xlane.f32.xlu0 %v3285
        %v3287 = vpop.xlane.xlu0 %3286
        %v3288 = vsub.f32 %v3280, %v3284
        %v3289 = vsub.f32 %v3281, %v3287
        %v3290 = vmul.f32 %v3288, 1.442695
        %v3291 = vpow.pop %v3290
        %v3292 = vmul.f32 %v3289, 1.442695
        %v3293 = vpow.pop %v3292
        %v3294 = vsel %vm1679, %v3291, 0.0
        %3295 = vadd.xlane.f32.xlu0 %v3294
        %v3296 = vpop.xlane.xlu0 %3295
        %v3297 = vsel %vm1679, %v3293, 0.0
        %3298 = vadd.xlane.f32.xlu0 %v3297
        %v3299 = vpop.xlane.xlu0 %3298
        %v3300 = vrcp.pop %v3296
        %v3301 = vrcp.pop %v3299
        %v3302 = vmul.f32 %v3291, %v3300
        %v3303 = vmul.f32 %v3293, %v3301
        %v3304 = vpack.c.bf16 %v3302, %v3302
        %v3305 = vpack.c.bf16 %v3303, %v3303
        %3306 = vrot.lane.b32.xlu0 %v2703, 81
        %v3307 = vpop.permute.xlu0 %3306
        %v3309 = vsel %vm1679, %v3304, 0
        %v3312 = vsel %vm1707, %v3307, 0
        %3314 = vmatprep.subr.bf16.mxu0 0
        %3315 = vmatpush1.bf16.msra.mxu0 0
        %3316 = vmatprep.subr.bf16.mxu0 0
        %3317 = vmatpush1.bf16.msra.mxu0 0
        %3318 = vmatprep.subr.bf16.mxu0 0
        %3319 = vmatpush1.bf16.msra.mxu0 0
        %3320 = vmatprep.subr.bf16.mxu0 0
        %3321 = vmatpush1.bf16.msra.mxu0 0
        %3322 = vmatprep.subr.bf16.mxu0 0
        %3323 = vmatpush1.bf16.msra.mxu0 0
        %3324 = vmatprep.subr.bf16.mxu0 0
        %3325 = vmatpush1.bf16.msra.mxu0 0
        %3326 = vmatprep.subr.bf16.mxu0 0
        %3327 = vmatpush1.bf16.msra.mxu0 0
        %3328 = vmatprep.subr.bf16.mxu0 0
        %3329 = vmatpush1.bf16.msra.mxu0 %v3312
        %3330 = vmatprep.subr.bf16.mxu0 0
        %3331 = vmatpush2.bf16.msra.mxu0 0
        %3332 = vmatprep.subr.bf16.mxu0 0
        %3333 = vmatpush2.bf16.msra.mxu0 0
        %3334 = vmatprep.subr.bf16.mxu0 0
        %3335 = vmatpush2.bf16.msra.mxu0 0
        %3336 = vmatprep.subr.bf16.mxu0 0
        %3337 = vmatpush2.bf16.msra.mxu0 0
        %3338 = vmatprep.subr.bf16.mxu0 0
        %3339 = vmatpush2.bf16.msra.mxu0 0
        %3340 = vmatprep.subr.bf16.mxu0 0
        %3341 = vmatpush2.bf16.msra.mxu0 0
        %3342 = vmatprep.subr.bf16.mxu0 0
        %3343 = vmatpush2.bf16.msra.mxu0 0
        %3344 = vmatprep.subr.bf16.mxu0 0
        %3345 = vmatpush2.bf16.msra.mxu0 0
        %3346 = vmatprep.mubr.bf16.mxu0 0
        %3347 = vmatmul.mubr.bf16.gmra.mxu0 %v3309
        %v3348 = vpop.f32.mrf.mxu0
        %v3349 = vadd.f32 0.0, %v3348
        %v3350 = vpop.f32.mrf.mxu0
        %v3351 = vpop.f32.mrf.mxu0
        %v3352 = vpop.f32.mrf.mxu0
        %3353 = vdwg.mxu0
        %3354 = vrot.lane.b32.xlu0 %v2704, 81
        %v3355 = vpop.permute.xlu0 %3354
        %v3357 = vsel %vm1679, %v3305, 0
        %v3360 = vsel %vm1707, %v3355, 0
        %3362 = vmatprep.subr.bf16.mxu0 0
        %3363 = vmatpush1.bf16.msra.mxu0 0
        %3364 = vmatprep.subr.bf16.mxu0 0
        %3365 = vmatpush1.bf16.msra.mxu0 0
        %3366 = vmatprep.subr.bf16.mxu0 0
        %3367 = vmatpush1.bf16.msra.mxu0 0
        %3368 = vmatprep.subr.bf16.mxu0 0
        %3369 = vmatpush1.bf16.msra.mxu0 0
        %3370 = vmatprep.subr.bf16.mxu0 0
        %3371 = vmatpush1.bf16.msra.mxu0 0
        %3372 = vmatprep.subr.bf16.mxu0 0
        %3373 = vmatpush1.bf16.msra.mxu0 0
        %3374 = vmatprep.subr.bf16.mxu0 0
        %3375 = vmatpush1.bf16.msra.mxu0 0
        %3376 = vmatprep.subr.bf16.mxu0 0
        %3377 = vmatpush1.bf16.msra.mxu0 %v3360
        %3378 = vmatprep.subr.bf16.mxu0 0
        %3379 = vmatpush2.bf16.msra.mxu0 0
        %3380 = vmatprep.subr.bf16.mxu0 0
        %3381 = vmatpush2.bf16.msra.mxu0 0
        %3382 = vmatprep.subr.bf16.mxu0 0
        %3383 = vmatpush2.bf16.msra.mxu0 0
        %3384 = vmatprep.subr.bf16.mxu0 0
        %3385 = vmatpush2.bf16.msra.mxu0 0
        %3386 = vmatprep.subr.bf16.mxu0 0
        %3387 = vmatpush2.bf16.msra.mxu0 0
        %3388 = vmatprep.subr.bf16.mxu0 0
        %3389 = vmatpush2.bf16.msra.mxu0 0
        %3390 = vmatprep.subr.bf16.mxu0 0
        %3391 = vmatpush2.bf16.msra.mxu0 0
        %3392 = vmatprep.subr.bf16.mxu0 0
        %3393 = vmatpush2.bf16.msra.mxu0 0
        %3394 = vmatprep.mubr.bf16.mxu0 0
        %3395 = vmatmul.mubr.bf16.gmra.mxu0 %v3357
        %v3396 = vpop.f32.mrf.mxu0
        %v3397 = vadd.f32 0.0, %v3396
        %v3398 = vpop.f32.mrf.mxu0
        %v3399 = vpop.f32.mrf.mxu0
        %v3400 = vpop.f32.mrf.mxu0
        %3401 = vdwg.mxu0
        %3402 = vrot.lane.b32.xlu0 %v2699, 56
        %v3403 = vpop.permute.xlu0 %3402
        %3404 = vrot.lane.b32.xlu0 %v2701, 56
        %v3405 = vpop.permute.xlu0 %3404
        %v3407 = vsel %vm1582, %v3403, 0
        %v3410 = vsel %vm1582, %v3405, 0
        %3412 = vmatprep.subr.bf16.mxu0 0
        %3413 = vmatpush1.bf16.xpose.msra.mxu0 0
        %3414 = vmatprep.subr.bf16.mxu0 0
        %3415 = vmatpush1.bf16.xpose.msra.mxu0 0
        %3416 = vmatprep.subr.bf16.mxu0 0
        %3417 = vmatpush1.bf16.xpose.msra.mxu0 0
        %3418 = vmatprep.subr.bf16.mxu0 0
        %3419 = vmatpush1.bf16.xpose.msra.mxu0 0
        %3420 = vmatprep.subr.bf16.mxu0 0
        %3421 = vmatpush1.bf16.xpose.msra.mxu0 0
        %3422 = vmatprep.subr.bf16.mxu0 0
        %3423 = vmatpush1.bf16.xpose.msra.mxu0 0
        %3424 = vmatprep.subr.bf16.mxu0 0
        %3425 = vmatpush1.bf16.xpose.msra.mxu0 0
        %3426 = vmatprep.subr.bf16.mxu0 0
        %3427 = vmatpush1.bf16.xpose.msra.mxu0 %v3410
        %3428 = vmatprep.subr.bf16.mxu0 0
        %3429 = vmatpush2.bf16.xpose.msra.mxu0 0
        %3430 = vmatprep.subr.bf16.mxu0 0
        %3431 = vmatpush2.bf16.xpose.msra.mxu0 0
        %3432 = vmatprep.subr.bf16.mxu0 0
        %3433 = vmatpush2.bf16.xpose.msra.mxu0 0
        %3434 = vmatprep.subr.bf16.mxu0 0
        %3435 = vmatpush2.bf16.xpose.msra.mxu0 0
        %3436 = vmatprep.subr.bf16.mxu0 0
        %3437 = vmatpush2.bf16.xpose.msra.mxu0 0
        %3438 = vmatprep.subr.bf16.mxu0 0
        %3439 = vmatpush2.bf16.xpose.msra.mxu0 0
        %3440 = vmatprep.subr.bf16.mxu0 0
        %3441 = vmatpush2.bf16.xpose.msra.mxu0 0
        %3442 = vmatprep.subr.bf16.mxu0 0
        %3443 = vmatpush2.bf16.xpose.msra.mxu0 0
        %3444 = vmatprep.mubr.bf16.mxu0 0
        %3445 = vmatmul.mubr.bf16.gmra.mxu0 %v3407
        %v3446 = vpop.f32.mrf.mxu0
        %v3447 = vadd.f32 0.0, %v3446
        %v3448 = vpop.f32.mrf.mxu0
        %v3449 = vpop.f32.mrf.mxu0
        %v3450 = vpop.f32.mrf.mxu0
        %3451 = vdwg.mxu0
        %3452 = vrot.lane.b32.xlu0 %v2700, 56
        %v3453 = vpop.permute.xlu0 %3452
        %3454 = vrot.lane.b32.xlu0 %v2702, 56
        %v3455 = vpop.permute.xlu0 %3454
        %v3457 = vsel %vm1582, %v3453, 0
        %v3460 = vsel %vm1582, %v3455, 0
        %3462 = vmatprep.subr.bf16.mxu0 0
        %3463 = vmatpush1.bf16.xpose.msra.mxu0 0
        %3464 = vmatprep.subr.bf16.mxu0 0
        %3465 = vmatpush1.bf16.xpose.msra.mxu0 0
        %3466 = vmatprep.subr.bf16.mxu0 0
        %3467 = vmatpush1.bf16.xpose.msra.mxu0 0
        %3468 = vmatprep.subr.bf16.mxu0 0
        %3469 = vmatpush1.bf16.xpose.msra.mxu0 0
        %3470 = vmatprep.subr.bf16.mxu0 0
        %3471 = vmatpush1.bf16.xpose.msra.mxu0 0
        %3472 = vmatprep.subr.bf16.mxu0 0
        %3473 = vmatpush1.bf16.xpose.msra.mxu0 0
        %3474 = vmatprep.subr.bf16.mxu0 0
        %3475 = vmatpush1.bf16.xpose.msra.mxu0 0
        %3476 = vmatprep.subr.bf16.mxu0 0
        %3477 = vmatpush1.bf16.xpose.msra.mxu0 %v3460
        %3478 = vmatprep.subr.bf16.mxu0 0
        %3479 = vmatpush2.bf16.xpose.msra.mxu0 0
        %3480 = vmatprep.subr.bf16.mxu0 0
        %3481 = vmatpush2.bf16.xpose.msra.mxu0 0
        %3482 = vmatprep.subr.bf16.mxu0 0
        %3483 = vmatpush2.bf16.xpose.msra.mxu0 0
        %3484 = vmatprep.subr.bf16.mxu0 0
        %3485 = vmatpush2.bf16.xpose.msra.mxu0 0
        %3486 = vmatprep.subr.bf16.mxu0 0
        %3487 = vmatpush2.bf16.xpose.msra.mxu0 0
        %3488 = vmatprep.subr.bf16.mxu0 0
        %3489 = vmatpush2.bf16.xpose.msra.mxu0 0
        %3490 = vmatprep.subr.bf16.mxu0 0
        %3491 = vmatpush2.bf16.xpose.msra.mxu0 0
        %3492 = vmatprep.subr.bf16.mxu0 0
        %3493 = vmatpush2.bf16.xpose.msra.mxu0 0
        %3494 = vmatprep.mubr.bf16.mxu0 0
        %3495 = vmatmul.mubr.bf16.gmra.mxu0 %v3457
        %v3496 = vpop.f32.mrf.mxu0
        %v3497 = vadd.f32 0.0, %v3496
        %v3498 = vpop.f32.mrf.mxu0
        %v3499 = vpop.f32.mrf.mxu0
        %v3500 = vpop.f32.mrf.mxu0
        %3501 = vdwg.mxu0
        %v3502 = vmul.f32 %v3447, 0.2
        %v3503 = vmul.f32 %v3497, 0.2
        %v3504 = vadd.f32 %v3502, %v1575
        %v3505 = vadd.f32 %v3503, %v1575
        %v3506 = vsel %vm1679, %v3504, -inf
        %3507 = vmax.xlane.f32.xlu0 %v3506
        %v3508 = vpop.xlane.xlu0 %3507
        %v3509 = vsel %vm1679, %v3505, -inf
        %3510 = vmax.xlane.f32.xlu0 %v3509
        %v3511 = vpop.xlane.xlu0 %3510
        %v3512 = vsub.f32 %v3504, %v3508
        %v3513 = vsub.f32 %v3505, %v3511
        %v3514 = vmul.f32 %v3512, 1.442695
        %v3515 = vpow.pop %v3514
        %v3516 = vmul.f32 %v3513, 1.442695
        %v3517 = vpow.pop %v3516
        %v3518 = vsel %vm1679, %v3515, 0.0
        %3519 = vadd.xlane.f32.xlu0 %v3518
        %v3520 = vpop.xlane.xlu0 %3519
        %v3521 = vsel %vm1679, %v3517, 0.0
        %3522 = vadd.xlane.f32.xlu0 %v3521
        %v3523 = vpop.xlane.xlu0 %3522
        %v3524 = vrcp.pop %v3520
        %v3525 = vrcp.pop %v3523
        %v3526 = vmul.f32 %v3515, %v3524
        %v3527 = vmul.f32 %v3517, %v3525
        %v3528 = vpack.c.bf16 %v3526, %v3526
        %v3529 = vpack.c.bf16 %v3527, %v3527
        %3530 = vrot.lane.b32.xlu0 %v2703, 56
        %v3531 = vpop.permute.xlu0 %3530
        %v3533 = vsel %vm1679, %v3528, 0
        %v3536 = vsel %vm1707, %v3531, 0
        %3538 = vmatprep.subr.bf16.mxu0 0
        %3539 = vmatpush1.bf16.msra.mxu0 0
        %3540 = vmatprep.subr.bf16.mxu0 0
        %3541 = vmatpush1.bf16.msra.mxu0 0
        %3542 = vmatprep.subr.bf16.mxu0 0
        %3543 = vmatpush1.bf16.msra.mxu0 0
        %3544 = vmatprep.subr.bf16.mxu0 0
        %3545 = vmatpush1.bf16.msra.mxu0 0
        %3546 = vmatprep.subr.bf16.mxu0 0
        %3547 = vmatpush1.bf16.msra.mxu0 0
        %3548 = vmatprep.subr.bf16.mxu0 0
        %3549 = vmatpush1.bf16.msra.mxu0 0
        %3550 = vmatprep.subr.bf16.mxu0 0
        %3551 = vmatpush1.bf16.msra.mxu0 0
        %3552 = vmatprep.subr.bf16.mxu0 0
        %3553 = vmatpush1.bf16.msra.mxu0 %v3536
        %3554 = vmatprep.subr.bf16.mxu0 0
        %3555 = vmatpush2.bf16.msra.mxu0 0
        %3556 = vmatprep.subr.bf16.mxu0 0
        %3557 = vmatpush2.bf16.msra.mxu0 0
        %3558 = vmatprep.subr.bf16.mxu0 0
        %3559 = vmatpush2.bf16.msra.mxu0 0
        %3560 = vmatprep.subr.bf16.mxu0 0
        %3561 = vmatpush2.bf16.msra.mxu0 0
        %3562 = vmatprep.subr.bf16.mxu0 0
        %3563 = vmatpush2.bf16.msra.mxu0 0
        %3564 = vmatprep.subr.bf16.mxu0 0
        %3565 = vmatpush2.bf16.msra.mxu0 0
        %3566 = vmatprep.subr.bf16.mxu0 0
        %3567 = vmatpush2.bf16.msra.mxu0 0
        %3568 = vmatprep.subr.bf16.mxu0 0
        %3569 = vmatpush2.bf16.msra.mxu0 0
        %3570 = vmatprep.mubr.bf16.mxu0 0
        %3571 = vmatmul.mubr.bf16.gmra.mxu0 %v3533
        %v3572 = vpop.f32.mrf.mxu0
        %v3573 = vadd.f32 0.0, %v3572
        %v3574 = vpop.f32.mrf.mxu0
        %v3575 = vpop.f32.mrf.mxu0
        %v3576 = vpop.f32.mrf.mxu0
        %3577 = vdwg.mxu0
        %3578 = vrot.lane.b32.xlu0 %v2704, 56
        %v3579 = vpop.permute.xlu0 %3578
        %v3581 = vsel %vm1679, %v3529, 0
        %v3584 = vsel %vm1707, %v3579, 0
        %3586 = vmatprep.subr.bf16.mxu0 0
        %3587 = vmatpush1.bf16.msra.mxu0 0
        %3588 = vmatprep.subr.bf16.mxu0 0
        %3589 = vmatpush1.bf16.msra.mxu0 0
        %3590 = vmatprep.subr.bf16.mxu0 0
        %3591 = vmatpush1.bf16.msra.mxu0 0
        %3592 = vmatprep.subr.bf16.mxu0 0
        %3593 = vmatpush1.bf16.msra.mxu0 0
        %3594 = vmatprep.subr.bf16.mxu0 0
        %3595 = vmatpush1.bf16.msra.mxu0 0
        %3596 = vmatprep.subr.bf16.mxu0 0
        %3597 = vmatpush1.bf16.msra.mxu0 0
        %3598 = vmatprep.subr.bf16.mxu0 0
        %3599 = vmatpush1.bf16.msra.mxu0 0
        %3600 = vmatprep.subr.bf16.mxu0 0
        %3601 = vmatpush1.bf16.msra.mxu0 %v3584
        %3602 = vmatprep.subr.bf16.mxu0 0
        %3603 = vmatpush2.bf16.msra.mxu0 0
        %3604 = vmatprep.subr.bf16.mxu0 0
        %3605 = vmatpush2.bf16.msra.mxu0 0
        %3606 = vmatprep.subr.bf16.mxu0 0
        %3607 = vmatpush2.bf16.msra.mxu0 0
        %3608 = vmatprep.subr.bf16.mxu0 0
        %3609 = vmatpush2.bf16.msra.mxu0 0
        %3610 = vmatprep.subr.bf16.mxu0 0
        %3611 = vmatpush2.bf16.msra.mxu0 0
        %3612 = vmatprep.subr.bf16.mxu0 0
        %3613 = vmatpush2.bf16.msra.mxu0 0
        %3614 = vmatprep.subr.bf16.mxu0 0
        %3615 = vmatpush2.bf16.msra.mxu0 0
        %3616 = vmatprep.subr.bf16.mxu0 0
        %3617 = vmatpush2.bf16.msra.mxu0 0
        %3618 = vmatprep.mubr.bf16.mxu0 0
        %3619 = vmatmul.mubr.bf16.gmra.mxu0 %v3581
        %v3620 = vpop.f32.mrf.mxu0
        %v3621 = vadd.f32 0.0, %v3620
        %v3622 = vpop.f32.mrf.mxu0
        %v3623 = vpop.f32.mrf.mxu0
        %v3624 = vpop.f32.mrf.mxu0
        %3625 = vdwg.mxu0
        %3626 = vrot.lane.b32.xlu0 %v2699, 31
        %v3627 = vpop.permute.xlu0 %3626
        %3628 = vrot.lane.b32.xlu0 %v2701, 31
        %v3629 = vpop.permute.xlu0 %3628
        %v3631 = vsel %vm1582, %v3627, 0
        %v3634 = vsel %vm1582, %v3629, 0
        %3636 = vmatprep.subr.bf16.mxu0 0
        %3637 = vmatpush1.bf16.xpose.msra.mxu0 0
        %3638 = vmatprep.subr.bf16.mxu0 0
        %3639 = vmatpush1.bf16.xpose.msra.mxu0 0
        %3640 = vmatprep.subr.bf16.mxu0 0
        %3641 = vmatpush1.bf16.xpose.msra.mxu0 0
        %3642 = vmatprep.subr.bf16.mxu0 0
        %3643 = vmatpush1.bf16.xpose.msra.mxu0 0
        %3644 = vmatprep.subr.bf16.mxu0 0
        %3645 = vmatpush1.bf16.xpose.msra.mxu0 0
        %3646 = vmatprep.subr.bf16.mxu0 0
        %3647 = vmatpush1.bf16.xpose.msra.mxu0 0
        %3648 = vmatprep.subr.bf16.mxu0 0
        %3649 = vmatpush1.bf16.xpose.msra.mxu0 0
        %3650 = vmatprep.subr.bf16.mxu0 0
        %3651 = vmatpush1.bf16.xpose.msra.mxu0 %v3634
        %3652 = vmatprep.subr.bf16.mxu0 0
        %3653 = vmatpush2.bf16.xpose.msra.mxu0 0
        %3654 = vmatprep.subr.bf16.mxu0 0
        %3655 = vmatpush2.bf16.xpose.msra.mxu0 0
        %3656 = vmatprep.subr.bf16.mxu0 0
        %3657 = vmatpush2.bf16.xpose.msra.mxu0 0
        %3658 = vmatprep.subr.bf16.mxu0 0
        %3659 = vmatpush2.bf16.xpose.msra.mxu0 0
        %3660 = vmatprep.subr.bf16.mxu0 0
        %3661 = vmatpush2.bf16.xpose.msra.mxu0 0
        %3662 = vmatprep.subr.bf16.mxu0 0
        %3663 = vmatpush2.bf16.xpose.msra.mxu0 0
        %3664 = vmatprep.subr.bf16.mxu0 0
        %3665 = vmatpush2.bf16.xpose.msra.mxu0 0
        %3666 = vmatprep.subr.bf16.mxu0 0
        %3667 = vmatpush2.bf16.xpose.msra.mxu0 0
        %3668 = vmatprep.mubr.bf16.mxu0 0
        %3669 = vmatmul.mubr.bf16.gmra.mxu0 %v3631
        %v3670 = vpop.f32.mrf.mxu0
        %v3671 = vadd.f32 0.0, %v3670
        %v3672 = vpop.f32.mrf.mxu0
        %v3673 = vpop.f32.mrf.mxu0
        %v3674 = vpop.f32.mrf.mxu0
        %3675 = vdwg.mxu0
        %3676 = vrot.lane.b32.xlu0 %v2700, 31
        %v3677 = vpop.permute.xlu0 %3676
        %3678 = vrot.lane.b32.xlu0 %v2702, 31
        %v3679 = vpop.permute.xlu0 %3678
        %v3681 = vsel %vm1582, %v3677, 0
        %v3684 = vsel %vm1582, %v3679, 0
        %3686 = vmatprep.subr.bf16.mxu0 0
        %3687 = vmatpush1.bf16.xpose.msra.mxu0 0
        %3688 = vmatprep.subr.bf16.mxu0 0
        %3689 = vmatpush1.bf16.xpose.msra.mxu0 0
        %3690 = vmatprep.subr.bf16.mxu0 0
        %3691 = vmatpush1.bf16.xpose.msra.mxu0 0
        %3692 = vmatprep.subr.bf16.mxu0 0
        %3693 = vmatpush1.bf16.xpose.msra.mxu0 0
        %3694 = vmatprep.subr.bf16.mxu0 0
        %3695 = vmatpush1.bf16.xpose.msra.mxu0 0
        %3696 = vmatprep.subr.bf16.mxu0 0
        %3697 = vmatpush1.bf16.xpose.msra.mxu0 0
        %3698 = vmatprep.subr.bf16.mxu0 0
        %3699 = vmatpush1.bf16.xpose.msra.mxu0 0
        %3700 = vmatprep.subr.bf16.mxu0 0
        %3701 = vmatpush1.bf16.xpose.msra.mxu0 %v3684
        %3702 = vmatprep.subr.bf16.mxu0 0
        %3703 = vmatpush2.bf16.xpose.msra.mxu0 0
        %3704 = vmatprep.subr.bf16.mxu0 0
        %3705 = vmatpush2.bf16.xpose.msra.mxu0 0
        %3706 = vmatprep.subr.bf16.mxu0 0
        %3707 = vmatpush2.bf16.xpose.msra.mxu0 0
        %3708 = vmatprep.subr.bf16.mxu0 0
        %3709 = vmatpush2.bf16.xpose.msra.mxu0 0
        %3710 = vmatprep.subr.bf16.mxu0 0
        %3711 = vmatpush2.bf16.xpose.msra.mxu0 0
        %3712 = vmatprep.subr.bf16.mxu0 0
        %3713 = vmatpush2.bf16.xpose.msra.mxu0 0
        %3714 = vmatprep.subr.bf16.mxu0 0
        %3715 = vmatpush2.bf16.xpose.msra.mxu0 0
        %3716 = vmatprep.subr.bf16.mxu0 0
        %3717 = vmatpush2.bf16.xpose.msra.mxu0 0
        %3718 = vmatprep.mubr.bf16.mxu0 0
        %3719 = vmatmul.mubr.bf16.gmra.mxu0 %v3681
        %v3720 = vpop.f32.mrf.mxu0
        %v3721 = vadd.f32 0.0, %v3720
        %v3722 = vpop.f32.mrf.mxu0
        %v3723 = vpop.f32.mrf.mxu0
        %v3724 = vpop.f32.mrf.mxu0
        %3725 = vdwg.mxu0
        %v3726 = vmul.f32 %v3671, 0.2
        %v3727 = vmul.f32 %v3721, 0.2
        %v3728 = vadd.f32 %v3726, %v1575
        %v3729 = vadd.f32 %v3727, %v1575
        %v3730 = vsel %vm1679, %v3728, -inf
        %3731 = vmax.xlane.f32.xlu0 %v3730
        %v3732 = vpop.xlane.xlu0 %3731
        %v3733 = vsel %vm1679, %v3729, -inf
        %3734 = vmax.xlane.f32.xlu0 %v3733
        %v3735 = vpop.xlane.xlu0 %3734
        %v3736 = vsub.f32 %v3728, %v3732
        %v3737 = vsub.f32 %v3729, %v3735
        %v3738 = vmul.f32 %v3736, 1.442695
        %v3739 = vpow.pop %v3738
        %v3740 = vmul.f32 %v3737, 1.442695
        %v3741 = vpow.pop %v3740
        %v3742 = vsel %vm1679, %v3739, 0.0
        %3743 = vadd.xlane.f32.xlu0 %v3742
        %v3744 = vpop.xlane.xlu0 %3743
        %v3745 = vsel %vm1679, %v3741, 0.0
        %3746 = vadd.xlane.f32.xlu0 %v3745
        %v3747 = vpop.xlane.xlu0 %3746
        %v3748 = vrcp.pop %v3744
        %v3749 = vrcp.pop %v3747
        %v3750 = vmul.f32 %v3739, %v3748
        %v3751 = vmul.f32 %v3741, %v3749
        %v3752 = vpack.c.bf16 %v3750, %v3750
        %v3753 = vpack.c.bf16 %v3751, %v3751
        %3754 = vrot.lane.b32.xlu0 %v2703, 31
        %v3755 = vpop.permute.xlu0 %3754
        %v3757 = vsel %vm1679, %v3752, 0
        %v3760 = vsel %vm1707, %v3755, 0
        %3762 = vmatprep.subr.bf16.mxu0 0
        %3763 = vmatpush1.bf16.msra.mxu0 0
        %3764 = vmatprep.subr.bf16.mxu0 0
        %3765 = vmatpush1.bf16.msra.mxu0 0
        %3766 = vmatprep.subr.bf16.mxu0 0
        %3767 = vmatpush1.bf16.msra.mxu0 0
        %3768 = vmatprep.subr.bf16.mxu0 0
        %3769 = vmatpush1.bf16.msra.mxu0 0
        %3770 = vmatprep.subr.bf16.mxu0 0
        %3771 = vmatpush1.bf16.msra.mxu0 0
        %3772 = vmatprep.subr.bf16.mxu0 0
        %3773 = vmatpush1.bf16.msra.mxu0 0
        %3774 = vmatprep.subr.bf16.mxu0 0
        %3775 = vmatpush1.bf16.msra.mxu0 0
        %3776 = vmatprep.subr.bf16.mxu0 0
        %3777 = vmatpush1.bf16.msra.mxu0 %v3760
        %3778 = vmatprep.subr.bf16.mxu0 0
        %3779 = vmatpush2.bf16.msra.mxu0 0
        %3780 = vmatprep.subr.bf16.mxu0 0
        %3781 = vmatpush2.bf16.msra.mxu0 0
        %3782 = vmatprep.subr.bf16.mxu0 0
        %3783 = vmatpush2.bf16.msra.mxu0 0
        %3784 = vmatprep.subr.bf16.mxu0 0
        %3785 = vmatpush2.bf16.msra.mxu0 0
        %3786 = vmatprep.subr.bf16.mxu0 0
        %3787 = vmatpush2.bf16.msra.mxu0 0
        %3788 = vmatprep.subr.bf16.mxu0 0
        %3789 = vmatpush2.bf16.msra.mxu0 0
        %3790 = vmatprep.subr.bf16.mxu0 0
        %3791 = vmatpush2.bf16.msra.mxu0 0
        %3792 = vmatprep.subr.bf16.mxu0 0
        %3793 = vmatpush2.bf16.msra.mxu0 0
        %3794 = vmatprep.mubr.bf16.mxu0 0
        %3795 = vmatmul.mubr.bf16.gmra.mxu0 %v3757
        %v3796 = vpop.f32.mrf.mxu0
        %v3797 = vadd.f32 0.0, %v3796
        %v3798 = vpop.f32.mrf.mxu0
        %v3799 = vpop.f32.mrf.mxu0
        %v3800 = vpop.f32.mrf.mxu0
        %3801 = vdwg.mxu0
        %3802 = vrot.lane.b32.xlu0 %v2704, 31
        %v3803 = vpop.permute.xlu0 %3802
        %v3805 = vsel %vm1679, %v3753, 0
        %v3808 = vsel %vm1707, %v3803, 0
        %3810 = vmatprep.subr.bf16.mxu0 0
        %3811 = vmatpush1.bf16.msra.mxu0 0
        %3812 = vmatprep.subr.bf16.mxu0 0
        %3813 = vmatpush1.bf16.msra.mxu0 0
        %3814 = vmatprep.subr.bf16.mxu0 0
        %3815 = vmatpush1.bf16.msra.mxu0 0
        %3816 = vmatprep.subr.bf16.mxu0 0
        %3817 = vmatpush1.bf16.msra.mxu0 0
        %3818 = vmatprep.subr.bf16.mxu0 0
        %3819 = vmatpush1.bf16.msra.mxu0 0
        %3820 = vmatprep.subr.bf16.mxu0 0
        %3821 = vmatpush1.bf16.msra.mxu0 0
        %3822 = vmatprep.subr.bf16.mxu0 0
        %3823 = vmatpush1.bf16.msra.mxu0 0
        %3824 = vmatprep.subr.bf16.mxu0 0
        %3825 = vmatpush1.bf16.msra.mxu0 %v3808
        %3826 = vmatprep.subr.bf16.mxu0 0
        %3827 = vmatpush2.bf16.msra.mxu0 0
        %3828 = vmatprep.subr.bf16.mxu0 0
        %3829 = vmatpush2.bf16.msra.mxu0 0
        %3830 = vmatprep.subr.bf16.mxu0 0
        %3831 = vmatpush2.bf16.msra.mxu0 0
        %3832 = vmatprep.subr.bf16.mxu0 0
        %3833 = vmatpush2.bf16.msra.mxu0 0
        %3834 = vmatprep.subr.bf16.mxu0 0
        %3835 = vmatpush2.bf16.msra.mxu0 0
        %3836 = vmatprep.subr.bf16.mxu0 0
        %3837 = vmatpush2.bf16.msra.mxu0 0
        %3838 = vmatprep.subr.bf16.mxu0 0
        %3839 = vmatpush2.bf16.msra.mxu0 0
        %3840 = vmatprep.subr.bf16.mxu0 0
        %3841 = vmatpush2.bf16.msra.mxu0 0
        %3842 = vmatprep.mubr.bf16.mxu0 0
        %3843 = vmatmul.mubr.bf16.gmra.mxu0 %v3805
        %v3844 = vpop.f32.mrf.mxu0
        %v3845 = vadd.f32 0.0, %v3844
        %v3846 = vpop.f32.mrf.mxu0
        %v3847 = vpop.f32.mrf.mxu0
        %v3848 = vpop.f32.mrf.mxu0
        %3849 = vdwg.mxu0
        %3852 = vrot.lane.b32.xlu0 %v1973, 25
        %v3853 = vpop.permute.xlu0 %3852
        %3854 = vrot.lane.b32.xlu0 %v2022, 25
        %v3855 = vpop.permute.xlu0 %3854
        %3860 = vrot.lane.b32.xlu0 %v2198, 50
        %v3861 = vpop.permute.xlu0 %3860
        %3862 = vrot.lane.b32.xlu0 %v2246, 50
        %v3863 = vpop.permute.xlu0 %3862
        %3868 = vrot.lane.b32.xlu0 %v2422, 75
        %v3869 = vpop.permute.xlu0 %3868
        %3870 = vrot.lane.b32.xlu0 %v2470, 75
        %v3871 = vpop.permute.xlu0 %3870
        %3876 = vrot.lane.b32.xlu0 %v2646, 100
        %v3877 = vpop.permute.xlu0 %3876
        %3878 = vrot.lane.b32.xlu0 %v2694, 100
        %v3879 = vpop.permute.xlu0 %3878
        %3884 = vrot.lane.b32.xlu0 %v2897, 125
        %v3885 = vpop.permute.xlu0 %3884
        %3886 = vrot.lane.b32.xlu0 %v2949, 125
        %v3887 = vpop.permute.xlu0 %3886
        %3892 = vrot.lane.b32.xlu0 %v3125, 22
        %v3893 = vpop.permute.xlu0 %3892
        %3894 = vrot.lane.b32.xlu0 %v3173, 22
        %v3895 = vpop.permute.xlu0 %3894
        %3900 = vrot.lane.b32.xlu0 %v3349, 47
        %v3901 = vpop.permute.xlu0 %3900
        %3902 = vrot.lane.b32.xlu0 %v3397, 47
        %v3903 = vpop.permute.xlu0 %3902
        %3908 = vrot.lane.b32.xlu0 %v3573, 72
        %v3909 = vpop.permute.xlu0 %3908
        %3910 = vrot.lane.b32.xlu0 %v3621, 72
        %v3911 = vpop.permute.xlu0 %3910
        %3916 = vrot.lane.b32.xlu0 %v3797, 97
        %v3917 = vpop.permute.xlu0 %3916
        %3918 = vrot.lane.b32.xlu0 %v3845, 97
        %v3919 = vpop.permute.xlu0 %3918
        %v3922 = vsel %vm1582, %v1746, %v3853
        %v3923 = vsel %vm1582, %v1792, %v3855
        %vm3924 = vcmask 408576
        %v3925 = vsel %vm3924, %v3922, %v3861
        %v3926 = vsel %vm3924, %v3923, %v3863
        %vm3927 = vcmask 613376
        %v3928 = vsel %vm3927, %v3925, %v3869
        %v3929 = vsel %vm3927, %v3926, %v3871
        %vm3930 = vcmask 818176
        %v3931 = vsel %vm3930, %v3928, %v3877
        %v3932 = vsel %vm3930, %v3929, %v3879
        %vm3933 = vcmask 1022976
        %v3934 = vsel %vm3933, %v3931, %v3885
        %v3935 = vsel %vm3933, %v3932, %v3887
        %vm3936 = vcmask 179200
        %v3937 = vsel %vm3936, %v3885, %v3893
        %v3938 = vsel %vm3936, %v3887, %v3895
        %vm3939 = vcmask 384000
        %v3940 = vsel %vm3939, %v3937, %v3901
        %v3941 = vsel %vm3939, %v3938, %v3903
        %vm3942 = vcmask 588800
        %v3943 = vsel %vm3942, %v3940, %v3909
        %v3944 = vsel %vm3942, %v3941, %v3911
        %vm3945 = vcmask 793600
        %v3946 = vsel %vm3945, %v3943, %v3917
        %v3947 = vsel %vm3945, %v3944, %v3919
        %v3948 = vpack.c.bf16 %v3935, %v3934
        %v3949 = vpack.c.bf16 %v3947, %v3946
        %v3950 = vld [vmem:[#allocation14] sm:$0xff]
        %v3951 = vld [vmem:[#allocation14 + $0x8] sm:$0xff]
        %v3952 = vld [vmem:[#allocation14 + $0x10] sm:$0xff]
        %v3953 = vld [vmem:[#allocation14 + $0x18] sm:$0xff]
        %v3954 = vld [vmem:[#allocation14 + $0x20] sm:$0xff]
        %v3955 = vld [vmem:[#allocation14 + $0x28] sm:$0xff]
        %v3956 = vld [vmem:[#allocation14 + $0x30] sm:$0xff]
        %v3957 = vld [vmem:[#allocation14 + $0x38] sm:$0xff]
        %v3958 = vld [vmem:[#allocation14 + $0x40] sm:$0xff]
        %v3959 = vld [vmem:[#allocation14 + $0x48] sm:$0xff]
        %v3960 = vld [vmem:[#allocation14 + $0x50] sm:$0xff]
        %v3961 = vld [vmem:[#allocation14 + $0x58] sm:$0xff]
        %v3962 = vld [vmem:[#allocation14 + $0x60] sm:$0xff]
        %v3963 = vld [vmem:[#allocation14 + $0x68] sm:$0xff]
        %v3964 = vld [vmem:[#allocation14 + $0x70] sm:$0xff]
        %v3965 = vld [vmem:[#allocation14 + $0x78] sm:$0xff]
        %v3966 = vld [vmem:[#allocation14 + $0x80] sm:$0xff]
        %v3967 = vld [vmem:[#allocation14 + $0x88] sm:$0xff]
        %v3968 = vld [vmem:[#allocation14 + $0x90] sm:$0xff]
        %v3969 = vld [vmem:[#allocation14 + $0x98] sm:$0xff]
        %v3970 = vld [vmem:[#allocation14 + $0xa0] sm:$0xff]
        %v3971 = vld [vmem:[#allocation14 + $0xa8] sm:$0xff]
        %v3972 = vld [vmem:[#allocation14 + $0xb0] sm:$0xff]
        %v3973 = vld [vmem:[#allocation14 + $0xb8] sm:$0xff]
        %v3974 = vld [vmem:[#allocation14 + $0xc0] sm:$0xff]
        %v3975 = vld [vmem:[#allocation14 + $0xc8] sm:$0xff]
        %v3976 = vld [vmem:[#allocation14 + $0xd0] sm:$0xff]
        %v3977 = vld [vmem:[#allocation14 + $0xd8] sm:$0xff]
        %v3978 = vld [vmem:[#allocation14 + $0xe0] sm:$0xff]
        %v3979 = vld [vmem:[#allocation14 + $0xe8] sm:$0xff]
        %v3980 = vld [vmem:[#allocation14 + $0xf0] sm:$0xff]
        %v3981 = vld [vmem:[#allocation14 + $0xf8] sm:$0x11]
        %v3982 = vld [vmem:[%s10] sm:$0x3]
        %v3984 = vlaneseq
        %v3985 = vshrl.u32 %v3984, 7
        %v3986 = vsub.s32 0, %v3985
        %v3987 = vrot.slane %v3982, %v3986
        %v3988 = vlaneseq
        %v3989 = vshrl.u32 %v3988, 7
        %v3990 = vsub.s32 1, %v3989
        %v3991 = vrot.slane %v3982, %v3990
        %v4026 = vunpack.c.l.b16 %v3950
        %v4027 = vunpack.c.h.b16 %v3950
        %v4028 = vunpack.c.l.b16 %v3951
        %v4029 = vunpack.c.h.b16 %v3951
        %v4030 = vunpack.c.l.b16 %v3952
        %v4031 = vunpack.c.h.b16 %v3952
        %v4032 = vunpack.c.l.b16 %v3953
        %v4033 = vunpack.c.h.b16 %v3953
        %v4034 = vunpack.c.l.b16 %v3954
        %v4035 = vunpack.c.h.b16 %v3954
        %v4036 = vunpack.c.l.b16 %v3955
        %v4037 = vunpack.c.h.b16 %v3955
        %v4038 = vunpack.c.l.b16 %v3956
        %v4039 = vunpack.c.h.b16 %v3956
        %v4040 = vunpack.c.l.b16 %v3957
        %v4041 = vunpack.c.h.b16 %v3957
        %v4042 = vunpack.c.l.b16 %v3958
        %v4043 = vunpack.c.h.b16 %v3958
        %v4044 = vunpack.c.l.b16 %v3959
        %v4045 = vunpack.c.h.b16 %v3959
        %v4046 = vunpack.c.l.b16 %v3960
        %v4047 = vunpack.c.h.b16 %v3960
        %v4048 = vunpack.c.l.b16 %v3961
        %v4049 = vunpack.c.h.b16 %v3961
        %v4050 = vunpack.c.l.b16 %v3962
        %v4051 = vunpack.c.h.b16 %v3962
        %v4052 = vunpack.c.l.b16 %v3963
        %v4053 = vunpack.c.h.b16 %v3963
        %v4054 = vunpack.c.l.b16 %v3964
        %v4055 = vunpack.c.h.b16 %v3964
        %v4056 = vunpack.c.l.b16 %v3965
        %v4057 = vunpack.c.h.b16 %v3965
        %v4058 = vunpack.c.l.b16 %v3966
        %v4059 = vunpack.c.h.b16 %v3966
        %v4060 = vunpack.c.l.b16 %v3967
        %v4061 = vunpack.c.h.b16 %v3967
        %v4062 = vunpack.c.l.b16 %v3968
        %v4063 = vunpack.c.h.b16 %v3968
        %v4064 = vunpack.c.l.b16 %v3969
        %v4065 = vunpack.c.h.b16 %v3969
        %v4066 = vunpack.c.l.b16 %v3970
        %v4067 = vunpack.c.h.b16 %v3970
        %v4068 = vunpack.c.l.b16 %v3971
        %v4069 = vunpack.c.h.b16 %v3971
        %v4070 = vunpack.c.l.b16 %v3972
        %v4071 = vunpack.c.h.b16 %v3972
        %v4072 = vunpack.c.l.b16 %v3973
        %v4073 = vunpack.c.h.b16 %v3973
        %v4074 = vunpack.c.l.b16 %v3974
        %v4075 = vunpack.c.h.b16 %v3974
        %v4076 = vunpack.c.l.b16 %v3975
        %v4077 = vunpack.c.h.b16 %v3975
        %v4078 = vunpack.c.l.b16 %v3976
        %v4079 = vunpack.c.h.b16 %v3976
        %v4080 = vunpack.c.l.b16 %v3977
        %v4081 = vunpack.c.h.b16 %v3977
        %v4082 = vunpack.c.l.b16 %v3978
        %v4083 = vunpack.c.h.b16 %v3978
        %v4084 = vunpack.c.l.b16 %v3979
        %v4085 = vunpack.c.h.b16 %v3979
        %v4086 = vunpack.c.l.b16 %v3980
        %v4087 = vunpack.c.h.b16 %v3980
        %v4088 = vunpack.c.l.b16 %v3981
        %v4089 = vunpack.c.h.b16 %v3981
        %v4090 = vpack.c.b16 %v4028, %v4026
        %v4091 = vpack.c.b16 %v4029, %v4027
        %v4092 = vpack.c.b16 %v4032, %v4030
        %v4093 = vpack.c.b16 %v4033, %v4031
        %v4094 = vpack.c.b16 %v4036, %v4034
        %v4095 = vpack.c.b16 %v4037, %v4035
        %v4096 = vpack.c.b16 %v4040, %v4038
        %v4097 = vpack.c.b16 %v4041, %v4039
        %v4098 = vpack.c.b16 %v4044, %v4042
        %v4099 = vpack.c.b16 %v4045, %v4043
        %v4100 = vpack.c.b16 %v4048, %v4046
        %v4101 = vpack.c.b16 %v4049, %v4047
        %v4102 = vpack.c.b16 %v4052, %v4050
        %v4103 = vpack.c.b16 %v4053, %v4051
        %v4104 = vpack.c.b16 %v4056, %v4054
        %v4105 = vpack.c.b16 %v4057, %v4055
        %v4106 = vpack.c.b16 %v4060, %v4058
        %v4107 = vpack.c.b16 %v4061, %v4059
        %v4108 = vpack.c.b16 %v4064, %v4062
        %v4109 = vpack.c.b16 %v4065, %v4063
        %v4110 = vpack.c.b16 %v4068, %v4066
        %v4111 = vpack.c.b16 %v4069, %v4067
        %v4112 = vpack.c.b16 %v4072, %v4070
        %v4113 = vpack.c.b16 %v4073, %v4071
        %v4114 = vpack.c.b16 %v4076, %v4074
        %v4115 = vpack.c.b16 %v4077, %v4075
        %v4116 = vpack.c.b16 %v4080, %v4078
        %v4117 = vpack.c.b16 %v4081, %v4079
        %v4118 = vpack.c.b16 %v4084, %v4082
        %v4119 = vpack.c.b16 %v4085, %v4083
        %v4120 = vpack.c.b16 %v4088, %v4086
        %v4121 = vpack.c.b16 %v4089, %v4087
        %v4153 = vsel %vm1019, %v3949, 0
        %v4156 = vsel %vm1023, %v4120, 0
        %v4159 = vsel %vm1023, %v4121, 0
        %4161 = vmatprep.subr.bf16.mxu0 %v4105
        %4162 = vmatpush1.bf16.msra.mxu0 %v4104
        %4163 = vmatprep.subr.bf16.mxu0 %v4103
        %4164 = vmatpush1.bf16.msra.mxu0 %v4102
        %4165 = vmatprep.subr.bf16.mxu0 %v4101
        %4166 = vmatpush1.bf16.msra.mxu0 %v4100
        %4167 = vmatprep.subr.bf16.mxu0 %v4099
        %4168 = vmatpush1.bf16.msra.mxu0 %v4098
        %4169 = vmatprep.subr.bf16.mxu0 %v4097
        %4170 = vmatpush1.bf16.msra.mxu0 %v4096
        %4171 = vmatprep.subr.bf16.mxu0 %v4095
        %4172 = vmatpush1.bf16.msra.mxu0 %v4094
        %4173 = vmatprep.subr.bf16.mxu0 %v4093
        %4174 = vmatpush1.bf16.msra.mxu0 %v4092
        %4175 = vmatprep.subr.bf16.mxu0 %v4091
        %4176 = vmatpush1.bf16.msra.mxu0 %v4090
        %4177 = vmatprep.subr.bf16.mxu0 %v4159
        %4178 = vmatpush2.bf16.msra.mxu0 %v4156
        %4179 = vmatprep.subr.bf16.mxu0 %v4119
        %4180 = vmatpush2.bf16.msra.mxu0 %v4118
        %4181 = vmatprep.subr.bf16.mxu0 %v4117
        %4182 = vmatpush2.bf16.msra.mxu0 %v4116
        %4183 = vmatprep.subr.bf16.mxu0 %v4115
        %4184 = vmatpush2.bf16.msra.mxu0 %v4114
        %4185 = vmatprep.subr.bf16.mxu0 %v4113
        %4186 = vmatpush2.bf16.msra.mxu0 %v4112
        %4187 = vmatprep.subr.bf16.mxu0 %v4111
        %4188 = vmatpush2.bf16.msra.mxu0 %v4110
        %4189 = vmatprep.subr.bf16.mxu0 %v4109
        %4190 = vmatpush2.bf16.msra.mxu0 %v4108
        %4191 = vmatprep.subr.bf16.mxu0 %v4107
        %4192 = vmatpush2.bf16.msra.mxu0 %v4106
        %4193 = vmatprep.mubr.bf16.mxu0 %v4153
        %4194 = vmatmul.mubr.bf16.gmra.mxu0 %v3948
        %v4195 = vpop.f32.mrf.mxu0
        %v4196 = vadd.f32 %v3987, %v4195
        %v4197 = vpop.f32.mrf.mxu0
        %v4198 = vadd.f32 %v3991, %v4197
        %v4199 = vpop.f32.mrf.mxu0
        %v4200 = vadd.f32 %v3987, %v4199
        %v4201 = vpop.f32.mrf.mxu0
        %v4202 = vadd.f32 %v3991, %v4201
        %4203 = vdwg.mxu0
        %v4204 = vadd.f32 %v811, %v4196
        %v4205 = vadd.f32 %v812, %v4198
        %v4206 = vadd.f32 %v813, %v4200
        %v4207 = vadd.f32 %v814, %v4202
        %v4208 = vld [vmem:[%s11] sm:$0x3]
        %v4209 = vld [vmem:[#allocation15] sm:$0x3]
        %v4210 = vsel %vm1019, %v4205, 0.0
        %v4211 = vadd.f32 %v4204, %v4210
        %4212 = vadd.xlane.f32.xlu0 %v4211
        %v4213 = vpop.xlane.xlu0 %4212
        %v4214 = vsel %vm1019, %v4207, 0.0
        %v4215 = vadd.f32 %v4206, %v4214
        %4216 = vadd.xlane.f32.xlu0 %v4215
        %v4217 = vpop.xlane.xlu0 %4216
        %v4218 = vrcp.pop 250.0
        %v4219 = vmul.f32 %v4213, %v4218
        %v4220 = vmul.f32 %v4217, %v4218
        %v4221 = vsub.f32 %v4204, %v4219
        %v4222 = vsub.f32 %v4205, %v4219
        %v4223 = vsub.f32 %v4206, %v4220
        %v4224 = vsub.f32 %v4207, %v4220
        %v4225 = vmul.f32 %v4221, %v4221
        %v4226 = vmul.f32 %v4222, %v4222
        %v4227 = vmul.f32 %v4223, %v4223
        %v4228 = vmul.f32 %v4224, %v4224
        %v4229 = vsel %vm1019, %v4226, 0.0
        %v4230 = vadd.f32 %v4225, %v4229
        %4231 = vadd.xlane.f32.xlu0 %v4230
        %v4232 = vpop.xlane.xlu0 %4231
        %v4233 = vsel %vm1019, %v4228, 0.0
        %v4234 = vadd.f32 %v4227, %v4233
        %4235 = vadd.xlane.f32.xlu0 %v4234
        %v4236 = vpop.xlane.xlu0 %4235
        %v4237 = vmul.f32 %v4232, %v4218
        %v4238 = vmul.f32 %v4236, %v4218
        %v4239 = vadd.f32 %v4237, 1e-05
        %v4240 = vadd.f32 %v4238, 1e-05
        %v4241 = vrsqrt.pop %v4239
        %v4242 = vrsqrt.pop %v4240
        %v4243 = vmul.f32 %v4221, %v4241
        %v4244 = vmul.f32 %v4222, %v4241
        %v4245 = vmul.f32 %v4223, %v4242
        %v4246 = vmul.f32 %v4224, %v4242
        %v4248 = vlaneseq
        %v4249 = vshrl.u32 %v4248, 7
        %v4250 = vsub.s32 0, %v4249
        %v4251 = vrot.slane %v4208, %v4250
        %v4252 = vlaneseq
        %v4253 = vshrl.u32 %v4252, 7
        %v4254 = vsub.s32 1, %v4253
        %v4255 = vrot.slane %v4208, %v4254
        %v4258 = vmul.f32 %v4243, %v4251
        %v4259 = vmul.f32 %v4244, %v4255
        %v4260 = vmul.f32 %v4245, %v4251
        %v4261 = vmul.f32 %v4246, %v4255
        %v4263 = vlaneseq
        %v4264 = vshrl.u32 %v4263, 7
        %v4265 = vsub.s32 0, %v4264
        %v4266 = vrot.slane %v4209, %v4265
        %v4267 = vlaneseq
        %v4268 = vshrl.u32 %v4267, 7
        %v4269 = vsub.s32 1, %v4268
        %v4270 = vrot.slane %v4209, %v4269
        %v4273 = vadd.f32 %v4258, %v4266
        %v4274 = vadd.f32 %v4259, %v4270
        %v4275 = vadd.f32 %v4260, %v4266
        %v4276 = vadd.f32 %v4261, %v4270
        %v4277 = vpack.c.bf16 %v4275, %v4273
        %v4278 = vpack.c.bf16 %v4276, %v4274
        %v4279 = vld [vmem:[#allocation17] sm:$0xff]
        %v4280 = vld [vmem:[#allocation17 + $0x8] sm:$0xff]
        %v4281 = vld [vmem:[#allocation17 + $0x10] sm:$0xff]
        %v4282 = vld [vmem:[#allocation17 + $0x18] sm:$0xff]
        %v4283 = vld [vmem:[#allocation17 + $0x20] sm:$0xff]
        %v4284 = vld [vmem:[#allocation17 + $0x28] sm:$0xff]
        %v4285 = vld [vmem:[#allocation17 + $0x30] sm:$0xff]
        %v4286 = vld [vmem:[#allocation17 + $0x38] sm:$0xff]
        %v4287 = vld [vmem:[#allocation17 + $0x40] sm:$0xff]
        %v4288 = vld [vmem:[#allocation17 + $0x48] sm:$0xff]
        %v4289 = vld [vmem:[#allocation17 + $0x50] sm:$0xff]
        %v4290 = vld [vmem:[#allocation17 + $0x58] sm:$0xff]
        %v4291 = vld [vmem:[#allocation17 + $0x60] sm:$0xff]
        %v4292 = vld [vmem:[#allocation17 + $0x68] sm:$0xff]
        %v4293 = vld [vmem:[#allocation17 + $0x70] sm:$0xff]
        %v4294 = vld [vmem:[#allocation17 + $0x78] sm:$0xff]
        %v4295 = vld [vmem:[#allocation17 + $0x80] sm:$0xff]
        %v4296 = vld [vmem:[#allocation17 + $0x88] sm:$0xff]
        %v4297 = vld [vmem:[#allocation17 + $0x90] sm:$0xff]
        %v4298 = vld [vmem:[#allocation17 + $0x98] sm:$0xff]
        %v4299 = vld [vmem:[#allocation17 + $0xa0] sm:$0xff]
        %v4300 = vld [vmem:[#allocation17 + $0xa8] sm:$0xff]
        %v4301 = vld [vmem:[#allocation17 + $0xb0] sm:$0xff]
        %v4302 = vld [vmem:[#allocation17 + $0xb8] sm:$0xff]
        %v4303 = vld [vmem:[#allocation17 + $0xc0] sm:$0xff]
        %v4304 = vld [vmem:[#allocation17 + $0xc8] sm:$0xff]
        %v4305 = vld [vmem:[#allocation17 + $0xd0] sm:$0xff]
        %v4306 = vld [vmem:[#allocation17 + $0xd8] sm:$0xff]
        %v4307 = vld [vmem:[#allocation17 + $0xe0] sm:$0xff]
        %v4308 = vld [vmem:[#allocation17 + $0xe8] sm:$0xff]
        %v4309 = vld [vmem:[#allocation17 + $0xf0] sm:$0xff]
        %v4310 = vld [vmem:[#allocation17 + $0xf8] sm:$0xff]
        %v4311 = vld [vmem:[#allocation17 + $0x100] sm:$0xff]
        %v4312 = vld [vmem:[#allocation17 + $0x108] sm:$0xff]
        %v4313 = vld [vmem:[#allocation17 + $0x110] sm:$0xff]
        %v4314 = vld [vmem:[#allocation17 + $0x118] sm:$0xff]
        %v4315 = vld [vmem:[#allocation17 + $0x120] sm:$0xff]
        %v4316 = vld [vmem:[#allocation17 + $0x128] sm:$0xff]
        %v4317 = vld [vmem:[#allocation17 + $0x130] sm:$0xff]
        %v4318 = vld [vmem:[#allocation17 + $0x138] sm:$0xff]
        %v4319 = vld [vmem:[#allocation17 + $0x140] sm:$0xff]
        %v4320 = vld [vmem:[#allocation17 + $0x148] sm:$0xff]
        %v4321 = vld [vmem:[#allocation17 + $0x150] sm:$0xff]
        %v4322 = vld [vmem:[#allocation17 + $0x158] sm:$0xff]
        %v4323 = vld [vmem:[#allocation17 + $0x160] sm:$0xff]
        %v4324 = vld [vmem:[#allocation17 + $0x168] sm:$0xff]
        %v4325 = vld [vmem:[#allocation17 + $0x170] sm:$0xff]
        %v4326 = vld [vmem:[#allocation17 + $0x178] sm:$0xff]
        %v4327 = vld [vmem:[#allocation17 + $0x180] sm:$0xff]
        %v4328 = vld [vmem:[#allocation17 + $0x188] sm:$0xff]
        %v4329 = vld [vmem:[#allocation17 + $0x190] sm:$0xff]
        %v4330 = vld [vmem:[#allocation17 + $0x198] sm:$0xff]
        %v4331 = vld [vmem:[#allocation17 + $0x1a0] sm:$0xff]
        %v4332 = vld [vmem:[#allocation17 + $0x1a8] sm:$0xff]
        %v4333 = vld [vmem:[#allocation17 + $0x1b0] sm:$0xff]
        %v4334 = vld [vmem:[#allocation17 + $0x1b8] sm:$0xff]
        %v4335 = vld [vmem:[#allocation17 + $0x1c0] sm:$0xff]
        %v4336 = vld [vmem:[#allocation17 + $0x1c8] sm:$0xff]
        %v4337 = vld [vmem:[#allocation17 + $0x1d0] sm:$0xff]
        %v4338 = vld [vmem:[#allocation17 + $0x1d8] sm:$0xff]
        %v4339 = vld [vmem:[#allocation17 + $0x1e0] sm:$0xff]
        %v4340 = vld [vmem:[#allocation17 + $0x1e8] sm:$0xff]
        %v4341 = vld [vmem:[#allocation17 + $0x1f0] sm:$0xff]
        %v4342 = vld [vmem:[#allocation17 + $0x1f8] sm:$0xff]
        %v4343 = vld [vmem:[#allocation17 + $0x200] sm:$0xff]
        %v4344 = vld [vmem:[#allocation17 + $0x208] sm:$0xff]
        %v4345 = vld [vmem:[#allocation17 + $0x210] sm:$0xff]
        %v4346 = vld [vmem:[#allocation17 + $0x218] sm:$0xff]
        %v4347 = vld [vmem:[#allocation17 + $0x220] sm:$0xff]
        %v4348 = vld [vmem:[#allocation17 + $0x228] sm:$0xff]
        %v4349 = vld [vmem:[#allocation17 + $0x230] sm:$0xff]
        %v4350 = vld [vmem:[#allocation17 + $0x238] sm:$0xff]
        %v4351 = vld [vmem:[#allocation17 + $0x240] sm:$0xff]
        %v4352 = vld [vmem:[#allocation17 + $0x248] sm:$0xff]
        %v4353 = vld [vmem:[#allocation17 + $0x250] sm:$0xff]
        %v4354 = vld [vmem:[#allocation17 + $0x258] sm:$0xff]
        %v4355 = vld [vmem:[#allocation17 + $0x260] sm:$0xff]
        %v4356 = vld [vmem:[#allocation17 + $0x268] sm:$0xff]
        %v4357 = vld [vmem:[#allocation17 + $0x270] sm:$0xff]
        %v4358 = vld [vmem:[#allocation17 + $0x278] sm:$0xff]
        %v4359 = vld [vmem:[#allocation17 + $0x280] sm:$0xff]
        %v4360 = vld [vmem:[#allocation17 + $0x288] sm:$0xff]
        %v4361 = vld [vmem:[#allocation17 + $0x290] sm:$0xff]
        %v4362 = vld [vmem:[#allocation17 + $0x298] sm:$0xff]
        %v4363 = vld [vmem:[#allocation17 + $0x2a0] sm:$0xff]
        %v4364 = vld [vmem:[#allocation17 + $0x2a8] sm:$0xff]
        %v4365 = vld [vmem:[#allocation17 + $0x2b0] sm:$0xff]
        %v4366 = vld [vmem:[#allocation17 + $0x2b8] sm:$0xff]
        %v4367 = vld [vmem:[#allocation17 + $0x2c0] sm:$0xff]
        %v4368 = vld [vmem:[#allocation17 + $0x2c8] sm:$0xff]
        %v4369 = vld [vmem:[#allocation17 + $0x2d0] sm:$0xff]
        %v4370 = vld [vmem:[#allocation17 + $0x2d8] sm:$0xff]
        %v4371 = vld [vmem:[#allocation17 + $0x2e0] sm:$0xff]
        %v4372 = vld [vmem:[#allocation17 + $0x2e8] sm:$0xff]
        %v4373 = vld [vmem:[#allocation17 + $0x2f0] sm:$0xff]
        %v4374 = vld [vmem:[#allocation17 + $0x2f8] sm:$0xff]
        %v4375 = vld [vmem:[#allocation17 + $0x300] sm:$0xff]
        %v4376 = vld [vmem:[#allocation17 + $0x308] sm:$0xff]
        %v4377 = vld [vmem:[#allocation17 + $0x310] sm:$0xff]
        %v4378 = vld [vmem:[#allocation17 + $0x318] sm:$0xff]
        %v4379 = vld [vmem:[#allocation17 + $0x320] sm:$0xff]
        %v4380 = vld [vmem:[#allocation17 + $0x328] sm:$0xff]
        %v4381 = vld [vmem:[#allocation17 + $0x330] sm:$0xff]
        %v4382 = vld [vmem:[#allocation17 + $0x338] sm:$0xff]
        %v4383 = vld [vmem:[#allocation17 + $0x340] sm:$0xff]
        %v4384 = vld [vmem:[#allocation17 + $0x348] sm:$0xff]
        %v4385 = vld [vmem:[#allocation17 + $0x350] sm:$0xff]
        %v4386 = vld [vmem:[#allocation17 + $0x358] sm:$0xff]
        %v4387 = vld [vmem:[#allocation17 + $0x360] sm:$0xff]
        %v4388 = vld [vmem:[#allocation17 + $0x368] sm:$0xff]
        %v4389 = vld [vmem:[#allocation17 + $0x370] sm:$0xff]
        %v4390 = vld [vmem:[#allocation17 + $0x378] sm:$0xff]
        %v4391 = vld [vmem:[#allocation17 + $0x380] sm:$0xff]
        %v4392 = vld [vmem:[#allocation17 + $0x388] sm:$0xff]
        %v4393 = vld [vmem:[#allocation17 + $0x390] sm:$0xff]
        %v4394 = vld [vmem:[#allocation17 + $0x398] sm:$0xff]
        %v4395 = vld [vmem:[#allocation17 + $0x3a0] sm:$0xff]
        %v4396 = vld [vmem:[#allocation17 + $0x3a8] sm:$0xff]
        %v4397 = vld [vmem:[#allocation17 + $0x3b0] sm:$0xff]
        %v4398 = vld [vmem:[#allocation17 + $0x3b8] sm:$0xff]
        %v4399 = vld [vmem:[#allocation17 + $0x3c0] sm:$0xff]
        %v4400 = vld [vmem:[#allocation17 + $0x3c8] sm:$0xff]
        %v4401 = vld [vmem:[#allocation17 + $0x3d0] sm:$0xff]
        %v4402 = vld [vmem:[#allocation17 + $0x3d8] sm:$0xff]
        %v4403 = vld [vmem:[#allocation17 + $0x3e0] sm:$0xff]
        %v4404 = vld [vmem:[#allocation17 + $0x3e8] sm:$0xff]
        %v4405 = vld [vmem:[#allocation17 + $0x3f0] sm:$0xff]
        %v4406 = vld [vmem:[#allocation17 + $0x3f8] sm:$0xff]
        %v4407 = vld [vmem:[#allocation17 + $0x400] sm:$0xff]
        %v4408 = vld [vmem:[#allocation17 + $0x408] sm:$0xff]
        %v4409 = vld [vmem:[#allocation17 + $0x410] sm:$0xff]
        %v4410 = vld [vmem:[#allocation17 + $0x418] sm:$0xff]
        %v4411 = vld [vmem:[#allocation17 + $0x420] sm:$0xff]
        %v4412 = vld [vmem:[#allocation17 + $0x428] sm:$0xff]
        %v4413 = vld [vmem:[#allocation17 + $0x430] sm:$0xff]
        %v4414 = vld [vmem:[#allocation17 + $0x438] sm:$0xff]
        %v4415 = vld [vmem:[#allocation17 + $0x440] sm:$0xff]
        %v4416 = vld [vmem:[#allocation17 + $0x448] sm:$0xff]
        %v4417 = vld [vmem:[#allocation17 + $0x450] sm:$0xff]
        %v4418 = vld [vmem:[#allocation17 + $0x458] sm:$0xff]
        %v4419 = vld [vmem:[#allocation17 + $0x460] sm:$0xff]
        %v4420 = vld [vmem:[#allocation17 + $0x468] sm:$0xff]
        %v4421 = vld [vmem:[#allocation17 + $0x470] sm:$0xff]
        %v4422 = vld [vmem:[#allocation17 + $0x478] sm:$0xff]
        %v4423 = vld [vmem:[#allocation17 + $0x480] sm:$0xff]
        %v4424 = vld [vmem:[#allocation17 + $0x488] sm:$0xff]
        %v4425 = vld [vmem:[#allocation17 + $0x490] sm:$0xff]
        %v4426 = vld [vmem:[#allocation17 + $0x498] sm:$0xff]
        %v4427 = vld [vmem:[#allocation17 + $0x4a0] sm:$0xff]
        %v4428 = vld [vmem:[#allocation17 + $0x4a8] sm:$0xff]
        %v4429 = vld [vmem:[#allocation17 + $0x4b0] sm:$0xff]
        %v4430 = vld [vmem:[#allocation17 + $0x4b8] sm:$0xff]
        %v4431 = vld [vmem:[#allocation17 + $0x4c0] sm:$0xff]
        %v4432 = vld [vmem:[#allocation17 + $0x4c8] sm:$0xff]
        %v4433 = vld [vmem:[#allocation17 + $0x4d0] sm:$0xff]
        %v4434 = vld [vmem:[#allocation17 + $0x4d8] sm:$0xff]
        %v4435 = vld [vmem:[#allocation17 + $0x4e0] sm:$0xff]
        %v4436 = vld [vmem:[#allocation17 + $0x4e8] sm:$0xff]
        %v4437 = vld [vmem:[#allocation17 + $0x4f0] sm:$0xff]
        %v4438 = vld [vmem:[#allocation17 + $0x4f8] sm:$0xff]
        %v4439 = vld [vmem:[#allocation17 + $0x500] sm:$0xff]
        %v4440 = vld [vmem:[#allocation17 + $0x508] sm:$0xff]
        %v4441 = vld [vmem:[#allocation17 + $0x510] sm:$0xff]
        %v4442 = vld [vmem:[#allocation17 + $0x518] sm:$0xff]
        %v4443 = vld [vmem:[#allocation17 + $0x520] sm:$0xff]
        %v4444 = vld [vmem:[#allocation17 + $0x528] sm:$0xff]
        %v4445 = vld [vmem:[#allocation17 + $0x530] sm:$0xff]
        %v4446 = vld [vmem:[#allocation17 + $0x538] sm:$0xff]
        %v4447 = vld [vmem:[#allocation17 + $0x540] sm:$0xff]
        %v4448 = vld [vmem:[#allocation17 + $0x548] sm:$0xff]
        %v4449 = vld [vmem:[#allocation17 + $0x550] sm:$0xff]
        %v4450 = vld [vmem:[#allocation17 + $0x558] sm:$0xff]
        %v4451 = vld [vmem:[#allocation17 + $0x560] sm:$0xff]
        %v4452 = vld [vmem:[#allocation17 + $0x568] sm:$0xff]
        %v4453 = vld [vmem:[#allocation17 + $0x570] sm:$0xff]
        %v4454 = vld [vmem:[#allocation17 + $0x578] sm:$0xff]
        %v4455 = vld [vmem:[#allocation17 + $0x580] sm:$0xff]
        %v4456 = vld [vmem:[#allocation17 + $0x588] sm:$0xff]
        %v4457 = vld [vmem:[#allocation17 + $0x590] sm:$0xff]
        %v4458 = vld [vmem:[#allocation17 + $0x598] sm:$0xff]
        %v4459 = vld [vmem:[#allocation17 + $0x5a0] sm:$0xff]
        %v4460 = vld [vmem:[#allocation17 + $0x5a8] sm:$0xff]
        %v4461 = vld [vmem:[#allocation17 + $0x5b0] sm:$0xff]
        %v4462 = vld [vmem:[#allocation17 + $0x5b8] sm:$0xff]
        %v4463 = vld [vmem:[#allocation17 + $0x5c0] sm:$0xff]
        %v4464 = vld [vmem:[#allocation17 + $0x5c8] sm:$0xff]
        %v4465 = vld [vmem:[#allocation17 + $0x5d0] sm:$0xff]
        %v4466 = vld [vmem:[#allocation17 + $0x5d8] sm:$0xff]
        %v4467 = vld [vmem:[#allocation17 + $0x5e0] sm:$0xff]
        %v4468 = vld [vmem:[#allocation17 + $0x5e8] sm:$0xff]
        %v4469 = vld [vmem:[#allocation17 + $0x5f0] sm:$0xff]
        %v4470 = vld [vmem:[#allocation17 + $0x5f8] sm:$0xff]
        %v4471 = vld [vmem:[#allocation17 + $0x600] sm:$0xff]
        %v4472 = vld [vmem:[#allocation17 + $0x608] sm:$0xff]
        %v4473 = vld [vmem:[#allocation17 + $0x610] sm:$0xff]
        %v4474 = vld [vmem:[#allocation17 + $0x618] sm:$0xff]
        %v4475 = vld [vmem:[#allocation17 + $0x620] sm:$0xff]
        %v4476 = vld [vmem:[#allocation17 + $0x628] sm:$0xff]
        %v4477 = vld [vmem:[#allocation17 + $0x630] sm:$0xff]
        %v4478 = vld [vmem:[#allocation17 + $0x638] sm:$0xff]
        %v4479 = vld [vmem:[#allocation17 + $0x640] sm:$0xff]
        %v4480 = vld [vmem:[#allocation17 + $0x648] sm:$0xff]
        %v4481 = vld [vmem:[#allocation17 + $0x650] sm:$0xff]
        %v4482 = vld [vmem:[#allocation17 + $0x658] sm:$0xff]
        %v4483 = vld [vmem:[#allocation17 + $0x660] sm:$0xff]
        %v4484 = vld [vmem:[#allocation17 + $0x668] sm:$0xff]
        %v4485 = vld [vmem:[#allocation17 + $0x670] sm:$0xff]
        %v4486 = vld [vmem:[#allocation17 + $0x678] sm:$0xff]
        %v4487 = vld [vmem:[#allocation17 + $0x680] sm:$0xff]
        %v4488 = vld [vmem:[#allocation17 + $0x688] sm:$0xff]
        %v4489 = vld [vmem:[#allocation17 + $0x690] sm:$0xff]
        %v4490 = vld [vmem:[#allocation17 + $0x698] sm:$0xff]
        %v4491 = vld [vmem:[#allocation17 + $0x6a0] sm:$0xff]
        %v4492 = vld [vmem:[#allocation17 + $0x6a8] sm:$0xff]
        %v4493 = vld [vmem:[#allocation17 + $0x6b0] sm:$0xff]
        %v4494 = vld [vmem:[#allocation17 + $0x6b8] sm:$0xff]
        %v4495 = vld [vmem:[#allocation17 + $0x6c0] sm:$0xff]
        %v4496 = vld [vmem:[#allocation17 + $0x6c8] sm:$0xff]
        %v4497 = vld [vmem:[#allocation17 + $0x6d0] sm:$0xff]
        %v4498 = vld [vmem:[#allocation17 + $0x6d8] sm:$0xff]
        %v4499 = vld [vmem:[#allocation17 + $0x6e0] sm:$0xff]
        %v4500 = vld [vmem:[#allocation17 + $0x6e8] sm:$0xff]
        %v4501 = vld [vmem:[#allocation17 + $0x6f0] sm:$0xff]
        %v4502 = vld [vmem:[#allocation17 + $0x6f8] sm:$0xff]
        %v4503 = vld [vmem:[#allocation17 + $0x700] sm:$0xff]
        %v4504 = vld [vmem:[#allocation17 + $0x708] sm:$0xff]
        %v4505 = vld [vmem:[#allocation17 + $0x710] sm:$0xff]
        %v4506 = vld [vmem:[#allocation17 + $0x718] sm:$0xff]
        %v4507 = vld [vmem:[#allocation17 + $0x720] sm:$0xff]
        %v4508 = vld [vmem:[#allocation17 + $0x728] sm:$0xff]
        %v4509 = vld [vmem:[#allocation17 + $0x730] sm:$0xff]
        %v4510 = vld [vmem:[#allocation17 + $0x738] sm:$0xff]
        %v4511 = vld [vmem:[#allocation17 + $0x740] sm:$0xff]
        %v4512 = vld [vmem:[#allocation17 + $0x748] sm:$0xff]
        %v4513 = vld [vmem:[#allocation17 + $0x750] sm:$0xff]
        %v4514 = vld [vmem:[#allocation17 + $0x758] sm:$0xff]
        %v4515 = vld [vmem:[#allocation17 + $0x760] sm:$0xff]
        %v4516 = vld [vmem:[#allocation17 + $0x768] sm:$0xff]
        %v4517 = vld [vmem:[#allocation17 + $0x770] sm:$0xff]
        %v4518 = vld [vmem:[#allocation17 + $0x778] sm:$0xff]
        %v4519 = vld [vmem:[#allocation17 + $0x780] sm:$0xff]
        %v4520 = vld [vmem:[#allocation17 + $0x788] sm:$0xff]
        %v4521 = vld [vmem:[#allocation17 + $0x790] sm:$0xff]
        %v4522 = vld [vmem:[#allocation17 + $0x798] sm:$0xff]
        %v4523 = vld [vmem:[#allocation17 + $0x7a0] sm:$0xff]
        %v4524 = vld [vmem:[#allocation17 + $0x7a8] sm:$0xff]
        %v4525 = vld [vmem:[#allocation17 + $0x7b0] sm:$0xff]
        %v4526 = vld [vmem:[#allocation17 + $0x7b8] sm:$0xff]
        %v4527 = vld [vmem:[#allocation17 + $0x7c0] sm:$0x11]
        %v4528 = vld [vmem:[#allocation17 + $0x7c8] sm:$0x11]
        %v4529 = vld [vmem:[#allocation17 + $0x7d0] sm:$0x11]
        %v4530 = vld [vmem:[#allocation17 + $0x7d8] sm:$0x11]
        %v4531 = vld [vmem:[#allocation17 + $0x7e0] sm:$0x11]
        %v4532 = vld [vmem:[#allocation17 + $0x7e8] sm:$0x11]
        %v4533 = vld [vmem:[#allocation17 + $0x7f0] sm:$0x11]
        %v4534 = vld [vmem:[#allocation17 + $0x7f8] sm:$0x11]
        %v4535 = vld [vmem:[%s14] sm:$0xff]
        %v4536 = vld [vmem:[%s14 + $0x8] sm:$0xff]
        %v4539 = vlaneseq
        %v4540 = vshrl.u32 %v4539, 7
        %v4541 = vsub.s32 0, %v4540
        %v4542 = vrot.slane %v4535, %v4541
        %v4543 = vlaneseq
        %v4544 = vshrl.u32 %v4543, 7
        %v4545 = vsub.s32 1, %v4544
        %v4546 = vrot.slane %v4535, %v4545
        %v4547 = vlaneseq
        %v4548 = vshrl.u32 %v4547, 7
        %v4549 = vsub.s32 2, %v4548
        %v4550 = vrot.slane %v4535, %v4549
        %v4551 = vlaneseq
        %v4552 = vshrl.u32 %v4551, 7
        %v4553 = vsub.s32 3, %v4552
        %v4554 = vrot.slane %v4535, %v4553
        %v4555 = vlaneseq
        %v4556 = vshrl.u32 %v4555, 7
        %v4557 = vsub.s32 4, %v4556
        %v4558 = vrot.slane %v4535, %v4557
        %v4559 = vlaneseq
        %v4560 = vshrl.u32 %v4559, 7
        %v4561 = vsub.s32 5, %v4560
        %v4562 = vrot.slane %v4535, %v4561
        %v4563 = vlaneseq
        %v4564 = vshrl.u32 %v4563, 7
        %v4565 = vsub.s32 6, %v4564
        %v4566 = vrot.slane %v4535, %v4565
        %v4567 = vlaneseq
        %v4568 = vshrl.u32 %v4567, 7
        %v4569 = vsub.s32 7, %v4568
        %v4570 = vrot.slane %v4535, %v4569
        %v4571 = vlaneseq
        %v4572 = vshrl.u32 %v4571, 7
        %v4573 = vsub.s32 0, %v4572
        %v4574 = vrot.slane %v4536, %v4573
        %v4575 = vlaneseq
        %v4576 = vshrl.u32 %v4575, 7
        %v4577 = vsub.s32 1, %v4576
        %v4578 = vrot.slane %v4536, %v4577
        %v4579 = vlaneseq
        %v4580 = vshrl.u32 %v4579, 7
        %v4581 = vsub.s32 2, %v4580
        %v4582 = vrot.slane %v4536, %v4581
        %v4583 = vlaneseq
        %v4584 = vshrl.u32 %v4583, 7
        %v4585 = vsub.s32 3, %v4584
        %v4586 = vrot.slane %v4536, %v4585
        %v4587 = vlaneseq
        %v4588 = vshrl.u32 %v4587, 7
        %v4589 = vsub.s32 4, %v4588
        %v4590 = vrot.slane %v4536, %v4589
        %v4591 = vlaneseq
        %v4592 = vshrl.u32 %v4591, 7
        %v4593 = vsub.s32 5, %v4592
        %v4594 = vrot.slane %v4536, %v4593
        %v4595 = vlaneseq
        %v4596 = vshrl.u32 %v4595, 7
        %v4597 = vsub.s32 6, %v4596
        %v4598 = vrot.slane %v4536, %v4597
        %v4599 = vlaneseq
        %v4600 = vshrl.u32 %v4599, 7
        %v4601 = vsub.s32 7, %v4600
        %v4602 = vrot.slane %v4536, %v4601
        %v4875 = vunpack.c.l.b16 %v4279
        %v4876 = vunpack.c.h.b16 %v4279
        %v4877 = vunpack.c.l.b16 %v4280
        %v4878 = vunpack.c.h.b16 %v4280
        %v4879 = vunpack.c.l.b16 %v4281
        %v4880 = vunpack.c.h.b16 %v4281
        %v4881 = vunpack.c.l.b16 %v4282
        %v4882 = vunpack.c.h.b16 %v4282
        %v4883 = vunpack.c.l.b16 %v4283
        %v4884 = vunpack.c.h.b16 %v4283
        %v4885 = vunpack.c.l.b16 %v4284
        %v4886 = vunpack.c.h.b16 %v4284
        %v4887 = vunpack.c.l.b16 %v4285
        %v4888 = vunpack.c.h.b16 %v4285
        %v4889 = vunpack.c.l.b16 %v4286
        %v4890 = vunpack.c.h.b16 %v4286
        %v4891 = vunpack.c.l.b16 %v4287
        %v4892 = vunpack.c.h.b16 %v4287
        %v4893 = vunpack.c.l.b16 %v4288
        %v4894 = vunpack.c.h.b16 %v4288
        %v4895 = vunpack.c.l.b16 %v4289
        %v4896 = vunpack.c.h.b16 %v4289
        %v4897 = vunpack.c.l.b16 %v4290
        %v4898 = vunpack.c.h.b16 %v4290
        %v4899 = vunpack.c.l.b16 %v4291
        %v4900 = vunpack.c.h.b16 %v4291
        %v4901 = vunpack.c.l.b16 %v4292
        %v4902 = vunpack.c.h.b16 %v4292
        %v4903 = vunpack.c.l.b16 %v4293
        %v4904 = vunpack.c.h.b16 %v4293
        %v4905 = vunpack.c.l.b16 %v4294
        %v4906 = vunpack.c.h.b16 %v4294
        %v4907 = vunpack.c.l.b16 %v4295
        %v4908 = vunpack.c.h.b16 %v4295
        %v4909 = vunpack.c.l.b16 %v4296
        %v4910 = vunpack.c.h.b16 %v4296
        %v4911 = vunpack.c.l.b16 %v4297
        %v4912 = vunpack.c.h.b16 %v4297
        %v4913 = vunpack.c.l.b16 %v4298
        %v4914 = vunpack.c.h.b16 %v4298
        %v4915 = vunpack.c.l.b16 %v4299
        %v4916 = vunpack.c.h.b16 %v4299
        %v4917 = vunpack.c.l.b16 %v4300
        %v4918 = vunpack.c.h.b16 %v4300
        %v4919 = vunpack.c.l.b16 %v4301
        %v4920 = vunpack.c.h.b16 %v4301
        %v4921 = vunpack.c.l.b16 %v4302
        %v4922 = vunpack.c.h.b16 %v4302
        %v4923 = vunpack.c.l.b16 %v4303
        %v4924 = vunpack.c.h.b16 %v4303
        %v4925 = vunpack.c.l.b16 %v4304
        %v4926 = vunpack.c.h.b16 %v4304
        %v4927 = vunpack.c.l.b16 %v4305
        %v4928 = vunpack.c.h.b16 %v4305
        %v4929 = vunpack.c.l.b16 %v4306
        %v4930 = vunpack.c.h.b16 %v4306
        %v4931 = vunpack.c.l.b16 %v4307
        %v4932 = vunpack.c.h.b16 %v4307
        %v4933 = vunpack.c.l.b16 %v4308
        %v4934 = vunpack.c.h.b16 %v4308
        %v4935 = vunpack.c.l.b16 %v4309
        %v4936 = vunpack.c.h.b16 %v4309
        %v4937 = vunpack.c.l.b16 %v4310
        %v4938 = vunpack.c.h.b16 %v4310
        %v4939 = vunpack.c.l.b16 %v4311
        %v4940 = vunpack.c.h.b16 %v4311
        %v4941 = vunpack.c.l.b16 %v4312
        %v4942 = vunpack.c.h.b16 %v4312
        %v4943 = vunpack.c.l.b16 %v4313
        %v4944 = vunpack.c.h.b16 %v4313
        %v4945 = vunpack.c.l.b16 %v4314
        %v4946 = vunpack.c.h.b16 %v4314
        %v4947 = vunpack.c.l.b16 %v4315
        %v4948 = vunpack.c.h.b16 %v4315
        %v4949 = vunpack.c.l.b16 %v4316
        %v4950 = vunpack.c.h.b16 %v4316
        %v4951 = vunpack.c.l.b16 %v4317
        %v4952 = vunpack.c.h.b16 %v4317
        %v4953 = vunpack.c.l.b16 %v4318
        %v4954 = vunpack.c.h.b16 %v4318
        %v4955 = vunpack.c.l.b16 %v4319
        %v4956 = vunpack.c.h.b16 %v4319
        %v4957 = vunpack.c.l.b16 %v4320
        %v4958 = vunpack.c.h.b16 %v4320
        %v4959 = vunpack.c.l.b16 %v4321
        %v4960 = vunpack.c.h.b16 %v4321
        %v4961 = vunpack.c.l.b16 %v4322
        %v4962 = vunpack.c.h.b16 %v4322
        %v4963 = vunpack.c.l.b16 %v4323
        %v4964 = vunpack.c.h.b16 %v4323
        %v4965 = vunpack.c.l.b16 %v4324
        %v4966 = vunpack.c.h.b16 %v4324
        %v4967 = vunpack.c.l.b16 %v4325
        %v4968 = vunpack.c.h.b16 %v4325
        %v4969 = vunpack.c.l.b16 %v4326
        %v4970 = vunpack.c.h.b16 %v4326
        %v4971 = vunpack.c.l.b16 %v4327
        %v4972 = vunpack.c.h.b16 %v4327
        %v4973 = vunpack.c.l.b16 %v4328
        %v4974 = vunpack.c.h.b16 %v4328
        %v4975 = vunpack.c.l.b16 %v4329
        %v4976 = vunpack.c.h.b16 %v4329
        %v4977 = vunpack.c.l.b16 %v4330
        %v4978 = vunpack.c.h.b16 %v4330
        %v4979 = vunpack.c.l.b16 %v4331
        %v4980 = vunpack.c.h.b16 %v4331
        %v4981 = vunpack.c.l.b16 %v4332
        %v4982 = vunpack.c.h.b16 %v4332
        %v4983 = vunpack.c.l.b16 %v4333
        %v4984 = vunpack.c.h.b16 %v4333
        %v4985 = vunpack.c.l.b16 %v4334
        %v4986 = vunpack.c.h.b16 %v4334
        %v4987 = vunpack.c.l.b16 %v4335
        %v4988 = vunpack.c.h.b16 %v4335
        %v4989 = vunpack.c.l.b16 %v4336
        %v4990 = vunpack.c.h.b16 %v4336
        %v4991 = vunpack.c.l.b16 %v4337
        %v4992 = vunpack.c.h.b16 %v4337
        %v4993 = vunpack.c.l.b16 %v4338
        %v4994 = vunpack.c.h.b16 %v4338
        %v4995 = vunpack.c.l.b16 %v4339
        %v4996 = vunpack.c.h.b16 %v4339
        %v4997 = vunpack.c.l.b16 %v4340
        %v4998 = vunpack.c.h.b16 %v4340
        %v4999 = vunpack.c.l.b16 %v4341
        %v5000 = vunpack.c.h.b16 %v4341
        %v5001 = vunpack.c.l.b16 %v4342
        %v5002 = vunpack.c.h.b16 %v4342
        %v5003 = vunpack.c.l.b16 %v4343
        %v5004 = vunpack.c.h.b16 %v4343
        %v5005 = vunpack.c.l.b16 %v4344
        %v5006 = vunpack.c.h.b16 %v4344
        %v5007 = vunpack.c.l.b16 %v4345
        %v5008 = vunpack.c.h.b16 %v4345
        %v5009 = vunpack.c.l.b16 %v4346
        %v5010 = vunpack.c.h.b16 %v4346
        %v5011 = vunpack.c.l.b16 %v4347
        %v5012 = vunpack.c.h.b16 %v4347
        %v5013 = vunpack.c.l.b16 %v4348
        %v5014 = vunpack.c.h.b16 %v4348
        %v5015 = vunpack.c.l.b16 %v4349
        %v5016 = vunpack.c.h.b16 %v4349
        %v5017 = vunpack.c.l.b16 %v4350
        %v5018 = vunpack.c.h.b16 %v4350
        %v5019 = vunpack.c.l.b16 %v4351
        %v5020 = vunpack.c.h.b16 %v4351
        %v5021 = vunpack.c.l.b16 %v4352
        %v5022 = vunpack.c.h.b16 %v4352
        %v5023 = vunpack.c.l.b16 %v4353
        %v5024 = vunpack.c.h.b16 %v4353
        %v5025 = vunpack.c.l.b16 %v4354
        %v5026 = vunpack.c.h.b16 %v4354
        %v5027 = vunpack.c.l.b16 %v4355
        %v5028 = vunpack.c.h.b16 %v4355
        %v5029 = vunpack.c.l.b16 %v4356
        %v5030 = vunpack.c.h.b16 %v4356
        %v5031 = vunpack.c.l.b16 %v4357
        %v5032 = vunpack.c.h.b16 %v4357
        %v5033 = vunpack.c.l.b16 %v4358
        %v5034 = vunpack.c.h.b16 %v4358
        %v5035 = vunpack.c.l.b16 %v4359
        %v5036 = vunpack.c.h.b16 %v4359
        %v5037 = vunpack.c.l.b16 %v4360
        %v5038 = vunpack.c.h.b16 %v4360
        %v5039 = vunpack.c.l.b16 %v4361
        %v5040 = vunpack.c.h.b16 %v4361
        %v5041 = vunpack.c.l.b16 %v4362
        %v5042 = vunpack.c.h.b16 %v4362
        %v5043 = vunpack.c.l.b16 %v4363
        %v5044 = vunpack.c.h.b16 %v4363
        %v5045 = vunpack.c.l.b16 %v4364
        %v5046 = vunpack.c.h.b16 %v4364
        %v5047 = vunpack.c.l.b16 %v4365
        %v5048 = vunpack.c.h.b16 %v4365
        %v5049 = vunpack.c.l.b16 %v4366
        %v5050 = vunpack.c.h.b16 %v4366
        %v5051 = vunpack.c.l.b16 %v4367
        %v5052 = vunpack.c.h.b16 %v4367
        %v5053 = vunpack.c.l.b16 %v4368
        %v5054 = vunpack.c.h.b16 %v4368
        %v5055 = vunpack.c.l.b16 %v4369
        %v5056 = vunpack.c.h.b16 %v4369
        %v5057 = vunpack.c.l.b16 %v4370
        %v5058 = vunpack.c.h.b16 %v4370
        %v5059 = vunpack.c.l.b16 %v4371
        %v5060 = vunpack.c.h.b16 %v4371
        %v5061 = vunpack.c.l.b16 %v4372
        %v5062 = vunpack.c.h.b16 %v4372
        %v5063 = vunpack.c.l.b16 %v4373
        %v5064 = vunpack.c.h.b16 %v4373
        %v5065 = vunpack.c.l.b16 %v4374
        %v5066 = vunpack.c.h.b16 %v4374
        %v5067 = vunpack.c.l.b16 %v4375
        %v5068 = vunpack.c.h.b16 %v4375
        %v5069 = vunpack.c.l.b16 %v4376
        %v5070 = vunpack.c.h.b16 %v4376
        %v5071 = vunpack.c.l.b16 %v4377
        %v5072 = vunpack.c.h.b16 %v4377
        %v5073 = vunpack.c.l.b16 %v4378
        %v5074 = vunpack.c.h.b16 %v4378
        %v5075 = vunpack.c.l.b16 %v4379
        %v5076 = vunpack.c.h.b16 %v4379
        %v5077 = vunpack.c.l.b16 %v4380
        %v5078 = vunpack.c.h.b16 %v4380
        %v5079 = vunpack.c.l.b16 %v4381
        %v5080 = vunpack.c.h.b16 %v4381
        %v5081 = vunpack.c.l.b16 %v4382
        %v5082 = vunpack.c.h.b16 %v4382
        %v5083 = vunpack.c.l.b16 %v4383
        %v5084 = vunpack.c.h.b16 %v4383
        %v5085 = vunpack.c.l.b16 %v4384
        %v5086 = vunpack.c.h.b16 %v4384
        %v5087 = vunpack.c.l.b16 %v4385
        %v5088 = vunpack.c.h.b16 %v4385
        %v5089 = vunpack.c.l.b16 %v4386
        %v5090 = vunpack.c.h.b16 %v4386
        %v5091 = vunpack.c.l.b16 %v4387
        %v5092 = vunpack.c.h.b16 %v4387
        %v5093 = vunpack.c.l.b16 %v4388
        %v5094 = vunpack.c.h.b16 %v4388
        %v5095 = vunpack.c.l.b16 %v4389
        %v5096 = vunpack.c.h.b16 %v4389
        %v5097 = vunpack.c.l.b16 %v4390
        %v5098 = vunpack.c.h.b16 %v4390
        %v5099 = vunpack.c.l.b16 %v4391
        %v5100 = vunpack.c.h.b16 %v4391
        %v5101 = vunpack.c.l.b16 %v4392
        %v5102 = vunpack.c.h.b16 %v4392
        %v5103 = vunpack.c.l.b16 %v4393
        %v5104 = vunpack.c.h.b16 %v4393
        %v5105 = vunpack.c.l.b16 %v4394
        %v5106 = vunpack.c.h.b16 %v4394
        %v5107 = vunpack.c.l.b16 %v4395
        %v5108 = vunpack.c.h.b16 %v4395
        %v5109 = vunpack.c.l.b16 %v4396
        %v5110 = vunpack.c.h.b16 %v4396
        %v5111 = vunpack.c.l.b16 %v4397
        %v5112 = vunpack.c.h.b16 %v4397
        %v5113 = vunpack.c.l.b16 %v4398
        %v5114 = vunpack.c.h.b16 %v4398
        %v5115 = vunpack.c.l.b16 %v4399
        %v5116 = vunpack.c.h.b16 %v4399
        %v5117 = vunpack.c.l.b16 %v4400
        %v5118 = vunpack.c.h.b16 %v4400
        %v5119 = vunpack.c.l.b16 %v4401
        %v5120 = vunpack.c.h.b16 %v4401
        %v5121 = vunpack.c.l.b16 %v4402
        %v5122 = vunpack.c.h.b16 %v4402
        %v5123 = vunpack.c.l.b16 %v4403
        %v5124 = vunpack.c.h.b16 %v4403
        %v5125 = vunpack.c.l.b16 %v4404
        %v5126 = vunpack.c.h.b16 %v4404
        %v5127 = vunpack.c.l.b16 %v4405
        %v5128 = vunpack.c.h.b16 %v4405
        %v5129 = vunpack.c.l.b16 %v4406
        %v5130 = vunpack.c.h.b16 %v4406
        %v5131 = vunpack.c.l.b16 %v4407
        %v5132 = vunpack.c.h.b16 %v4407
        %v5133 = vunpack.c.l.b16 %v4408
        %v5134 = vunpack.c.h.b16 %v4408
        %v5135 = vunpack.c.l.b16 %v4409
        %v5136 = vunpack.c.h.b16 %v4409
        %v5137 = vunpack.c.l.b16 %v4410
        %v5138 = vunpack.c.h.b16 %v4410
        %v5139 = vunpack.c.l.b16 %v4411
        %v5140 = vunpack.c.h.b16 %v4411
        %v5141 = vunpack.c.l.b16 %v4412
        %v5142 = vunpack.c.h.b16 %v4412
        %v5143 = vunpack.c.l.b16 %v4413
        %v5144 = vunpack.c.h.b16 %v4413
        %v5145 = vunpack.c.l.b16 %v4414
        %v5146 = vunpack.c.h.b16 %v4414
        %v5147 = vunpack.c.l.b16 %v4415
        %v5148 = vunpack.c.h.b16 %v4415
        %v5149 = vunpack.c.l.b16 %v4416
        %v5150 = vunpack.c.h.b16 %v4416
        %v5151 = vunpack.c.l.b16 %v4417
        %v5152 = vunpack.c.h.b16 %v4417
        %v5153 = vunpack.c.l.b16 %v4418
        %v5154 = vunpack.c.h.b16 %v4418
        %v5155 = vunpack.c.l.b16 %v4419
        %v5156 = vunpack.c.h.b16 %v4419
        %v5157 = vunpack.c.l.b16 %v4420
        %v5158 = vunpack.c.h.b16 %v4420
        %v5159 = vunpack.c.l.b16 %v4421
        %v5160 = vunpack.c.h.b16 %v4421
        %v5161 = vunpack.c.l.b16 %v4422
        %v5162 = vunpack.c.h.b16 %v4422
        %v5163 = vunpack.c.l.b16 %v4423
        %v5164 = vunpack.c.h.b16 %v4423
        %v5165 = vunpack.c.l.b16 %v4424
        %v5166 = vunpack.c.h.b16 %v4424
        %v5167 = vunpack.c.l.b16 %v4425
        %v5168 = vunpack.c.h.b16 %v4425
        %v5169 = vunpack.c.l.b16 %v4426
        %v5170 = vunpack.c.h.b16 %v4426
        %v5171 = vunpack.c.l.b16 %v4427
        %v5172 = vunpack.c.h.b16 %v4427
        %v5173 = vunpack.c.l.b16 %v4428
        %v5174 = vunpack.c.h.b16 %v4428
        %v5175 = vunpack.c.l.b16 %v4429
        %v5176 = vunpack.c.h.b16 %v4429
        %v5177 = vunpack.c.l.b16 %v4430
        %v5178 = vunpack.c.h.b16 %v4430
        %v5179 = vunpack.c.l.b16 %v4431
        %v5180 = vunpack.c.h.b16 %v4431
        %v5181 = vunpack.c.l.b16 %v4432
        %v5182 = vunpack.c.h.b16 %v4432
        %v5183 = vunpack.c.l.b16 %v4433
        %v5184 = vunpack.c.h.b16 %v4433
        %v5185 = vunpack.c.l.b16 %v4434
        %v5186 = vunpack.c.h.b16 %v4434
        %v5187 = vunpack.c.l.b16 %v4435
        %v5188 = vunpack.c.h.b16 %v4435
        %v5189 = vunpack.c.l.b16 %v4436
        %v5190 = vunpack.c.h.b16 %v4436
        %v5191 = vunpack.c.l.b16 %v4437
        %v5192 = vunpack.c.h.b16 %v4437
        %v5193 = vunpack.c.l.b16 %v4438
        %v5194 = vunpack.c.h.b16 %v4438
        %v5195 = vunpack.c.l.b16 %v4439
        %v5196 = vunpack.c.h.b16 %v4439
        %v5197 = vunpack.c.l.b16 %v4440
        %v5198 = vunpack.c.h.b16 %v4440
        %v5199 = vunpack.c.l.b16 %v4441
        %v5200 = vunpack.c.h.b16 %v4441
        %v5201 = vunpack.c.l.b16 %v4442
        %v5202 = vunpack.c.h.b16 %v4442
        %v5203 = vunpack.c.l.b16 %v4443
        %v5204 = vunpack.c.h.b16 %v4443
        %v5205 = vunpack.c.l.b16 %v4444
        %v5206 = vunpack.c.h.b16 %v4444
        %v5207 = vunpack.c.l.b16 %v4445
        %v5208 = vunpack.c.h.b16 %v4445
        %v5209 = vunpack.c.l.b16 %v4446
        %v5210 = vunpack.c.h.b16 %v4446
        %v5211 = vunpack.c.l.b16 %v4447
        %v5212 = vunpack.c.h.b16 %v4447
        %v5213 = vunpack.c.l.b16 %v4448
        %v5214 = vunpack.c.h.b16 %v4448
        %v5215 = vunpack.c.l.b16 %v4449
        %v5216 = vunpack.c.h.b16 %v4449
        %v5217 = vunpack.c.l.b16 %v4450
        %v5218 = vunpack.c.h.b16 %v4450
        %v5219 = vunpack.c.l.b16 %v4451
        %v5220 = vunpack.c.h.b16 %v4451
        %v5221 = vunpack.c.l.b16 %v4452
        %v5222 = vunpack.c.h.b16 %v4452
        %v5223 = vunpack.c.l.b16 %v4453
        %v5224 = vunpack.c.h.b16 %v4453
        %v5225 = vunpack.c.l.b16 %v4454
        %v5226 = vunpack.c.h.b16 %v4454
        %v5227 = vunpack.c.l.b16 %v4455
        %v5228 = vunpack.c.h.b16 %v4455
        %v5229 = vunpack.c.l.b16 %v4456
        %v5230 = vunpack.c.h.b16 %v4456
        %v5231 = vunpack.c.l.b16 %v4457
        %v5232 = vunpack.c.h.b16 %v4457
        %v5233 = vunpack.c.l.b16 %v4458
        %v5234 = vunpack.c.h.b16 %v4458
        %v5235 = vunpack.c.l.b16 %v4459
        %v5236 = vunpack.c.h.b16 %v4459
        %v5237 = vunpack.c.l.b16 %v4460
        %v5238 = vunpack.c.h.b16 %v4460
        %v5239 = vunpack.c.l.b16 %v4461
        %v5240 = vunpack.c.h.b16 %v4461
        %v5241 = vunpack.c.l.b16 %v4462
        %v5242 = vunpack.c.h.b16 %v4462
        %v5243 = vunpack.c.l.b16 %v4463
        %v5244 = vunpack.c.h.b16 %v4463
        %v5245 = vunpack.c.l.b16 %v4464
        %v5246 = vunpack.c.h.b16 %v4464
        %v5247 = vunpack.c.l.b16 %v4465
        %v5248 = vunpack.c.h.b16 %v4465
        %v5249 = vunpack.c.l.b16 %v4466
        %v5250 = vunpack.c.h.b16 %v4466
        %v5251 = vunpack.c.l.b16 %v4467
        %v5252 = vunpack.c.h.b16 %v4467
        %v5253 = vunpack.c.l.b16 %v4468
        %v5254 = vunpack.c.h.b16 %v4468
        %v5255 = vunpack.c.l.b16 %v4469
        %v5256 = vunpack.c.h.b16 %v4469
        %v5257 = vunpack.c.l.b16 %v4470
        %v5258 = vunpack.c.h.b16 %v4470
        %v5259 = vunpack.c.l.b16 %v4471
        %v5260 = vunpack.c.h.b16 %v4471
        %v5261 = vunpack.c.l.b16 %v4472
        %v5262 = vunpack.c.h.b16 %v4472
        %v5263 = vunpack.c.l.b16 %v4473
        %v5264 = vunpack.c.h.b16 %v4473
        %v5265 = vunpack.c.l.b16 %v4474
        %v5266 = vunpack.c.h.b16 %v4474
        %v5267 = vunpack.c.l.b16 %v4475
        %v5268 = vunpack.c.h.b16 %v4475
        %v5269 = vunpack.c.l.b16 %v4476
        %v5270 = vunpack.c.h.b16 %v4476
        %v5271 = vunpack.c.l.b16 %v4477
        %v5272 = vunpack.c.h.b16 %v4477
        %v5273 = vunpack.c.l.b16 %v4478
        %v5274 = vunpack.c.h.b16 %v4478
        %v5275 = vunpack.c.l.b16 %v4479
        %v5276 = vunpack.c.h.b16 %v4479
        %v5277 = vunpack.c.l.b16 %v4480
        %v5278 = vunpack.c.h.b16 %v4480
        %v5279 = vunpack.c.l.b16 %v4481
        %v5280 = vunpack.c.h.b16 %v4481
        %v5281 = vunpack.c.l.b16 %v4482
        %v5282 = vunpack.c.h.b16 %v4482
        %v5283 = vunpack.c.l.b16 %v4483
        %v5284 = vunpack.c.h.b16 %v4483
        %v5285 = vunpack.c.l.b16 %v4484
        %v5286 = vunpack.c.h.b16 %v4484
        %v5287 = vunpack.c.l.b16 %v4485
        %v5288 = vunpack.c.h.b16 %v4485
        %v5289 = vunpack.c.l.b16 %v4486
        %v5290 = vunpack.c.h.b16 %v4486
        %v5291 = vunpack.c.l.b16 %v4487
        %v5292 = vunpack.c.h.b16 %v4487
        %v5293 = vunpack.c.l.b16 %v4488
        %v5294 = vunpack.c.h.b16 %v4488
        %v5295 = vunpack.c.l.b16 %v4489
        %v5296 = vunpack.c.h.b16 %v4489
        %v5297 = vunpack.c.l.b16 %v4490
        %v5298 = vunpack.c.h.b16 %v4490
        %v5299 = vunpack.c.l.b16 %v4491
        %v5300 = vunpack.c.h.b16 %v4491
        %v5301 = vunpack.c.l.b16 %v4492
        %v5302 = vunpack.c.h.b16 %v4492
        %v5303 = vunpack.c.l.b16 %v4493
        %v5304 = vunpack.c.h.b16 %v4493
        %v5305 = vunpack.c.l.b16 %v4494
        %v5306 = vunpack.c.h.b16 %v4494
        %v5307 = vunpack.c.l.b16 %v4495
        %v5308 = vunpack.c.h.b16 %v4495
        %v5309 = vunpack.c.l.b16 %v4496
        %v5310 = vunpack.c.h.b16 %v4496
        %v5311 = vunpack.c.l.b16 %v4497
        %v5312 = vunpack.c.h.b16 %v4497
        %v5313 = vunpack.c.l.b16 %v4498
        %v5314 = vunpack.c.h.b16 %v4498
        %v5315 = vunpack.c.l.b16 %v4499
        %v5316 = vunpack.c.h.b16 %v4499
        %v5317 = vunpack.c.l.b16 %v4500
        %v5318 = vunpack.c.h.b16 %v4500
        %v5319 = vunpack.c.l.b16 %v4501
        %v5320 = vunpack.c.h.b16 %v4501
        %v5321 = vunpack.c.l.b16 %v4502
        %v5322 = vunpack.c.h.b16 %v4502
        %v5323 = vunpack.c.l.b16 %v4503
        %v5324 = vunpack.c.h.b16 %v4503
        %v5325 = vunpack.c.l.b16 %v4504
        %v5326 = vunpack.c.h.b16 %v4504
        %v5327 = vunpack.c.l.b16 %v4505
        %v5328 = vunpack.c.h.b16 %v4505
        %v5329 = vunpack.c.l.b16 %v4506
        %v5330 = vunpack.c.h.b16 %v4506
        %v5331 = vunpack.c.l.b16 %v4507
        %v5332 = vunpack.c.h.b16 %v4507
        %v5333 = vunpack.c.l.b16 %v4508
        %v5334 = vunpack.c.h.b16 %v4508
        %v5335 = vunpack.c.l.b16 %v4509
        %v5336 = vunpack.c.h.b16 %v4509
        %v5337 = vunpack.c.l.b16 %v4510
        %v5338 = vunpack.c.h.b16 %v4510
        %v5339 = vunpack.c.l.b16 %v4511
        %v5340 = vunpack.c.h.b16 %v4511
        %v5341 = vunpack.c.l.b16 %v4512
        %v5342 = vunpack.c.h.b16 %v4512
        %v5343 = vunpack.c.l.b16 %v4513
        %v5344 = vunpack.c.h.b16 %v4513
        %v5345 = vunpack.c.l.b16 %v4514
        %v5346 = vunpack.c.h.b16 %v4514
        %v5347 = vunpack.c.l.b16 %v4515
        %v5348 = vunpack.c.h.b16 %v4515
        %v5349 = vunpack.c.l.b16 %v4516
        %v5350 = vunpack.c.h.b16 %v4516
        %v5351 = vunpack.c.l.b16 %v4517
        %v5352 = vunpack.c.h.b16 %v4517
        %v5353 = vunpack.c.l.b16 %v4518
        %v5354 = vunpack.c.h.b16 %v4518
        %v5355 = vunpack.c.l.b16 %v4519
        %v5356 = vunpack.c.h.b16 %v4519
        %v5357 = vunpack.c.l.b16 %v4520
        %v5358 = vunpack.c.h.b16 %v4520
        %v5359 = vunpack.c.l.b16 %v4521
        %v5360 = vunpack.c.h.b16 %v4521
        %v5361 = vunpack.c.l.b16 %v4522
        %v5362 = vunpack.c.h.b16 %v4522
        %v5363 = vunpack.c.l.b16 %v4523
        %v5364 = vunpack.c.h.b16 %v4523
        %v5365 = vunpack.c.l.b16 %v4524
        %v5366 = vunpack.c.h.b16 %v4524
        %v5367 = vunpack.c.l.b16 %v4525
        %v5368 = vunpack.c.h.b16 %v4525
        %v5369 = vunpack.c.l.b16 %v4526
        %v5370 = vunpack.c.h.b16 %v4526
        %v5371 = vunpack.c.l.b16 %v4527
        %v5372 = vunpack.c.h.b16 %v4527
        %v5373 = vunpack.c.l.b16 %v4528
        %v5374 = vunpack.c.h.b16 %v4528
        %v5375 = vunpack.c.l.b16 %v4529
        %v5376 = vunpack.c.h.b16 %v4529
        %v5377 = vunpack.c.l.b16 %v4530
        %v5378 = vunpack.c.h.b16 %v4530
        %v5379 = vunpack.c.l.b16 %v4531
        %v5380 = vunpack.c.h.b16 %v4531
        %v5381 = vunpack.c.l.b16 %v4532
        %v5382 = vunpack.c.h.b16 %v4532
        %v5383 = vunpack.c.l.b16 %v4533
        %v5384 = vunpack.c.h.b16 %v4533
        %v5385 = vunpack.c.l.b16 %v4534
        %v5386 = vunpack.c.h.b16 %v4534
        %v5387 = vpack.c.b16 %v4891, %v4875
        %v5388 = vpack.c.b16 %v4892, %v4876
        %v5389 = vpack.c.b16 %v4893, %v4877
        %v5390 = vpack.c.b16 %v4894, %v4878
        %v5391 = vpack.c.b16 %v4895, %v4879
        %v5392 = vpack.c.b16 %v4896, %v4880
        %v5393 = vpack.c.b16 %v4897, %v4881
        %v5394 = vpack.c.b16 %v4898, %v4882
        %v5395 = vpack.c.b16 %v4899, %v4883
        %v5396 = vpack.c.b16 %v4900, %v4884
        %v5397 = vpack.c.b16 %v4901, %v4885
        %v5398 = vpack.c.b16 %v4902, %v4886
        %v5399 = vpack.c.b16 %v4903, %v4887
        %v5400 = vpack.c.b16 %v4904, %v4888
        %v5401 = vpack.c.b16 %v4905, %v4889
        %v5402 = vpack.c.b16 %v4906, %v4890
        %v5403 = vpack.c.b16 %v4923, %v4907
        %v5404 = vpack.c.b16 %v4924, %v4908
        %v5405 = vpack.c.b16 %v4925, %v4909
        %v5406 = vpack.c.b16 %v4926, %v4910
        %v5407 = vpack.c.b16 %v4927, %v4911
        %v5408 = vpack.c.b16 %v4928, %v4912
        %v5409 = vpack.c.b16 %v4929, %v4913
        %v5410 = vpack.c.b16 %v4930, %v4914
        %v5411 = vpack.c.b16 %v4931, %v4915
        %v5412 = vpack.c.b16 %v4932, %v4916
        %v5413 = vpack.c.b16 %v4933, %v4917
        %v5414 = vpack.c.b16 %v4934, %v4918
        %v5415 = vpack.c.b16 %v4935, %v4919
        %v5416 = vpack.c.b16 %v4936, %v4920
        %v5417 = vpack.c.b16 %v4937, %v4921
        %v5418 = vpack.c.b16 %v4938, %v4922
        %v5419 = vpack.c.b16 %v4955, %v4939
        %v5420 = vpack.c.b16 %v4956, %v4940
        %v5421 = vpack.c.b16 %v4957, %v4941
        %v5422 = vpack.c.b16 %v4958, %v4942
        %v5423 = vpack.c.b16 %v4959, %v4943
        %v5424 = vpack.c.b16 %v4960, %v4944
        %v5425 = vpack.c.b16 %v4961, %v4945
        %v5426 = vpack.c.b16 %v4962, %v4946
        %v5427 = vpack.c.b16 %v4963, %v4947
        %v5428 = vpack.c.b16 %v4964, %v4948
        %v5429 = vpack.c.b16 %v4965, %v4949
        %v5430 = vpack.c.b16 %v4966, %v4950
        %v5431 = vpack.c.b16 %v4967, %v4951
        %v5432 = vpack.c.b16 %v4968, %v4952
        %v5433 = vpack.c.b16 %v4969, %v4953
        %v5434 = vpack.c.b16 %v4970, %v4954
        %v5435 = vpack.c.b16 %v4987, %v4971
        %v5436 = vpack.c.b16 %v4988, %v4972
        %v5437 = vpack.c.b16 %v4989, %v4973
        %v5438 = vpack.c.b16 %v4990, %v4974
        %v5439 = vpack.c.b16 %v4991, %v4975
        %v5440 = vpack.c.b16 %v4992, %v4976
        %v5441 = vpack.c.b16 %v4993, %v4977
        %v5442 = vpack.c.b16 %v4994, %v4978
        %v5443 = vpack.c.b16 %v4995, %v4979
        %v5444 = vpack.c.b16 %v4996, %v4980
        %v5445 = vpack.c.b16 %v4997, %v4981
        %v5446 = vpack.c.b16 %v4998, %v4982
        %v5447 = vpack.c.b16 %v4999, %v4983
        %v5448 = vpack.c.b16 %v5000, %v4984
        %v5449 = vpack.c.b16 %v5001, %v4985
        %v5450 = vpack.c.b16 %v5002, %v4986
        %v5451 = vpack.c.b16 %v5019, %v5003
        %v5452 = vpack.c.b16 %v5020, %v5004
        %v5453 = vpack.c.b16 %v5021, %v5005
        %v5454 = vpack.c.b16 %v5022, %v5006
        %v5455 = vpack.c.b16 %v5023, %v5007
        %v5456 = vpack.c.b16 %v5024, %v5008
        %v5457 = vpack.c.b16 %v5025, %v5009
        %v5458 = vpack.c.b16 %v5026, %v5010
        %v5459 = vpack.c.b16 %v5027, %v5011
        %v5460 = vpack.c.b16 %v5028, %v5012
        %v5461 = vpack.c.b16 %v5029, %v5013
        %v5462 = vpack.c.b16 %v5030, %v5014
        %v5463 = vpack.c.b16 %v5031, %v5015
        %v5464 = vpack.c.b16 %v5032, %v5016
        %v5465 = vpack.c.b16 %v5033, %v5017
        %v5466 = vpack.c.b16 %v5034, %v5018
        %v5467 = vpack.c.b16 %v5051, %v5035
        %v5468 = vpack.c.b16 %v5052, %v5036
        %v5469 = vpack.c.b16 %v5053, %v5037
        %v5470 = vpack.c.b16 %v5054, %v5038
        %v5471 = vpack.c.b16 %v5055, %v5039
        %v5472 = vpack.c.b16 %v5056, %v5040
        %v5473 = vpack.c.b16 %v5057, %v5041
        %v5474 = vpack.c.b16 %v5058, %v5042
        %v5475 = vpack.c.b16 %v5059, %v5043
        %v5476 = vpack.c.b16 %v5060, %v5044
        %v5477 = vpack.c.b16 %v5061, %v5045
        %v5478 = vpack.c.b16 %v5062, %v5046
        %v5479 = vpack.c.b16 %v5063, %v5047
        %v5480 = vpack.c.b16 %v5064, %v5048
        %v5481 = vpack.c.b16 %v5065, %v5049
        %v5482 = vpack.c.b16 %v5066, %v5050
        %v5483 = vpack.c.b16 %v5083, %v5067
        %v5484 = vpack.c.b16 %v5084, %v5068
        %v5485 = vpack.c.b16 %v5085, %v5069
        %v5486 = vpack.c.b16 %v5086, %v5070
        %v5487 = vpack.c.b16 %v5087, %v5071
        %v5488 = vpack.c.b16 %v5088, %v5072
        %v5489 = vpack.c.b16 %v5089, %v5073
        %v5490 = vpack.c.b16 %v5090, %v5074
        %v5491 = vpack.c.b16 %v5091, %v5075
        %v5492 = vpack.c.b16 %v5092, %v5076
        %v5493 = vpack.c.b16 %v5093, %v5077
        %v5494 = vpack.c.b16 %v5094, %v5078
        %v5495 = vpack.c.b16 %v5095, %v5079
        %v5496 = vpack.c.b16 %v5096, %v5080
        %v5497 = vpack.c.b16 %v5097, %v5081
        %v5498 = vpack.c.b16 %v5098, %v5082
        %v5499 = vpack.c.b16 %v5115, %v5099
        %v5500 = vpack.c.b16 %v5116, %v5100
        %v5501 = vpack.c.b16 %v5117, %v5101
        %v5502 = vpack.c.b16 %v5118, %v5102
        %v5503 = vpack.c.b16 %v5119, %v5103
        %v5504 = vpack.c.b16 %v5120, %v5104
        %v5505 = vpack.c.b16 %v5121, %v5105
        %v5506 = vpack.c.b16 %v5122, %v5106
        %v5507 = vpack.c.b16 %v5123, %v5107
        %v5508 = vpack.c.b16 %v5124, %v5108
        %v5509 = vpack.c.b16 %v5125, %v5109
        %v5510 = vpack.c.b16 %v5126, %v5110
        %v5511 = vpack.c.b16 %v5127, %v5111
        %v5512 = vpack.c.b16 %v5128, %v5112
        %v5513 = vpack.c.b16 %v5129, %v5113
        %v5514 = vpack.c.b16 %v5130, %v5114
        %v5515 = vpack.c.b16 %v5147, %v5131
        %v5516 = vpack.c.b16 %v5148, %v5132
        %v5517 = vpack.c.b16 %v5149, %v5133
        %v5518 = vpack.c.b16 %v5150, %v5134
        %v5519 = vpack.c.b16 %v5151, %v5135
        %v5520 = vpack.c.b16 %v5152, %v5136
        %v5521 = vpack.c.b16 %v5153, %v5137
        %v5522 = vpack.c.b16 %v5154, %v5138
        %v5523 = vpack.c.b16 %v5155, %v5139
        %v5524 = vpack.c.b16 %v5156, %v5140
        %v5525 = vpack.c.b16 %v5157, %v5141
        %v5526 = vpack.c.b16 %v5158, %v5142
        %v5527 = vpack.c.b16 %v5159, %v5143
        %v5528 = vpack.c.b16 %v5160, %v5144
        %v5529 = vpack.c.b16 %v5161, %v5145
        %v5530 = vpack.c.b16 %v5162, %v5146
        %v5531 = vpack.c.b16 %v5179, %v5163
        %v5532 = vpack.c.b16 %v5180, %v5164
        %v5533 = vpack.c.b16 %v5181, %v5165
        %v5534 = vpack.c.b16 %v5182, %v5166
        %v5535 = vpack.c.b16 %v5183, %v5167
        %v5536 = vpack.c.b16 %v5184, %v5168
        %v5537 = vpack.c.b16 %v5185, %v5169
        %v5538 = vpack.c.b16 %v5186, %v5170
        %v5539 = vpack.c.b16 %v5187, %v5171
        %v5540 = vpack.c.b16 %v5188, %v5172
        %v5541 = vpack.c.b16 %v5189, %v5173
        %v5542 = vpack.c.b16 %v5190, %v5174
        %v5543 = vpack.c.b16 %v5191, %v5175
        %v5544 = vpack.c.b16 %v5192, %v5176
        %v5545 = vpack.c.b16 %v5193, %v5177
        %v5546 = vpack.c.b16 %v5194, %v5178
        %v5547 = vpack.c.b16 %v5211, %v5195
        %v5548 = vpack.c.b16 %v5212, %v5196
        %v5549 = vpack.c.b16 %v5213, %v5197
        %v5550 = vpack.c.b16 %v5214, %v5198
        %v5551 = vpack.c.b16 %v5215, %v5199
        %v5552 = vpack.c.b16 %v5216, %v5200
        %v5553 = vpack.c.b16 %v5217, %v5201
        %v5554 = vpack.c.b16 %v5218, %v5202
        %v5555 = vpack.c.b16 %v5219, %v5203
        %v5556 = vpack.c.b16 %v5220, %v5204
        %v5557 = vpack.c.b16 %v5221, %v5205
        %v5558 = vpack.c.b16 %v5222, %v5206
        %v5559 = vpack.c.b16 %v5223, %v5207
        %v5560 = vpack.c.b16 %v5224, %v5208
        %v5561 = vpack.c.b16 %v5225, %v5209
        %v5562 = vpack.c.b16 %v5226, %v5210
        %v5563 = vpack.c.b16 %v5243, %v5227
        %v5564 = vpack.c.b16 %v5244, %v5228
        %v5565 = vpack.c.b16 %v5245, %v5229
        %v5566 = vpack.c.b16 %v5246, %v5230
        %v5567 = vpack.c.b16 %v5247, %v5231
        %v5568 = vpack.c.b16 %v5248, %v5232
        %v5569 = vpack.c.b16 %v5249, %v5233
        %v5570 = vpack.c.b16 %v5250, %v5234
        %v5571 = vpack.c.b16 %v5251, %v5235
        %v5572 = vpack.c.b16 %v5252, %v5236
        %v5573 = vpack.c.b16 %v5253, %v5237
        %v5574 = vpack.c.b16 %v5254, %v5238
        %v5575 = vpack.c.b16 %v5255, %v5239
        %v5576 = vpack.c.b16 %v5256, %v5240
        %v5577 = vpack.c.b16 %v5257, %v5241
        %v5578 = vpack.c.b16 %v5258, %v5242
        %v5579 = vpack.c.b16 %v5275, %v5259
        %v5580 = vpack.c.b16 %v5276, %v5260
        %v5581 = vpack.c.b16 %v5277, %v5261
        %v5582 = vpack.c.b16 %v5278, %v5262
        %v5583 = vpack.c.b16 %v5279, %v5263
        %v5584 = vpack.c.b16 %v5280, %v5264
        %v5585 = vpack.c.b16 %v5281, %v5265
        %v5586 = vpack.c.b16 %v5282, %v5266
        %v5587 = vpack.c.b16 %v5283, %v5267
        %v5588 = vpack.c.b16 %v5284, %v5268
        %v5589 = vpack.c.b16 %v5285, %v5269
        %v5590 = vpack.c.b16 %v5286, %v5270
        %v5591 = vpack.c.b16 %v5287, %v5271
        %v5592 = vpack.c.b16 %v5288, %v5272
        %v5593 = vpack.c.b16 %v5289, %v5273
        %v5594 = vpack.c.b16 %v5290, %v5274
        %v5595 = vpack.c.b16 %v5307, %v5291
        %v5596 = vpack.c.b16 %v5308, %v5292
        %v5597 = vpack.c.b16 %v5309, %v5293
        %v5598 = vpack.c.b16 %v5310, %v5294
        %v5599 = vpack.c.b16 %v5311, %v5295
        %v5600 = vpack.c.b16 %v5312, %v5296
        %v5601 = vpack.c.b16 %v5313, %v5297
        %v5602 = vpack.c.b16 %v5314, %v5298
        %v5603 = vpack.c.b16 %v5315, %v5299
        %v5604 = vpack.c.b16 %v5316, %v5300
        %v5605 = vpack.c.b16 %v5317, %v5301
        %v5606 = vpack.c.b16 %v5318, %v5302
        %v5607 = vpack.c.b16 %v5319, %v5303
        %v5608 = vpack.c.b16 %v5320, %v5304
        %v5609 = vpack.c.b16 %v5321, %v5305
        %v5610 = vpack.c.b16 %v5322, %v5306
        %v5611 = vpack.c.b16 %v5339, %v5323
        %v5612 = vpack.c.b16 %v5340, %v5324
        %v5613 = vpack.c.b16 %v5341, %v5325
        %v5614 = vpack.c.b16 %v5342, %v5326
        %v5615 = vpack.c.b16 %v5343, %v5327
        %v5616 = vpack.c.b16 %v5344, %v5328
        %v5617 = vpack.c.b16 %v5345, %v5329
        %v5618 = vpack.c.b16 %v5346, %v5330
        %v5619 = vpack.c.b16 %v5347, %v5331
        %v5620 = vpack.c.b16 %v5348, %v5332
        %v5621 = vpack.c.b16 %v5349, %v5333
        %v5622 = vpack.c.b16 %v5350, %v5334
        %v5623 = vpack.c.b16 %v5351, %v5335
        %v5624 = vpack.c.b16 %v5352, %v5336
        %v5625 = vpack.c.b16 %v5353, %v5337
        %v5626 = vpack.c.b16 %v5354, %v5338
        %v5627 = vpack.c.b16 %v5371, %v5355
        %v5628 = vpack.c.b16 %v5372, %v5356
        %v5629 = vpack.c.b16 %v5373, %v5357
        %v5630 = vpack.c.b16 %v5374, %v5358
        %v5631 = vpack.c.b16 %v5375, %v5359
        %v5632 = vpack.c.b16 %v5376, %v5360
        %v5633 = vpack.c.b16 %v5377, %v5361
        %v5634 = vpack.c.b16 %v5378, %v5362
        %v5635 = vpack.c.b16 %v5379, %v5363
        %v5636 = vpack.c.b16 %v5380, %v5364
        %v5637 = vpack.c.b16 %v5381, %v5365
        %v5638 = vpack.c.b16 %v5382, %v5366
        %v5639 = vpack.c.b16 %v5383, %v5367
        %v5640 = vpack.c.b16 %v5384, %v5368
        %v5641 = vpack.c.b16 %v5385, %v5369
        %v5642 = vpack.c.b16 %v5386, %v5370
        %v5884 = vsel %vm1019, %v4278, 0
        %v5887 = vsel %vm1023, %v5627, 0
        %v5890 = vsel %vm1023, %v5628, 0
        %v5893 = vsel %vm1023, %v5629, 0
        %v5896 = vsel %vm1023, %v5630, 0
        %v5899 = vsel %vm1023, %v5631, 0
        %v5902 = vsel %vm1023, %v5632, 0
        %v5905 = vsel %vm1023, %v5633, 0
        %v5908 = vsel %vm1023, %v5634, 0
        %v5911 = vsel %vm1023, %v5635, 0
        %v5914 = vsel %vm1023, %v5636, 0
        %v5917 = vsel %vm1023, %v5637, 0
        %v5920 = vsel %vm1023, %v5638, 0
        %v5923 = vsel %vm1023, %v5639, 0
        %v5926 = vsel %vm1023, %v5640, 0
        %v5929 = vsel %vm1023, %v5641, 0
        %v5932 = vsel %vm1023, %v5642, 0
        %5934 = vmatprep.subr.bf16.mxu0 %v5500
        %5935 = vmatpush1.bf16.msra.mxu0 %v5499
        %5936 = vmatprep.subr.bf16.mxu0 %v5484
        %5937 = vmatpush1.bf16.msra.mxu0 %v5483
        %5938 = vmatprep.subr.bf16.mxu0 %v5468
        %5939 = vmatpush1.bf16.msra.mxu0 %v5467
        %5940 = vmatprep.subr.bf16.mxu0 %v5452
        %5941 = vmatpush1.bf16.msra.mxu0 %v5451
        %5942 = vmatprep.subr.bf16.mxu0 %v5436
        %5943 = vmatpush1.bf16.msra.mxu0 %v5435
        %5944 = vmatprep.subr.bf16.mxu0 %v5420
        %5945 = vmatpush1.bf16.msra.mxu0 %v5419
        %5946 = vmatprep.subr.bf16.mxu0 %v5404
        %5947 = vmatpush1.bf16.msra.mxu0 %v5403
        %5948 = vmatprep.subr.bf16.mxu0 %v5388
        %5949 = vmatpush1.bf16.msra.mxu0 %v5387
        %5950 = vmatprep.subr.bf16.mxu0 %v5890
        %5951 = vmatpush2.bf16.msra.mxu0 %v5887
        %5952 = vmatprep.subr.bf16.mxu0 %v5612
        %5953 = vmatpush2.bf16.msra.mxu0 %v5611
        %5954 = vmatprep.subr.bf16.mxu0 %v5596
        %5955 = vmatpush2.bf16.msra.mxu0 %v5595
        %5956 = vmatprep.subr.bf16.mxu0 %v5580
        %5957 = vmatpush2.bf16.msra.mxu0 %v5579
        %5958 = vmatprep.subr.bf16.mxu0 %v5564
        %5959 = vmatpush2.bf16.msra.mxu0 %v5563
        %5960 = vmatprep.subr.bf16.mxu0 %v5548
        %5961 = vmatpush2.bf16.msra.mxu0 %v5547
        %5962 = vmatprep.subr.bf16.mxu0 %v5532
        %5963 = vmatpush2.bf16.msra.mxu0 %v5531
        %5964 = vmatprep.subr.bf16.mxu0 %v5516
        %5965 = vmatpush2.bf16.msra.mxu0 %v5515
        %5966 = vmatprep.mubr.bf16.mxu0 %v5884
        %5967 = vmatmul.mubr.bf16.gmra.mxu0 %v4277
        %v5968 = vpop.f32.mrf.mxu0
        %v5969 = vadd.f32 %v4542, %v5968
        %v5970 = vpop.f32.mrf.mxu0
        %v5971 = vadd.f32 %v4546, %v5970
        %v5972 = vpop.f32.mrf.mxu0
        %v5973 = vadd.f32 %v4542, %v5972
        %v5974 = vpop.f32.mrf.mxu0
        %v5975 = vadd.f32 %v4546, %v5974
        %5976 = vdwg.mxu0
        %5977 = vmatprep.subr.bf16.mxu0 %v5502
        %5978 = vmatpush1.bf16.msra.mxu0 %v5501
        %5979 = vmatprep.subr.bf16.mxu0 %v5486
        %5980 = vmatpush1.bf16.msra.mxu0 %v5485
        %5981 = vmatprep.subr.bf16.mxu0 %v5470
        %5982 = vmatpush1.bf16.msra.mxu0 %v5469
        %5983 = vmatprep.subr.bf16.mxu0 %v5454
        %5984 = vmatpush1.bf16.msra.mxu0 %v5453
        %5985 = vmatprep.subr.bf16.mxu0 %v5438
        %5986 = vmatpush1.bf16.msra.mxu0 %v5437
        %5987 = vmatprep.subr.bf16.mxu0 %v5422
        %5988 = vmatpush1.bf16.msra.mxu0 %v5421
        %5989 = vmatprep.subr.bf16.mxu0 %v5406
        %5990 = vmatpush1.bf16.msra.mxu0 %v5405
        %5991 = vmatprep.subr.bf16.mxu0 %v5390
        %5992 = vmatpush1.bf16.msra.mxu0 %v5389
        %5993 = vmatprep.subr.bf16.mxu0 %v5896
        %5994 = vmatpush2.bf16.msra.mxu0 %v5893
        %5995 = vmatprep.subr.bf16.mxu0 %v5614
        %5996 = vmatpush2.bf16.msra.mxu0 %v5613
        %5997 = vmatprep.subr.bf16.mxu0 %v5598
        %5998 = vmatpush2.bf16.msra.mxu0 %v5597
        %5999 = vmatprep.subr.bf16.mxu0 %v5582
        %6000 = vmatpush2.bf16.msra.mxu0 %v5581
        %6001 = vmatprep.subr.bf16.mxu0 %v5566
        %6002 = vmatpush2.bf16.msra.mxu0 %v5565
        %6003 = vmatprep.subr.bf16.mxu0 %v5550
        %6004 = vmatpush2.bf16.msra.mxu0 %v5549
        %6005 = vmatprep.subr.bf16.mxu0 %v5534
        %6006 = vmatpush2.bf16.msra.mxu0 %v5533
        %6007 = vmatprep.subr.bf16.mxu0 %v5518
        %6008 = vmatpush2.bf16.msra.mxu0 %v5517
        %6009 = vmatprep.mubr.bf16.mxu0 %v5884
        %6010 = vmatmul.mubr.bf16.gmra.mxu0 %v4277
        %v6011 = vpop.f32.mrf.mxu0
        %v6012 = vadd.f32 %v4550, %v6011
        %v6013 = vpop.f32.mrf.mxu0
        %v6014 = vadd.f32 %v4554, %v6013
        %v6015 = vpop.f32.mrf.mxu0
        %v6016 = vadd.f32 %v4550, %v6015
        %v6017 = vpop.f32.mrf.mxu0
        %v6018 = vadd.f32 %v4554, %v6017
        %6019 = vdwg.mxu0
        %6020 = vmatprep.subr.bf16.mxu0 %v5504
        %6021 = vmatpush1.bf16.msra.mxu0 %v5503
        %6022 = vmatprep.subr.bf16.mxu0 %v5488
        %6023 = vmatpush1.bf16.msra.mxu0 %v5487
        %6024 = vmatprep.subr.bf16.mxu0 %v5472
        %6025 = vmatpush1.bf16.msra.mxu0 %v5471
        %6026 = vmatprep.subr.bf16.mxu0 %v5456
        %6027 = vmatpush1.bf16.msra.mxu0 %v5455
        %6028 = vmatprep.subr.bf16.mxu0 %v5440
        %6029 = vmatpush1.bf16.msra.mxu0 %v5439
        %6030 = vmatprep.subr.bf16.mxu0 %v5424
        %6031 = vmatpush1.bf16.msra.mxu0 %v5423
        %6032 = vmatprep.subr.bf16.mxu0 %v5408
        %6033 = vmatpush1.bf16.msra.mxu0 %v5407
        %6034 = vmatprep.subr.bf16.mxu0 %v5392
        %6035 = vmatpush1.bf16.msra.mxu0 %v5391
        %6036 = vmatprep.subr.bf16.mxu0 %v5902
        %6037 = vmatpush2.bf16.msra.mxu0 %v5899
        %6038 = vmatprep.subr.bf16.mxu0 %v5616
        %6039 = vmatpush2.bf16.msra.mxu0 %v5615
        %6040 = vmatprep.subr.bf16.mxu0 %v5600
        %6041 = vmatpush2.bf16.msra.mxu0 %v5599
        %6042 = vmatprep.subr.bf16.mxu0 %v5584
        %6043 = vmatpush2.bf16.msra.mxu0 %v5583
        %6044 = vmatprep.subr.bf16.mxu0 %v5568
        %6045 = vmatpush2.bf16.msra.mxu0 %v5567
        %6046 = vmatprep.subr.bf16.mxu0 %v5552
        %6047 = vmatpush2.bf16.msra.mxu0 %v5551
        %6048 = vmatprep.subr.bf16.mxu0 %v5536
        %6049 = vmatpush2.bf16.msra.mxu0 %v5535
        %6050 = vmatprep.subr.bf16.mxu0 %v5520
        %6051 = vmatpush2.bf16.msra.mxu0 %v5519
        %6052 = vmatprep.mubr.bf16.mxu0 %v5884
        %6053 = vmatmul.mubr.bf16.gmra.mxu0 %v4277
        %v6054 = vpop.f32.mrf.mxu0
        %v6055 = vadd.f32 %v4558, %v6054
        %v6056 = vpop.f32.mrf.mxu0
        %v6057 = vadd.f32 %v4562, %v6056
        %v6058 = vpop.f32.mrf.mxu0
        %v6059 = vadd.f32 %v4558, %v6058
        %v6060 = vpop.f32.mrf.mxu0
        %v6061 = vadd.f32 %v4562, %v6060
        %6062 = vdwg.mxu0
        %6063 = vmatprep.subr.bf16.mxu0 %v5506
        %6064 = vmatpush1.bf16.msra.mxu0 %v5505
        %6065 = vmatprep.subr.bf16.mxu0 %v5490
        %6066 = vmatpush1.bf16.msra.mxu0 %v5489
        %6067 = vmatprep.subr.bf16.mxu0 %v5474
        %6068 = vmatpush1.bf16.msra.mxu0 %v5473
        %6069 = vmatprep.subr.bf16.mxu0 %v5458
        %6070 = vmatpush1.bf16.msra.mxu0 %v5457
        %6071 = vmatprep.subr.bf16.mxu0 %v5442
        %6072 = vmatpush1.bf16.msra.mxu0 %v5441
        %6073 = vmatprep.subr.bf16.mxu0 %v5426
        %6074 = vmatpush1.bf16.msra.mxu0 %v5425
        %6075 = vmatprep.subr.bf16.mxu0 %v5410
        %6076 = vmatpush1.bf16.msra.mxu0 %v5409
        %6077 = vmatprep.subr.bf16.mxu0 %v5394
        %6078 = vmatpush1.bf16.msra.mxu0 %v5393
        %6079 = vmatprep.subr.bf16.mxu0 %v5908
        %6080 = vmatpush2.bf16.msra.mxu0 %v5905
        %6081 = vmatprep.subr.bf16.mxu0 %v5618
        %6082 = vmatpush2.bf16.msra.mxu0 %v5617
        %6083 = vmatprep.subr.bf16.mxu0 %v5602
        %6084 = vmatpush2.bf16.msra.mxu0 %v5601
        %6085 = vmatprep.subr.bf16.mxu0 %v5586
        %6086 = vmatpush2.bf16.msra.mxu0 %v5585
        %6087 = vmatprep.subr.bf16.mxu0 %v5570
        %6088 = vmatpush2.bf16.msra.mxu0 %v5569
        %6089 = vmatprep.subr.bf16.mxu0 %v5554
        %6090 = vmatpush2.bf16.msra.mxu0 %v5553
        %6091 = vmatprep.subr.bf16.mxu0 %v5538
        %6092 = vmatpush2.bf16.msra.mxu0 %v5537
        %6093 = vmatprep.subr.bf16.mxu0 %v5522
        %6094 = vmatpush2.bf16.msra.mxu0 %v5521
        %6095 = vmatprep.mubr.bf16.mxu0 %v5884
        %6096 = vmatmul.mubr.bf16.gmra.mxu0 %v4277
        %v6097 = vpop.f32.mrf.mxu0
        %v6098 = vadd.f32 %v4566, %v6097
        %v6099 = vpop.f32.mrf.mxu0
        %v6100 = vadd.f32 %v4570, %v6099
        %v6101 = vpop.f32.mrf.mxu0
        %v6102 = vadd.f32 %v4566, %v6101
        %v6103 = vpop.f32.mrf.mxu0
        %v6104 = vadd.f32 %v4570, %v6103
        %6105 = vdwg.mxu0
        %6106 = vmatprep.subr.bf16.mxu0 %v5508
        %6107 = vmatpush1.bf16.msra.mxu0 %v5507
        %6108 = vmatprep.subr.bf16.mxu0 %v5492
        %6109 = vmatpush1.bf16.msra.mxu0 %v5491
        %6110 = vmatprep.subr.bf16.mxu0 %v5476
        %6111 = vmatpush1.bf16.msra.mxu0 %v5475
        %6112 = vmatprep.subr.bf16.mxu0 %v5460
        %6113 = vmatpush1.bf16.msra.mxu0 %v5459
        %6114 = vmatprep.subr.bf16.mxu0 %v5444
        %6115 = vmatpush1.bf16.msra.mxu0 %v5443
        %6116 = vmatprep.subr.bf16.mxu0 %v5428
        %6117 = vmatpush1.bf16.msra.mxu0 %v5427
        %6118 = vmatprep.subr.bf16.mxu0 %v5412
        %6119 = vmatpush1.bf16.msra.mxu0 %v5411
        %6120 = vmatprep.subr.bf16.mxu0 %v5396
        %6121 = vmatpush1.bf16.msra.mxu0 %v5395
        %6122 = vmatprep.subr.bf16.mxu0 %v5914
        %6123 = vmatpush2.bf16.msra.mxu0 %v5911
        %6124 = vmatprep.subr.bf16.mxu0 %v5620
        %6125 = vmatpush2.bf16.msra.mxu0 %v5619
        %6126 = vmatprep.subr.bf16.mxu0 %v5604
        %6127 = vmatpush2.bf16.msra.mxu0 %v5603
        %6128 = vmatprep.subr.bf16.mxu0 %v5588
        %6129 = vmatpush2.bf16.msra.mxu0 %v5587
        %6130 = vmatprep.subr.bf16.mxu0 %v5572
        %6131 = vmatpush2.bf16.msra.mxu0 %v5571
        %6132 = vmatprep.subr.bf16.mxu0 %v5556
        %6133 = vmatpush2.bf16.msra.mxu0 %v5555
        %6134 = vmatprep.subr.bf16.mxu0 %v5540
        %6135 = vmatpush2.bf16.msra.mxu0 %v5539
        %6136 = vmatprep.subr.bf16.mxu0 %v5524
        %6137 = vmatpush2.bf16.msra.mxu0 %v5523
        %6138 = vmatprep.mubr.bf16.mxu0 %v5884
        %6139 = vmatmul.mubr.bf16.gmra.mxu0 %v4277
        %v6140 = vpop.f32.mrf.mxu0
        %v6141 = vadd.f32 %v4574, %v6140
        %v6142 = vpop.f32.mrf.mxu0
        %v6143 = vadd.f32 %v4578, %v6142
        %v6144 = vpop.f32.mrf.mxu0
        %v6145 = vadd.f32 %v4574, %v6144
        %v6146 = vpop.f32.mrf.mxu0
        %v6147 = vadd.f32 %v4578, %v6146
        %6148 = vdwg.mxu0
        %6149 = vmatprep.subr.bf16.mxu0 %v5510
        %6150 = vmatpush1.bf16.msra.mxu0 %v5509
        %6151 = vmatprep.subr.bf16.mxu0 %v5494
        %6152 = vmatpush1.bf16.msra.mxu0 %v5493
        %6153 = vmatprep.subr.bf16.mxu0 %v5478
        %6154 = vmatpush1.bf16.msra.mxu0 %v5477
        %6155 = vmatprep.subr.bf16.mxu0 %v5462
        %6156 = vmatpush1.bf16.msra.mxu0 %v5461
        %6157 = vmatprep.subr.bf16.mxu0 %v5446
        %6158 = vmatpush1.bf16.msra.mxu0 %v5445
        %6159 = vmatprep.subr.bf16.mxu0 %v5430
        %6160 = vmatpush1.bf16.msra.mxu0 %v5429
        %6161 = vmatprep.subr.bf16.mxu0 %v5414
        %6162 = vmatpush1.bf16.msra.mxu0 %v5413
        %6163 = vmatprep.subr.bf16.mxu0 %v5398
        %6164 = vmatpush1.bf16.msra.mxu0 %v5397
        %6165 = vmatprep.subr.bf16.mxu0 %v5920
        %6166 = vmatpush2.bf16.msra.mxu0 %v5917
        %6167 = vmatprep.subr.bf16.mxu0 %v5622
        %6168 = vmatpush2.bf16.msra.mxu0 %v5621
        %6169 = vmatprep.subr.bf16.mxu0 %v5606
        %6170 = vmatpush2.bf16.msra.mxu0 %v5605
        %6171 = vmatprep.subr.bf16.mxu0 %v5590
        %6172 = vmatpush2.bf16.msra.mxu0 %v5589
        %6173 = vmatprep.subr.bf16.mxu0 %v5574
        %6174 = vmatpush2.bf16.msra.mxu0 %v5573
        %6175 = vmatprep.subr.bf16.mxu0 %v5558
        %6176 = vmatpush2.bf16.msra.mxu0 %v5557
        %6177 = vmatprep.subr.bf16.mxu0 %v5542
        %6178 = vmatpush2.bf16.msra.mxu0 %v5541
        %6179 = vmatprep.subr.bf16.mxu0 %v5526
        %6180 = vmatpush2.bf16.msra.mxu0 %v5525
        %6181 = vmatprep.mubr.bf16.mxu0 %v5884
        %6182 = vmatmul.mubr.bf16.gmra.mxu0 %v4277
        %v6183 = vpop.f32.mrf.mxu0
        %v6184 = vadd.f32 %v4582, %v6183
        %v6185 = vpop.f32.mrf.mxu0
        %v6186 = vadd.f32 %v4586, %v6185
        %v6187 = vpop.f32.mrf.mxu0
        %v6188 = vadd.f32 %v4582, %v6187
        %v6189 = vpop.f32.mrf.mxu0
        %v6190 = vadd.f32 %v4586, %v6189
        %6191 = vdwg.mxu0
        %6192 = vmatprep.subr.bf16.mxu0 %v5512
        %6193 = vmatpush1.bf16.msra.mxu0 %v5511
        %6194 = vmatprep.subr.bf16.mxu0 %v5496
        %6195 = vmatpush1.bf16.msra.mxu0 %v5495
        %6196 = vmatprep.subr.bf16.mxu0 %v5480
        %6197 = vmatpush1.bf16.msra.mxu0 %v5479
        %6198 = vmatprep.subr.bf16.mxu0 %v5464
        %6199 = vmatpush1.bf16.msra.mxu0 %v5463
        %6200 = vmatprep.subr.bf16.mxu0 %v5448
        %6201 = vmatpush1.bf16.msra.mxu0 %v5447
        %6202 = vmatprep.subr.bf16.mxu0 %v5432
        %6203 = vmatpush1.bf16.msra.mxu0 %v5431
        %6204 = vmatprep.subr.bf16.mxu0 %v5416
        %6205 = vmatpush1.bf16.msra.mxu0 %v5415
        %6206 = vmatprep.subr.bf16.mxu0 %v5400
        %6207 = vmatpush1.bf16.msra.mxu0 %v5399
        %6208 = vmatprep.subr.bf16.mxu0 %v5926
        %6209 = vmatpush2.bf16.msra.mxu0 %v5923
        %6210 = vmatprep.subr.bf16.mxu0 %v5624
        %6211 = vmatpush2.bf16.msra.mxu0 %v5623
        %6212 = vmatprep.subr.bf16.mxu0 %v5608
        %6213 = vmatpush2.bf16.msra.mxu0 %v5607
        %6214 = vmatprep.subr.bf16.mxu0 %v5592
        %6215 = vmatpush2.bf16.msra.mxu0 %v5591
        %6216 = vmatprep.subr.bf16.mxu0 %v5576
        %6217 = vmatpush2.bf16.msra.mxu0 %v5575
        %6218 = vmatprep.subr.bf16.mxu0 %v5560
        %6219 = vmatpush2.bf16.msra.mxu0 %v5559
        %6220 = vmatprep.subr.bf16.mxu0 %v5544
        %6221 = vmatpush2.bf16.msra.mxu0 %v5543
        %6222 = vmatprep.subr.bf16.mxu0 %v5528
        %6223 = vmatpush2.bf16.msra.mxu0 %v5527
        %6224 = vmatprep.mubr.bf16.mxu0 %v5884
        %6225 = vmatmul.mubr.bf16.gmra.mxu0 %v4277
        %v6226 = vpop.f32.mrf.mxu0
        %v6227 = vadd.f32 %v4590, %v6226
        %v6228 = vpop.f32.mrf.mxu0
        %v6229 = vadd.f32 %v4594, %v6228
        %v6230 = vpop.f32.mrf.mxu0
        %v6231 = vadd.f32 %v4590, %v6230
        %v6232 = vpop.f32.mrf.mxu0
        %v6233 = vadd.f32 %v4594, %v6232
        %6234 = vdwg.mxu0
        %6235 = vmatprep.subr.bf16.mxu0 %v5514
        %6236 = vmatpush1.bf16.msra.mxu0 %v5513
        %6237 = vmatprep.subr.bf16.mxu0 %v5498
        %6238 = vmatpush1.bf16.msra.mxu0 %v5497
        %6239 = vmatprep.subr.bf16.mxu0 %v5482
        %6240 = vmatpush1.bf16.msra.mxu0 %v5481
        %6241 = vmatprep.subr.bf16.mxu0 %v5466
        %6242 = vmatpush1.bf16.msra.mxu0 %v5465
        %6243 = vmatprep.subr.bf16.mxu0 %v5450
        %6244 = vmatpush1.bf16.msra.mxu0 %v5449
        %6245 = vmatprep.subr.bf16.mxu0 %v5434
        %6246 = vmatpush1.bf16.msra.mxu0 %v5433
        %6247 = vmatprep.subr.bf16.mxu0 %v5418
        %6248 = vmatpush1.bf16.msra.mxu0 %v5417
        %6249 = vmatprep.subr.bf16.mxu0 %v5402
        %6250 = vmatpush1.bf16.msra.mxu0 %v5401
        %6251 = vmatprep.subr.bf16.mxu0 %v5932
        %6252 = vmatpush2.bf16.msra.mxu0 %v5929
        %6253 = vmatprep.subr.bf16.mxu0 %v5626
        %6254 = vmatpush2.bf16.msra.mxu0 %v5625
        %6255 = vmatprep.subr.bf16.mxu0 %v5610
        %6256 = vmatpush2.bf16.msra.mxu0 %v5609
        %6257 = vmatprep.subr.bf16.mxu0 %v5594
        %6258 = vmatpush2.bf16.msra.mxu0 %v5593
        %6259 = vmatprep.subr.bf16.mxu0 %v5578
        %6260 = vmatpush2.bf16.msra.mxu0 %v5577
        %6261 = vmatprep.subr.bf16.mxu0 %v5562
        %6262 = vmatpush2.bf16.msra.mxu0 %v5561
        %6263 = vmatprep.subr.bf16.mxu0 %v5546
        %6264 = vmatpush2.bf16.msra.mxu0 %v5545
        %6265 = vmatprep.subr.bf16.mxu0 %v5530
        %6266 = vmatpush2.bf16.msra.mxu0 %v5529
        %6267 = vmatprep.mubr.bf16.mxu0 %v5884
        %6268 = vmatmul.mubr.bf16.gmra.mxu0 %v4277
        %v6269 = vpop.f32.mrf.mxu0
        %v6270 = vadd.f32 %v4598, %v6269
        %v6271 = vpop.f32.mrf.mxu0
        %v6272 = vadd.f32 %v4602, %v6271
        %v6273 = vpop.f32.mrf.mxu0
        %v6274 = vadd.f32 %v4598, %v6273
        %v6275 = vpop.f32.mrf.mxu0
        %v6276 = vadd.f32 %v4602, %v6275
        %6277 = vdwg.mxu0
        %v6278 = vmax.f32 %v5969, 0.0
        %v6279 = vmax.f32 %v5971, 0.0
        %v6280 = vmax.f32 %v6012, 0.0
        %v6281 = vmax.f32 %v6014, 0.0
        %v6282 = vmax.f32 %v6055, 0.0
        %v6283 = vmax.f32 %v6057, 0.0
        %v6284 = vmax.f32 %v6098, 0.0
        %v6285 = vmax.f32 %v6100, 0.0
        %v6286 = vmax.f32 %v6141, 0.0
        %v6287 = vmax.f32 %v6143, 0.0
        %v6288 = vmax.f32 %v6184, 0.0
        %v6289 = vmax.f32 %v6186, 0.0
        %v6290 = vmax.f32 %v6227, 0.0
        %v6291 = vmax.f32 %v6229, 0.0
        %v6292 = vmax.f32 %v6270, 0.0
        %v6293 = vmax.f32 %v6272, 0.0
        %v6294 = vmax.f32 %v5973, 0.0
        %v6295 = vmax.f32 %v5975, 0.0
        %v6296 = vmax.f32 %v6016, 0.0
        %v6297 = vmax.f32 %v6018, 0.0
        %v6298 = vmax.f32 %v6059, 0.0
        %v6299 = vmax.f32 %v6061, 0.0
        %v6300 = vmax.f32 %v6102, 0.0
        %v6301 = vmax.f32 %v6104, 0.0
        %v6302 = vmax.f32 %v6145, 0.0
        %v6303 = vmax.f32 %v6147, 0.0
        %v6304 = vmax.f32 %v6188, 0.0
        %v6305 = vmax.f32 %v6190, 0.0
        %v6306 = vmax.f32 %v6231, 0.0
        %v6307 = vmax.f32 %v6233, 0.0
        %v6308 = vmax.f32 %v6274, 0.0
        %v6309 = vmax.f32 %v6276, 0.0
        %v6310 = vpack.c.bf16 %v6294, %v6278
        %v6311 = vpack.c.bf16 %v6295, %v6279
        %v6312 = vpack.c.bf16 %v6296, %v6280
        %v6313 = vpack.c.bf16 %v6297, %v6281
        %v6314 = vpack.c.bf16 %v6298, %v6282
        %v6315 = vpack.c.bf16 %v6299, %v6283
        %v6316 = vpack.c.bf16 %v6300, %v6284
        %v6317 = vpack.c.bf16 %v6301, %v6285
        %v6318 = vpack.c.bf16 %v6302, %v6286
        %v6319 = vpack.c.bf16 %v6303, %v6287
        %v6320 = vpack.c.bf16 %v6304, %v6288
        %v6321 = vpack.c.bf16 %v6305, %v6289
        %v6322 = vpack.c.bf16 %v6306, %v6290
        %v6323 = vpack.c.bf16 %v6307, %v6291
        %v6324 = vpack.c.bf16 %v6308, %v6292
        %v6325 = vpack.c.bf16 %v6309, %v6293
        %v6326 = vld [vmem:[#allocation18] sm:$0xff]
        %v6327 = vld [vmem:[#allocation18 + $0x8] sm:$0xff]
        %v6328 = vld [vmem:[#allocation18 + $0x10] sm:$0xff]
        %v6329 = vld [vmem:[#allocation18 + $0x18] sm:$0xff]
        %v6330 = vld [vmem:[#allocation18 + $0x20] sm:$0xff]
        %v6331 = vld [vmem:[#allocation18 + $0x28] sm:$0xff]
        %v6332 = vld [vmem:[#allocation18 + $0x30] sm:$0xff]
        %v6333 = vld [vmem:[#allocation18 + $0x38] sm:$0xff]
        %v6334 = vld [vmem:[#allocation18 + $0x40] sm:$0xff]
        %v6335 = vld [vmem:[#allocation18 + $0x48] sm:$0xff]
        %v6336 = vld [vmem:[#allocation18 + $0x50] sm:$0xff]
        %v6337 = vld [vmem:[#allocation18 + $0x58] sm:$0xff]
        %v6338 = vld [vmem:[#allocation18 + $0x60] sm:$0xff]
        %v6339 = vld [vmem:[#allocation18 + $0x68] sm:$0xff]
        %v6340 = vld [vmem:[#allocation18 + $0x70] sm:$0xff]
        %v6341 = vld [vmem:[#allocation18 + $0x78] sm:$0xff]
        %v6342 = vld [vmem:[#allocation18 + $0x80] sm:$0xff]
        %v6343 = vld [vmem:[#allocation18 + $0x88] sm:$0xff]
        %v6344 = vld [vmem:[#allocation18 + $0x90] sm:$0xff]
        %v6345 = vld [vmem:[#allocation18 + $0x98] sm:$0xff]
        %v6346 = vld [vmem:[#allocation18 + $0xa0] sm:$0xff]
        %v6347 = vld [vmem:[#allocation18 + $0xa8] sm:$0xff]
        %v6348 = vld [vmem:[#allocation18 + $0xb0] sm:$0xff]
        %v6349 = vld [vmem:[#allocation18 + $0xb8] sm:$0xff]
        %v6350 = vld [vmem:[#allocation18 + $0xc0] sm:$0xff]
        %v6351 = vld [vmem:[#allocation18 + $0xc8] sm:$0xff]
        %v6352 = vld [vmem:[#allocation18 + $0xd0] sm:$0xff]
        %v6353 = vld [vmem:[#allocation18 + $0xd8] sm:$0xff]
        %v6354 = vld [vmem:[#allocation18 + $0xe0] sm:$0xff]
        %v6355 = vld [vmem:[#allocation18 + $0xe8] sm:$0xff]
        %v6356 = vld [vmem:[#allocation18 + $0xf0] sm:$0xff]
        %v6357 = vld [vmem:[#allocation18 + $0xf8] sm:$0xff]
        %v6358 = vld [vmem:[#allocation18 + $0x100] sm:$0xff]
        %v6359 = vld [vmem:[#allocation18 + $0x108] sm:$0xff]
        %v6360 = vld [vmem:[#allocation18 + $0x110] sm:$0xff]
        %v6361 = vld [vmem:[#allocation18 + $0x118] sm:$0xff]
        %v6362 = vld [vmem:[#allocation18 + $0x120] sm:$0xff]
        %v6363 = vld [vmem:[#allocation18 + $0x128] sm:$0xff]
        %v6364 = vld [vmem:[#allocation18 + $0x130] sm:$0xff]
        %v6365 = vld [vmem:[#allocation18 + $0x138] sm:$0xff]
        %v6366 = vld [vmem:[#allocation18 + $0x140] sm:$0xff]
        %v6367 = vld [vmem:[#allocation18 + $0x148] sm:$0xff]
        %v6368 = vld [vmem:[#allocation18 + $0x150] sm:$0xff]
        %v6369 = vld [vmem:[#allocation18 + $0x158] sm:$0xff]
        %v6370 = vld [vmem:[#allocation18 + $0x160] sm:$0xff]
        %v6371 = vld [vmem:[#allocation18 + $0x168] sm:$0xff]
        %v6372 = vld [vmem:[#allocation18 + $0x170] sm:$0xff]
        %v6373 = vld [vmem:[#allocation18 + $0x178] sm:$0xff]
        %v6374 = vld [vmem:[#allocation18 + $0x180] sm:$0xff]
        %v6375 = vld [vmem:[#allocation18 + $0x188] sm:$0xff]
        %v6376 = vld [vmem:[#allocation18 + $0x190] sm:$0xff]
        %v6377 = vld [vmem:[#allocation18 + $0x198] sm:$0xff]
        %v6378 = vld [vmem:[#allocation18 + $0x1a0] sm:$0xff]
        %v6379 = vld [vmem:[#allocation18 + $0x1a8] sm:$0xff]
        %v6380 = vld [vmem:[#allocation18 + $0x1b0] sm:$0xff]
        %v6381 = vld [vmem:[#allocation18 + $0x1b8] sm:$0xff]
        %v6382 = vld [vmem:[#allocation18 + $0x1c0] sm:$0xff]
        %v6383 = vld [vmem:[#allocation18 + $0x1c8] sm:$0xff]
        %v6384 = vld [vmem:[#allocation18 + $0x1d0] sm:$0xff]
        %v6385 = vld [vmem:[#allocation18 + $0x1d8] sm:$0xff]
        %v6386 = vld [vmem:[#allocation18 + $0x1e0] sm:$0xff]
        %v6387 = vld [vmem:[#allocation18 + $0x1e8] sm:$0xff]
        %v6388 = vld [vmem:[#allocation18 + $0x1f0] sm:$0xff]
        %v6389 = vld [vmem:[#allocation18 + $0x1f8] sm:$0xff]
        %v6390 = vld [vmem:[#allocation18 + $0x200] sm:$0xff]
        %v6391 = vld [vmem:[#allocation18 + $0x208] sm:$0xff]
        %v6392 = vld [vmem:[#allocation18 + $0x210] sm:$0xff]
        %v6393 = vld [vmem:[#allocation18 + $0x218] sm:$0xff]
        %v6394 = vld [vmem:[#allocation18 + $0x220] sm:$0xff]
        %v6395 = vld [vmem:[#allocation18 + $0x228] sm:$0xff]
        %v6396 = vld [vmem:[#allocation18 + $0x230] sm:$0xff]
        %v6397 = vld [vmem:[#allocation18 + $0x238] sm:$0xff]
        %v6398 = vld [vmem:[#allocation18 + $0x240] sm:$0xff]
        %v6399 = vld [vmem:[#allocation18 + $0x248] sm:$0xff]
        %v6400 = vld [vmem:[#allocation18 + $0x250] sm:$0xff]
        %v6401 = vld [vmem:[#allocation18 + $0x258] sm:$0xff]
        %v6402 = vld [vmem:[#allocation18 + $0x260] sm:$0xff]
        %v6403 = vld [vmem:[#allocation18 + $0x268] sm:$0xff]
        %v6404 = vld [vmem:[#allocation18 + $0x270] sm:$0xff]
        %v6405 = vld [vmem:[#allocation18 + $0x278] sm:$0xff]
        %v6406 = vld [vmem:[#allocation18 + $0x280] sm:$0xff]
        %v6407 = vld [vmem:[#allocation18 + $0x288] sm:$0xff]
        %v6408 = vld [vmem:[#allocation18 + $0x290] sm:$0xff]
        %v6409 = vld [vmem:[#allocation18 + $0x298] sm:$0xff]
        %v6410 = vld [vmem:[#allocation18 + $0x2a0] sm:$0xff]
        %v6411 = vld [vmem:[#allocation18 + $0x2a8] sm:$0xff]
        %v6412 = vld [vmem:[#allocation18 + $0x2b0] sm:$0xff]
        %v6413 = vld [vmem:[#allocation18 + $0x2b8] sm:$0xff]
        %v6414 = vld [vmem:[#allocation18 + $0x2c0] sm:$0xff]
        %v6415 = vld [vmem:[#allocation18 + $0x2c8] sm:$0xff]
        %v6416 = vld [vmem:[#allocation18 + $0x2d0] sm:$0xff]
        %v6417 = vld [vmem:[#allocation18 + $0x2d8] sm:$0xff]
        %v6418 = vld [vmem:[#allocation18 + $0x2e0] sm:$0xff]
        %v6419 = vld [vmem:[#allocation18 + $0x2e8] sm:$0xff]
        %v6420 = vld [vmem:[#allocation18 + $0x2f0] sm:$0xff]
        %v6421 = vld [vmem:[#allocation18 + $0x2f8] sm:$0xff]
        %v6422 = vld [vmem:[#allocation18 + $0x300] sm:$0xff]
        %v6423 = vld [vmem:[#allocation18 + $0x308] sm:$0xff]
        %v6424 = vld [vmem:[#allocation18 + $0x310] sm:$0xff]
        %v6425 = vld [vmem:[#allocation18 + $0x318] sm:$0xff]
        %v6426 = vld [vmem:[#allocation18 + $0x320] sm:$0xff]
        %v6427 = vld [vmem:[#allocation18 + $0x328] sm:$0xff]
        %v6428 = vld [vmem:[#allocation18 + $0x330] sm:$0xff]
        %v6429 = vld [vmem:[#allocation18 + $0x338] sm:$0xff]
        %v6430 = vld [vmem:[#allocation18 + $0x340] sm:$0xff]
        %v6431 = vld [vmem:[#allocation18 + $0x348] sm:$0xff]
        %v6432 = vld [vmem:[#allocation18 + $0x350] sm:$0xff]
        %v6433 = vld [vmem:[#allocation18 + $0x358] sm:$0xff]
        %v6434 = vld [vmem:[#allocation18 + $0x360] sm:$0xff]
        %v6435 = vld [vmem:[#allocation18 + $0x368] sm:$0xff]
        %v6436 = vld [vmem:[#allocation18 + $0x370] sm:$0xff]
        %v6437 = vld [vmem:[#allocation18 + $0x378] sm:$0xff]
        %v6438 = vld [vmem:[#allocation18 + $0x380] sm:$0xff]
        %v6439 = vld [vmem:[#allocation18 + $0x388] sm:$0xff]
        %v6440 = vld [vmem:[#allocation18 + $0x390] sm:$0xff]
        %v6441 = vld [vmem:[#allocation18 + $0x398] sm:$0xff]
        %v6442 = vld [vmem:[#allocation18 + $0x3a0] sm:$0xff]
        %v6443 = vld [vmem:[#allocation18 + $0x3a8] sm:$0xff]
        %v6444 = vld [vmem:[#allocation18 + $0x3b0] sm:$0xff]
        %v6445 = vld [vmem:[#allocation18 + $0x3b8] sm:$0xff]
        %v6446 = vld [vmem:[#allocation18 + $0x3c0] sm:$0xff]
        %v6447 = vld [vmem:[#allocation18 + $0x3c8] sm:$0xff]
        %v6448 = vld [vmem:[#allocation18 + $0x3d0] sm:$0xff]
        %v6449 = vld [vmem:[#allocation18 + $0x3d8] sm:$0xff]
        %v6450 = vld [vmem:[#allocation18 + $0x3e0] sm:$0xff]
        %v6451 = vld [vmem:[#allocation18 + $0x3e8] sm:$0xff]
        %v6452 = vld [vmem:[#allocation18 + $0x3f0] sm:$0xff]
        %v6453 = vld [vmem:[#allocation18 + $0x3f8] sm:$0xff]
        %v6454 = vld [vmem:[#allocation18 + $0x400] sm:$0xff]
        %v6455 = vld [vmem:[#allocation18 + $0x408] sm:$0xff]
        %v6456 = vld [vmem:[#allocation18 + $0x410] sm:$0xff]
        %v6457 = vld [vmem:[#allocation18 + $0x418] sm:$0xff]
        %v6458 = vld [vmem:[#allocation18 + $0x420] sm:$0xff]
        %v6459 = vld [vmem:[#allocation18 + $0x428] sm:$0xff]
        %v6460 = vld [vmem:[#allocation18 + $0x430] sm:$0xff]
        %v6461 = vld [vmem:[#allocation18 + $0x438] sm:$0xff]
        %v6462 = vld [vmem:[#allocation18 + $0x440] sm:$0xff]
        %v6463 = vld [vmem:[#allocation18 + $0x448] sm:$0xff]
        %v6464 = vld [vmem:[#allocation18 + $0x450] sm:$0xff]
        %v6465 = vld [vmem:[#allocation18 + $0x458] sm:$0xff]
        %v6466 = vld [vmem:[#allocation18 + $0x460] sm:$0xff]
        %v6467 = vld [vmem:[#allocation18 + $0x468] sm:$0xff]
        %v6468 = vld [vmem:[#allocation18 + $0x470] sm:$0xff]
        %v6469 = vld [vmem:[#allocation18 + $0x478] sm:$0xff]
        %v6470 = vld [vmem:[#allocation18 + $0x480] sm:$0xff]
        %v6471 = vld [vmem:[#allocation18 + $0x488] sm:$0xff]
        %v6472 = vld [vmem:[#allocation18 + $0x490] sm:$0xff]
        %v6473 = vld [vmem:[#allocation18 + $0x498] sm:$0xff]
        %v6474 = vld [vmem:[#allocation18 + $0x4a0] sm:$0xff]
        %v6475 = vld [vmem:[#allocation18 + $0x4a8] sm:$0xff]
        %v6476 = vld [vmem:[#allocation18 + $0x4b0] sm:$0xff]
        %v6477 = vld [vmem:[#allocation18 + $0x4b8] sm:$0xff]
        %v6478 = vld [vmem:[#allocation18 + $0x4c0] sm:$0xff]
        %v6479 = vld [vmem:[#allocation18 + $0x4c8] sm:$0xff]
        %v6480 = vld [vmem:[#allocation18 + $0x4d0] sm:$0xff]
        %v6481 = vld [vmem:[#allocation18 + $0x4d8] sm:$0xff]
        %v6482 = vld [vmem:[#allocation18 + $0x4e0] sm:$0xff]
        %v6483 = vld [vmem:[#allocation18 + $0x4e8] sm:$0xff]
        %v6484 = vld [vmem:[#allocation18 + $0x4f0] sm:$0xff]
        %v6485 = vld [vmem:[#allocation18 + $0x4f8] sm:$0xff]
        %v6486 = vld [vmem:[#allocation18 + $0x500] sm:$0xff]
        %v6487 = vld [vmem:[#allocation18 + $0x508] sm:$0xff]
        %v6488 = vld [vmem:[#allocation18 + $0x510] sm:$0xff]
        %v6489 = vld [vmem:[#allocation18 + $0x518] sm:$0xff]
        %v6490 = vld [vmem:[#allocation18 + $0x520] sm:$0xff]
        %v6491 = vld [vmem:[#allocation18 + $0x528] sm:$0xff]
        %v6492 = vld [vmem:[#allocation18 + $0x530] sm:$0xff]
        %v6493 = vld [vmem:[#allocation18 + $0x538] sm:$0xff]
        %v6494 = vld [vmem:[#allocation18 + $0x540] sm:$0xff]
        %v6495 = vld [vmem:[#allocation18 + $0x548] sm:$0xff]
        %v6496 = vld [vmem:[#allocation18 + $0x550] sm:$0xff]
        %v6497 = vld [vmem:[#allocation18 + $0x558] sm:$0xff]
        %v6498 = vld [vmem:[#allocation18 + $0x560] sm:$0xff]
        %v6499 = vld [vmem:[#allocation18 + $0x568] sm:$0xff]
        %v6500 = vld [vmem:[#allocation18 + $0x570] sm:$0xff]
        %v6501 = vld [vmem:[#allocation18 + $0x578] sm:$0xff]
        %v6502 = vld [vmem:[#allocation18 + $0x580] sm:$0xff]
        %v6503 = vld [vmem:[#allocation18 + $0x588] sm:$0xff]
        %v6504 = vld [vmem:[#allocation18 + $0x590] sm:$0xff]
        %v6505 = vld [vmem:[#allocation18 + $0x598] sm:$0xff]
        %v6506 = vld [vmem:[#allocation18 + $0x5a0] sm:$0xff]
        %v6507 = vld [vmem:[#allocation18 + $0x5a8] sm:$0xff]
        %v6508 = vld [vmem:[#allocation18 + $0x5b0] sm:$0xff]
        %v6509 = vld [vmem:[#allocation18 + $0x5b8] sm:$0xff]
        %v6510 = vld [vmem:[#allocation18 + $0x5c0] sm:$0xff]
        %v6511 = vld [vmem:[#allocation18 + $0x5c8] sm:$0xff]
        %v6512 = vld [vmem:[#allocation18 + $0x5d0] sm:$0xff]
        %v6513 = vld [vmem:[#allocation18 + $0x5d8] sm:$0xff]
        %v6514 = vld [vmem:[#allocation18 + $0x5e0] sm:$0xff]
        %v6515 = vld [vmem:[#allocation18 + $0x5e8] sm:$0xff]
        %v6516 = vld [vmem:[#allocation18 + $0x5f0] sm:$0xff]
        %v6517 = vld [vmem:[#allocation18 + $0x5f8] sm:$0xff]
        %v6518 = vld [vmem:[#allocation18 + $0x600] sm:$0xff]
        %v6519 = vld [vmem:[#allocation18 + $0x608] sm:$0xff]
        %v6520 = vld [vmem:[#allocation18 + $0x610] sm:$0xff]
        %v6521 = vld [vmem:[#allocation18 + $0x618] sm:$0xff]
        %v6522 = vld [vmem:[#allocation18 + $0x620] sm:$0xff]
        %v6523 = vld [vmem:[#allocation18 + $0x628] sm:$0xff]
        %v6524 = vld [vmem:[#allocation18 + $0x630] sm:$0xff]
        %v6525 = vld [vmem:[#allocation18 + $0x638] sm:$0xff]
        %v6526 = vld [vmem:[#allocation18 + $0x640] sm:$0xff]
        %v6527 = vld [vmem:[#allocation18 + $0x648] sm:$0xff]
        %v6528 = vld [vmem:[#allocation18 + $0x650] sm:$0xff]
        %v6529 = vld [vmem:[#allocation18 + $0x658] sm:$0xff]
        %v6530 = vld [vmem:[#allocation18 + $0x660] sm:$0xff]
        %v6531 = vld [vmem:[#allocation18 + $0x668] sm:$0xff]
        %v6532 = vld [vmem:[#allocation18 + $0x670] sm:$0xff]
        %v6533 = vld [vmem:[#allocation18 + $0x678] sm:$0xff]
        %v6534 = vld [vmem:[#allocation18 + $0x680] sm:$0xff]
        %v6535 = vld [vmem:[#allocation18 + $0x688] sm:$0xff]
        %v6536 = vld [vmem:[#allocation18 + $0x690] sm:$0xff]
        %v6537 = vld [vmem:[#allocation18 + $0x698] sm:$0xff]
        %v6538 = vld [vmem:[#allocation18 + $0x6a0] sm:$0xff]
        %v6539 = vld [vmem:[#allocation18 + $0x6a8] sm:$0xff]
        %v6540 = vld [vmem:[#allocation18 + $0x6b0] sm:$0xff]
        %v6541 = vld [vmem:[#allocation18 + $0x6b8] sm:$0xff]
        %v6542 = vld [vmem:[#allocation18 + $0x6c0] sm:$0xff]
        %v6543 = vld [vmem:[#allocation18 + $0x6c8] sm:$0xff]
        %v6544 = vld [vmem:[#allocation18 + $0x6d0] sm:$0xff]
        %v6545 = vld [vmem:[#allocation18 + $0x6d8] sm:$0xff]
        %v6546 = vld [vmem:[#allocation18 + $0x6e0] sm:$0xff]
        %v6547 = vld [vmem:[#allocation18 + $0x6e8] sm:$0xff]
        %v6548 = vld [vmem:[#allocation18 + $0x6f0] sm:$0xff]
        %v6549 = vld [vmem:[#allocation18 + $0x6f8] sm:$0xff]
        %v6550 = vld [vmem:[#allocation18 + $0x700] sm:$0xff]
        %v6551 = vld [vmem:[#allocation18 + $0x708] sm:$0xff]
        %v6552 = vld [vmem:[#allocation18 + $0x710] sm:$0xff]
        %v6553 = vld [vmem:[#allocation18 + $0x718] sm:$0xff]
        %v6554 = vld [vmem:[#allocation18 + $0x720] sm:$0xff]
        %v6555 = vld [vmem:[#allocation18 + $0x728] sm:$0xff]
        %v6556 = vld [vmem:[#allocation18 + $0x730] sm:$0xff]
        %v6557 = vld [vmem:[#allocation18 + $0x738] sm:$0xff]
        %v6558 = vld [vmem:[#allocation18 + $0x740] sm:$0xff]
        %v6559 = vld [vmem:[#allocation18 + $0x748] sm:$0xff]
        %v6560 = vld [vmem:[#allocation18 + $0x750] sm:$0xff]
        %v6561 = vld [vmem:[#allocation18 + $0x758] sm:$0xff]
        %v6562 = vld [vmem:[#allocation18 + $0x760] sm:$0xff]
        %v6563 = vld [vmem:[#allocation18 + $0x768] sm:$0xff]
        %v6564 = vld [vmem:[#allocation18 + $0x770] sm:$0xff]
        %v6565 = vld [vmem:[#allocation18 + $0x778] sm:$0xff]
        %v6566 = vld [vmem:[#allocation18 + $0x780] sm:$0xff]
        %v6567 = vld [vmem:[#allocation18 + $0x788] sm:$0xff]
        %v6568 = vld [vmem:[#allocation18 + $0x790] sm:$0xff]
        %v6569 = vld [vmem:[#allocation18 + $0x798] sm:$0xff]
        %v6570 = vld [vmem:[#allocation18 + $0x7a0] sm:$0xff]
        %v6571 = vld [vmem:[#allocation18 + $0x7a8] sm:$0xff]
        %v6572 = vld [vmem:[#allocation18 + $0x7b0] sm:$0xff]
        %v6573 = vld [vmem:[#allocation18 + $0x7b8] sm:$0xff]
        %v6574 = vld [vmem:[#allocation18 + $0x7c0] sm:$0xff]
        %v6575 = vld [vmem:[#allocation18 + $0x7c8] sm:$0xff]
        %v6576 = vld [vmem:[#allocation18 + $0x7d0] sm:$0xff]
        %v6577 = vld [vmem:[#allocation18 + $0x7d8] sm:$0xff]
        %v6578 = vld [vmem:[#allocation18 + $0x7e0] sm:$0xff]
        %v6579 = vld [vmem:[#allocation18 + $0x7e8] sm:$0xff]
        %v6580 = vld [vmem:[#allocation18 + $0x7f0] sm:$0xff]
        %v6581 = vld [vmem:[#allocation18 + $0x7f8] sm:$0xff]
        %v6582 = vld [vmem:[%s16] sm:$0x3]
        %v6584 = vlaneseq
        %v6585 = vshrl.u32 %v6584, 7
        %v6586 = vsub.s32 0, %v6585
        %v6587 = vrot.slane %v6582, %v6586
        %v6588 = vlaneseq
        %v6589 = vshrl.u32 %v6588, 7
        %v6590 = vsub.s32 1, %v6589
        %v6591 = vrot.slane %v6582, %v6590
        %v6850 = vunpack.c.l.b16 %v6326
        %v6851 = vunpack.c.h.b16 %v6326
        %v6852 = vunpack.c.l.b16 %v6327
        %v6853 = vunpack.c.h.b16 %v6327
        %v6854 = vunpack.c.l.b16 %v6328
        %v6855 = vunpack.c.h.b16 %v6328
        %v6856 = vunpack.c.l.b16 %v6329
        %v6857 = vunpack.c.h.b16 %v6329
        %v6858 = vunpack.c.l.b16 %v6330
        %v6859 = vunpack.c.h.b16 %v6330
        %v6860 = vunpack.c.l.b16 %v6331
        %v6861 = vunpack.c.h.b16 %v6331
        %v6862 = vunpack.c.l.b16 %v6332
        %v6863 = vunpack.c.h.b16 %v6332
        %v6864 = vunpack.c.l.b16 %v6333
        %v6865 = vunpack.c.h.b16 %v6333
        %v6866 = vunpack.c.l.b16 %v6334
        %v6867 = vunpack.c.h.b16 %v6334
        %v6868 = vunpack.c.l.b16 %v6335
        %v6869 = vunpack.c.h.b16 %v6335
        %v6870 = vunpack.c.l.b16 %v6336
        %v6871 = vunpack.c.h.b16 %v6336
        %v6872 = vunpack.c.l.b16 %v6337
        %v6873 = vunpack.c.h.b16 %v6337
        %v6874 = vunpack.c.l.b16 %v6338
        %v6875 = vunpack.c.h.b16 %v6338
        %v6876 = vunpack.c.l.b16 %v6339
        %v6877 = vunpack.c.h.b16 %v6339
        %v6878 = vunpack.c.l.b16 %v6340
        %v6879 = vunpack.c.h.b16 %v6340
        %v6880 = vunpack.c.l.b16 %v6341
        %v6881 = vunpack.c.h.b16 %v6341
        %v6882 = vunpack.c.l.b16 %v6342
        %v6883 = vunpack.c.h.b16 %v6342
        %v6884 = vunpack.c.l.b16 %v6343
        %v6885 = vunpack.c.h.b16 %v6343
        %v6886 = vunpack.c.l.b16 %v6344
        %v6887 = vunpack.c.h.b16 %v6344
        %v6888 = vunpack.c.l.b16 %v6345
        %v6889 = vunpack.c.h.b16 %v6345
        %v6890 = vunpack.c.l.b16 %v6346
        %v6891 = vunpack.c.h.b16 %v6346
        %v6892 = vunpack.c.l.b16 %v6347
        %v6893 = vunpack.c.h.b16 %v6347
        %v6894 = vunpack.c.l.b16 %v6348
        %v6895 = vunpack.c.h.b16 %v6348
        %v6896 = vunpack.c.l.b16 %v6349
        %v6897 = vunpack.c.h.b16 %v6349
        %v6898 = vunpack.c.l.b16 %v6350
        %v6899 = vunpack.c.h.b16 %v6350
        %v6900 = vunpack.c.l.b16 %v6351
        %v6901 = vunpack.c.h.b16 %v6351
        %v6902 = vunpack.c.l.b16 %v6352
        %v6903 = vunpack.c.h.b16 %v6352
        %v6904 = vunpack.c.l.b16 %v6353
        %v6905 = vunpack.c.h.b16 %v6353
        %v6906 = vunpack.c.l.b16 %v6354
        %v6907 = vunpack.c.h.b16 %v6354
        %v6908 = vunpack.c.l.b16 %v6355
        %v6909 = vunpack.c.h.b16 %v6355
        %v6910 = vunpack.c.l.b16 %v6356
        %v6911 = vunpack.c.h.b16 %v6356
        %v6912 = vunpack.c.l.b16 %v6357
        %v6913 = vunpack.c.h.b16 %v6357
        %v6914 = vunpack.c.l.b16 %v6358
        %v6915 = vunpack.c.h.b16 %v6358
        %v6916 = vunpack.c.l.b16 %v6359
        %v6917 = vunpack.c.h.b16 %v6359
        %v6918 = vunpack.c.l.b16 %v6360
        %v6919 = vunpack.c.h.b16 %v6360
        %v6920 = vunpack.c.l.b16 %v6361
        %v6921 = vunpack.c.h.b16 %v6361
        %v6922 = vunpack.c.l.b16 %v6362
        %v6923 = vunpack.c.h.b16 %v6362
        %v6924 = vunpack.c.l.b16 %v6363
        %v6925 = vunpack.c.h.b16 %v6363
        %v6926 = vunpack.c.l.b16 %v6364
        %v6927 = vunpack.c.h.b16 %v6364
        %v6928 = vunpack.c.l.b16 %v6365
        %v6929 = vunpack.c.h.b16 %v6365
        %v6930 = vunpack.c.l.b16 %v6366
        %v6931 = vunpack.c.h.b16 %v6366
        %v6932 = vunpack.c.l.b16 %v6367
        %v6933 = vunpack.c.h.b16 %v6367
        %v6934 = vunpack.c.l.b16 %v6368
        %v6935 = vunpack.c.h.b16 %v6368
        %v6936 = vunpack.c.l.b16 %v6369
        %v6937 = vunpack.c.h.b16 %v6369
        %v6938 = vunpack.c.l.b16 %v6370
        %v6939 = vunpack.c.h.b16 %v6370
        %v6940 = vunpack.c.l.b16 %v6371
        %v6941 = vunpack.c.h.b16 %v6371
        %v6942 = vunpack.c.l.b16 %v6372
        %v6943 = vunpack.c.h.b16 %v6372
        %v6944 = vunpack.c.l.b16 %v6373
        %v6945 = vunpack.c.h.b16 %v6373
        %v6946 = vunpack.c.l.b16 %v6374
        %v6947 = vunpack.c.h.b16 %v6374
        %v6948 = vunpack.c.l.b16 %v6375
        %v6949 = vunpack.c.h.b16 %v6375
        %v6950 = vunpack.c.l.b16 %v6376
        %v6951 = vunpack.c.h.b16 %v6376
        %v6952 = vunpack.c.l.b16 %v6377
        %v6953 = vunpack.c.h.b16 %v6377
        %v6954 = vunpack.c.l.b16 %v6378
        %v6955 = vunpack.c.h.b16 %v6378
        %v6956 = vunpack.c.l.b16 %v6379
        %v6957 = vunpack.c.h.b16 %v6379
        %v6958 = vunpack.c.l.b16 %v6380
        %v6959 = vunpack.c.h.b16 %v6380
        %v6960 = vunpack.c.l.b16 %v6381
        %v6961 = vunpack.c.h.b16 %v6381
        %v6962 = vunpack.c.l.b16 %v6382
        %v6963 = vunpack.c.h.b16 %v6382
        %v6964 = vunpack.c.l.b16 %v6383
        %v6965 = vunpack.c.h.b16 %v6383
        %v6966 = vunpack.c.l.b16 %v6384
        %v6967 = vunpack.c.h.b16 %v6384
        %v6968 = vunpack.c.l.b16 %v6385
        %v6969 = vunpack.c.h.b16 %v6385
        %v6970 = vunpack.c.l.b16 %v6386
        %v6971 = vunpack.c.h.b16 %v6386
        %v6972 = vunpack.c.l.b16 %v6387
        %v6973 = vunpack.c.h.b16 %v6387
        %v6974 = vunpack.c.l.b16 %v6388
        %v6975 = vunpack.c.h.b16 %v6388
        %v6976 = vunpack.c.l.b16 %v6389
        %v6977 = vunpack.c.h.b16 %v6389
        %v6978 = vunpack.c.l.b16 %v6390
        %v6979 = vunpack.c.h.b16 %v6390
        %v6980 = vunpack.c.l.b16 %v6391
        %v6981 = vunpack.c.h.b16 %v6391
        %v6982 = vunpack.c.l.b16 %v6392
        %v6983 = vunpack.c.h.b16 %v6392
        %v6984 = vunpack.c.l.b16 %v6393
        %v6985 = vunpack.c.h.b16 %v6393
        %v6986 = vunpack.c.l.b16 %v6394
        %v6987 = vunpack.c.h.b16 %v6394
        %v6988 = vunpack.c.l.b16 %v6395
        %v6989 = vunpack.c.h.b16 %v6395
        %v6990 = vunpack.c.l.b16 %v6396
        %v6991 = vunpack.c.h.b16 %v6396
        %v6992 = vunpack.c.l.b16 %v6397
        %v6993 = vunpack.c.h.b16 %v6397
        %v6994 = vunpack.c.l.b16 %v6398
        %v6995 = vunpack.c.h.b16 %v6398
        %v6996 = vunpack.c.l.b16 %v6399
        %v6997 = vunpack.c.h.b16 %v6399
        %v6998 = vunpack.c.l.b16 %v6400
        %v6999 = vunpack.c.h.b16 %v6400
        %v7000 = vunpack.c.l.b16 %v6401
        %v7001 = vunpack.c.h.b16 %v6401
        %v7002 = vunpack.c.l.b16 %v6402
        %v7003 = vunpack.c.h.b16 %v6402
        %v7004 = vunpack.c.l.b16 %v6403
        %v7005 = vunpack.c.h.b16 %v6403
        %v7006 = vunpack.c.l.b16 %v6404
        %v7007 = vunpack.c.h.b16 %v6404
        %v7008 = vunpack.c.l.b16 %v6405
        %v7009 = vunpack.c.h.b16 %v6405
        %v7010 = vunpack.c.l.b16 %v6406
        %v7011 = vunpack.c.h.b16 %v6406
        %v7012 = vunpack.c.l.b16 %v6407
        %v7013 = vunpack.c.h.b16 %v6407
        %v7014 = vunpack.c.l.b16 %v6408
        %v7015 = vunpack.c.h.b16 %v6408
        %v7016 = vunpack.c.l.b16 %v6409
        %v7017 = vunpack.c.h.b16 %v6409
        %v7018 = vunpack.c.l.b16 %v6410
        %v7019 = vunpack.c.h.b16 %v6410
        %v7020 = vunpack.c.l.b16 %v6411
        %v7021 = vunpack.c.h.b16 %v6411
        %v7022 = vunpack.c.l.b16 %v6412
        %v7023 = vunpack.c.h.b16 %v6412
        %v7024 = vunpack.c.l.b16 %v6413
        %v7025 = vunpack.c.h.b16 %v6413
        %v7026 = vunpack.c.l.b16 %v6414
        %v7027 = vunpack.c.h.b16 %v6414
        %v7028 = vunpack.c.l.b16 %v6415
        %v7029 = vunpack.c.h.b16 %v6415
        %v7030 = vunpack.c.l.b16 %v6416
        %v7031 = vunpack.c.h.b16 %v6416
        %v7032 = vunpack.c.l.b16 %v6417
        %v7033 = vunpack.c.h.b16 %v6417
        %v7034 = vunpack.c.l.b16 %v6418
        %v7035 = vunpack.c.h.b16 %v6418
        %v7036 = vunpack.c.l.b16 %v6419
        %v7037 = vunpack.c.h.b16 %v6419
        %v7038 = vunpack.c.l.b16 %v6420
        %v7039 = vunpack.c.h.b16 %v6420
        %v7040 = vunpack.c.l.b16 %v6421
        %v7041 = vunpack.c.h.b16 %v6421
        %v7042 = vunpack.c.l.b16 %v6422
        %v7043 = vunpack.c.h.b16 %v6422
        %v7044 = vunpack.c.l.b16 %v6423
        %v7045 = vunpack.c.h.b16 %v6423
        %v7046 = vunpack.c.l.b16 %v6424
        %v7047 = vunpack.c.h.b16 %v6424
        %v7048 = vunpack.c.l.b16 %v6425
        %v7049 = vunpack.c.h.b16 %v6425
        %v7050 = vunpack.c.l.b16 %v6426
        %v7051 = vunpack.c.h.b16 %v6426
        %v7052 = vunpack.c.l.b16 %v6427
        %v7053 = vunpack.c.h.b16 %v6427
        %v7054 = vunpack.c.l.b16 %v6428
        %v7055 = vunpack.c.h.b16 %v6428
        %v7056 = vunpack.c.l.b16 %v6429
        %v7057 = vunpack.c.h.b16 %v6429
        %v7058 = vunpack.c.l.b16 %v6430
        %v7059 = vunpack.c.h.b16 %v6430
        %v7060 = vunpack.c.l.b16 %v6431
        %v7061 = vunpack.c.h.b16 %v6431
        %v7062 = vunpack.c.l.b16 %v6432
        %v7063 = vunpack.c.h.b16 %v6432
        %v7064 = vunpack.c.l.b16 %v6433
        %v7065 = vunpack.c.h.b16 %v6433
        %v7066 = vunpack.c.l.b16 %v6434
        %v7067 = vunpack.c.h.b16 %v6434
        %v7068 = vunpack.c.l.b16 %v6435
        %v7069 = vunpack.c.h.b16 %v6435
        %v7070 = vunpack.c.l.b16 %v6436
        %v7071 = vunpack.c.h.b16 %v6436
        %v7072 = vunpack.c.l.b16 %v6437
        %v7073 = vunpack.c.h.b16 %v6437
        %v7074 = vunpack.c.l.b16 %v6438
        %v7075 = vunpack.c.h.b16 %v6438
        %v7076 = vunpack.c.l.b16 %v6439
        %v7077 = vunpack.c.h.b16 %v6439
        %v7078 = vunpack.c.l.b16 %v6440
        %v7079 = vunpack.c.h.b16 %v6440
        %v7080 = vunpack.c.l.b16 %v6441
        %v7081 = vunpack.c.h.b16 %v6441
        %v7082 = vunpack.c.l.b16 %v6442
        %v7083 = vunpack.c.h.b16 %v6442
        %v7084 = vunpack.c.l.b16 %v6443
        %v7085 = vunpack.c.h.b16 %v6443
        %v7086 = vunpack.c.l.b16 %v6444
        %v7087 = vunpack.c.h.b16 %v6444
        %v7088 = vunpack.c.l.b16 %v6445
        %v7089 = vunpack.c.h.b16 %v6445
        %v7090 = vunpack.c.l.b16 %v6446
        %v7091 = vunpack.c.h.b16 %v6446
        %v7092 = vunpack.c.l.b16 %v6447
        %v7093 = vunpack.c.h.b16 %v6447
        %v7094 = vunpack.c.l.b16 %v6448
        %v7095 = vunpack.c.h.b16 %v6448
        %v7096 = vunpack.c.l.b16 %v6449
        %v7097 = vunpack.c.h.b16 %v6449
        %v7098 = vunpack.c.l.b16 %v6450
        %v7099 = vunpack.c.h.b16 %v6450
        %v7100 = vunpack.c.l.b16 %v6451
        %v7101 = vunpack.c.h.b16 %v6451
        %v7102 = vunpack.c.l.b16 %v6452
        %v7103 = vunpack.c.h.b16 %v6452
        %v7104 = vunpack.c.l.b16 %v6453
        %v7105 = vunpack.c.h.b16 %v6453
        %v7106 = vunpack.c.l.b16 %v6454
        %v7107 = vunpack.c.h.b16 %v6454
        %v7108 = vunpack.c.l.b16 %v6455
        %v7109 = vunpack.c.h.b16 %v6455
        %v7110 = vunpack.c.l.b16 %v6456
        %v7111 = vunpack.c.h.b16 %v6456
        %v7112 = vunpack.c.l.b16 %v6457
        %v7113 = vunpack.c.h.b16 %v6457
        %v7114 = vunpack.c.l.b16 %v6458
        %v7115 = vunpack.c.h.b16 %v6458
        %v7116 = vunpack.c.l.b16 %v6459
        %v7117 = vunpack.c.h.b16 %v6459
        %v7118 = vunpack.c.l.b16 %v6460
        %v7119 = vunpack.c.h.b16 %v6460
        %v7120 = vunpack.c.l.b16 %v6461
        %v7121 = vunpack.c.h.b16 %v6461
        %v7122 = vunpack.c.l.b16 %v6462
        %v7123 = vunpack.c.h.b16 %v6462
        %v7124 = vunpack.c.l.b16 %v6463
        %v7125 = vunpack.c.h.b16 %v6463
        %v7126 = vunpack.c.l.b16 %v6464
        %v7127 = vunpack.c.h.b16 %v6464
        %v7128 = vunpack.c.l.b16 %v6465
        %v7129 = vunpack.c.h.b16 %v6465
        %v7130 = vunpack.c.l.b16 %v6466
        %v7131 = vunpack.c.h.b16 %v6466
        %v7132 = vunpack.c.l.b16 %v6467
        %v7133 = vunpack.c.h.b16 %v6467
        %v7134 = vunpack.c.l.b16 %v6468
        %v7135 = vunpack.c.h.b16 %v6468
        %v7136 = vunpack.c.l.b16 %v6469
        %v7137 = vunpack.c.h.b16 %v6469
        %v7138 = vunpack.c.l.b16 %v6470
        %v7139 = vunpack.c.h.b16 %v6470
        %v7140 = vunpack.c.l.b16 %v6471
        %v7141 = vunpack.c.h.b16 %v6471
        %v7142 = vunpack.c.l.b16 %v6472
        %v7143 = vunpack.c.h.b16 %v6472
        %v7144 = vunpack.c.l.b16 %v6473
        %v7145 = vunpack.c.h.b16 %v6473
        %v7146 = vunpack.c.l.b16 %v6474
        %v7147 = vunpack.c.h.b16 %v6474
        %v7148 = vunpack.c.l.b16 %v6475
        %v7149 = vunpack.c.h.b16 %v6475
        %v7150 = vunpack.c.l.b16 %v6476
        %v7151 = vunpack.c.h.b16 %v6476
        %v7152 = vunpack.c.l.b16 %v6477
        %v7153 = vunpack.c.h.b16 %v6477
        %v7154 = vunpack.c.l.b16 %v6478
        %v7155 = vunpack.c.h.b16 %v6478
        %v7156 = vunpack.c.l.b16 %v6479
        %v7157 = vunpack.c.h.b16 %v6479
        %v7158 = vunpack.c.l.b16 %v6480
        %v7159 = vunpack.c.h.b16 %v6480
        %v7160 = vunpack.c.l.b16 %v6481
        %v7161 = vunpack.c.h.b16 %v6481
        %v7162 = vunpack.c.l.b16 %v6482
        %v7163 = vunpack.c.h.b16 %v6482
        %v7164 = vunpack.c.l.b16 %v6483
        %v7165 = vunpack.c.h.b16 %v6483
        %v7166 = vunpack.c.l.b16 %v6484
        %v7167 = vunpack.c.h.b16 %v6484
        %v7168 = vunpack.c.l.b16 %v6485
        %v7169 = vunpack.c.h.b16 %v6485
        %v7170 = vunpack.c.l.b16 %v6486
        %v7171 = vunpack.c.h.b16 %v6486
        %v7172 = vunpack.c.l.b16 %v6487
        %v7173 = vunpack.c.h.b16 %v6487
        %v7174 = vunpack.c.l.b16 %v6488
        %v7175 = vunpack.c.h.b16 %v6488
        %v7176 = vunpack.c.l.b16 %v6489
        %v7177 = vunpack.c.h.b16 %v6489
        %v7178 = vunpack.c.l.b16 %v6490
        %v7179 = vunpack.c.h.b16 %v6490
        %v7180 = vunpack.c.l.b16 %v6491
        %v7181 = vunpack.c.h.b16 %v6491
        %v7182 = vunpack.c.l.b16 %v6492
        %v7183 = vunpack.c.h.b16 %v6492
        %v7184 = vunpack.c.l.b16 %v6493
        %v7185 = vunpack.c.h.b16 %v6493
        %v7186 = vunpack.c.l.b16 %v6494
        %v7187 = vunpack.c.h.b16 %v6494
        %v7188 = vunpack.c.l.b16 %v6495
        %v7189 = vunpack.c.h.b16 %v6495
        %v7190 = vunpack.c.l.b16 %v6496
        %v7191 = vunpack.c.h.b16 %v6496
        %v7192 = vunpack.c.l.b16 %v6497
        %v7193 = vunpack.c.h.b16 %v6497
        %v7194 = vunpack.c.l.b16 %v6498
        %v7195 = vunpack.c.h.b16 %v6498
        %v7196 = vunpack.c.l.b16 %v6499
        %v7197 = vunpack.c.h.b16 %v6499
        %v7198 = vunpack.c.l.b16 %v6500
        %v7199 = vunpack.c.h.b16 %v6500
        %v7200 = vunpack.c.l.b16 %v6501
        %v7201 = vunpack.c.h.b16 %v6501
        %v7202 = vunpack.c.l.b16 %v6502
        %v7203 = vunpack.c.h.b16 %v6502
        %v7204 = vunpack.c.l.b16 %v6503
        %v7205 = vunpack.c.h.b16 %v6503
        %v7206 = vunpack.c.l.b16 %v6504
        %v7207 = vunpack.c.h.b16 %v6504
        %v7208 = vunpack.c.l.b16 %v6505
        %v7209 = vunpack.c.h.b16 %v6505
        %v7210 = vunpack.c.l.b16 %v6506
        %v7211 = vunpack.c.h.b16 %v6506
        %v7212 = vunpack.c.l.b16 %v6507
        %v7213 = vunpack.c.h.b16 %v6507
        %v7214 = vunpack.c.l.b16 %v6508
        %v7215 = vunpack.c.h.b16 %v6508
        %v7216 = vunpack.c.l.b16 %v6509
        %v7217 = vunpack.c.h.b16 %v6509
        %v7218 = vunpack.c.l.b16 %v6510
        %v7219 = vunpack.c.h.b16 %v6510
        %v7220 = vunpack.c.l.b16 %v6511
        %v7221 = vunpack.c.h.b16 %v6511
        %v7222 = vunpack.c.l.b16 %v6512
        %v7223 = vunpack.c.h.b16 %v6512
        %v7224 = vunpack.c.l.b16 %v6513
        %v7225 = vunpack.c.h.b16 %v6513
        %v7226 = vunpack.c.l.b16 %v6514
        %v7227 = vunpack.c.h.b16 %v6514
        %v7228 = vunpack.c.l.b16 %v6515
        %v7229 = vunpack.c.h.b16 %v6515
        %v7230 = vunpack.c.l.b16 %v6516
        %v7231 = vunpack.c.h.b16 %v6516
        %v7232 = vunpack.c.l.b16 %v6517
        %v7233 = vunpack.c.h.b16 %v6517
        %v7234 = vunpack.c.l.b16 %v6518
        %v7235 = vunpack.c.h.b16 %v6518
        %v7236 = vunpack.c.l.b16 %v6519
        %v7237 = vunpack.c.h.b16 %v6519
        %v7238 = vunpack.c.l.b16 %v6520
        %v7239 = vunpack.c.h.b16 %v6520
        %v7240 = vunpack.c.l.b16 %v6521
        %v7241 = vunpack.c.h.b16 %v6521
        %v7242 = vunpack.c.l.b16 %v6522
        %v7243 = vunpack.c.h.b16 %v6522
        %v7244 = vunpack.c.l.b16 %v6523
        %v7245 = vunpack.c.h.b16 %v6523
        %v7246 = vunpack.c.l.b16 %v6524
        %v7247 = vunpack.c.h.b16 %v6524
        %v7248 = vunpack.c.l.b16 %v6525
        %v7249 = vunpack.c.h.b16 %v6525
        %v7250 = vunpack.c.l.b16 %v6526
        %v7251 = vunpack.c.h.b16 %v6526
        %v7252 = vunpack.c.l.b16 %v6527
        %v7253 = vunpack.c.h.b16 %v6527
        %v7254 = vunpack.c.l.b16 %v6528
        %v7255 = vunpack.c.h.b16 %v6528
        %v7256 = vunpack.c.l.b16 %v6529
        %v7257 = vunpack.c.h.b16 %v6529
        %v7258 = vunpack.c.l.b16 %v6530
        %v7259 = vunpack.c.h.b16 %v6530
        %v7260 = vunpack.c.l.b16 %v6531
        %v7261 = vunpack.c.h.b16 %v6531
        %v7262 = vunpack.c.l.b16 %v6532
        %v7263 = vunpack.c.h.b16 %v6532
        %v7264 = vunpack.c.l.b16 %v6533
        %v7265 = vunpack.c.h.b16 %v6533
        %v7266 = vunpack.c.l.b16 %v6534
        %v7267 = vunpack.c.h.b16 %v6534
        %v7268 = vunpack.c.l.b16 %v6535
        %v7269 = vunpack.c.h.b16 %v6535
        %v7270 = vunpack.c.l.b16 %v6536
        %v7271 = vunpack.c.h.b16 %v6536
        %v7272 = vunpack.c.l.b16 %v6537
        %v7273 = vunpack.c.h.b16 %v6537
        %v7274 = vunpack.c.l.b16 %v6538
        %v7275 = vunpack.c.h.b16 %v6538
        %v7276 = vunpack.c.l.b16 %v6539
        %v7277 = vunpack.c.h.b16 %v6539
        %v7278 = vunpack.c.l.b16 %v6540
        %v7279 = vunpack.c.h.b16 %v6540
        %v7280 = vunpack.c.l.b16 %v6541
        %v7281 = vunpack.c.h.b16 %v6541
        %v7282 = vunpack.c.l.b16 %v6542
        %v7283 = vunpack.c.h.b16 %v6542
        %v7284 = vunpack.c.l.b16 %v6543
        %v7285 = vunpack.c.h.b16 %v6543
        %v7286 = vunpack.c.l.b16 %v6544
        %v7287 = vunpack.c.h.b16 %v6544
        %v7288 = vunpack.c.l.b16 %v6545
        %v7289 = vunpack.c.h.b16 %v6545
        %v7290 = vunpack.c.l.b16 %v6546
        %v7291 = vunpack.c.h.b16 %v6546
        %v7292 = vunpack.c.l.b16 %v6547
        %v7293 = vunpack.c.h.b16 %v6547
        %v7294 = vunpack.c.l.b16 %v6548
        %v7295 = vunpack.c.h.b16 %v6548
        %v7296 = vunpack.c.l.b16 %v6549
        %v7297 = vunpack.c.h.b16 %v6549
        %v7298 = vunpack.c.l.b16 %v6550
        %v7299 = vunpack.c.h.b16 %v6550
        %v7300 = vunpack.c.l.b16 %v6551
        %v7301 = vunpack.c.h.b16 %v6551
        %v7302 = vunpack.c.l.b16 %v6552
        %v7303 = vunpack.c.h.b16 %v6552
        %v7304 = vunpack.c.l.b16 %v6553
        %v7305 = vunpack.c.h.b16 %v6553
        %v7306 = vunpack.c.l.b16 %v6554
        %v7307 = vunpack.c.h.b16 %v6554
        %v7308 = vunpack.c.l.b16 %v6555
        %v7309 = vunpack.c.h.b16 %v6555
        %v7310 = vunpack.c.l.b16 %v6556
        %v7311 = vunpack.c.h.b16 %v6556
        %v7312 = vunpack.c.l.b16 %v6557
        %v7313 = vunpack.c.h.b16 %v6557
        %v7314 = vunpack.c.l.b16 %v6558
        %v7315 = vunpack.c.h.b16 %v6558
        %v7316 = vunpack.c.l.b16 %v6559
        %v7317 = vunpack.c.h.b16 %v6559
        %v7318 = vunpack.c.l.b16 %v6560
        %v7319 = vunpack.c.h.b16 %v6560
        %v7320 = vunpack.c.l.b16 %v6561
        %v7321 = vunpack.c.h.b16 %v6561
        %v7322 = vunpack.c.l.b16 %v6562
        %v7323 = vunpack.c.h.b16 %v6562
        %v7324 = vunpack.c.l.b16 %v6563
        %v7325 = vunpack.c.h.b16 %v6563
        %v7326 = vunpack.c.l.b16 %v6564
        %v7327 = vunpack.c.h.b16 %v6564
        %v7328 = vunpack.c.l.b16 %v6565
        %v7329 = vunpack.c.h.b16 %v6565
        %v7330 = vunpack.c.l.b16 %v6566
        %v7331 = vunpack.c.h.b16 %v6566
        %v7332 = vunpack.c.l.b16 %v6567
        %v7333 = vunpack.c.h.b16 %v6567
        %v7334 = vunpack.c.l.b16 %v6568
        %v7335 = vunpack.c.h.b16 %v6568
        %v7336 = vunpack.c.l.b16 %v6569
        %v7337 = vunpack.c.h.b16 %v6569
        %v7338 = vunpack.c.l.b16 %v6570
        %v7339 = vunpack.c.h.b16 %v6570
        %v7340 = vunpack.c.l.b16 %v6571
        %v7341 = vunpack.c.h.b16 %v6571
        %v7342 = vunpack.c.l.b16 %v6572
        %v7343 = vunpack.c.h.b16 %v6572
        %v7344 = vunpack.c.l.b16 %v6573
        %v7345 = vunpack.c.h.b16 %v6573
        %v7346 = vunpack.c.l.b16 %v6574
        %v7347 = vunpack.c.h.b16 %v6574
        %v7348 = vunpack.c.l.b16 %v6575
        %v7349 = vunpack.c.h.b16 %v6575
        %v7350 = vunpack.c.l.b16 %v6576
        %v7351 = vunpack.c.h.b16 %v6576
        %v7352 = vunpack.c.l.b16 %v6577
        %v7353 = vunpack.c.h.b16 %v6577
        %v7354 = vunpack.c.l.b16 %v6578
        %v7355 = vunpack.c.h.b16 %v6578
        %v7356 = vunpack.c.l.b16 %v6579
        %v7357 = vunpack.c.h.b16 %v6579
        %v7358 = vunpack.c.l.b16 %v6580
        %v7359 = vunpack.c.h.b16 %v6580
        %v7360 = vunpack.c.l.b16 %v6581
        %v7361 = vunpack.c.h.b16 %v6581
        %v7362 = vpack.c.b16 %v6852, %v6850
        %v7363 = vpack.c.b16 %v6853, %v6851
        %v7364 = vpack.c.b16 %v6856, %v6854
        %v7365 = vpack.c.b16 %v6857, %v6855
        %v7366 = vpack.c.b16 %v6860, %v6858
        %v7367 = vpack.c.b16 %v6861, %v6859
        %v7368 = vpack.c.b16 %v6864, %v6862
        %v7369 = vpack.c.b16 %v6865, %v6863
        %v7370 = vpack.c.b16 %v6868, %v6866
        %v7371 = vpack.c.b16 %v6869, %v6867
        %v7372 = vpack.c.b16 %v6872, %v6870
        %v7373 = vpack.c.b16 %v6873, %v6871
        %v7374 = vpack.c.b16 %v6876, %v6874
        %v7375 = vpack.c.b16 %v6877, %v6875
        %v7376 = vpack.c.b16 %v6880, %v6878
        %v7377 = vpack.c.b16 %v6881, %v6879
        %v7378 = vpack.c.b16 %v6884, %v6882
        %v7379 = vpack.c.b16 %v6885, %v6883
        %v7380 = vpack.c.b16 %v6888, %v6886
        %v7381 = vpack.c.b16 %v6889, %v6887
        %v7382 = vpack.c.b16 %v6892, %v6890
        %v7383 = vpack.c.b16 %v6893, %v6891
        %v7384 = vpack.c.b16 %v6896, %v6894
        %v7385 = vpack.c.b16 %v6897, %v6895
        %v7386 = vpack.c.b16 %v6900, %v6898
        %v7387 = vpack.c.b16 %v6901, %v6899
        %v7388 = vpack.c.b16 %v6904, %v6902
        %v7389 = vpack.c.b16 %v6905, %v6903
        %v7390 = vpack.c.b16 %v6908, %v6906
        %v7391 = vpack.c.b16 %v6909, %v6907
        %v7392 = vpack.c.b16 %v6912, %v6910
        %v7393 = vpack.c.b16 %v6913, %v6911
        %v7394 = vpack.c.b16 %v6916, %v6914
        %v7395 = vpack.c.b16 %v6917, %v6915
        %v7396 = vpack.c.b16 %v6920, %v6918
        %v7397 = vpack.c.b16 %v6921, %v6919
        %v7398 = vpack.c.b16 %v6924, %v6922
        %v7399 = vpack.c.b16 %v6925, %v6923
        %v7400 = vpack.c.b16 %v6928, %v6926
        %v7401 = vpack.c.b16 %v6929, %v6927
        %v7402 = vpack.c.b16 %v6932, %v6930
        %v7403 = vpack.c.b16 %v6933, %v6931
        %v7404 = vpack.c.b16 %v6936, %v6934
        %v7405 = vpack.c.b16 %v6937, %v6935
        %v7406 = vpack.c.b16 %v6940, %v6938
        %v7407 = vpack.c.b16 %v6941, %v6939
        %v7408 = vpack.c.b16 %v6944, %v6942
        %v7409 = vpack.c.b16 %v6945, %v6943
        %v7410 = vpack.c.b16 %v6948, %v6946
        %v7411 = vpack.c.b16 %v6949, %v6947
        %v7412 = vpack.c.b16 %v6952, %v6950
        %v7413 = vpack.c.b16 %v6953, %v6951
        %v7414 = vpack.c.b16 %v6956, %v6954
        %v7415 = vpack.c.b16 %v6957, %v6955
        %v7416 = vpack.c.b16 %v6960, %v6958
        %v7417 = vpack.c.b16 %v6961, %v6959
        %v7418 = vpack.c.b16 %v6964, %v6962
        %v7419 = vpack.c.b16 %v6965, %v6963
        %v7420 = vpack.c.b16 %v6968, %v6966
        %v7421 = vpack.c.b16 %v6969, %v6967
        %v7422 = vpack.c.b16 %v6972, %v6970
        %v7423 = vpack.c.b16 %v6973, %v6971
        %v7424 = vpack.c.b16 %v6976, %v6974
        %v7425 = vpack.c.b16 %v6977, %v6975
        %v7426 = vpack.c.b16 %v6980, %v6978
        %v7427 = vpack.c.b16 %v6981, %v6979
        %v7428 = vpack.c.b16 %v6984, %v6982
        %v7429 = vpack.c.b16 %v6985, %v6983
        %v7430 = vpack.c.b16 %v6988, %v6986
        %v7431 = vpack.c.b16 %v6989, %v6987
        %v7432 = vpack.c.b16 %v6992, %v6990
        %v7433 = vpack.c.b16 %v6993, %v6991
        %v7434 = vpack.c.b16 %v6996, %v6994
        %v7435 = vpack.c.b16 %v6997, %v6995
        %v7436 = vpack.c.b16 %v7000, %v6998
        %v7437 = vpack.c.b16 %v7001, %v6999
        %v7438 = vpack.c.b16 %v7004, %v7002
        %v7439 = vpack.c.b16 %v7005, %v7003
        %v7440 = vpack.c.b16 %v7008, %v7006
        %v7441 = vpack.c.b16 %v7009, %v7007
        %v7442 = vpack.c.b16 %v7012, %v7010
        %v7443 = vpack.c.b16 %v7013, %v7011
        %v7444 = vpack.c.b16 %v7016, %v7014
        %v7445 = vpack.c.b16 %v7017, %v7015
        %v7446 = vpack.c.b16 %v7020, %v7018
        %v7447 = vpack.c.b16 %v7021, %v7019
        %v7448 = vpack.c.b16 %v7024, %v7022
        %v7449 = vpack.c.b16 %v7025, %v7023
        %v7450 = vpack.c.b16 %v7028, %v7026
        %v7451 = vpack.c.b16 %v7029, %v7027
        %v7452 = vpack.c.b16 %v7032, %v7030
        %v7453 = vpack.c.b16 %v7033, %v7031
        %v7454 = vpack.c.b16 %v7036, %v7034
        %v7455 = vpack.c.b16 %v7037, %v7035
        %v7456 = vpack.c.b16 %v7040, %v7038
        %v7457 = vpack.c.b16 %v7041, %v7039
        %v7458 = vpack.c.b16 %v7044, %v7042
        %v7459 = vpack.c.b16 %v7045, %v7043
        %v7460 = vpack.c.b16 %v7048, %v7046
        %v7461 = vpack.c.b16 %v7049, %v7047
        %v7462 = vpack.c.b16 %v7052, %v7050
        %v7463 = vpack.c.b16 %v7053, %v7051
        %v7464 = vpack.c.b16 %v7056, %v7054
        %v7465 = vpack.c.b16 %v7057, %v7055
        %v7466 = vpack.c.b16 %v7060, %v7058
        %v7467 = vpack.c.b16 %v7061, %v7059
        %v7468 = vpack.c.b16 %v7064, %v7062
        %v7469 = vpack.c.b16 %v7065, %v7063
        %v7470 = vpack.c.b16 %v7068, %v7066
        %v7471 = vpack.c.b16 %v7069, %v7067
        %v7472 = vpack.c.b16 %v7072, %v7070
        %v7473 = vpack.c.b16 %v7073, %v7071
        %v7474 = vpack.c.b16 %v7076, %v7074
        %v7475 = vpack.c.b16 %v7077, %v7075
        %v7476 = vpack.c.b16 %v7080, %v7078
        %v7477 = vpack.c.b16 %v7081, %v7079
        %v7478 = vpack.c.b16 %v7084, %v7082
        %v7479 = vpack.c.b16 %v7085, %v7083
        %v7480 = vpack.c.b16 %v7088, %v7086
        %v7481 = vpack.c.b16 %v7089, %v7087
        %v7482 = vpack.c.b16 %v7092, %v7090
        %v7483 = vpack.c.b16 %v7093, %v7091
        %v7484 = vpack.c.b16 %v7096, %v7094
        %v7485 = vpack.c.b16 %v7097, %v7095
        %v7486 = vpack.c.b16 %v7100, %v7098
        %v7487 = vpack.c.b16 %v7101, %v7099
        %v7488 = vpack.c.b16 %v7104, %v7102
        %v7489 = vpack.c.b16 %v7105, %v7103
        %v7490 = vpack.c.b16 %v7108, %v7106
        %v7491 = vpack.c.b16 %v7109, %v7107
        %v7492 = vpack.c.b16 %v7112, %v7110
        %v7493 = vpack.c.b16 %v7113, %v7111
        %v7494 = vpack.c.b16 %v7116, %v7114
        %v7495 = vpack.c.b16 %v7117, %v7115
        %v7496 = vpack.c.b16 %v7120, %v7118
        %v7497 = vpack.c.b16 %v7121, %v7119
        %v7498 = vpack.c.b16 %v7124, %v7122
        %v7499 = vpack.c.b16 %v7125, %v7123
        %v7500 = vpack.c.b16 %v7128, %v7126
        %v7501 = vpack.c.b16 %v7129, %v7127
        %v7502 = vpack.c.b16 %v7132, %v7130
        %v7503 = vpack.c.b16 %v7133, %v7131
        %v7504 = vpack.c.b16 %v7136, %v7134
        %v7505 = vpack.c.b16 %v7137, %v7135
        %v7506 = vpack.c.b16 %v7140, %v7138
        %v7507 = vpack.c.b16 %v7141, %v7139
        %v7508 = vpack.c.b16 %v7144, %v7142
        %v7509 = vpack.c.b16 %v7145, %v7143
        %v7510 = vpack.c.b16 %v7148, %v7146
        %v7511 = vpack.c.b16 %v7149, %v7147
        %v7512 = vpack.c.b16 %v7152, %v7150
        %v7513 = vpack.c.b16 %v7153, %v7151
        %v7514 = vpack.c.b16 %v7156, %v7154
        %v7515 = vpack.c.b16 %v7157, %v7155
        %v7516 = vpack.c.b16 %v7160, %v7158
        %v7517 = vpack.c.b16 %v7161, %v7159
        %v7518 = vpack.c.b16 %v7164, %v7162
        %v7519 = vpack.c.b16 %v7165, %v7163
        %v7520 = vpack.c.b16 %v7168, %v7166
        %v7521 = vpack.c.b16 %v7169, %v7167
        %v7522 = vpack.c.b16 %v7172, %v7170
        %v7523 = vpack.c.b16 %v7173, %v7171
        %v7524 = vpack.c.b16 %v7176, %v7174
        %v7525 = vpack.c.b16 %v7177, %v7175
        %v7526 = vpack.c.b16 %v7180, %v7178
        %v7527 = vpack.c.b16 %v7181, %v7179
        %v7528 = vpack.c.b16 %v7184, %v7182
        %v7529 = vpack.c.b16 %v7185, %v7183
        %v7530 = vpack.c.b16 %v7188, %v7186
        %v7531 = vpack.c.b16 %v7189, %v7187
        %v7532 = vpack.c.b16 %v7192, %v7190
        %v7533 = vpack.c.b16 %v7193, %v7191
        %v7534 = vpack.c.b16 %v7196, %v7194
        %v7535 = vpack.c.b16 %v7197, %v7195
        %v7536 = vpack.c.b16 %v7200, %v7198
        %v7537 = vpack.c.b16 %v7201, %v7199
        %v7538 = vpack.c.b16 %v7204, %v7202
        %v7539 = vpack.c.b16 %v7205, %v7203
        %v7540 = vpack.c.b16 %v7208, %v7206
        %v7541 = vpack.c.b16 %v7209, %v7207
        %v7542 = vpack.c.b16 %v7212, %v7210
        %v7543 = vpack.c.b16 %v7213, %v7211
        %v7544 = vpack.c.b16 %v7216, %v7214
        %v7545 = vpack.c.b16 %v7217, %v7215
        %v7546 = vpack.c.b16 %v7220, %v7218
        %v7547 = vpack.c.b16 %v7221, %v7219
        %v7548 = vpack.c.b16 %v7224, %v7222
        %v7549 = vpack.c.b16 %v7225, %v7223
        %v7550 = vpack.c.b16 %v7228, %v7226
        %v7551 = vpack.c.b16 %v7229, %v7227
        %v7552 = vpack.c.b16 %v7232, %v7230
        %v7553 = vpack.c.b16 %v7233, %v7231
        %v7554 = vpack.c.b16 %v7236, %v7234
        %v7555 = vpack.c.b16 %v7237, %v7235
        %v7556 = vpack.c.b16 %v7240, %v7238
        %v7557 = vpack.c.b16 %v7241, %v7239
        %v7558 = vpack.c.b16 %v7244, %v7242
        %v7559 = vpack.c.b16 %v7245, %v7243
        %v7560 = vpack.c.b16 %v7248, %v7246
        %v7561 = vpack.c.b16 %v7249, %v7247
        %v7562 = vpack.c.b16 %v7252, %v7250
        %v7563 = vpack.c.b16 %v7253, %v7251
        %v7564 = vpack.c.b16 %v7256, %v7254
        %v7565 = vpack.c.b16 %v7257, %v7255
        %v7566 = vpack.c.b16 %v7260, %v7258
        %v7567 = vpack.c.b16 %v7261, %v7259
        %v7568 = vpack.c.b16 %v7264, %v7262
        %v7569 = vpack.c.b16 %v7265, %v7263
        %v7570 = vpack.c.b16 %v7268, %v7266
        %v7571 = vpack.c.b16 %v7269, %v7267
        %v7572 = vpack.c.b16 %v7272, %v7270
        %v7573 = vpack.c.b16 %v7273, %v7271
        %v7574 = vpack.c.b16 %v7276, %v7274
        %v7575 = vpack.c.b16 %v7277, %v7275
        %v7576 = vpack.c.b16 %v7280, %v7278
        %v7577 = vpack.c.b16 %v7281, %v7279
        %v7578 = vpack.c.b16 %v7284, %v7282
        %v7579 = vpack.c.b16 %v7285, %v7283
        %v7580 = vpack.c.b16 %v7288, %v7286
        %v7581 = vpack.c.b16 %v7289, %v7287
        %v7582 = vpack.c.b16 %v7292, %v7290
        %v7583 = vpack.c.b16 %v7293, %v7291
        %v7584 = vpack.c.b16 %v7296, %v7294
        %v7585 = vpack.c.b16 %v7297, %v7295
        %v7586 = vpack.c.b16 %v7300, %v7298
        %v7587 = vpack.c.b16 %v7301, %v7299
        %v7588 = vpack.c.b16 %v7304, %v7302
        %v7589 = vpack.c.b16 %v7305, %v7303
        %v7590 = vpack.c.b16 %v7308, %v7306
        %v7591 = vpack.c.b16 %v7309, %v7307
        %v7592 = vpack.c.b16 %v7312, %v7310
        %v7593 = vpack.c.b16 %v7313, %v7311
        %v7594 = vpack.c.b16 %v7316, %v7314
        %v7595 = vpack.c.b16 %v7317, %v7315
        %v7596 = vpack.c.b16 %v7320, %v7318
        %v7597 = vpack.c.b16 %v7321, %v7319
        %v7598 = vpack.c.b16 %v7324, %v7322
        %v7599 = vpack.c.b16 %v7325, %v7323
        %v7600 = vpack.c.b16 %v7328, %v7326
        %v7601 = vpack.c.b16 %v7329, %v7327
        %v7602 = vpack.c.b16 %v7332, %v7330
        %v7603 = vpack.c.b16 %v7333, %v7331
        %v7604 = vpack.c.b16 %v7336, %v7334
        %v7605 = vpack.c.b16 %v7337, %v7335
        %v7606 = vpack.c.b16 %v7340, %v7338
        %v7607 = vpack.c.b16 %v7341, %v7339
        %v7608 = vpack.c.b16 %v7344, %v7342
        %v7609 = vpack.c.b16 %v7345, %v7343
        %v7610 = vpack.c.b16 %v7348, %v7346
        %v7611 = vpack.c.b16 %v7349, %v7347
        %v7612 = vpack.c.b16 %v7352, %v7350
        %v7613 = vpack.c.b16 %v7353, %v7351
        %v7614 = vpack.c.b16 %v7356, %v7354
        %v7615 = vpack.c.b16 %v7357, %v7355
        %v7616 = vpack.c.b16 %v7360, %v7358
        %v7617 = vpack.c.b16 %v7361, %v7359
        %7874 = vmatprep.subr.bf16.mxu0 %v7377
        %7875 = vmatpush1.bf16.msra.mxu0 %v7376
        %7876 = vmatprep.subr.bf16.mxu0 %v7375
        %7877 = vmatpush1.bf16.msra.mxu0 %v7374
        %7878 = vmatprep.subr.bf16.mxu0 %v7373
        %7879 = vmatpush1.bf16.msra.mxu0 %v7372
        %7880 = vmatprep.subr.bf16.mxu0 %v7371
        %7881 = vmatpush1.bf16.msra.mxu0 %v7370
        %7882 = vmatprep.subr.bf16.mxu0 %v7369
        %7883 = vmatpush1.bf16.msra.mxu0 %v7368
        %7884 = vmatprep.subr.bf16.mxu0 %v7367
        %7885 = vmatpush1.bf16.msra.mxu0 %v7366
        %7886 = vmatprep.subr.bf16.mxu0 %v7365
        %7887 = vmatpush1.bf16.msra.mxu0 %v7364
        %7888 = vmatprep.subr.bf16.mxu0 %v7363
        %7889 = vmatpush1.bf16.msra.mxu0 %v7362
        %7890 = vmatprep.subr.bf16.mxu0 %v7393
        %7891 = vmatpush2.bf16.msra.mxu0 %v7392
        %7892 = vmatprep.subr.bf16.mxu0 %v7391
        %7893 = vmatpush2.bf16.msra.mxu0 %v7390
        %7894 = vmatprep.subr.bf16.mxu0 %v7389
        %7895 = vmatpush2.bf16.msra.mxu0 %v7388
        %7896 = vmatprep.subr.bf16.mxu0 %v7387
        %7897 = vmatpush2.bf16.msra.mxu0 %v7386
        %7898 = vmatprep.subr.bf16.mxu0 %v7385
        %7899 = vmatpush2.bf16.msra.mxu0 %v7384
        %7900 = vmatprep.subr.bf16.mxu0 %v7383
        %7901 = vmatpush2.bf16.msra.mxu0 %v7382
        %7902 = vmatprep.subr.bf16.mxu0 %v7381
        %7903 = vmatpush2.bf16.msra.mxu0 %v7380
        %7904 = vmatprep.subr.bf16.mxu0 %v7379
        %7905 = vmatpush2.bf16.msra.mxu0 %v7378
        %7906 = vmatprep.mubr.bf16.mxu0 %v6311
        %7907 = vmatmul.mubr.bf16.gmra.mxu0 %v6310
        %v7908 = vpop.f32.mrf.mxu0
        %v7909 = vadd.f32 %v6587, %v7908
        %v7910 = vpop.f32.mrf.mxu0
        %v7911 = vadd.f32 %v6591, %v7910
        %v7912 = vpop.f32.mrf.mxu0
        %v7913 = vadd.f32 %v6587, %v7912
        %v7914 = vpop.f32.mrf.mxu0
        %v7915 = vadd.f32 %v6591, %v7914
        %7916 = vdwg.mxu0
        %7917 = vmatprep.subr.bf16.mxu0 %v7409
        %7918 = vmatpush1.bf16.msra.mxu0 %v7408
        %7919 = vmatprep.subr.bf16.mxu0 %v7407
        %7920 = vmatpush1.bf16.msra.mxu0 %v7406
        %7921 = vmatprep.subr.bf16.mxu0 %v7405
        %7922 = vmatpush1.bf16.msra.mxu0 %v7404
        %7923 = vmatprep.subr.bf16.mxu0 %v7403
        %7924 = vmatpush1.bf16.msra.mxu0 %v7402
        %7925 = vmatprep.subr.bf16.mxu0 %v7401
        %7926 = vmatpush1.bf16.msra.mxu0 %v7400
        %7927 = vmatprep.subr.bf16.mxu0 %v7399
        %7928 = vmatpush1.bf16.msra.mxu0 %v7398
        %7929 = vmatprep.subr.bf16.mxu0 %v7397
        %7930 = vmatpush1.bf16.msra.mxu0 %v7396
        %7931 = vmatprep.subr.bf16.mxu0 %v7395
        %7932 = vmatpush1.bf16.msra.mxu0 %v7394
        %7933 = vmatprep.subr.bf16.mxu0 %v7425
        %7934 = vmatpush2.bf16.msra.mxu0 %v7424
        %7935 = vmatprep.subr.bf16.mxu0 %v7423
        %7936 = vmatpush2.bf16.msra.mxu0 %v7422
        %7937 = vmatprep.subr.bf16.mxu0 %v7421
        %7938 = vmatpush2.bf16.msra.mxu0 %v7420
        %7939 = vmatprep.subr.bf16.mxu0 %v7419
        %7940 = vmatpush2.bf16.msra.mxu0 %v7418
        %7941 = vmatprep.subr.bf16.mxu0 %v7417
        %7942 = vmatpush2.bf16.msra.mxu0 %v7416
        %7943 = vmatprep.subr.bf16.mxu0 %v7415
        %7944 = vmatpush2.bf16.msra.mxu0 %v7414
        %7945 = vmatprep.subr.bf16.mxu0 %v7413
        %7946 = vmatpush2.bf16.msra.mxu0 %v7412
        %7947 = vmatprep.subr.bf16.mxu0 %v7411
        %7948 = vmatpush2.bf16.msra.mxu0 %v7410
        %7949 = vmatprep.mubr.bf16.mxu0 %v6313
        %7950 = vmatmul.mubr.bf16.gmra.mxu0 %v6312
        %v7951 = vpop.f32.mrf.mxu0
        %v7952 = vadd.f32 %v7909, %v7951
        %v7953 = vpop.f32.mrf.mxu0
        %v7954 = vadd.f32 %v7911, %v7953
        %v7955 = vpop.f32.mrf.mxu0
        %v7956 = vadd.f32 %v7913, %v7955
        %v7957 = vpop.f32.mrf.mxu0
        %v7958 = vadd.f32 %v7915, %v7957
        %7959 = vdwg.mxu0
        %7960 = vmatprep.subr.bf16.mxu0 %v7441
        %7961 = vmatpush1.bf16.msra.mxu0 %v7440
        %7962 = vmatprep.subr.bf16.mxu0 %v7439
        %7963 = vmatpush1.bf16.msra.mxu0 %v7438
        %7964 = vmatprep.subr.bf16.mxu0 %v7437
        %7965 = vmatpush1.bf16.msra.mxu0 %v7436
        %7966 = vmatprep.subr.bf16.mxu0 %v7435
        %7967 = vmatpush1.bf16.msra.mxu0 %v7434
        %7968 = vmatprep.subr.bf16.mxu0 %v7433
        %7969 = vmatpush1.bf16.msra.mxu0 %v7432
        %7970 = vmatprep.subr.bf16.mxu0 %v7431
        %7971 = vmatpush1.bf16.msra.mxu0 %v7430
        %7972 = vmatprep.subr.bf16.mxu0 %v7429
        %7973 = vmatpush1.bf16.msra.mxu0 %v7428
        %7974 = vmatprep.subr.bf16.mxu0 %v7427
        %7975 = vmatpush1.bf16.msra.mxu0 %v7426
        %7976 = vmatprep.subr.bf16.mxu0 %v7457
        %7977 = vmatpush2.bf16.msra.mxu0 %v7456
        %7978 = vmatprep.subr.bf16.mxu0 %v7455
        %7979 = vmatpush2.bf16.msra.mxu0 %v7454
        %7980 = vmatprep.subr.bf16.mxu0 %v7453
        %7981 = vmatpush2.bf16.msra.mxu0 %v7452
        %7982 = vmatprep.subr.bf16.mxu0 %v7451
        %7983 = vmatpush2.bf16.msra.mxu0 %v7450
        %7984 = vmatprep.subr.bf16.mxu0 %v7449
        %7985 = vmatpush2.bf16.msra.mxu0 %v7448
        %7986 = vmatprep.subr.bf16.mxu0 %v7447
        %7987 = vmatpush2.bf16.msra.mxu0 %v7446
        %7988 = vmatprep.subr.bf16.mxu0 %v7445
        %7989 = vmatpush2.bf16.msra.mxu0 %v7444
        %7990 = vmatprep.subr.bf16.mxu0 %v7443
        %7991 = vmatpush2.bf16.msra.mxu0 %v7442
        %7992 = vmatprep.mubr.bf16.mxu0 %v6315
        %7993 = vmatmul.mubr.bf16.gmra.mxu0 %v6314
        %v7994 = vpop.f32.mrf.mxu0
        %v7995 = vadd.f32 %v7952, %v7994
        %v7996 = vpop.f32.mrf.mxu0
        %v7997 = vadd.f32 %v7954, %v7996
        %v7998 = vpop.f32.mrf.mxu0
        %v7999 = vadd.f32 %v7956, %v7998
        %v8000 = vpop.f32.mrf.mxu0
        %v8001 = vadd.f32 %v7958, %v8000
        %8002 = vdwg.mxu0
        %8003 = vmatprep.subr.bf16.mxu0 %v7473
        %8004 = vmatpush1.bf16.msra.mxu0 %v7472
        %8005 = vmatprep.subr.bf16.mxu0 %v7471
        %8006 = vmatpush1.bf16.msra.mxu0 %v7470
        %8007 = vmatprep.subr.bf16.mxu0 %v7469
        %8008 = vmatpush1.bf16.msra.mxu0 %v7468
        %8009 = vmatprep.subr.bf16.mxu0 %v7467
        %8010 = vmatpush1.bf16.msra.mxu0 %v7466
        %8011 = vmatprep.subr.bf16.mxu0 %v7465
        %8012 = vmatpush1.bf16.msra.mxu0 %v7464
        %8013 = vmatprep.subr.bf16.mxu0 %v7463
        %8014 = vmatpush1.bf16.msra.mxu0 %v7462
        %8015 = vmatprep.subr.bf16.mxu0 %v7461
        %8016 = vmatpush1.bf16.msra.mxu0 %v7460
        %8017 = vmatprep.subr.bf16.mxu0 %v7459
        %8018 = vmatpush1.bf16.msra.mxu0 %v7458
        %8019 = vmatprep.subr.bf16.mxu0 %v7489
        %8020 = vmatpush2.bf16.msra.mxu0 %v7488
        %8021 = vmatprep.subr.bf16.mxu0 %v7487
        %8022 = vmatpush2.bf16.msra.mxu0 %v7486
        %8023 = vmatprep.subr.bf16.mxu0 %v7485
        %8024 = vmatpush2.bf16.msra.mxu0 %v7484
        %8025 = vmatprep.subr.bf16.mxu0 %v7483
        %8026 = vmatpush2.bf16.msra.mxu0 %v7482
        %8027 = vmatprep.subr.bf16.mxu0 %v7481
        %8028 = vmatpush2.bf16.msra.mxu0 %v7480
        %8029 = vmatprep.subr.bf16.mxu0 %v7479
        %8030 = vmatpush2.bf16.msra.mxu0 %v7478
        %8031 = vmatprep.subr.bf16.mxu0 %v7477
        %8032 = vmatpush2.bf16.msra.mxu0 %v7476
        %8033 = vmatprep.subr.bf16.mxu0 %v7475
        %8034 = vmatpush2.bf16.msra.mxu0 %v7474
        %8035 = vmatprep.mubr.bf16.mxu0 %v6317
        %8036 = vmatmul.mubr.bf16.gmra.mxu0 %v6316
        %v8037 = vpop.f32.mrf.mxu0
        %v8038 = vadd.f32 %v7995, %v8037
        %v8039 = vpop.f32.mrf.mxu0
        %v8040 = vadd.f32 %v7997, %v8039
        %v8041 = vpop.f32.mrf.mxu0
        %v8042 = vadd.f32 %v7999, %v8041
        %v8043 = vpop.f32.mrf.mxu0
        %v8044 = vadd.f32 %v8001, %v8043
        %8045 = vdwg.mxu0
        %8046 = vmatprep.subr.bf16.mxu0 %v7505
        %8047 = vmatpush1.bf16.msra.mxu0 %v7504
        %8048 = vmatprep.subr.bf16.mxu0 %v7503
        %8049 = vmatpush1.bf16.msra.mxu0 %v7502
        %8050 = vmatprep.subr.bf16.mxu0 %v7501
        %8051 = vmatpush1.bf16.msra.mxu0 %v7500
        %8052 = vmatprep.subr.bf16.mxu0 %v7499
        %8053 = vmatpush1.bf16.msra.mxu0 %v7498
        %8054 = vmatprep.subr.bf16.mxu0 %v7497
        %8055 = vmatpush1.bf16.msra.mxu0 %v7496
        %8056 = vmatprep.subr.bf16.mxu0 %v7495
        %8057 = vmatpush1.bf16.msra.mxu0 %v7494
        %8058 = vmatprep.subr.bf16.mxu0 %v7493
        %8059 = vmatpush1.bf16.msra.mxu0 %v7492
        %8060 = vmatprep.subr.bf16.mxu0 %v7491
        %8061 = vmatpush1.bf16.msra.mxu0 %v7490
        %8062 = vmatprep.subr.bf16.mxu0 %v7521
        %8063 = vmatpush2.bf16.msra.mxu0 %v7520
        %8064 = vmatprep.subr.bf16.mxu0 %v7519
        %8065 = vmatpush2.bf16.msra.mxu0 %v7518
        %8066 = vmatprep.subr.bf16.mxu0 %v7517
        %8067 = vmatpush2.bf16.msra.mxu0 %v7516
        %8068 = vmatprep.subr.bf16.mxu0 %v7515
        %8069 = vmatpush2.bf16.msra.mxu0 %v7514
        %8070 = vmatprep.subr.bf16.mxu0 %v7513
        %8071 = vmatpush2.bf16.msra.mxu0 %v7512
        %8072 = vmatprep.subr.bf16.mxu0 %v7511
        %8073 = vmatpush2.bf16.msra.mxu0 %v7510
        %8074 = vmatprep.subr.bf16.mxu0 %v7509
        %8075 = vmatpush2.bf16.msra.mxu0 %v7508
        %8076 = vmatprep.subr.bf16.mxu0 %v7507
        %8077 = vmatpush2.bf16.msra.mxu0 %v7506
        %8078 = vmatprep.mubr.bf16.mxu0 %v6319
        %8079 = vmatmul.mubr.bf16.gmra.mxu0 %v6318
        %v8080 = vpop.f32.mrf.mxu0
        %v8081 = vadd.f32 %v8038, %v8080
        %v8082 = vpop.f32.mrf.mxu0
        %v8083 = vadd.f32 %v8040, %v8082
        %v8084 = vpop.f32.mrf.mxu0
        %v8085 = vadd.f32 %v8042, %v8084
        %v8086 = vpop.f32.mrf.mxu0
        %v8087 = vadd.f32 %v8044, %v8086
        %8088 = vdwg.mxu0
        %8089 = vmatprep.subr.bf16.mxu0 %v7537
        %8090 = vmatpush1.bf16.msra.mxu0 %v7536
        %8091 = vmatprep.subr.bf16.mxu0 %v7535
        %8092 = vmatpush1.bf16.msra.mxu0 %v7534
        %8093 = vmatprep.subr.bf16.mxu0 %v7533
        %8094 = vmatpush1.bf16.msra.mxu0 %v7532
        %8095 = vmatprep.subr.bf16.mxu0 %v7531
        %8096 = vmatpush1.bf16.msra.mxu0 %v7530
        %8097 = vmatprep.subr.bf16.mxu0 %v7529
        %8098 = vmatpush1.bf16.msra.mxu0 %v7528
        %8099 = vmatprep.subr.bf16.mxu0 %v7527
        %8100 = vmatpush1.bf16.msra.mxu0 %v7526
        %8101 = vmatprep.subr.bf16.mxu0 %v7525
        %8102 = vmatpush1.bf16.msra.mxu0 %v7524
        %8103 = vmatprep.subr.bf16.mxu0 %v7523
        %8104 = vmatpush1.bf16.msra.mxu0 %v7522
        %8105 = vmatprep.subr.bf16.mxu0 %v7553
        %8106 = vmatpush2.bf16.msra.mxu0 %v7552
        %8107 = vmatprep.subr.bf16.mxu0 %v7551
        %8108 = vmatpush2.bf16.msra.mxu0 %v7550
        %8109 = vmatprep.subr.bf16.mxu0 %v7549
        %8110 = vmatpush2.bf16.msra.mxu0 %v7548
        %8111 = vmatprep.subr.bf16.mxu0 %v7547
        %8112 = vmatpush2.bf16.msra.mxu0 %v7546
        %8113 = vmatprep.subr.bf16.mxu0 %v7545
        %8114 = vmatpush2.bf16.msra.mxu0 %v7544
        %8115 = vmatprep.subr.bf16.mxu0 %v7543
        %8116 = vmatpush2.bf16.msra.mxu0 %v7542
        %8117 = vmatprep.subr.bf16.mxu0 %v7541
        %8118 = vmatpush2.bf16.msra.mxu0 %v7540
        %8119 = vmatprep.subr.bf16.mxu0 %v7539
        %8120 = vmatpush2.bf16.msra.mxu0 %v7538
        %8121 = vmatprep.mubr.bf16.mxu0 %v6321
        %8122 = vmatmul.mubr.bf16.gmra.mxu0 %v6320
        %v8123 = vpop.f32.mrf.mxu0
        %v8124 = vadd.f32 %v8081, %v8123
        %v8125 = vpop.f32.mrf.mxu0
        %v8126 = vadd.f32 %v8083, %v8125
        %v8127 = vpop.f32.mrf.mxu0
        %v8128 = vadd.f32 %v8085, %v8127
        %v8129 = vpop.f32.mrf.mxu0
        %v8130 = vadd.f32 %v8087, %v8129
        %8131 = vdwg.mxu0
        %8132 = vmatprep.subr.bf16.mxu0 %v7569
        %8133 = vmatpush1.bf16.msra.mxu0 %v7568
        %8134 = vmatprep.subr.bf16.mxu0 %v7567
        %8135 = vmatpush1.bf16.msra.mxu0 %v7566
        %8136 = vmatprep.subr.bf16.mxu0 %v7565
        %8137 = vmatpush1.bf16.msra.mxu0 %v7564
        %8138 = vmatprep.subr.bf16.mxu0 %v7563
        %8139 = vmatpush1.bf16.msra.mxu0 %v7562
        %8140 = vmatprep.subr.bf16.mxu0 %v7561
        %8141 = vmatpush1.bf16.msra.mxu0 %v7560
        %8142 = vmatprep.subr.bf16.mxu0 %v7559
        %8143 = vmatpush1.bf16.msra.mxu0 %v7558
        %8144 = vmatprep.subr.bf16.mxu0 %v7557
        %8145 = vmatpush1.bf16.msra.mxu0 %v7556
        %8146 = vmatprep.subr.bf16.mxu0 %v7555
        %8147 = vmatpush1.bf16.msra.mxu0 %v7554
        %8148 = vmatprep.subr.bf16.mxu0 %v7585
        %8149 = vmatpush2.bf16.msra.mxu0 %v7584
        %8150 = vmatprep.subr.bf16.mxu0 %v7583
        %8151 = vmatpush2.bf16.msra.mxu0 %v7582
        %8152 = vmatprep.subr.bf16.mxu0 %v7581
        %8153 = vmatpush2.bf16.msra.mxu0 %v7580
        %8154 = vmatprep.subr.bf16.mxu0 %v7579
        %8155 = vmatpush2.bf16.msra.mxu0 %v7578
        %8156 = vmatprep.subr.bf16.mxu0 %v7577
        %8157 = vmatpush2.bf16.msra.mxu0 %v7576
        %8158 = vmatprep.subr.bf16.mxu0 %v7575
        %8159 = vmatpush2.bf16.msra.mxu0 %v7574
        %8160 = vmatprep.subr.bf16.mxu0 %v7573
        %8161 = vmatpush2.bf16.msra.mxu0 %v7572
        %8162 = vmatprep.subr.bf16.mxu0 %v7571
        %8163 = vmatpush2.bf16.msra.mxu0 %v7570
        %8164 = vmatprep.mubr.bf16.mxu0 %v6323
        %8165 = vmatmul.mubr.bf16.gmra.mxu0 %v6322
        %v8166 = vpop.f32.mrf.mxu0
        %v8167 = vadd.f32 %v8124, %v8166
        %v8168 = vpop.f32.mrf.mxu0
        %v8169 = vadd.f32 %v8126, %v8168
        %v8170 = vpop.f32.mrf.mxu0
        %v8171 = vadd.f32 %v8128, %v8170
        %v8172 = vpop.f32.mrf.mxu0
        %v8173 = vadd.f32 %v8130, %v8172
        %8174 = vdwg.mxu0
        %8175 = vmatprep.subr.bf16.mxu0 %v7601
        %8176 = vmatpush1.bf16.msra.mxu0 %v7600
        %8177 = vmatprep.subr.bf16.mxu0 %v7599
        %8178 = vmatpush1.bf16.msra.mxu0 %v7598
        %8179 = vmatprep.subr.bf16.mxu0 %v7597
        %8180 = vmatpush1.bf16.msra.mxu0 %v7596
        %8181 = vmatprep.subr.bf16.mxu0 %v7595
        %8182 = vmatpush1.bf16.msra.mxu0 %v7594
        %8183 = vmatprep.subr.bf16.mxu0 %v7593
        %8184 = vmatpush1.bf16.msra.mxu0 %v7592
        %8185 = vmatprep.subr.bf16.mxu0 %v7591
        %8186 = vmatpush1.bf16.msra.mxu0 %v7590
        %8187 = vmatprep.subr.bf16.mxu0 %v7589
        %8188 = vmatpush1.bf16.msra.mxu0 %v7588
        %8189 = vmatprep.subr.bf16.mxu0 %v7587
        %8190 = vmatpush1.bf16.msra.mxu0 %v7586
        %8191 = vmatprep.subr.bf16.mxu0 %v7617
        %8192 = vmatpush2.bf16.msra.mxu0 %v7616
        %8193 = vmatprep.subr.bf16.mxu0 %v7615
        %8194 = vmatpush2.bf16.msra.mxu0 %v7614
        %8195 = vmatprep.subr.bf16.mxu0 %v7613
        %8196 = vmatpush2.bf16.msra.mxu0 %v7612
        %8197 = vmatprep.subr.bf16.mxu0 %v7611
        %8198 = vmatpush2.bf16.msra.mxu0 %v7610
        %8199 = vmatprep.subr.bf16.mxu0 %v7609
        %8200 = vmatpush2.bf16.msra.mxu0 %v7608
        %8201 = vmatprep.subr.bf16.mxu0 %v7607
        %8202 = vmatpush2.bf16.msra.mxu0 %v7606
        %8203 = vmatprep.subr.bf16.mxu0 %v7605
        %8204 = vmatpush2.bf16.msra.mxu0 %v7604
        %8205 = vmatprep.subr.bf16.mxu0 %v7603
        %8206 = vmatpush2.bf16.msra.mxu0 %v7602
        %8207 = vmatprep.mubr.bf16.mxu0 %v6325
        %8208 = vmatmul.mubr.bf16.gmra.mxu0 %v6324
        %v8209 = vpop.f32.mrf.mxu0
        %v8210 = vadd.f32 %v8167, %v8209
        %v8211 = vpop.f32.mrf.mxu0
        %v8212 = vadd.f32 %v8169, %v8211
        %v8213 = vpop.f32.mrf.mxu0
        %v8214 = vadd.f32 %v8171, %v8213
        %v8215 = vpop.f32.mrf.mxu0
        %v8216 = vadd.f32 %v8173, %v8215
        %8217 = vdwg.mxu0
        %v8218 = vadd.f32 %v4273, %v8210
        %v8219 = vadd.f32 %v4274, %v8212
        %v8220 = vadd.f32 %v4275, %v8214
        %v8221 = vadd.f32 %v4276, %v8216
        %v8222 = vld [vmem:[%s17] sm:$0x3]
        %v8223 = vld [vmem:[%s18] sm:$0x3]
        %v8224 = vsel %vm1019, %v8219, 0.0
        %v8225 = vadd.f32 %v8218, %v8224
        %8226 = vadd.xlane.f32.xlu0 %v8225
        %v8227 = vpop.xlane.xlu0 %8226
        %v8228 = vsel %vm1019, %v8221, 0.0
        %v8229 = vadd.f32 %v8220, %v8228
        %8230 = vadd.xlane.f32.xlu0 %v8229
        %v8231 = vpop.xlane.xlu0 %8230
        %v8232 = vmul.f32 %v8227, %v4218
        %v8233 = vmul.f32 %v8231, %v4218
        %v8234 = vsub.f32 %v8218, %v8232
        %v8235 = vsub.f32 %v8219, %v8232
        %v8236 = vsub.f32 %v8220, %v8233
        %v8237 = vsub.f32 %v8221, %v8233
        %v8238 = vmul.f32 %v8234, %v8234
        %v8239 = vmul.f32 %v8235, %v8235
        %v8240 = vmul.f32 %v8236, %v8236
        %v8241 = vmul.f32 %v8237, %v8237
        %v8242 = vsel %vm1019, %v8239, 0.0
        %v8243 = vadd.f32 %v8238, %v8242
        %8244 = vadd.xlane.f32.xlu0 %v8243
        %v8245 = vpop.xlane.xlu0 %8244
        %v8246 = vsel %vm1019, %v8241, 0.0
        %v8247 = vadd.f32 %v8240, %v8246
        %8248 = vadd.xlane.f32.xlu0 %v8247
        %v8249 = vpop.xlane.xlu0 %8248
        %v8250 = vmul.f32 %v8245, %v4218
        %v8251 = vmul.f32 %v8249, %v4218
        %v8252 = vadd.f32 %v8250, 1e-05
        %v8253 = vadd.f32 %v8251, 1e-05
        %v8254 = vrsqrt.pop %v8252
        %v8255 = vrsqrt.pop %v8253
        %v8256 = vmul.f32 %v8234, %v8254
        %v8257 = vmul.f32 %v8235, %v8254
        %v8258 = vmul.f32 %v8236, %v8255
        %v8259 = vmul.f32 %v8237, %v8255
        %v8261 = vlaneseq
        %v8262 = vshrl.u32 %v8261, 7
        %v8263 = vsub.s32 0, %v8262
        %v8264 = vrot.slane %v8222, %v8263
        %v8265 = vlaneseq
        %v8266 = vshrl.u32 %v8265, 7
        %v8267 = vsub.s32 1, %v8266
        %v8268 = vrot.slane %v8222, %v8267
        %v8271 = vmul.f32 %v8256, %v8264
        %v8272 = vmul.f32 %v8257, %v8268
        %v8273 = vmul.f32 %v8258, %v8264
        %v8274 = vmul.f32 %v8259, %v8268
        %v8276 = vlaneseq
        %v8277 = vshrl.u32 %v8276, 7
        %v8278 = vsub.s32 0, %v8277
        %v8279 = vrot.slane %v8223, %v8278
        %v8280 = vlaneseq
        %v8281 = vshrl.u32 %v8280, 7
        %v8282 = vsub.s32 1, %v8281
        %v8283 = vrot.slane %v8223, %v8282
        %v8286 = vadd.f32 %v8271, %v8279
        %v8287 = vadd.f32 %v8272, %v8283
        %v8288 = vadd.f32 %v8273, %v8279
        %v8289 = vadd.f32 %v8274, %v8283
        %v8290 = vld [vmem:[%s19] sm:$0x3]
        %v8292 = vlaneseq
        %v8293 = vshrl.u32 %v8292, 7
        %v8294 = vsub.s32 0, %v8293
        %v8295 = vrot.slane %v8290, %v8294
        %v8296 = vlaneseq
        %v8297 = vshrl.u32 %v8296, 7
        %v8298 = vsub.s32 1, %v8297
        %v8299 = vrot.slane %v8290, %v8298
        %v8302 = vmul.f32 %v8286, %v8295
        %v8303 = vmul.f32 %v8287, %v8299
        %v8304 = vmul.f32 %v8288, %v8295
        %v8305 = vmul.f32 %v8289, %v8299
        %v8306 = vsel %vm1019, %v8303, 0.0
        %v8307 = vadd.f32 %v8302, %v8306
        %8308 = vadd.xlane.f32.xlu0 %v8307
        %v8309 = vpop.xlane.xlu0 %8308
        %v8310 = vsel %vm1019, %v8305, 0.0
        %v8311 = vadd.f32 %v8304, %v8310
        %8312 = vadd.xlane.f32.xlu0 %v8311
        %v8313 = vpop.xlane.xlu0 %8312
        %v8314 = vld [vmem:[#allocation2] sm:$0x1]
        %v8316 = vlaneseq
        %v8317 = vshrl.u32 %v8316, 7
        %v8318 = vsub.s32 0, %v8317
        %v8319 = vrot.slane %v8314, %v8318
        %8320 = vset.pattern.permute.xlu0 0
        %8321 = vperm.xlu0 %8320, %v8319
        %v8322 = vpop.permute.xlu0 %8321
        %v8324 = vadd.f32 %v8309, %v8322
        %v8325 = vadd.f32 %v8313, %v8322
        %v8328 = vlaneseq
        %v8329 = vand.u32 %v8328, 127
        %v8330 = vlaneseq
        %v8331 = vshrl.u32 %v8330, 7
        %v8332 = vsub.s32 %v8329, %v8331
        %v8333 = vrot.slane %v8324, %v8332
        %v8334 = vlaneseq
        %v8335 = vshrl.u32 %v8334, 7
        %v8336 = vsub.s32 %v8329, %v8335
        %v8337 = vrot.slane %v8325, %v8336
        %vm8338 = vcmask 1041409
        %v8339 = vsel %vm8338, %v8337, %v8333
        %vm8341 = vcmask 58368
        %8342 = vst.msk [vmem:[%s802] sm:$0x3] %vm8341, %v8339
        %s8343 = sand.u32 %s499, 1
        %s8344 = scalar_lea.sflag [#allocation5], %s8343
        %s8345 = sand.u32 %s499, 1
        %s8346 = smul.addr %s8345, 2
        %s8347 = scalar_lea.vmem [#allocation20], %s8346
        // Predicated region
        $region145: #{tpu_custom_call.1} parent=103 // pred_check
          %p8348 = pneg %p509
        $region146: #{tpu_custom_call.1} parent=103 // pred_check_branch
          %8350 = sbr.rel (%p8348) target = $region148
        $region147: #{tpu_custom_call.1} parent=103 // pred_region
          %s8352 = ssub.s32 32, 32
          %8353 = vsyncadd %s8344, %s8352
          %s8354 = smul.addr %s45, 32
          %s8355 = scalar_lea.hbm %s21, %s8354
          %s8357 = sshll.u32 %s8347, 4
          %s8358 = int_to_ptr.vmem [resolvable:$true] %s8357
          %8360 = dma.vmem_to_hbm [thread:$0]  %s8358, 32, %s8355, %s8344
        $region148: #{tpu_custom_call.1} parent=103 // pred_fallthru
          _
      $region104: #{tpu_custom_call.1} parent=5 // pred_fallthru
        _
      %p8361 = scmp.le.s32.totalorder 2, %s40
      // Predicated region
      $region149: #{tpu_custom_call.1} parent=5 // pred_check
        %p8362 = pneg %p8361
      $region150: #{tpu_custom_call.1} parent=5 // pred_check_branch
        %8364 = sbr.rel (%p8362) target = $region152
      $region151: #{tpu_custom_call.1} parent=5 // pred_region
        %s8365 = ssub.s32 %s40, 2
        // Predicated region
        $region153: #{tpu_custom_call.1} parent=151 // pred_check
          %p8366 = pneg %p515
        $region154: #{tpu_custom_call.1} parent=151 // pred_check_branch
          %8368 = sbr.rel (%p8366) target = $region156
        $region155: #{tpu_custom_call.1} parent=151 // pred_region
          %s8369 = sand.u32 %s500, 1
          %s8370 = scalar_lea.sflag [#allocation5], %s8369
          %s8371 = sand.u32 %s500, 1
          %s8372 = smul.addr %s8371, 2
          %s8373 = scalar_lea.vmem [#allocation20], %s8372
          %8374 = dma.done %s8370, 32
        $region156: #{tpu_custom_call.1} parent=151 // pred_fallthru
          _
      $region152: #{tpu_custom_call.1} parent=5 // pred_fallthru
        _
    $region6: #{tpu_custom_call.1} parent=1 // loop_footer
      %s44 = sadd.s32 1, %s40
    $region7: #{tpu_custom_call.1} parent=1 // loop_footer_branch
      %39 = sbr.rel target = $region3
    $region8: #{tpu_custom_call.1} parent=1 // loop_exit
      _
    %8375 = vsyncpa [#allocation4], 1
    %s8376 = scalar_lea.sflag [#allocation4], 1
    %8377 = vsyncpa %s8376, 1
    %8378 = vsyncpa [#allocation7], 1
    %8379 = vsyncpa [#allocation10], 1
    %8380 = vsyncpa [#allocation13], 1
    %8381 = vsyncpa [#allocation16], 1
    %8382 = vsyncpa [#allocation19], 1
    %8383 = vsyncpa [#allocation5], 1
    %s8384 = scalar_lea.sflag [#allocation5], 1
    %8385 = vsyncpa %s8384, 1

</llo_original>
